<compile_context>
chip_gen: v7x
topology: tpu7x:2x2x1
jax: 0.10.0
libtpu: 0.0.40
codegen_flags: <defaults>
</compile_context>

<pallas_src>
import functools

import jax
import jax.numpy as jnp
from jax.experimental import pallas as pl
from jax.experimental.pallas import tpu as pltpu

F32 = jnp.float32
BF16 = jnp.bfloat16
MiB = 1024 * 1024


# ------------------------------ kernels -------------------------------------
def _kernel_a(a_l_ref, gn_ref, f_l_ref, f_g2_ref, b1_ref, x_d_ref, f_e_ref):
    """Per node row-tile i (bf16 x bf16 -> f32 accumulation):
         x_d[i] = relu(A_L[i,:] @ F_L + b1)     (GCNConv on L, ReLU)            -> bf16
         F_E[i] = Gn[i,:] @ F_G2                (LaplacianFeatures row; W2 is
                                                 pre-folded into F_G2)          -> bf16
    """
    x_d = jnp.dot(a_l_ref[...], f_l_ref[...], preferred_element_type=F32) + b1_ref[...]
    x_d_ref[...] = jnp.maximum(x_d, 0.0).astype(BF16)
    f_e_ref[...] = jnp.dot(gn_ref[...], f_g2_ref[...],
                           preferred_element_type=F32).astype(BF16)


def _kernel_b(a_e_ref, f_e_ref, pre_h_ref, x_in_ref,
              b2_ref, wm1g_ref, wm2_ref, bm2_ref, out_ref):
    """Per node row-tile i:
         x_g2 = relu(A_E[i,:] @ F_E + b2)          (lap_layer2)
         h    = relu(pre_h[i] + x_g2 @ Wm1g)       (MLP layer 1; x_in/x_d halves hoisted)
         out  = h @ Wm2 + bm2 + x_in[i]            (MLP layer 2 + residual)
    """
    x_g2 = jnp.maximum(
        jnp.dot(a_e_ref[...], f_e_ref[...], preferred_element_type=F32) + b2_ref[...],
        0.0)
    h = jnp.maximum(
        pre_h_ref[...].astype(F32)
        + jnp.dot(x_g2.astype(BF16), wm1g_ref[...], preferred_element_type=F32),
        0.0)
    out_ref[...] = (jnp.dot(h.astype(BF16), wm2_ref[...], preferred_element_type=F32)
                    + bm2_ref[...] + x_in_ref[...])


# ------------------------------ specs / helpers -------------------------------
def _row_spec(tn, cols):
    return pl.BlockSpec((tn, cols), lambda i: (i, 0))


def _resident_spec(shape, single_buffer):
    # Constant index_map -> block never changes; Buffered(1) halves its VMEM cost.
    if single_buffer:
        return pl.BlockSpec(shape, lambda i: (0, 0), pipeline_mode=pl.Buffered(1))
    return pl.BlockSpec(shape, lambda i: (0, 0))


def _pick_vmem_limit():
    """Per-generation scoped-VMEM budget: ~3/4 of per-core capacity, capped at 96 MiB.
    -> ~48 MiB on v7x (64 MiB/TC), 96 MiB on v5e/v6e (128 MiB, default scope 16-32)."""
    try:
        cap = pltpu.get_tpu_info().vmem_capacity_bytes
    except Exception:
        cap = 128 * MiB
    return int(min(96 * MiB, (cap * 3) // 4))


# ------------------------------ wrapper --------------------------------------
def tide_block_forward(x_in, x_orig, evecs, evals, t,
                       A_L_b, W1, b1, Gn_b, Wf, bf, A_E_b, W2, b2,
                       Wm1x, Wm1d, Wm1g, bm1, Wm2, bm2, *,
                       tn=128, single_buffer_residents=True):
    N, C = x_in.shape
    H = Wm2.shape[0]
    assert N % tn == 0, "node count must be divisible by the row tile"
    # adjacency matrices must be pre-cast (cached) bf16 -- do NOT cast per call.
    assert A_L_b.dtype == BF16 and Gn_b.dtype == BF16 and A_E_b.dtype == BF16

    # --- hoisted O(N*K*C) / O(N*C^2) prep (tiny vs. the O(N^2*C) adjacency matmuls)
    x_spec = evecs.T @ x_in                                      # [K, C]
    z = jnp.exp(-evals[:, None] * t[None, :]) * x_spec           # [K, C]
    F_L = ((evecs @ z) @ W1).astype(BF16)                        # [N, C] = x_diffuse @ W1
    F_G2 = ((x_orig @ Wf + bf) @ W2).astype(BF16)                # [N, C] = fc1(x_orig) @ W2
    Wm1g_b = Wm1g.astype(BF16)                                   # small weights -> bf16
    Wm2_b = Wm2.astype(BF16)

    grid = (N // tn,)
    cparams = pltpu.CompilerParams(
        dimension_semantics=("parallel",),          # megacore on v7x; no-op on v5e/v6e
        vmem_limit_bytes=_pick_vmem_limit())

    ce_a = pl.CostEstimate(
        flops=4 * N * N * C, transcendentals=0,
        bytes_accessed=2 * N * N * 2 + 2 * N * C * 2 + C * 4 + 2 * N * C * 2)
    ce_b = pl.CostEstimate(
        flops=2 * N * N * C + 4 * N * C * H, transcendentals=0,
        bytes_accessed=(N * N * 2 + N * C * 2 + N * H * 2 + N * C * 4
                        + 2 * C * H * 2 + 2 * C * 4 + N * C * 4))

    # --- kernel A: GCN-on-L rows + LaplacianFeatures rows (W2 pre-folded) ------
    x_d, F_E = pl.pallas_call(
        _kernel_a,
        grid=grid,
        in_specs=[
            _row_spec(tn, N),                                        # A_L rows (bf16, streamed)
            _row_spec(tn, N),                                        # Gn  rows (bf16, streamed)
            _resident_spec((N, C), single_buffer_residents),         # F_L  (bf16, resident)
            _resident_spec((N, C), single_buffer_residents),         # F_G2 (bf16, resident)
            _resident_spec((1, C), single_buffer_residents),         # b1
        ],
        out_specs=[_row_spec(tn, C), _row_spec(tn, C)],
        out_shape=[jax.ShapeDtypeStruct((N, C), BF16),               # x_d  (bf16 HBM round trip)
                   jax.ShapeDtypeStruct((N, C), BF16)],              # F_E
        compiler_params=cparams,
        cost_estimate=ce_a,
    )(A_L_b, Gn_b, F_L, F_G2, b1)

    # --- hoisted half of the MiniMLP (review: delete 2 f32 matmuls from kernel B)
    pre_h = (x_in @ Wm1x + x_d.astype(F32) @ Wm1d + bm1).astype(BF16)   # [N, H]

    # --- kernel B: lap_layer2 rows + remaining MLP + residual ------------------
    out = pl.pallas_call(
        _kernel_b,
        grid=grid,
        in_specs=[
            _row_spec(tn, N),                                        # A_E rows (bf16, streamed)
            _resident_spec((N, C), single_buffer_residents),         # F_E  (bf16, resident)
            _row_spec(tn, H),                                        # pre_h rows (bf16)
            _row_spec(tn, C),                                        # x_in rows (f32, residual)
            _resident_spec((1, C), single_buffer_residents),         # b2
            _resident_spec((C, H), single_buffer_residents),         # Wm1g (bf16)
            _resident_spec((H, C), single_buffer_residents),         # Wm2  (bf16)
            _resident_spec((1, C), single_buffer_residents),         # bm2
        ],
        out_specs=_row_spec(tn, C),
        out_shape=jax.ShapeDtypeStruct((N, C), F32),
        compiler_params=cparams,
        cost_estimate=ce_b,
    )(A_E_b, F_E, pre_h, x_in, b2, Wm1g_b, Wm2_b, bm2)

    return out


# --------------------------- plain-JAX reference ------------------------------
def tide_block_ref(x_in, x_orig, evecs, evals, t,
                   A_L, W1, b1, Gn, Wf, bf, A_E, W2, b2,
                   Wm1x, Wm1d, Wm1g, bm1, Wm2, bm2):
    hp = jax.lax.Precision.HIGHEST
    up = lambda a: a.astype(BF16).astype(F32)     # mirror the kernel's bf16 cast points

    x_spec = evecs.T @ x_in
    z = jnp.exp(-evals[:, None] * t[None, :]) * x_spec
    F_L = up((evecs @ z) @ W1)
    F_G2 = up((x_orig @ Wf + bf) @ W2)            # W2 folded (associativity), as in wrapper

    x_d = up(jax.nn.relu(jnp.dot(up(A_L), F_L, precision=hp) + b1))
    F_E = up(jnp.dot(up(Gn), F_G2, precision=hp))            # LaplacianFeatures forward path
    pre_h = up(x_in @ Wm1x + x_d @ Wm1d + bm1)

    x_g2 = jax.nn.relu(jnp.dot(up(A_E), F_E, precision=hp) + b2)
    h = jax.nn.relu(pre_h + jnp.dot(up(x_g2), up(Wm1g), precision=hp))
    return jnp.dot(up(h), up(Wm2), precision=hp) + bm2 + x_in


# ------------------------------ graph glue ------------------------------------
def gcn_norm_dense(A):
    """GCNConv normalization: A_hat = D^-1/2 (A + I) D^-1/2."""
    N = A.shape[0]
    A = A + jnp.eye(N, dtype=A.dtype)
    dinv = 1.0 / jnp.sqrt(A.sum(axis=1))
    return A * dinv[:, None] * dinv[None, :]


def lap_feature_norm(G):
    """LaplacianFeatures.__init__: diag(1/sqrt(rowsum)) @ G @ diag(1/sqrt(rowsum))."""
    dinv = 1.0 / jnp.sqrt(G.sum(axis=1))
    return G * dinv[:, None] * dinv[None, :]


# TODO(synk): the `learnable` branch (masked zeroing of Gradient_X) and the
# torch_sparse SparseTensor path are init/train-time parameter ops, not forward
# compute; inference uses the fixed normalized Gn built above.


if __name__ == "__main__":
    # lane-dense small shapes: N nodes, C_in, C_width, K eigenpairs, MLP hidden H
    N, C_IN, C, K, H = 512, 64, 128, 64, 128
    TN = 128    # grid of 4 -> >=2 steps per core on v7x "parallel"; sweep 256/512 on v5e/v6e

    key = jax.random.PRNGKey(0)
    ks = jax.random.split(key, 16)

    x_in = jax.random.normal(ks[0], (N, C), F32)
    x_original = jax.random.normal(ks[1], (N, C_IN), F32)

    evecs = jax.random.normal(ks[2], (N, K), F32) / jnp.sqrt(N)
    evals = jax.random.uniform(ks[3], (K,), F32, 0.0, 2.0)
    t = jax.random.uniform(ks[4], (C,), F32, 0.0, 0.5)

    mask_L = (jax.random.uniform(ks[5], (N, N)) < 0.3).astype(F32)
    w_L = jax.random.uniform(ks[6], (N, N), F32, 0.1, 1.0) * mask_L
    w_L = 0.5 * (w_L + w_L.T) * (1.0 - jnp.eye(N))
    A_L = gcn_norm_dense(w_L)

    mask_E = (jax.random.uniform(ks[7], (N, N)) < 0.3).astype(F32)
    adj_E = jnp.maximum(mask_E, mask_E.T) * (1.0 - jnp.eye(N))
    A_E = gcn_norm_dense(adj_E)

    G = jax.random.uniform(ks[8], (N, N), F32, 0.1, 1.0)
    Gn = lap_feature_norm(G)

    def glorot(k, shape):
        fan_in, fan_out = shape
        lim = jnp.sqrt(6.0 / (fan_in + fan_out))
        return jax.random.uniform(k, shape, F32, -lim, lim)

    W1, b1 = glorot(ks[9], (C, C)), jnp.zeros((1, C), F32)
    Wf, bf = glorot(ks[10], (C_IN, C)), 0.01 * jnp.ones((1, C), F32)
    W2, b2 = glorot(ks[11], (C, C)), jnp.zeros((1, C), F32)

    Wm1 = glorot(ks[12], (3 * C, H))
    Wm1x, Wm1d, Wm1g = Wm1[:C], Wm1[C:2 * C], Wm1[2 * C:]
    bm1 = 0.01 * jnp.ones((1, H), F32)
    Wm2 = glorot(ks[13], (H, C))
    bm2 = 0.01 * jnp.ones((1, C), F32)

    # review #4: cache bf16 adjacency copies ONCE at graph-load time (outside jit)
    A_L_b = jax.block_until_ready(A_L.astype(BF16))
    Gn_b = jax.block_until_ready(Gn.astype(BF16))
    A_E_b = jax.block_until_ready(A_E.astype(BF16))

    args = (x_in, x_original, evecs, evals, t,
            A_L_b, W1, b1, Gn_b, Wf, bf, A_E_b, W2, b2,
            Wm1x, Wm1d, Wm1g, bm1, Wm2, bm2)
    ref_args = (x_in, x_original, evecs, evals, t,
                A_L, W1, b1, Gn, Wf, bf, A_E, W2, b2,
                Wm1x, Wm1d, Wm1g, bm1, Wm2, bm2)

    def make_fwd(single_buffer):
        return jax.jit(functools.partial(
            tide_block_forward, tn=TN, single_buffer_residents=single_buffer))

    try:
        out = jax.block_until_ready(make_fwd(True)(*args))
    except Exception:
        # pipeline_mode=pl.Buffered(1) not supported on this jax/backend combo:
        # fall back to default double-buffered residents (identical math).
        out = jax.block_until_ready(make_fwd(False)(*args))

    ref = tide_block_ref(*ref_args)
    assert out.shape == (N, C)
    # bf16 operands for the N x N matmuls and bf16 intermediates -> loosened tolerance
    assert jnp.allclose(out, ref, rtol=2e-2, atol=2e-2), "mismatch vs JAX reference"

    print("KERNEL_OK")
</pallas_src>

<mosaic_0001>
module attributes {stable_mosaic.version = 11 : i64} {
  func.func @_kernel_a(%arg0: i32, %arg1: memref<128x512xbf16, #tpu.memory_space<vmem>>, %arg2: memref<128x512xbf16, #tpu.memory_space<vmem>>, %arg3: memref<512x128xbf16, #tpu.memory_space<vmem>>, %arg4: memref<512x128xbf16, #tpu.memory_space<vmem>>, %arg5: memref<1x128xf32, #tpu.memory_space<vmem>>, %arg6: memref<128x128xbf16, #tpu.memory_space<vmem>>, %arg7: memref<128x128xbf16, #tpu.memory_space<vmem>>) attributes {dimension_semantics = [#tpu.dimension_semantics<parallel>], iteration_bounds = array<i64: 4>, scalar_prefetch = 0 : i64, scratch_operands = 0 : i64, tpu.core_type = #tpu.core_type<tc>, window_params = [{transform_indices = @transform_0, window_bounds = array<i64: 128, 512>}, {transform_indices = @transform_1, window_bounds = array<i64: 128, 512>}, {pipeline_mode = #tpu.pipeline_mode<synchronous>, transform_indices = @transform_2, window_bounds = array<i64: 512, 128>}, {pipeline_mode = #tpu.pipeline_mode<synchronous>, transform_indices = @transform_3, window_bounds = array<i64: 512, 128>}, {pipeline_mode = #tpu.pipeline_mode<synchronous>, transform_indices = @transform_4, window_bounds = array<i64: 1, 128>}, {transform_indices = @transform_5, window_bounds = array<i64: 128, 128>}, {transform_indices = @transform_6, window_bounds = array<i64: 128, 128>}]} {
    %c0 = arith.constant 0 : index
    %c0_0 = arith.constant 0 : index
    %0 = vector.load %arg1[%c0, %c0_0] : memref<128x512xbf16, #tpu.memory_space<vmem>>, vector<128x512xbf16>
    %c0_1 = arith.constant 0 : index
    %c0_2 = arith.constant 0 : index
    %1 = vector.load %arg3[%c0_1, %c0_2] : memref<512x128xbf16, #tpu.memory_space<vmem>>, vector<512x128xbf16>
    %cst = arith.constant dense<0.000000e+00> : vector<128x128xf32>
    %2 = tpu.matmul %0, %1, %cst {dimension_numbers = #tpu.dot_dimension_numbers<[1], [0], [0], [1], [0, 0, 1, 1], [], []>} : vector<128x512xbf16>, vector<512x128xbf16>, vector<128x128xf32> -> vector<128x128xf32>
    %c0_3 = arith.constant 0 : index
    %c0_4 = arith.constant 0 : index
    %3 = vector.load %arg5[%c0_3, %c0_4] : memref<1x128xf32, #tpu.memory_space<vmem>>, vector<1x128xf32>
    %4 = vector.broadcast %3 : vector<1x128xf32> to vector<128x128xf32>
    %5 = arith.addf %2, %4 : vector<128x128xf32>
    %cst_5 = arith.constant 0.000000e+00 : f32
    %6 = vector.broadcast %cst_5 : f32 to vector<128x128xf32>
    %7 = arith.maximumf %5, %6 : vector<128x128xf32>
    %8 = arith.truncf %7 : vector<128x128xf32> to vector<128x128xbf16>
    %c0_6 = arith.constant 0 : index
    %c0_7 = arith.constant 0 : index
    %9 = vector.load %arg6[%c0_6, %c0_7] : memref<128x128xbf16, #tpu.memory_space<vmem>>, vector<128x128xbf16>
    tpu.vector_store %arg6[%c0_6, %c0_7], %8 {strides = array<i32>} : memref<128x128xbf16, #tpu.memory_space<vmem>>, vector<128x128xbf16>,
    %c0_8 = arith.constant 0 : index
    %c0_9 = arith.constant 0 : index
    %10 = vector.load %arg2[%c0_8, %c0_9] : memref<128x512xbf16, #tpu.memory_space<vmem>>, vector<128x512xbf16>
    %c0_10 = arith.constant 0 : index
    %c0_11 = arith.constant 0 : index
    %11 = vector.load %arg4[%c0_10, %c0_11] : memref<512x128xbf16, #tpu.memory_space<vmem>>, vector<512x128xbf16>
    %cst_12 = arith.constant dense<0.000000e+00> : vector<128x128xf32>
    %12 = tpu.matmul %10, %11, %cst_12 {dimension_numbers = #tpu.dot_dimension_numbers<[1], [0], [0], [1], [0, 0, 1, 1], [], []>} : vector<128x512xbf16>, vector<512x128xbf16>, vector<128x128xf32> -> vector<128x128xf32>
    %13 = arith.truncf %12 : vector<128x128xf32> to vector<128x128xbf16>
    %c0_13 = arith.constant 0 : index
    %c0_14 = arith.constant 0 : index
    %14 = vector.load %arg7[%c0_13, %c0_14] : memref<128x128xbf16, #tpu.memory_space<vmem>>, vector<128x128xbf16>
    tpu.vector_store %arg7[%c0_13, %c0_14], %13 {strides = array<i32>} : memref<128x128xbf16, #tpu.memory_space<vmem>>, vector<128x128xbf16>,
    return
  }
  func.func @transform_0(%arg0: i32) -> (i32, i32) {
    %c0_i32 = arith.constant 0 : i32
    %c0_i32_0 = arith.constant 0 : i32
    return %arg0, %c0_i32 : i32, i32
  }
  func.func @transform_1(%arg0: i32) -> (i32, i32) {
    %c0_i32 = arith.constant 0 : i32
    %c0_i32_0 = arith.constant 0 : i32
    return %arg0, %c0_i32 : i32, i32
  }
  func.func @transform_2(%arg0: i32) -> (i32, i32) {
    %c0_i32 = arith.constant 0 : i32
    %c0_i32_0 = arith.constant 0 : i32
    %c0_i32_1 = arith.constant 0 : i32
    return %c0_i32, %c0_i32_0 : i32, i32
  }
  func.func @transform_3(%arg0: i32) -> (i32, i32) {
    %c0_i32 = arith.constant 0 : i32
    %c0_i32_0 = arith.constant 0 : i32
    %c0_i32_1 = arith.constant 0 : i32
    return %c0_i32, %c0_i32_0 : i32, i32
  }
  func.func @transform_4(%arg0: i32) -> (i32, i32) {
    %c0_i32 = arith.constant 0 : i32
    %c0_i32_0 = arith.constant 0 : i32
    %c0_i32_1 = arith.constant 0 : i32
    return %c0_i32, %c0_i32_0 : i32, i32
  }
  func.func @transform_5(%arg0: i32) -> (i32, i32) {
    %c0_i32 = arith.constant 0 : i32
    %c0_i32_0 = arith.constant 0 : i32
    return %arg0, %c0_i32 : i32, i32
  }
  func.func @transform_6(%arg0: i32) -> (i32, i32) {
    %c0_i32 = arith.constant 0 : i32
    %c0_i32_0 = arith.constant 0 : i32
    return %arg0, %c0_i32 : i32, i32
  }
}

module attributes {stable_mosaic.version = 11 : i64} {
  func.func @_kernel_b(%arg0: i32, %arg1: memref<128x512xbf16, #tpu.memory_space<vmem>>, %arg2: memref<512x128xbf16, #tpu.memory_space<vmem>>, %arg3: memref<128x128xbf16, #tpu.memory_space<vmem>>, %arg4: memref<128x128xf32, #tpu.memory_space<vmem>>, %arg5: memref<1x128xf32, #tpu.memory_space<vmem>>, %arg6: memref<128x128xbf16, #tpu.memory_space<vmem>>, %arg7: memref<128x128xbf16, #tpu.memory_space<vmem>>, %arg8: memref<1x128xf32, #tpu.memory_space<vmem>>, %arg9: memref<128x128xf32, #tpu.memory_space<vmem>>) attributes {dimension_semantics = [#tpu.dimension_semantics<parallel>], iteration_bounds = array<i64: 4>, scalar_prefetch = 0 : i64, scratch_operands = 0 : i64, tpu.core_type = #tpu.core_type<tc>, window_params = [{transform_indices = @transform_0, window_bounds = array<i64: 128, 512>}, {pipeline_mode = #tpu.pipeline_mode<synchronous>, transform_indices = @transform_1, window_bounds = array<i64: 512, 128>}, {transform_indices = @transform_2, window_bounds = array<i64: 128, 128>}, {transform_indices = @transform_3, window_bounds = array<i64: 128, 128>}, {pipeline_mode = #tpu.pipeline_mode<synchronous>, transform_indices = @transform_4, window_bounds = array<i64: 1, 128>}, {pipeline_mode = #tpu.pipeline_mode<synchronous>, transform_indices = @transform_5, window_bounds = array<i64: 128, 128>}, {pipeline_mode = #tpu.pipeline_mode<synchronous>, transform_indices = @transform_6, window_bounds = array<i64: 128, 128>}, {pipeline_mode = #tpu.pipeline_mode<synchronous>, transform_indices = @transform_7, window_bounds = array<i64: 1, 128>}, {transform_indices = @transform_8, window_bounds = array<i64: 128, 128>}]} {
    %c0 = arith.constant 0 : index
    %c0_0 = arith.constant 0 : index
    %0 = vector.load %arg1[%c0, %c0_0] : memref<128x512xbf16, #tpu.memory_space<vmem>>, vector<128x512xbf16>
    %c0_1 = arith.constant 0 : index
    %c0_2 = arith.constant 0 : index
    %1 = vector.load %arg2[%c0_1, %c0_2] : memref<512x128xbf16, #tpu.memory_space<vmem>>, vector<512x128xbf16>
    %cst = arith.constant dense<0.000000e+00> : vector<128x128xf32>
    %2 = tpu.matmul %0, %1, %cst {dimension_numbers = #tpu.dot_dimension_numbers<[1], [0], [0], [1], [0, 0, 1, 1], [], []>} : vector<128x512xbf16>, vector<512x128xbf16>, vector<128x128xf32> -> vector<128x128xf32>
    %c0_3 = arith.constant 0 : index
    %c0_4 = arith.constant 0 : index
    %3 = vector.load %arg5[%c0_3, %c0_4] : memref<1x128xf32, #tpu.memory_space<vmem>>, vector<1x128xf32>
    %4 = vector.broadcast %3 : vector<1x128xf32> to vector<128x128xf32>
    %5 = arith.addf %2, %4 : vector<128x128xf32>
    %cst_5 = arith.constant 0.000000e+00 : f32
    %6 = vector.broadcast %cst_5 : f32 to vector<128x128xf32>
    %7 = arith.maximumf %5, %6 : vector<128x128xf32>
    %c0_6 = arith.constant 0 : index
    %c0_7 = arith.constant 0 : index
    %8 = vector.load %arg3[%c0_6, %c0_7] : memref<128x128xbf16, #tpu.memory_space<vmem>>, vector<128x128xbf16>
    %9 = arith.extf %8 : vector<128x128xbf16> to vector<128x128xf32>
    %10 = arith.truncf %7 : vector<128x128xf32> to vector<128x128xbf16>
    %c0_8 = arith.constant 0 : index
    %c0_9 = arith.constant 0 : index
    %11 = vector.load %arg6[%c0_8, %c0_9] : memref<128x128xbf16, #tpu.memory_space<vmem>>, vector<128x128xbf16>
    %cst_10 = arith.constant dense<0.000000e+00> : vector<128x128xf32>
    %12 = tpu.matmul %10, %11, %cst_10 {dimension_numbers = #tpu.dot_dimension_numbers<[1], [0], [0], [1], [0, 0, 1, 1], [], []>} : vector<128x128xbf16>, vector<128x128xbf16>, vector<128x128xf32> -> vector<128x128xf32>
    %13 = arith.addf %9, %12 : vector<128x128xf32>
    %cst_11 = arith.constant 0.000000e+00 : f32
    %14 = vector.broadcast %cst_11 : f32 to vector<128x128xf32>
    %15 = arith.maximumf %13, %14 : vector<128x128xf32>
    %16 = arith.truncf %15 : vector<128x128xf32> to vector<128x128xbf16>
    %c0_12 = arith.constant 0 : index
    %c0_13 = arith.constant 0 : index
    %17 = vector.load %arg7[%c0_12, %c0_13] : memref<128x128xbf16, #tpu.memory_space<vmem>>, vector<128x128xbf16>
    %cst_14 = arith.constant dense<0.000000e+00> : vector<128x128xf32>
    %18 = tpu.matmul %16, %17, %cst_14 {dimension_numbers = #tpu.dot_dimension_numbers<[1], [0], [0], [1], [0, 0, 1, 1], [], []>} : vector<128x128xbf16>, vector<128x128xbf16>, vector<128x128xf32> -> vector<128x128xf32>
    %c0_15 = arith.constant 0 : index
    %c0_16 = arith.constant 0 : index
    %19 = vector.load %arg8[%c0_15, %c0_16] : memref<1x128xf32, #tpu.memory_space<vmem>>, vector<1x128xf32>
    %20 = vector.broadcast %19 : vector<1x128xf32> to vector<128x128xf32>
    %21 = arith.addf %18, %20 : vector<128x128xf32>
    %c0_17 = arith.constant 0 : index
    %c0_18 = arith.constant 0 : index
    %22 = vector.load %arg4[%c0_17, %c0_18] : memref<128x128xf32, #tpu.memory_space<vmem>>, vector<128x128xf32>
    %23 = arith.addf %21, %22 : vector<128x128xf32>
    %c0_19 = arith.constant 0 : index
    %c0_20 = arith.constant 0 : index
    %24 = vector.load %arg9[%c0_19, %c0_20] : memref<128x128xf32, #tpu.memory_space<vmem>>, vector<128x128xf32>
    tpu.vector_store %arg9[%c0_19, %c0_20], %23 {strides = array<i32>} : memref<128x128xf32, #tpu.memory_space<vmem>>, vector<128x128xf32>,
    return
  }
  func.func @transform_0(%arg0: i32) -> (i32, i32) {
    %c0_i32 = arith.constant 0 : i32
    %c0_i32_0 = arith.constant 0 : i32
    return %arg0, %c0_i32 : i32, i32
  }
  func.func @transform_1(%arg0: i32) -> (i32, i32) {
    %c0_i32 = arith.constant 0 : i32
    %c0_i32_0 = arith.constant 0 : i32
    %c0_i32_1 = arith.constant 0 : i32
    return %c0_i32, %c0_i32_0 : i32, i32
  }
  func.func @transform_2(%arg0: i32) -> (i32, i32) {
    %c0_i32 = arith.constant 0 : i32
    %c0_i32_0 = arith.constant 0 : i32
    return %arg0, %c0_i32 : i32, i32
  }
  func.func @transform_3(%arg0: i32) -> (i32, i32) {
    %c0_i32 = arith.constant 0 : i32
    %c0_i32_0 = arith.constant 0 : i32
    return %arg0, %c0_i32 : i32, i32
  }
  func.func @transform_4(%arg0: i32) -> (i32, i32) {
    %c0_i32 = arith.constant 0 : i32
    %c0_i32_0 = arith.constant 0 : i32
    %c0_i32_1 = arith.constant 0 : i32
    return %c0_i32, %c0_i32_0 : i32, i32
  }
  func.func @transform_5(%arg0: i32) -> (i32, i32) {
    %c0_i32 = arith.constant 0 : i32
    %c0_i32_0 = arith.constant 0 : i32
    %c0_i32_1 = arith.constant 0 : i32
    return %c0_i32, %c0_i32_0 : i32, i32
  }
  func.func @transform_6(%arg0: i32) -> (i32, i32) {
    %c0_i32 = arith.constant 0 : i32
    %c0_i32_0 = arith.constant 0 : i32
    %c0_i32_1 = arith.constant 0 : i32
    return %c0_i32, %c0_i32_0 : i32, i32
  }
  func.func @transform_7(%arg0: i32) -> (i32, i32) {
    %c0_i32 = arith.constant 0 : i32
    %c0_i32_0 = arith.constant 0 : i32
    %c0_i32_1 = arith.constant 0 : i32
    return %c0_i32, %c0_i32_0 : i32, i32
  }
  func.func @transform_8(%arg0: i32) -> (i32, i32) {
    %c0_i32 = arith.constant 0 : i32
    %c0_i32_0 = arith.constant 0 : i32
    return %arg0, %c0_i32 : i32, i32
  }
}

module attributes {stable_mosaic.version = 11 : i64} {
  func.func @_kernel_a(%arg0: i32, %arg1: memref<128x512xbf16, #tpu.memory_space<vmem>>, %arg2: memref<128x512xbf16, #tpu.memory_space<vmem>>, %arg3: memref<512x128xbf16, #tpu.memory_space<vmem>>, %arg4: memref<512x128xbf16, #tpu.memory_space<vmem>>, %arg5: memref<1x128xf32, #tpu.memory_space<vmem>>, %arg6: memref<128x128xbf16, #tpu.memory_space<vmem>>, %arg7: memref<128x128xbf16, #tpu.memory_space<vmem>>) attributes {dimension_semantics = [#tpu.dimension_semantics<parallel>], iteration_bounds = array<i64: 4>, scalar_prefetch = 0 : i64, scratch_operands = 0 : i64, tpu.core_type = #tpu.core_type<tc>, window_params = [{transform_indices = @transform_0, window_bounds = array<i64: 128, 512>}, {transform_indices = @transform_1, window_bounds = array<i64: 128, 512>}, {pipeline_mode = #tpu.pipeline_mode<synchronous>, transform_indices = @transform_2, window_bounds = array<i64: 512, 128>}, {pipeline_mode = #tpu.pipeline_mode<synchronous>, transform_indices = @transform_3, window_bounds = array<i64: 512, 128>}, {pipeline_mode = #tpu.pipeline_mode<synchronous>, transform_indices = @transform_4, window_bounds = array<i64: 1, 128>}, {transform_indices = @transform_5, window_bounds = array<i64: 128, 128>}, {transform_indices = @transform_6, window_bounds = array<i64: 128, 128>}]} {
    %c0 = arith.constant 0 : index
    %c0_0 = arith.constant 0 : index
    %0 = vector.load %arg1[%c0, %c0_0] : memref<128x512xbf16, #tpu.memory_space<vmem>>, vector<128x512xbf16>
    %c0_1 = arith.constant 0 : index
    %c0_2 = arith.constant 0 : index
    %1 = vector.load %arg3[%c0_1, %c0_2] : memref<512x128xbf16, #tpu.memory_space<vmem>>, vector<512x128xbf16>
    %cst = arith.constant dense<0.000000e+00> : vector<128x128xf32>
    %2 = tpu.matmul %0, %1, %cst {dimension_numbers = #tpu.dot_dimension_numbers<[1], [0], [0], [1], [0, 0, 1, 1], [], []>} : vector<128x512xbf16>, vector<512x128xbf16>, vector<128x128xf32> -> vector<128x128xf32>
    %c0_3 = arith.constant 0 : index
    %c0_4 = arith.constant 0 : index
    %3 = vector.load %arg5[%c0_3, %c0_4] : memref<1x128xf32, #tpu.memory_space<vmem>>, vector<1x128xf32>
    %4 = vector.broadcast %3 : vector<1x128xf32> to vector<128x128xf32>
    %5 = arith.addf %2, %4 : vector<128x128xf32>
    %cst_5 = arith.constant 0.000000e+00 : f32
    %6 = vector.broadcast %cst_5 : f32 to vector<128x128xf32>
    %7 = arith.maximumf %5, %6 : vector<128x128xf32>
    %8 = arith.truncf %7 : vector<128x128xf32> to vector<128x128xbf16>
    %c0_6 = arith.constant 0 : index
    %c0_7 = arith.constant 0 : index
    %9 = vector.load %arg6[%c0_6, %c0_7] : memref<128x128xbf16, #tpu.memory_space<vmem>>, vector<128x128xbf16>
    tpu.vector_store %arg6[%c0_6, %c0_7], %8 {strides = array<i32>} : memref<128x128xbf16, #tpu.memory_space<vmem>>, vector<128x128xbf16>,
    %c0_8 = arith.constant 0 : index
    %c0_9 = arith.constant 0 : index
    %10 = vector.load %arg2[%c0_8, %c0_9] : memref<128x512xbf16, #tpu.memory_space<vmem>>, vector<128x512xbf16>
    %c0_10 = arith.constant 0 : index
    %c0_11 = arith.constant 0 : index
    %11 = vector.load %arg4[%c0_10, %c0_11] : memref<512x128xbf16, #tpu.memory_space<vmem>>, vector<512x128xbf16>
    %cst_12 = arith.constant dense<0.000000e+00> : vector<128x128xf32>
    %12 = tpu.matmul %10, %11, %cst_12 {dimension_numbers = #tpu.dot_dimension_numbers<[1], [0], [0], [1], [0, 0, 1, 1], [], []>} : vector<128x512xbf16>, vector<512x128xbf16>, vector<128x128xf32> -> vector<128x128xf32>
    %13 = arith.truncf %12 : vector<128x128xf32> to vector<128x128xbf16>
    %c0_13 = arith.constant 0 : index
    %c0_14 = arith.constant 0 : index
    %14 = vector.load %arg7[%c0_13, %c0_14] : memref<128x128xbf16, #tpu.memory_space<vmem>>, vector<128x128xbf16>
    tpu.vector_store %arg7[%c0_13, %c0_14], %13 {strides = array<i32>} : memref<128x128xbf16, #tpu.memory_space<vmem>>, vector<128x128xbf16>,
    return
  }
  func.func @transform_0(%arg0: i32) -> (i32, i32) {
    %c0_i32 = arith.constant 0 : i32
    %c0_i32_0 = arith.constant 0 : i32
    return %arg0, %c0_i32 : i32, i32
  }
  func.func @transform_1(%arg0: i32) -> (i32, i32) {
    %c0_i32 = arith.constant 0 : i32
    %c0_i32_0 = arith.constant 0 : i32
    return %arg0, %c0_i32 : i32, i32
  }
  func.func @transform_2(%arg0: i32) -> (i32, i32) {
    %c0_i32 = arith.constant 0 : i32
    %c0_i32_0 = arith.constant 0 : i32
    %c0_i32_1 = arith.constant 0 : i32
    return %c0_i32, %c0_i32_0 : i32, i32
  }
  func.func @transform_3(%arg0: i32) -> (i32, i32) {
    %c0_i32 = arith.constant 0 : i32
    %c0_i32_0 = arith.constant 0 : i32
    %c0_i32_1 = arith.constant 0 : i32
    return %c0_i32, %c0_i32_0 : i32, i32
  }
  func.func @transform_4(%arg0: i32) -> (i32, i32) {
    %c0_i32 = arith.constant 0 : i32
    %c0_i32_0 = arith.constant 0 : i32
    %c0_i32_1 = arith.constant 0 : i32
    return %c0_i32, %c0_i32_0 : i32, i32
  }
  func.func @transform_5(%arg0: i32) -> (i32, i32) {
    %c0_i32 = arith.constant 0 : i32
    %c0_i32_0 = arith.constant 0 : i32
    return %arg0, %c0_i32 : i32, i32
  }
  func.func @transform_6(%arg0: i32) -> (i32, i32) {
    %c0_i32 = arith.constant 0 : i32
    %c0_i32_0 = arith.constant 0 : i32
    return %arg0, %c0_i32 : i32, i32
  }
}

module attributes {stable_mosaic.version = 11 : i64} {
  func.func @_kernel_b(%arg0: i32, %arg1: memref<128x512xbf16, #tpu.memory_space<vmem>>, %arg2: memref<512x128xbf16, #tpu.memory_space<vmem>>, %arg3: memref<128x128xbf16, #tpu.memory_space<vmem>>, %arg4: memref<128x128xf32, #tpu.memory_space<vmem>>, %arg5: memref<1x128xf32, #tpu.memory_space<vmem>>, %arg6: memref<128x128xbf16, #tpu.memory_space<vmem>>, %arg7: memref<128x128xbf16, #tpu.memory_space<vmem>>, %arg8: memref<1x128xf32, #tpu.memory_space<vmem>>, %arg9: memref<128x128xf32, #tpu.memory_space<vmem>>) attributes {dimension_semantics = [#tpu.dimension_semantics<parallel>], iteration_bounds = array<i64: 4>, scalar_prefetch = 0 : i64, scratch_operands = 0 : i64, tpu.core_type = #tpu.core_type<tc>, window_params = [{transform_indices = @transform_0, window_bounds = array<i64: 128, 512>}, {pipeline_mode = #tpu.pipeline_mode<synchronous>, transform_indices = @transform_1, window_bounds = array<i64: 512, 128>}, {transform_indices = @transform_2, window_bounds = array<i64: 128, 128>}, {transform_indices = @transform_3, window_bounds = array<i64: 128, 128>}, {pipeline_mode = #tpu.pipeline_mode<synchronous>, transform_indices = @transform_4, window_bounds = array<i64: 1, 128>}, {pipeline_mode = #tpu.pipeline_mode<synchronous>, transform_indices = @transform_5, window_bounds = array<i64: 128, 128>}, {pipeline_mode = #tpu.pipeline_mode<synchronous>, transform_indices = @transform_6, window_bounds = array<i64: 128, 128>}, {pipeline_mode = #tpu.pipeline_mode<synchronous>, transform_indices = @transform_7, window_bounds = array<i64: 1, 128>}, {transform_indices = @transform_8, window_bounds = array<i64: 128, 128>}]} {
    %c0 = arith.constant 0 : index
    %c0_0 = arith.constant 0 : index
    %0 = vector.load %arg1[%c0, %c0_0] : memref<128x512xbf16, #tpu.memory_space<vmem>>, vector<128x512xbf16>
    %c0_1 = arith.constant 0 : index
    %c0_2 = arith.constant 0 : index
    %1 = vector.load %arg2[%c0_1, %c0_2] : memref<512x128xbf16, #tpu.memory_space<vmem>>, vector<512x128xbf16>
    %cst = arith.constant dense<0.000000e+00> : vector<128x128xf32>
    %2 = tpu.matmul %0, %1, %cst {dimension_numbers = #tpu.dot_dimension_numbers<[1], [0], [0], [1], [0, 0, 1, 1], [], []>} : vector<128x512xbf16>, vector<512x128xbf16>, vector<128x128xf32> -> vector<128x128xf32>
    %c0_3 = arith.constant 0 : index
    %c0_4 = arith.constant 0 : index
    %3 = vector.load %arg5[%c0_3, %c0_4] : memref<1x128xf32, #tpu.memory_space<vmem>>, vector<1x128xf32>
    %4 = vector.broadcast %3 : vector<1x128xf32> to vector<128x128xf32>
    %5 = arith.addf %2, %4 : vector<128x128xf32>
    %cst_5 = arith.constant 0.000000e+00 : f32
    %6 = vector.broadcast %cst_5 : f32 to vector<128x128xf32>
    %7 = arith.maximumf %5, %6 : vector<128x128xf32>
    %c0_6 = arith.constant 0 : index
    %c0_7 = arith.constant 0 : index
    %8 = vector.load %arg3[%c0_6, %c0_7] : memref<128x128xbf16, #tpu.memory_space<vmem>>, vector<128x128xbf16>
    %9 = arith.extf %8 : vector<128x128xbf16> to vector<128x128xf32>
    %10 = arith.truncf %7 : vector<128x128xf32> to vector<128x128xbf16>
    %c0_8 = arith.constant 0 : index
    %c0_9 = arith.constant 0 : index
    %11 = vector.load %arg6[%c0_8, %c0_9] : memref<128x128xbf16, #tpu.memory_space<vmem>>, vector<128x128xbf16>
    %cst_10 = arith.constant dense<0.000000e+00> : vector<128x128xf32>
    %12 = tpu.matmul %10, %11, %cst_10 {dimension_numbers = #tpu.dot_dimension_numbers<[1], [0], [0], [1], [0, 0, 1, 1], [], []>} : vector<128x128xbf16>, vector<128x128xbf16>, vector<128x128xf32> -> vector<128x128xf32>
    %13 = arith.addf %9, %12 : vector<128x128xf32>
    %cst_11 = arith.constant 0.000000e+00 : f32
    %14 = vector.broadcast %cst_11 : f32 to vector<128x128xf32>
    %15 = arith.maximumf %13, %14 : vector<128x128xf32>
    %16 = arith.truncf %15 : vector<128x128xf32> to vector<128x128xbf16>
    %c0_12 = arith.constant 0 : index
    %c0_13 = arith.constant 0 : index
    %17 = vector.load %arg7[%c0_12, %c0_13] : memref<128x128xbf16, #tpu.memory_space<vmem>>, vector<128x128xbf16>
    %cst_14 = arith.constant dense<0.000000e+00> : vector<128x128xf32>
    %18 = tpu.matmul %16, %17, %cst_14 {dimension_numbers = #tpu.dot_dimension_numbers<[1], [0], [0], [1], [0, 0, 1, 1], [], []>} : vector<128x128xbf16>, vector<128x128xbf16>, vector<128x128xf32> -> vector<128x128xf32>
    %c0_15 = arith.constant 0 : index
    %c0_16 = arith.constant 0 : index
    %19 = vector.load %arg8[%c0_15, %c0_16] : memref<1x128xf32, #tpu.memory_space<vmem>>, vector<1x128xf32>
    %20 = vector.broadcast %19 : vector<1x128xf32> to vector<128x128xf32>
    %21 = arith.addf %18, %20 : vector<128x128xf32>
    %c0_17 = arith.constant 0 : index
    %c0_18 = arith.constant 0 : index
    %22 = vector.load %arg4[%c0_17, %c0_18] : memref<128x128xf32, #tpu.memory_space<vmem>>, vector<128x128xf32>
    %23 = arith.addf %21, %22 : vector<128x128xf32>
    %c0_19 = arith.constant 0 : index
    %c0_20 = arith.constant 0 : index
    %24 = vector.load %arg9[%c0_19, %c0_20] : memref<128x128xf32, #tpu.memory_space<vmem>>, vector<128x128xf32>
    tpu.vector_store %arg9[%c0_19, %c0_20], %23 {strides = array<i32>} : memref<128x128xf32, #tpu.memory_space<vmem>>, vector<128x128xf32>,
    return
  }
  func.func @transform_0(%arg0: i32) -> (i32, i32) {
    %c0_i32 = arith.constant 0 : i32
    %c0_i32_0 = arith.constant 0 : i32
    return %arg0, %c0_i32 : i32, i32
  }
  func.func @transform_1(%arg0: i32) -> (i32, i32) {
    %c0_i32 = arith.constant 0 : i32
    %c0_i32_0 = arith.constant 0 : i32
    %c0_i32_1 = arith.constant 0 : i32
    return %c0_i32, %c0_i32_0 : i32, i32
  }
  func.func @transform_2(%arg0: i32) -> (i32, i32) {
    %c0_i32 = arith.constant 0 : i32
    %c0_i32_0 = arith.constant 0 : i32
    return %arg0, %c0_i32 : i32, i32
  }
  func.func @transform_3(%arg0: i32) -> (i32, i32) {
    %c0_i32 = arith.constant 0 : i32
    %c0_i32_0 = arith.constant 0 : i32
    return %arg0, %c0_i32 : i32, i32
  }
  func.func @transform_4(%arg0: i32) -> (i32, i32) {
    %c0_i32 = arith.constant 0 : i32
    %c0_i32_0 = arith.constant 0 : i32
    %c0_i32_1 = arith.constant 0 : i32
    return %c0_i32, %c0_i32_0 : i32, i32
  }
  func.func @transform_5(%arg0: i32) -> (i32, i32) {
    %c0_i32 = arith.constant 0 : i32
    %c0_i32_0 = arith.constant 0 : i32
    %c0_i32_1 = arith.constant 0 : i32
    return %c0_i32, %c0_i32_0 : i32, i32
  }
  func.func @transform_6(%arg0: i32) -> (i32, i32) {
    %c0_i32 = arith.constant 0 : i32
    %c0_i32_0 = arith.constant 0 : i32
    %c0_i32_1 = arith.constant 0 : i32
    return %c0_i32, %c0_i32_0 : i32, i32
  }
  func.func @transform_7(%arg0: i32) -> (i32, i32) {
    %c0_i32 = arith.constant 0 : i32
    %c0_i32_0 = arith.constant 0 : i32
    %c0_i32_1 = arith.constant 0 : i32
    return %c0_i32, %c0_i32_0 : i32, i32
  }
  func.func @transform_8(%arg0: i32) -> (i32, i32) {
    %c0_i32 = arith.constant 0 : i32
    %c0_i32_0 = arith.constant 0 : i32
    return %arg0, %c0_i32 : i32, i32
  }
}

</mosaic_0001>

<llo_original>
// kernel: neg.0
$region0: #{neg.0}
  #allocation0 [shape = 's32[1]{0}', space=sflag, size = 0x4, scoped, tag = 'scoped memory for neg.0']
  %s0 = inlined_call_operand.vmem [shape: f32[64], index: 0, kind: input, shape index: {}]
  %s1 = inlined_call_operand.vmem [shape: f32[64], index: 1, kind: output, shape index: {}]
  %v2 = vld [vmem:[%s0] sm:$0x1]
  %3 = xla_tuple %v2
  %4 = xla_tuple %3
  %v5 = vxor.u32 %v2, 2147483648
  %6 = xla_tuple %v5
  %7 = vst [vmem:[%s1] sm:$0x1] %v5

// kernel: tide_block_forward.3
$region0: #{tide_block_forward.3}
  #allocation0 [shape = 'u32[]', space=smem, size = 0x4, offset = 0x4, fixed_abs, tag = 'smem constant byte address 0x4 - core index']
  #allocation1 [shape = 'u32[144,128]{1,0:T(1,128)}', space=vmem, size = 0x12000, scoped, tag = 'internal scratch']
  %s0 = inlined_call_operand.hbm [shape: bf16[512,512], index: 0, kind: input, shape index: {}]
  %s1 = inlined_call_operand.hbm [shape: bf16[512,128], index: 1, kind: input, shape index: {}]
  %s2 = inlined_call_operand.hbm [shape: bf16[512,128], index: 2, kind: input, shape index: {}]
  %s3 = inlined_call_operand.hbm [shape: f32[512,128], index: 3, kind: input, shape index: {}]
  %s4 = inlined_call_operand.hbm [shape: f32[1,128], index: 4, kind: input, shape index: {}]
  %s5 = inlined_call_operand.hbm [shape: bf16[128,128], index: 5, kind: input, shape index: {}]
  %s6 = inlined_call_operand.hbm [shape: bf16[128,128], index: 6, kind: input, shape index: {}]
  %s7 = inlined_call_operand.hbm [shape: f32[1,128], index: 7, kind: input, shape index: {}]
  %s8 = inlined_call_operand.hbm [shape: f32[512,128], index: 8, kind: output, shape index: {}]
  %s9 = sld [smem:[#allocation0]]
  $region97: #{tide_block_forward.3} parent=0
    _
  %s11 = ssub.s32 1, %s9
  %s12 = scalar_select 0, %s11, %s9
  $region1: #{tide_block_forward.3} parent=0
    #allocation2 [shape = 'u8[262144]{0}', space=vmem, size = 0x40000, scoped, tag = 'input window, operand 0']
    #allocation3 [shape = 's32[2]{0}', space=sflag, size = 0x8, scoped, tag = 'scoped memory for tide_block_forward.3']
    #allocation4 [shape = 's32[2]{0}', space=sflag, size = 0x8, scoped, tag = 'scoped memory for tide_block_forward.3']
    #allocation5 [shape = 'u8[131072]{0}', space=vmem, size = 0x20000, scoped, tag = 'input window, operand 1, single buffered']
    #allocation6 [shape = 's32[1]{0}', space=sflag, size = 0x4, scoped, tag = 'scoped memory for tide_block_forward.3']
    #allocation7 [shape = 'u8[65536]{0}', space=vmem, size = 0x10000, scoped, tag = 'input window, operand 2']
    #allocation8 [shape = 'u8[131072]{0}', space=vmem, size = 0x20000, scoped, tag = 'input window, operand 3']
    #allocation9 [shape = 'u8[512]{0}', space=vmem, size = 0x400, scoped, tag = 'input window, operand 4, single buffered']
    #allocation10 [shape = 'u8[32768]{0}', space=vmem, size = 0x8000, scoped, tag = 'input window, operand 5, single buffered']
    #allocation11 [shape = 's32[1]{0}', space=sflag, size = 0x4, scoped, tag = 'scoped memory for tide_block_forward.3']
    #allocation12 [shape = 'u8[32768]{0}', space=vmem, size = 0x8000, scoped, tag = 'input window, operand 6, single buffered']
    #allocation13 [shape = 'u8[512]{0}', space=vmem, size = 0x400, scoped, tag = 'input window, operand 7, single buffered']
    #allocation14 [shape = 's32[1]{0}', space=sflag, size = 0x4, scoped, tag = 'scoped memory for tide_block_forward.3']
    #allocation15 [shape = 'u8[131072]{0}', space=vmem, size = 0x20000, scoped, tag = 'output window, operand 0']
    %13 = vsyncpa [#allocation3], 0
    %s14 = scalar_lea.sflag [#allocation3], 1
    %15 = vsyncpa %s14, 0
    %16 = vsyncpa [#allocation6], 0
    %17 = vsyncpa [#allocation11], 0
    %18 = vsyncpa [#allocation14], 0
    %19 = vsyncpa [#allocation4], 0
    %s20 = scalar_lea.sflag [#allocation4], 1
    %21 = vsyncpa %s20, 0
    loop: start=0, step=1, limit=6
    $region2: #{tide_block_forward.3} parent=1 // loop_pre_header
      _
    $region3: #{tide_block_forward.3} parent=1 // loop_header
      %s23 = sphi 0, %s27
      %p24 = scmp.ge.s32.totalorder %s23, 6
      %s33 = sphi 0, %s35
      %s36 = sphi 0, %s33
      %s37 = sphi 0, %s36
      %s53 = sphi 0, %s37
      %s57 = sphi 0, %s57
      %s59 = sphi 0, %s57
      %s60 = sphi 0, %s59
      %s74 = sphi 0, %s60
      %s80 = sphi 0, %s82
      %s83 = sphi 0, %s80
      %s84 = sphi 0, %s83
      %s100 = sphi 0, %s84
      %s106 = sphi 0, %s108
      %s109 = sphi 0, %s106
      %s110 = sphi 0, %s109
      %s126 = sphi 0, %s110
      %s130 = sphi 0, %s130
      %s132 = sphi 0, %s130
      %s133 = sphi 0, %s132
      %s147 = sphi 0, %s133
      %s151 = sphi 0, %s151
      %s153 = sphi 0, %s151
      %s154 = sphi 0, %s153
      %s168 = sphi 0, %s154
      %s172 = sphi 0, %s172
      %s174 = sphi 0, %s172
      %s175 = sphi 0, %s174
      %s189 = sphi 0, %s175
      %s193 = sphi 0, %s193
      %s195 = sphi 0, %s193
      %s196 = sphi 0, %s195
      %s210 = sphi 0, %s196
      %s216 = sphi 0, %s218
      %s219 = sphi 0, %s216
      %s220 = sphi 0, %s219
      %s236 = sphi 0, %s220
    $region4: #{tide_block_forward.3} parent=1 // loop_header_branch
      %26 = sbr.rel (%p24) target = $region8
    $region5: #{tide_block_forward.3} parent=1 // loop_body
      %s28 = ssub.s32 %s23, 1
      %s29 = ssub.s32 %s23, 2
      %s30 = sadd.s32 %s23, 1
      %s31 = ssub.s32 %s23, %s30
      %p32 = scmp.eq.s32.totalorder %s31, 0
      %s34 = sadd.s32 %s33, 1
      %s35 = scalar_select %p32, %s33, %s34
      %p38 = pneg %p32
      %p39 = scmp.eq.s32.totalorder %s23, 3
      %p40 = por %p38, %p39
      %p41 = scmp.ne.s32.totalorder %s33, %s36
      %p42 = scmp.eq.s32.totalorder %s23, 0
      %p43 = por %p41, %p42
      %p44 = scmp.ne.s32.totalorder %s33, %s36
      %p45 = scmp.eq.s32.totalorder %s28, 3
      %p46 = por %p44, %p45
      %p47 = scmp.ne.s32.totalorder %s36, %s37
      %p48 = scmp.eq.s32.totalorder %s28, 0
      %p49 = por %p47, %p48
      %p50 = scmp.ne.s32.totalorder %s36, %s37
      %p51 = scmp.eq.s32.totalorder %s29, 3
      %p52 = por %p50, %p51
      %p54 = scmp.ne.s32.totalorder %s37, %s53
      %p55 = scmp.eq.s32.totalorder %s29, 0
      %p56 = por %p54, %p55
      %s58 = sadd.s32 %s57, 1
      %p61 = scmp.eq.s32.totalorder %s23, 3
      %p62 = scmp.ne.s32.totalorder %s57, %s59
      %p63 = scmp.eq.s32.totalorder %s23, 0
      %p64 = por %p62, %p63
      %p65 = scmp.ne.s32.totalorder %s57, %s59
      %p66 = scmp.eq.s32.totalorder %s28, 3
      %p67 = por %p65, %p66
      %p68 = scmp.ne.s32.totalorder %s59, %s60
      %p69 = scmp.eq.s32.totalorder %s28, 0
      %p70 = por %p68, %p69
      %p71 = scmp.ne.s32.totalorder %s59, %s60
      %p72 = scmp.eq.s32.totalorder %s29, 3
      %p73 = por %p71, %p72
      %p75 = scmp.ne.s32.totalorder %s60, %s74
      %p76 = scmp.eq.s32.totalorder %s29, 0
      %p77 = por %p75, %p76
      %s78 = ssub.s32 %s23, %s30
      %p79 = scmp.eq.s32.totalorder %s78, 0
      %s81 = sadd.s32 %s80, 1
      %s82 = scalar_select %p79, %s80, %s81
      %p85 = pneg %p79
      %p86 = scmp.eq.s32.totalorder %s23, 3
      %p87 = por %p85, %p86
      %p88 = scmp.ne.s32.totalorder %s80, %s83
      %p89 = scmp.eq.s32.totalorder %s23, 0
      %p90 = por %p88, %p89
      %p91 = scmp.ne.s32.totalorder %s80, %s83
      %p92 = scmp.eq.s32.totalorder %s28, 3
      %p93 = por %p91, %p92
      %p94 = scmp.ne.s32.totalorder %s83, %s84
      %p95 = scmp.eq.s32.totalorder %s28, 0
      %p96 = por %p94, %p95
      %p97 = scmp.ne.s32.totalorder %s83, %s84
      %p98 = scmp.eq.s32.totalorder %s29, 3
      %p99 = por %p97, %p98
      %p101 = scmp.ne.s32.totalorder %s84, %s100
      %p102 = scmp.eq.s32.totalorder %s29, 0
      %p103 = por %p101, %p102
      %s104 = ssub.s32 %s23, %s30
      %p105 = scmp.eq.s32.totalorder %s104, 0
      %s107 = sadd.s32 %s106, 1
      %s108 = scalar_select %p105, %s106, %s107
      %p111 = pneg %p105
      %p112 = scmp.eq.s32.totalorder %s23, 3
      %p113 = por %p111, %p112
      %p114 = scmp.ne.s32.totalorder %s106, %s109
      %p115 = scmp.eq.s32.totalorder %s23, 0
      %p116 = por %p114, %p115
      %p117 = scmp.ne.s32.totalorder %s106, %s109
      %p118 = scmp.eq.s32.totalorder %s28, 3
      %p119 = por %p117, %p118
      %p120 = scmp.ne.s32.totalorder %s109, %s110
      %p121 = scmp.eq.s32.totalorder %s28, 0
      %p122 = por %p120, %p121
      %p123 = scmp.ne.s32.totalorder %s109, %s110
      %p124 = scmp.eq.s32.totalorder %s29, 3
      %p125 = por %p123, %p124
      %p127 = scmp.ne.s32.totalorder %s110, %s126
      %p128 = scmp.eq.s32.totalorder %s29, 0
      %p129 = por %p127, %p128
      %s131 = sadd.s32 %s130, 1
      %p134 = scmp.eq.s32.totalorder %s23, 3
      %p135 = scmp.ne.s32.totalorder %s130, %s132
      %p136 = scmp.eq.s32.totalorder %s23, 0
      %p137 = por %p135, %p136
      %p138 = scmp.ne.s32.totalorder %s130, %s132
      %p139 = scmp.eq.s32.totalorder %s28, 3
      %p140 = por %p138, %p139
      %p141 = scmp.ne.s32.totalorder %s132, %s133
      %p142 = scmp.eq.s32.totalorder %s28, 0
      %p143 = por %p141, %p142
      %p144 = scmp.ne.s32.totalorder %s132, %s133
      %p145 = scmp.eq.s32.totalorder %s29, 3
      %p146 = por %p144, %p145
      %p148 = scmp.ne.s32.totalorder %s133, %s147
      %p149 = scmp.eq.s32.totalorder %s29, 0
      %p150 = por %p148, %p149
      %s152 = sadd.s32 %s151, 1
      %p155 = scmp.eq.s32.totalorder %s23, 3
      %p156 = scmp.ne.s32.totalorder %s151, %s153
      %p157 = scmp.eq.s32.totalorder %s23, 0
      %p158 = por %p156, %p157
      %p159 = scmp.ne.s32.totalorder %s151, %s153
      %p160 = scmp.eq.s32.totalorder %s28, 3
      %p161 = por %p159, %p160
      %p162 = scmp.ne.s32.totalorder %s153, %s154
      %p163 = scmp.eq.s32.totalorder %s28, 0
      %p164 = por %p162, %p163
      %p165 = scmp.ne.s32.totalorder %s153, %s154
      %p166 = scmp.eq.s32.totalorder %s29, 3
      %p167 = por %p165, %p166
      %p169 = scmp.ne.s32.totalorder %s154, %s168
      %p170 = scmp.eq.s32.totalorder %s29, 0
      %p171 = por %p169, %p170
      %s173 = sadd.s32 %s172, 1
      %p176 = scmp.eq.s32.totalorder %s23, 3
      %p177 = scmp.ne.s32.totalorder %s172, %s174
      %p178 = scmp.eq.s32.totalorder %s23, 0
      %p179 = por %p177, %p178
      %p180 = scmp.ne.s32.totalorder %s172, %s174
      %p181 = scmp.eq.s32.totalorder %s28, 3
      %p182 = por %p180, %p181
      %p183 = scmp.ne.s32.totalorder %s174, %s175
      %p184 = scmp.eq.s32.totalorder %s28, 0
      %p185 = por %p183, %p184
      %p186 = scmp.ne.s32.totalorder %s174, %s175
      %p187 = scmp.eq.s32.totalorder %s29, 3
      %p188 = por %p186, %p187
      %p190 = scmp.ne.s32.totalorder %s175, %s189
      %p191 = scmp.eq.s32.totalorder %s29, 0
      %p192 = por %p190, %p191
      %s194 = sadd.s32 %s193, 1
      %p197 = scmp.eq.s32.totalorder %s23, 3
      %p198 = scmp.ne.s32.totalorder %s193, %s195
      %p199 = scmp.eq.s32.totalorder %s23, 0
      %p200 = por %p198, %p199
      %p201 = scmp.ne.s32.totalorder %s193, %s195
      %p202 = scmp.eq.s32.totalorder %s28, 3
      %p203 = por %p201, %p202
      %p204 = scmp.ne.s32.totalorder %s195, %s196
      %p205 = scmp.eq.s32.totalorder %s28, 0
      %p206 = por %p204, %p205
      %p207 = scmp.ne.s32.totalorder %s195, %s196
      %p208 = scmp.eq.s32.totalorder %s29, 3
      %p209 = por %p207, %p208
      %p211 = scmp.ne.s32.totalorder %s196, %s210
      %p212 = scmp.eq.s32.totalorder %s29, 0
      %p213 = por %p211, %p212
      %s214 = ssub.s32 %s23, %s30
      %p215 = scmp.eq.s32.totalorder %s214, 0
      %s217 = sadd.s32 %s216, 1
      %s218 = scalar_select %p215, %s216, %s217
      %p221 = pneg %p215
      %p222 = scmp.eq.s32.totalorder %s23, 3
      %p223 = por %p221, %p222
      %p224 = scmp.ne.s32.totalorder %s216, %s219
      %p225 = scmp.eq.s32.totalorder %s23, 0
      %p226 = por %p224, %p225
      %p227 = scmp.ne.s32.totalorder %s216, %s219
      %p228 = scmp.eq.s32.totalorder %s28, 3
      %p229 = por %p227, %p228
      %p230 = scmp.ne.s32.totalorder %s219, %s220
      %p231 = scmp.eq.s32.totalorder %s28, 0
      %p232 = por %p230, %p231
      %p233 = scmp.ne.s32.totalorder %s219, %s220
      %p234 = scmp.eq.s32.totalorder %s29, 3
      %p235 = por %p233, %p234
      %p237 = scmp.ne.s32.totalorder %s220, %s236
      %p238 = scmp.eq.s32.totalorder %s29, 0
      %p239 = por %p237, %p238
      %p240 = scmp.le.s32.totalorder 1, %s23
      %p241 = scmp.lt.s32.totalorder %s23, 5
      %p242 = pnand %p240, %p241
      %p243 = pneg %p242
      // Predicated region
      $region9: #{tide_block_forward.3} parent=5 // pred_check
        _
      $region10: #{tide_block_forward.3} parent=5 // pred_check_branch
        %245 = sbr.rel (%p242) target = $region12
      $region11: #{tide_block_forward.3} parent=5 // pred_region
        %s246 = ssub.s32 %s23, 1
        // Predicated region
        $region13: #{tide_block_forward.3} parent=11 // pred_check
          %p247 = pneg %p70
        $region14: #{tide_block_forward.3} parent=11 // pred_check_branch
          %249 = sbr.rel (%p247) target = $region16
        $region15: #{tide_block_forward.3} parent=11 // pred_region
          %s251 = ssub.s32 4096, 4096
          %252 = vsyncadd [#allocation6], %s251
          %s253 = sshll.u32 [#allocation5], 4
          %s254 = int_to_ptr.vmem [resolvable:$true] %s253
          %259 = dma.hbm_to_vmem [thread:$0]  %s1, 4096, %s254, [#allocation6], 64, 64, 4
        $region16: #{tide_block_forward.3} parent=11 // pred_fallthru
          _
        // Predicated region
        $region17: #{tide_block_forward.3} parent=11 // pred_check
          %p260 = pneg %p143
        $region18: #{tide_block_forward.3} parent=11 // pred_check_branch
          %262 = sbr.rel (%p260) target = $region20
        $region19: #{tide_block_forward.3} parent=11 // pred_region
          %s264 = ssub.s32 16, 16
          %265 = vsyncadd [#allocation6], %s264
          %s267 = sshll.u32 [#allocation9], 4
          %s268 = int_to_ptr.vmem [resolvable:$true] %s267
          %270 = dma.hbm_to_vmem [thread:$0]  %s4, 16, %s268, [#allocation6]
        $region20: #{tide_block_forward.3} parent=11 // pred_fallthru
          _
        // Predicated region
        $region21: #{tide_block_forward.3} parent=11 // pred_check
          %p271 = pneg %p164
        $region22: #{tide_block_forward.3} parent=11 // pred_check_branch
          %273 = sbr.rel (%p271) target = $region24
        $region23: #{tide_block_forward.3} parent=11 // pred_region
          %s275 = ssub.s32 1024, 1024
          %276 = vsyncadd [#allocation11], %s275
          %s277 = sshll.u32 [#allocation10], 4
          %s278 = int_to_ptr.vmem [resolvable:$true] %s277
          %283 = dma.hbm_to_vmem [thread:$0]  %s5, 1024, %s278, [#allocation11], 64, 64, 4
        $region24: #{tide_block_forward.3} parent=11 // pred_fallthru
          _
        // Predicated region
        $region25: #{tide_block_forward.3} parent=11 // pred_check
          %p284 = pneg %p185
        $region26: #{tide_block_forward.3} parent=11 // pred_check_branch
          %286 = sbr.rel (%p284) target = $region28
        $region27: #{tide_block_forward.3} parent=11 // pred_region
          %s288 = ssub.s32 1024, 1024
          %289 = vsyncadd [#allocation11], %s288
          %s290 = sshll.u32 [#allocation12], 4
          %s291 = int_to_ptr.vmem [resolvable:$true] %s290
          %296 = dma.hbm_to_vmem [thread:$0]  %s6, 1024, %s291, [#allocation11], 64, 64, 4
        $region28: #{tide_block_forward.3} parent=11 // pred_fallthru
          _
        // Predicated region
        $region29: #{tide_block_forward.3} parent=11 // pred_check
          %p297 = pneg %p206
        $region30: #{tide_block_forward.3} parent=11 // pred_check_branch
          %299 = sbr.rel (%p297) target = $region32
        $region31: #{tide_block_forward.3} parent=11 // pred_region
          %s301 = ssub.s32 16, 16
          %302 = vsyncadd [#allocation14], %s301
          %s304 = sshll.u32 [#allocation13], 4
          %s305 = int_to_ptr.vmem [resolvable:$true] %s304
          %307 = dma.hbm_to_vmem [thread:$0]  %s7, 16, %s305, [#allocation14]
        $region32: #{tide_block_forward.3} parent=11 // pred_fallthru
          _
      $region12: #{tide_block_forward.3} parent=5 // pred_fallthru
        _
      %p308 = scmp.lt.s32.totalorder %s23, 4
      // Predicated region
      $region33: #{tide_block_forward.3} parent=5 // pred_check
        %p309 = pneg %p308
      $region34: #{tide_block_forward.3} parent=5 // pred_check_branch
        %311 = sbr.rel (%p309) target = $region36
      $region35: #{tide_block_forward.3} parent=5 // pred_region
        // Predicated region
        $region37: #{tide_block_forward.3} parent=35 // pred_check
          %p312 = pneg %p43
        $region38: #{tide_block_forward.3} parent=35 // pred_check_branch
          %314 = sbr.rel (%p312) target = $region40
        $region39: #{tide_block_forward.3} parent=35 // pred_region
          %s315 = sand.u32 %s23, 1
          %s316 = scalar_lea.sflag [#allocation3], %s315
          %s317 = sand.u32 %s33, 1
          %s318 = smul.addr %s317, 256
          %s319 = scalar_lea.vmem [#allocation2], %s318
          %s320 = smul.u32 16, %s23
          %s322 = ssub.s32 4096, 4096
          %323 = vsyncadd %s316, %s322
          %s324 = smul.addr %s320, 4
          %s325 = smul.addr %s324, 64
          %s326 = scalar_lea.hbm %s0, %s325
          %s327 = sshll.u32 %s319, 4
          %s328 = int_to_ptr.vmem [resolvable:$true] %s327
          %333 = dma.hbm_to_vmem [thread:$0]  %s326, 4096, %s328, %s316, 256, 256, 16
        $region40: #{tide_block_forward.3} parent=35 // pred_fallthru
          _
        // Predicated region
        $region41: #{tide_block_forward.3} parent=35 // pred_check
          %p334 = pneg %p90
        $region42: #{tide_block_forward.3} parent=35 // pred_check_branch
          %336 = sbr.rel (%p334) target = $region44
        $region43: #{tide_block_forward.3} parent=35 // pred_region
          %s337 = sand.u32 %s23, 1
          %s338 = scalar_lea.sflag [#allocation3], %s337
          %s339 = sand.u32 %s80, 1
          %s340 = smul.addr %s339, 64
          %s341 = scalar_lea.vmem [#allocation7], %s340
          %s342 = smul.u32 16, %s23
          %s344 = ssub.s32 1024, 1024
          %345 = vsyncadd %s338, %s344
          %s346 = smul.addr %s342, 64
          %s347 = scalar_lea.hbm %s2, %s346
          %s348 = sshll.u32 %s341, 4
          %s349 = int_to_ptr.vmem [resolvable:$true] %s348
          %354 = dma.hbm_to_vmem [thread:$0]  %s347, 1024, %s349, %s338, 64, 64, 4
        $region44: #{tide_block_forward.3} parent=35 // pred_fallthru
          _
        // Predicated region
        $region45: #{tide_block_forward.3} parent=35 // pred_check
          %p355 = pneg %p116
        $region46: #{tide_block_forward.3} parent=35 // pred_check_branch
          %357 = sbr.rel (%p355) target = $region48
        $region47: #{tide_block_forward.3} parent=35 // pred_region
          %s358 = sand.u32 %s23, 1
          %s359 = scalar_lea.sflag [#allocation3], %s358
          %s360 = sand.u32 %s106, 1
          %s361 = smul.addr %s360, 128
          %s362 = scalar_lea.vmem [#allocation8], %s361
          %s363 = smul.u32 16, %s23
          %s365 = ssub.s32 2048, 2048
          %366 = vsyncadd %s359, %s365
          %s367 = smul.addr %s363, 128
          %s368 = scalar_lea.hbm %s3, %s367
          %s369 = sshll.u32 %s362, 4
          %s370 = int_to_ptr.vmem [resolvable:$true] %s369
          %375 = dma.hbm_to_vmem [thread:$0]  %s368, 2048, %s370, %s359, 128, 128, 8
        $region48: #{tide_block_forward.3} parent=35 // pred_fallthru
          _
      $region36: #{tide_block_forward.3} parent=5 // pred_fallthru
        _
      %p376 = scmp.le.s32.totalorder 1, %s23
      %p377 = scmp.lt.s32.totalorder %s23, 5
      %p378 = pnand %p376, %p377
      %p379 = pneg %p378
      // Predicated region
      $region49: #{tide_block_forward.3} parent=5 // pred_check
        _
      $region50: #{tide_block_forward.3} parent=5 // pred_check_branch
        %381 = sbr.rel (%p378) target = $region52
      $region51: #{tide_block_forward.3} parent=5 // pred_region
        %s382 = ssub.s32 %s23, 1
        %s383 = sand.u32 %s28, 1
        %s384 = scalar_lea.sflag [#allocation3], %s383
        %s385 = sand.u32 %s36, 1
        %s386 = smul.addr %s385, 256
        %s387 = scalar_lea.vmem [#allocation2], %s386
        // Predicated region
        $region53: #{tide_block_forward.3} parent=51 // pred_check
          %p388 = pneg %p49
        $region54: #{tide_block_forward.3} parent=51 // pred_check_branch
          %390 = sbr.rel (%p388) target = $region56
        $region55: #{tide_block_forward.3} parent=51 // pred_region
          %391 = dma.done %s384, 4096
        $region56: #{tide_block_forward.3} parent=51 // pred_fallthru
          _
        // Predicated region
        $region57: #{tide_block_forward.3} parent=51 // pred_check
          %p392 = pneg %p70
        $region58: #{tide_block_forward.3} parent=51 // pred_check_branch
          %394 = sbr.rel (%p392) target = $region60
        $region59: #{tide_block_forward.3} parent=51 // pred_region
          %395 = dma.done [#allocation6], 4096
        $region60: #{tide_block_forward.3} parent=51 // pred_fallthru
          _
        %s396 = sand.u32 %s28, 1
        %s397 = scalar_lea.sflag [#allocation3], %s396
        %s398 = sand.u32 %s83, 1
        %s399 = smul.addr %s398, 64
        %s400 = scalar_lea.vmem [#allocation7], %s399
        // Predicated region
        $region61: #{tide_block_forward.3} parent=51 // pred_check
          %p401 = pneg %p96
        $region62: #{tide_block_forward.3} parent=51 // pred_check_branch
          %403 = sbr.rel (%p401) target = $region64
        $region63: #{tide_block_forward.3} parent=51 // pred_region
          %404 = dma.done %s397, 1024
        $region64: #{tide_block_forward.3} parent=51 // pred_fallthru
          _
        %s405 = sand.u32 %s28, 1
        %s406 = scalar_lea.sflag [#allocation3], %s405
        %s407 = sand.u32 %s109, 1
        %s408 = smul.addr %s407, 128
        %s409 = scalar_lea.vmem [#allocation8], %s408
        // Predicated region
        $region65: #{tide_block_forward.3} parent=51 // pred_check
          %p410 = pneg %p122
        $region66: #{tide_block_forward.3} parent=51 // pred_check_branch
          %412 = sbr.rel (%p410) target = $region68
        $region67: #{tide_block_forward.3} parent=51 // pred_region
          %413 = dma.done %s406, 2048
        $region68: #{tide_block_forward.3} parent=51 // pred_fallthru
          _
        // Predicated region
        $region69: #{tide_block_forward.3} parent=51 // pred_check
          %p414 = pneg %p143
        $region70: #{tide_block_forward.3} parent=51 // pred_check_branch
          %416 = sbr.rel (%p414) target = $region72
        $region71: #{tide_block_forward.3} parent=51 // pred_region
          %417 = dma.done [#allocation6], 16
        $region72: #{tide_block_forward.3} parent=51 // pred_fallthru
          _
        // Predicated region
        $region73: #{tide_block_forward.3} parent=51 // pred_check
          %p418 = pneg %p164
        $region74: #{tide_block_forward.3} parent=51 // pred_check_branch
          %420 = sbr.rel (%p418) target = $region76
        $region75: #{tide_block_forward.3} parent=51 // pred_region
          %421 = dma.done [#allocation11], 1024
        $region76: #{tide_block_forward.3} parent=51 // pred_fallthru
          _
        // Predicated region
        $region77: #{tide_block_forward.3} parent=51 // pred_check
          %p422 = pneg %p185
        $region78: #{tide_block_forward.3} parent=51 // pred_check_branch
          %424 = sbr.rel (%p422) target = $region80
        $region79: #{tide_block_forward.3} parent=51 // pred_region
          %425 = dma.done [#allocation11], 1024
        $region80: #{tide_block_forward.3} parent=51 // pred_fallthru
          _
        // Predicated region
        $region81: #{tide_block_forward.3} parent=51 // pred_check
          %p426 = pneg %p206
        $region82: #{tide_block_forward.3} parent=51 // pred_check_branch
          %428 = sbr.rel (%p426) target = $region84
        $region83: #{tide_block_forward.3} parent=51 // pred_region
          %429 = dma.done [#allocation14], 16
        $region84: #{tide_block_forward.3} parent=51 // pred_fallthru
          _
        %s430 = sand.u32 %s28, 1
        %s431 = scalar_lea.sflag [#allocation3], %s430
        %s432 = sand.u32 %s36, 1
        %s433 = smul.addr %s432, 256
        %s434 = scalar_lea.vmem [#allocation2], %s433
        %p435 = pneg %p49
        %p436 = pneg %p46
        %p437 = pneg %p70
        %p438 = pneg %p67
        %s439 = sand.u32 %s28, 1
        %s440 = scalar_lea.sflag [#allocation3], %s439
        %s441 = sand.u32 %s83, 1
        %s442 = smul.addr %s441, 64
        %s443 = scalar_lea.vmem [#allocation7], %s442
        %p444 = pneg %p96
        %p445 = pneg %p93
        %s446 = sand.u32 %s28, 1
        %s447 = scalar_lea.sflag [#allocation3], %s446
        %s448 = sand.u32 %s109, 1
        %s449 = smul.addr %s448, 128
        %s450 = scalar_lea.vmem [#allocation8], %s449
        %p451 = pneg %p122
        %p452 = pneg %p119
        %p453 = pneg %p143
        %p454 = pneg %p140
        %p455 = pneg %p164
        %p456 = pneg %p161
        %p457 = pneg %p185
        %p458 = pneg %p182
        %p459 = pneg %p206
        %p460 = pneg %p203
        %p461 = pneg %p232
        %p462 = pneg %p229
        %s463 = sand.u32 %s219, 1
        %s464 = scalar_lea.sflag [#allocation4], %s463
        %s465 = sand.u32 %s219, 1
        %s466 = smul.addr %s465, 128
        %s467 = scalar_lea.vmem [#allocation15], %s466
        %s468 = smul.u32 16, %s28
        %s469 = smul.u32 16, %s28
        %s470 = smul.u32 16, %s28
        %s471 = smul.u32 16, %s28
        %v473 = vld [vmem:[%s387] sm:$0xff]
        %v474 = vld [vmem:[%s387 + $0x8] sm:$0xff]
        %v475 = vld [vmem:[%s387 + $0x10] sm:$0xff]
        %v476 = vld [vmem:[%s387 + $0x18] sm:$0xff]
        %v477 = vld [vmem:[%s387 + $0x20] sm:$0xff]
        %v478 = vld [vmem:[%s387 + $0x28] sm:$0xff]
        %v479 = vld [vmem:[%s387 + $0x30] sm:$0xff]
        %v480 = vld [vmem:[%s387 + $0x38] sm:$0xff]
        %v481 = vld [vmem:[%s387 + $0x40] sm:$0xff]
        %v482 = vld [vmem:[%s387 + $0x48] sm:$0xff]
        %v483 = vld [vmem:[%s387 + $0x50] sm:$0xff]
        %v484 = vld [vmem:[%s387 + $0x58] sm:$0xff]
        %v485 = vld [vmem:[%s387 + $0x60] sm:$0xff]
        %v486 = vld [vmem:[%s387 + $0x68] sm:$0xff]
        %v487 = vld [vmem:[%s387 + $0x70] sm:$0xff]
        %v488 = vld [vmem:[%s387 + $0x78] sm:$0xff]
        %v489 = vld [vmem:[%s387 + $0x80] sm:$0xff]
        %v490 = vld [vmem:[%s387 + $0x88] sm:$0xff]
        %v491 = vld [vmem:[%s387 + $0x90] sm:$0xff]
        %v492 = vld [vmem:[%s387 + $0x98] sm:$0xff]
        %v493 = vld [vmem:[%s387 + $0xa0] sm:$0xff]
        %v494 = vld [vmem:[%s387 + $0xa8] sm:$0xff]
        %v495 = vld [vmem:[%s387 + $0xb0] sm:$0xff]
        %v496 = vld [vmem:[%s387 + $0xb8] sm:$0xff]
        %v497 = vld [vmem:[%s387 + $0xc0] sm:$0xff]
        %v498 = vld [vmem:[%s387 + $0xc8] sm:$0xff]
        %v499 = vld [vmem:[%s387 + $0xd0] sm:$0xff]
        %v500 = vld [vmem:[%s387 + $0xd8] sm:$0xff]
        %v501 = vld [vmem:[%s387 + $0xe0] sm:$0xff]
        %v502 = vld [vmem:[%s387 + $0xe8] sm:$0xff]
        %v503 = vld [vmem:[%s387 + $0xf0] sm:$0xff]
        %v504 = vld [vmem:[%s387 + $0xf8] sm:$0xff]
        %v505 = vld [vmem:[#allocation5] sm:$0xf]
        %v506 = vld [vmem:[#allocation5 + $0x4] sm:$0xf]
        %v507 = vld [vmem:[#allocation5 + $0x8] sm:$0xf]
        %v508 = vld [vmem:[#allocation5 + $0xc] sm:$0xf]
        %v509 = vld [vmem:[#allocation5 + $0x10] sm:$0xf]
        %v510 = vld [vmem:[#allocation5 + $0x14] sm:$0xf]
        %v511 = vld [vmem:[#allocation5 + $0x18] sm:$0xf]
        %v512 = vld [vmem:[#allocation5 + $0x1c] sm:$0xf]
        %v513 = vld [vmem:[#allocation5 + $0x20] sm:$0xf]
        %v514 = vld [vmem:[#allocation5 + $0x24] sm:$0xf]
        %v515 = vld [vmem:[#allocation5 + $0x28] sm:$0xf]
        %v516 = vld [vmem:[#allocation5 + $0x2c] sm:$0xf]
        %v517 = vld [vmem:[#allocation5 + $0x30] sm:$0xf]
        %v518 = vld [vmem:[#allocation5 + $0x34] sm:$0xf]
        %v519 = vld [vmem:[#allocation5 + $0x38] sm:$0xf]
        %v520 = vld [vmem:[#allocation5 + $0x3c] sm:$0xf]
        %v521 = vld [vmem:[#allocation5 + $0x40] sm:$0xf]
        %v522 = vld [vmem:[#allocation5 + $0x44] sm:$0xf]
        %v523 = vld [vmem:[#allocation5 + $0x48] sm:$0xf]
        %v524 = vld [vmem:[#allocation5 + $0x4c] sm:$0xf]
        %v525 = vld [vmem:[#allocation5 + $0x50] sm:$0xf]
        %v526 = vld [vmem:[#allocation5 + $0x54] sm:$0xf]
        %v527 = vld [vmem:[#allocation5 + $0x58] sm:$0xf]
        %v528 = vld [vmem:[#allocation5 + $0x5c] sm:$0xf]
        %v529 = vld [vmem:[#allocation5 + $0x60] sm:$0xf]
        %v530 = vld [vmem:[#allocation5 + $0x64] sm:$0xf]
        %v531 = vld [vmem:[#allocation5 + $0x68] sm:$0xf]
        %v532 = vld [vmem:[#allocation5 + $0x6c] sm:$0xf]
        %v533 = vld [vmem:[#allocation5 + $0x70] sm:$0xf]
        %v534 = vld [vmem:[#allocation5 + $0x74] sm:$0xf]
        %v535 = vld [vmem:[#allocation5 + $0x78] sm:$0xf]
        %v536 = vld [vmem:[#allocation5 + $0x7c] sm:$0xf]
        %v537 = vld [vmem:[#allocation5 + $0x80] sm:$0xf]
        %v538 = vld [vmem:[#allocation5 + $0x84] sm:$0xf]
        %v539 = vld [vmem:[#allocation5 + $0x88] sm:$0xf]
        %v540 = vld [vmem:[#allocation5 + $0x8c] sm:$0xf]
        %v541 = vld [vmem:[#allocation5 + $0x90] sm:$0xf]
        %v542 = vld [vmem:[#allocation5 + $0x94] sm:$0xf]
        %v543 = vld [vmem:[#allocation5 + $0x98] sm:$0xf]
        %v544 = vld [vmem:[#allocation5 + $0x9c] sm:$0xf]
        %v545 = vld [vmem:[#allocation5 + $0xa0] sm:$0xf]
        %v546 = vld [vmem:[#allocation5 + $0xa4] sm:$0xf]
        %v547 = vld [vmem:[#allocation5 + $0xa8] sm:$0xf]
        %v548 = vld [vmem:[#allocation5 + $0xac] sm:$0xf]
        %v549 = vld [vmem:[#allocation5 + $0xb0] sm:$0xf]
        %v550 = vld [vmem:[#allocation5 + $0xb4] sm:$0xf]
        %v551 = vld [vmem:[#allocation5 + $0xb8] sm:$0xf]
        %v552 = vld [vmem:[#allocation5 + $0xbc] sm:$0xf]
        %v553 = vld [vmem:[#allocation5 + $0xc0] sm:$0xf]
        %v554 = vld [vmem:[#allocation5 + $0xc4] sm:$0xf]
        %v555 = vld [vmem:[#allocation5 + $0xc8] sm:$0xf]
        %v556 = vld [vmem:[#allocation5 + $0xcc] sm:$0xf]
        %v557 = vld [vmem:[#allocation5 + $0xd0] sm:$0xf]
        %v558 = vld [vmem:[#allocation5 + $0xd4] sm:$0xf]
        %v559 = vld [vmem:[#allocation5 + $0xd8] sm:$0xf]
        %v560 = vld [vmem:[#allocation5 + $0xdc] sm:$0xf]
        %v561 = vld [vmem:[#allocation5 + $0xe0] sm:$0xf]
        %v562 = vld [vmem:[#allocation5 + $0xe4] sm:$0xf]
        %v563 = vld [vmem:[#allocation5 + $0xe8] sm:$0xf]
        %v564 = vld [vmem:[#allocation5 + $0xec] sm:$0xf]
        %v565 = vld [vmem:[#allocation5 + $0xf0] sm:$0xf]
        %v566 = vld [vmem:[#allocation5 + $0xf4] sm:$0xf]
        %v567 = vld [vmem:[#allocation5 + $0xf8] sm:$0xf]
        %v568 = vld [vmem:[#allocation5 + $0xfc] sm:$0xf]
        %v569 = vld [vmem:[#allocation9] sm:$0x1]
        %v571 = vlaneseq
        %v572 = vshrl.u32 %v571, 7
        %v573 = vsub.s32 0, %v572
        %v574 = vrot.slane %v569, %v573
        %v608 = vunpack.c.l.b16 %v473
        %v609 = vunpack.c.h.b16 %v473
        %v610 = vunpack.c.l.b16 %v474
        %v611 = vunpack.c.h.b16 %v474
        %v612 = vunpack.c.l.b16 %v475
        %v613 = vunpack.c.h.b16 %v475
        %v614 = vunpack.c.l.b16 %v476
        %v615 = vunpack.c.h.b16 %v476
        %v616 = vunpack.c.l.b16 %v477
        %v617 = vunpack.c.h.b16 %v477
        %v618 = vunpack.c.l.b16 %v478
        %v619 = vunpack.c.h.b16 %v478
        %v620 = vunpack.c.l.b16 %v479
        %v621 = vunpack.c.h.b16 %v479
        %v622 = vunpack.c.l.b16 %v480
        %v623 = vunpack.c.h.b16 %v480
        %v624 = vunpack.c.l.b16 %v481
        %v625 = vunpack.c.h.b16 %v481
        %v626 = vunpack.c.l.b16 %v482
        %v627 = vunpack.c.h.b16 %v482
        %v628 = vunpack.c.l.b16 %v483
        %v629 = vunpack.c.h.b16 %v483
        %v630 = vunpack.c.l.b16 %v484
        %v631 = vunpack.c.h.b16 %v484
        %v632 = vunpack.c.l.b16 %v485
        %v633 = vunpack.c.h.b16 %v485
        %v634 = vunpack.c.l.b16 %v486
        %v635 = vunpack.c.h.b16 %v486
        %v636 = vunpack.c.l.b16 %v487
        %v637 = vunpack.c.h.b16 %v487
        %v638 = vunpack.c.l.b16 %v488
        %v639 = vunpack.c.h.b16 %v488
        %v640 = vunpack.c.l.b16 %v489
        %v641 = vunpack.c.h.b16 %v489
        %v642 = vunpack.c.l.b16 %v490
        %v643 = vunpack.c.h.b16 %v490
        %v644 = vunpack.c.l.b16 %v491
        %v645 = vunpack.c.h.b16 %v491
        %v646 = vunpack.c.l.b16 %v492
        %v647 = vunpack.c.h.b16 %v492
        %v648 = vunpack.c.l.b16 %v493
        %v649 = vunpack.c.h.b16 %v493
        %v650 = vunpack.c.l.b16 %v494
        %v651 = vunpack.c.h.b16 %v494
        %v652 = vunpack.c.l.b16 %v495
        %v653 = vunpack.c.h.b16 %v495
        %v654 = vunpack.c.l.b16 %v496
        %v655 = vunpack.c.h.b16 %v496
        %v656 = vunpack.c.l.b16 %v497
        %v657 = vunpack.c.h.b16 %v497
        %v658 = vunpack.c.l.b16 %v498
        %v659 = vunpack.c.h.b16 %v498
        %v660 = vunpack.c.l.b16 %v499
        %v661 = vunpack.c.h.b16 %v499
        %v662 = vunpack.c.l.b16 %v500
        %v663 = vunpack.c.h.b16 %v500
        %v664 = vunpack.c.l.b16 %v501
        %v665 = vunpack.c.h.b16 %v501
        %v666 = vunpack.c.l.b16 %v502
        %v667 = vunpack.c.h.b16 %v502
        %v668 = vunpack.c.l.b16 %v503
        %v669 = vunpack.c.h.b16 %v503
        %v670 = vunpack.c.l.b16 %v504
        %v671 = vunpack.c.h.b16 %v504
        %v672 = vpack.c.b16 %v612, %v608
        %v673 = vpack.c.b16 %v613, %v609
        %v674 = vpack.c.b16 %v614, %v610
        %v675 = vpack.c.b16 %v615, %v611
        %v676 = vpack.c.b16 %v620, %v616
        %v677 = vpack.c.b16 %v621, %v617
        %v678 = vpack.c.b16 %v622, %v618
        %v679 = vpack.c.b16 %v623, %v619
        %v680 = vpack.c.b16 %v628, %v624
        %v681 = vpack.c.b16 %v629, %v625
        %v682 = vpack.c.b16 %v630, %v626
        %v683 = vpack.c.b16 %v631, %v627
        %v684 = vpack.c.b16 %v636, %v632
        %v685 = vpack.c.b16 %v637, %v633
        %v686 = vpack.c.b16 %v638, %v634
        %v687 = vpack.c.b16 %v639, %v635
        %v688 = vpack.c.b16 %v644, %v640
        %v689 = vpack.c.b16 %v645, %v641
        %v690 = vpack.c.b16 %v646, %v642
        %v691 = vpack.c.b16 %v647, %v643
        %v692 = vpack.c.b16 %v652, %v648
        %v693 = vpack.c.b16 %v653, %v649
        %v694 = vpack.c.b16 %v654, %v650
        %v695 = vpack.c.b16 %v655, %v651
        %v696 = vpack.c.b16 %v660, %v656
        %v697 = vpack.c.b16 %v661, %v657
        %v698 = vpack.c.b16 %v662, %v658
        %v699 = vpack.c.b16 %v663, %v659
        %v700 = vpack.c.b16 %v668, %v664
        %v701 = vpack.c.b16 %v669, %v665
        %v702 = vpack.c.b16 %v670, %v666
        %v703 = vpack.c.b16 %v671, %v667
        %v800 = vunpack.c.l.b16 %v505
        %v801 = vunpack.c.l.b16 %v506
        %v802 = vunpack.c.l.b16 %v507
        %v803 = vunpack.c.l.b16 %v508
        %v804 = vunpack.c.l.b16 %v509
        %v805 = vunpack.c.l.b16 %v510
        %v806 = vunpack.c.l.b16 %v511
        %v807 = vunpack.c.l.b16 %v512
        %v808 = vunpack.c.l.b16 %v513
        %v809 = vunpack.c.l.b16 %v514
        %v810 = vunpack.c.l.b16 %v515
        %v811 = vunpack.c.l.b16 %v516
        %v812 = vunpack.c.l.b16 %v517
        %v813 = vunpack.c.l.b16 %v518
        %v814 = vunpack.c.l.b16 %v519
        %v815 = vunpack.c.l.b16 %v520
        %v816 = vunpack.c.l.b16 %v521
        %v817 = vunpack.c.l.b16 %v522
        %v818 = vunpack.c.l.b16 %v523
        %v819 = vunpack.c.l.b16 %v524
        %v820 = vunpack.c.l.b16 %v525
        %v821 = vunpack.c.l.b16 %v526
        %v822 = vunpack.c.l.b16 %v527
        %v823 = vunpack.c.l.b16 %v528
        %v824 = vunpack.c.l.b16 %v529
        %v825 = vunpack.c.l.b16 %v530
        %v826 = vunpack.c.l.b16 %v531
        %v827 = vunpack.c.l.b16 %v532
        %v828 = vunpack.c.l.b16 %v533
        %v829 = vunpack.c.l.b16 %v534
        %v830 = vunpack.c.l.b16 %v535
        %v831 = vunpack.c.l.b16 %v536
        %v832 = vunpack.c.l.b16 %v537
        %v833 = vunpack.c.l.b16 %v538
        %v834 = vunpack.c.l.b16 %v539
        %v835 = vunpack.c.l.b16 %v540
        %v836 = vunpack.c.l.b16 %v541
        %v837 = vunpack.c.l.b16 %v542
        %v838 = vunpack.c.l.b16 %v543
        %v839 = vunpack.c.l.b16 %v544
        %v840 = vunpack.c.l.b16 %v545
        %v841 = vunpack.c.l.b16 %v546
        %v842 = vunpack.c.l.b16 %v547
        %v843 = vunpack.c.l.b16 %v548
        %v844 = vunpack.c.l.b16 %v549
        %v845 = vunpack.c.l.b16 %v550
        %v846 = vunpack.c.l.b16 %v551
        %v847 = vunpack.c.l.b16 %v552
        %v848 = vunpack.c.l.b16 %v553
        %v849 = vunpack.c.l.b16 %v554
        %v850 = vunpack.c.l.b16 %v555
        %v851 = vunpack.c.l.b16 %v556
        %v852 = vunpack.c.l.b16 %v557
        %v853 = vunpack.c.l.b16 %v558
        %v854 = vunpack.c.l.b16 %v559
        %v855 = vunpack.c.l.b16 %v560
        %v856 = vunpack.c.l.b16 %v561
        %v857 = vunpack.c.l.b16 %v562
        %v858 = vunpack.c.l.b16 %v563
        %v859 = vunpack.c.l.b16 %v564
        %v860 = vunpack.c.l.b16 %v565
        %v861 = vunpack.c.l.b16 %v566
        %v862 = vunpack.c.l.b16 %v567
        %v863 = vunpack.c.l.b16 %v568
        %v864 = vpack.c.b16 %v801, %v800
        %v865 = vpack.c.b16 %v803, %v802
        %v866 = vpack.c.b16 %v805, %v804
        %v867 = vpack.c.b16 %v807, %v806
        %v868 = vpack.c.b16 %v809, %v808
        %v869 = vpack.c.b16 %v811, %v810
        %v870 = vpack.c.b16 %v813, %v812
        %v871 = vpack.c.b16 %v815, %v814
        %v872 = vpack.c.b16 %v817, %v816
        %v873 = vpack.c.b16 %v819, %v818
        %v874 = vpack.c.b16 %v821, %v820
        %v875 = vpack.c.b16 %v823, %v822
        %v876 = vpack.c.b16 %v825, %v824
        %v877 = vpack.c.b16 %v827, %v826
        %v878 = vpack.c.b16 %v829, %v828
        %v879 = vpack.c.b16 %v831, %v830
        %v880 = vpack.c.b16 %v833, %v832
        %v881 = vpack.c.b16 %v835, %v834
        %v882 = vpack.c.b16 %v837, %v836
        %v883 = vpack.c.b16 %v839, %v838
        %v884 = vpack.c.b16 %v841, %v840
        %v885 = vpack.c.b16 %v843, %v842
        %v886 = vpack.c.b16 %v845, %v844
        %v887 = vpack.c.b16 %v847, %v846
        %v888 = vpack.c.b16 %v849, %v848
        %v889 = vpack.c.b16 %v851, %v850
        %v890 = vpack.c.b16 %v853, %v852
        %v891 = vpack.c.b16 %v855, %v854
        %v892 = vpack.c.b16 %v857, %v856
        %v893 = vpack.c.b16 %v859, %v858
        %v894 = vpack.c.b16 %v861, %v860
        %v895 = vpack.c.b16 %v863, %v862
        %928 = vmatprep.subr.bf16.mxu0 0
        %929 = vmatpush1.bf16.msra.mxu0 %v864
        %930 = vmatprep.subr.bf16.mxu0 0
        %931 = vmatpush1.bf16.msra.mxu0 %v865
        %932 = vmatprep.subr.bf16.mxu0 0
        %933 = vmatpush1.bf16.msra.mxu0 %v866
        %934 = vmatprep.subr.bf16.mxu0 0
        %935 = vmatpush1.bf16.msra.mxu0 %v867
        %936 = vmatprep.subr.bf16.mxu0 0
        %937 = vmatpush1.bf16.msra.mxu0 %v868
        %938 = vmatprep.subr.bf16.mxu0 0
        %939 = vmatpush1.bf16.msra.mxu0 %v869
        %940 = vmatprep.subr.bf16.mxu0 0
        %941 = vmatpush1.bf16.msra.mxu0 %v870
        %942 = vmatprep.subr.bf16.mxu0 0
        %943 = vmatpush1.bf16.msra.mxu0 %v871
        %944 = vmatprep.subr.bf16.mxu0 0
        %945 = vmatpush1.bf16.msra.mxu0 %v872
        %946 = vmatprep.subr.bf16.mxu0 0
        %947 = vmatpush1.bf16.msra.mxu0 %v873
        %948 = vmatprep.subr.bf16.mxu0 0
        %949 = vmatpush1.bf16.msra.mxu0 %v874
        %950 = vmatprep.subr.bf16.mxu0 0
        %951 = vmatpush1.bf16.msra.mxu0 %v875
        %952 = vmatprep.subr.bf16.mxu0 0
        %953 = vmatpush1.bf16.msra.mxu0 %v876
        %954 = vmatprep.subr.bf16.mxu0 0
        %955 = vmatpush1.bf16.msra.mxu0 %v877
        %956 = vmatprep.subr.bf16.mxu0 0
        %957 = vmatpush1.bf16.msra.mxu0 %v878
        %958 = vmatprep.subr.bf16.mxu0 0
        %959 = vmatpush1.bf16.msra.mxu0 %v879
        %960 = vmatprep.mubr.bf16.mxu0 %v673
        %961 = vmatmul.mubr.bf16.gmra.mrb[0].mxu0 %v672
        %v962 = vpop.f32.mrb[0].mxu0
        %v963 = vadd.f32 %v574, %v962
        %v964 = vpop.f32.mrb[0].mxu0
        %v965 = vpop.f32.mrb[0].mxu0
        %v966 = vadd.f32 %v574, %v965
        %v967 = vpop.f32.mrb[0].mxu0
        %968 = vmatprep.mubr.bf16.mxu0 %v677
        %969 = vmatmul.mubr.bf16.gmra.mrb[0].mxu0 %v676
        %v970 = vpop.f32.mrb[0].mxu0
        %v971 = vadd.f32 %v574, %v970
        %v972 = vpop.f32.mrb[0].mxu0
        %v973 = vpop.f32.mrb[0].mxu0
        %v974 = vadd.f32 %v574, %v973
        %v975 = vpop.f32.mrb[0].mxu0
        %976 = vmatprep.mubr.bf16.mxu0 %v681
        %977 = vmatmul.mubr.bf16.gmra.mrb[0].mxu0 %v680
        %v978 = vpop.f32.mrb[0].mxu0
        %v979 = vadd.f32 %v574, %v978
        %v980 = vpop.f32.mrb[0].mxu0
        %v981 = vpop.f32.mrb[0].mxu0
        %v982 = vadd.f32 %v574, %v981
        %v983 = vpop.f32.mrb[0].mxu0
        %984 = vmatprep.mubr.bf16.mxu0 %v685
        %985 = vmatmul.mubr.bf16.gmra.mrb[0].mxu0 %v684
        %v986 = vpop.f32.mrb[0].mxu0
        %v987 = vadd.f32 %v574, %v986
        %v988 = vpop.f32.mrb[0].mxu0
        %v989 = vpop.f32.mrb[0].mxu0
        %v990 = vadd.f32 %v574, %v989
        %v991 = vpop.f32.mrb[0].mxu0
        %992 = vmatprep.mubr.bf16.mxu0 %v689
        %993 = vmatmul.mubr.bf16.gmra.mrb[0].mxu0 %v688
        %v994 = vpop.f32.mrb[0].mxu0
        %v995 = vadd.f32 %v574, %v994
        %v996 = vpop.f32.mrb[0].mxu0
        %v997 = vpop.f32.mrb[0].mxu0
        %v998 = vadd.f32 %v574, %v997
        %v999 = vpop.f32.mrb[0].mxu0
        %1000 = vmatprep.mubr.bf16.mxu0 %v693
        %1001 = vmatmul.mubr.bf16.gmra.mrb[0].mxu0 %v692
        %v1002 = vpop.f32.mrb[0].mxu0
        %v1003 = vadd.f32 %v574, %v1002
        %v1004 = vpop.f32.mrb[0].mxu0
        %v1005 = vpop.f32.mrb[0].mxu0
        %v1006 = vadd.f32 %v574, %v1005
        %v1007 = vpop.f32.mrb[0].mxu0
        %1008 = vmatprep.mubr.bf16.mxu0 %v697
        %1009 = vmatmul.mubr.bf16.gmra.mrb[0].mxu0 %v696
        %v1010 = vpop.f32.mrb[0].mxu0
        %v1011 = vadd.f32 %v574, %v1010
        %v1012 = vpop.f32.mrb[0].mxu0
        %v1013 = vpop.f32.mrb[0].mxu0
        %v1014 = vadd.f32 %v574, %v1013
        %v1015 = vpop.f32.mrb[0].mxu0
        %1016 = vmatprep.mubr.bf16.mxu0 %v701
        %1017 = vmatmul.mubr.bf16.gmra.mrb[0].mxu0 %v700
        %v1018 = vpop.f32.mrb[0].mxu0
        %v1019 = vadd.f32 %v574, %v1018
        %v1020 = vpop.f32.mrb[0].mxu0
        %v1021 = vpop.f32.mrb[0].mxu0
        %v1022 = vadd.f32 %v574, %v1021
        %v1023 = vpop.f32.mrb[0].mxu0
        %1024 = vdwg.mxu0
        %1025 = vmatprep.subr.bf16.mxu0 0
        %1026 = vmatpush1.bf16.msra.mxu0 %v880
        %1027 = vmatprep.subr.bf16.mxu0 0
        %1028 = vmatpush1.bf16.msra.mxu0 %v881
        %1029 = vmatprep.subr.bf16.mxu0 0
        %1030 = vmatpush1.bf16.msra.mxu0 %v882
        %1031 = vmatprep.subr.bf16.mxu0 0
        %1032 = vmatpush1.bf16.msra.mxu0 %v883
        %1033 = vmatprep.subr.bf16.mxu0 0
        %1034 = vmatpush1.bf16.msra.mxu0 %v884
        %1035 = vmatprep.subr.bf16.mxu0 0
        %1036 = vmatpush1.bf16.msra.mxu0 %v885
        %1037 = vmatprep.subr.bf16.mxu0 0
        %1038 = vmatpush1.bf16.msra.mxu0 %v886
        %1039 = vmatprep.subr.bf16.mxu0 0
        %1040 = vmatpush1.bf16.msra.mxu0 %v887
        %1041 = vmatprep.subr.bf16.mxu0 0
        %1042 = vmatpush1.bf16.msra.mxu0 %v888
        %1043 = vmatprep.subr.bf16.mxu0 0
        %1044 = vmatpush1.bf16.msra.mxu0 %v889
        %1045 = vmatprep.subr.bf16.mxu0 0
        %1046 = vmatpush1.bf16.msra.mxu0 %v890
        %1047 = vmatprep.subr.bf16.mxu0 0
        %1048 = vmatpush1.bf16.msra.mxu0 %v891
        %1049 = vmatprep.subr.bf16.mxu0 0
        %1050 = vmatpush1.bf16.msra.mxu0 %v892
        %1051 = vmatprep.subr.bf16.mxu0 0
        %1052 = vmatpush1.bf16.msra.mxu0 %v893
        %1053 = vmatprep.subr.bf16.mxu0 0
        %1054 = vmatpush1.bf16.msra.mxu0 %v894
        %1055 = vmatprep.subr.bf16.mxu0 0
        %1056 = vmatpush1.bf16.msra.mxu0 %v895
        %1057 = vmatprep.mubr.bf16.mxu0 %v675
        %1058 = vmatmul.mubr.bf16.gmra.mrb[0].mxu0 %v674
        %v1059 = vpop.f32.mrb[0].mxu0
        %v1060 = vadd.f32 %v963, %v1059
        %v1061 = vpop.f32.mrb[0].mxu0
        %v1062 = vpop.f32.mrb[0].mxu0
        %v1063 = vadd.f32 %v966, %v1062
        %v1064 = vpop.f32.mrb[0].mxu0
        %1065 = vmatprep.mubr.bf16.mxu0 %v679
        %1066 = vmatmul.mubr.bf16.gmra.mrb[0].mxu0 %v678
        %v1067 = vpop.f32.mrb[0].mxu0
        %v1068 = vadd.f32 %v971, %v1067
        %v1069 = vpop.f32.mrb[0].mxu0
        %v1070 = vpop.f32.mrb[0].mxu0
        %v1071 = vadd.f32 %v974, %v1070
        %v1072 = vpop.f32.mrb[0].mxu0
        %1073 = vmatprep.mubr.bf16.mxu0 %v683
        %1074 = vmatmul.mubr.bf16.gmra.mrb[0].mxu0 %v682
        %v1075 = vpop.f32.mrb[0].mxu0
        %v1076 = vadd.f32 %v979, %v1075
        %v1077 = vpop.f32.mrb[0].mxu0
        %v1078 = vpop.f32.mrb[0].mxu0
        %v1079 = vadd.f32 %v982, %v1078
        %v1080 = vpop.f32.mrb[0].mxu0
        %1081 = vmatprep.mubr.bf16.mxu0 %v687
        %1082 = vmatmul.mubr.bf16.gmra.mrb[0].mxu0 %v686
        %v1083 = vpop.f32.mrb[0].mxu0
        %v1084 = vadd.f32 %v987, %v1083
        %v1085 = vpop.f32.mrb[0].mxu0
        %v1086 = vpop.f32.mrb[0].mxu0
        %v1087 = vadd.f32 %v990, %v1086
        %v1088 = vpop.f32.mrb[0].mxu0
        %1089 = vmatprep.mubr.bf16.mxu0 %v691
        %1090 = vmatmul.mubr.bf16.gmra.mrb[0].mxu0 %v690
        %v1091 = vpop.f32.mrb[0].mxu0
        %v1092 = vadd.f32 %v995, %v1091
        %v1093 = vpop.f32.mrb[0].mxu0
        %v1094 = vpop.f32.mrb[0].mxu0
        %v1095 = vadd.f32 %v998, %v1094
        %v1096 = vpop.f32.mrb[0].mxu0
        %1097 = vmatprep.mubr.bf16.mxu0 %v695
        %1098 = vmatmul.mubr.bf16.gmra.mrb[0].mxu0 %v694
        %v1099 = vpop.f32.mrb[0].mxu0
        %v1100 = vadd.f32 %v1003, %v1099
        %v1101 = vpop.f32.mrb[0].mxu0
        %v1102 = vpop.f32.mrb[0].mxu0
        %v1103 = vadd.f32 %v1006, %v1102
        %v1104 = vpop.f32.mrb[0].mxu0
        %1105 = vmatprep.mubr.bf16.mxu0 %v699
        %1106 = vmatmul.mubr.bf16.gmra.mrb[0].mxu0 %v698
        %v1107 = vpop.f32.mrb[0].mxu0
        %v1108 = vadd.f32 %v1011, %v1107
        %v1109 = vpop.f32.mrb[0].mxu0
        %v1110 = vpop.f32.mrb[0].mxu0
        %v1111 = vadd.f32 %v1014, %v1110
        %v1112 = vpop.f32.mrb[0].mxu0
        %1113 = vmatprep.mubr.bf16.mxu0 %v703
        %1114 = vmatmul.mubr.bf16.gmra.mrb[0].mxu0 %v702
        %v1115 = vpop.f32.mrb[0].mxu0
        %v1116 = vadd.f32 %v1019, %v1115
        %v1117 = vpop.f32.mrb[0].mxu0
        %v1118 = vpop.f32.mrb[0].mxu0
        %v1119 = vadd.f32 %v1022, %v1118
        %v1120 = vpop.f32.mrb[0].mxu0
        %1121 = vdwg.mxu0
        %v1122 = vmax.f32 %v1060, 0.0
        %v1123 = vmax.f32 %v1063, 0.0
        %v1124 = vmax.f32 %v1068, 0.0
        %v1125 = vmax.f32 %v1071, 0.0
        %v1126 = vmax.f32 %v1076, 0.0
        %v1127 = vmax.f32 %v1079, 0.0
        %v1128 = vmax.f32 %v1084, 0.0
        %v1129 = vmax.f32 %v1087, 0.0
        %v1130 = vmax.f32 %v1092, 0.0
        %v1131 = vmax.f32 %v1095, 0.0
        %v1132 = vmax.f32 %v1100, 0.0
        %v1133 = vmax.f32 %v1103, 0.0
        %v1134 = vmax.f32 %v1108, 0.0
        %v1135 = vmax.f32 %v1111, 0.0
        %v1136 = vmax.f32 %v1116, 0.0
        %v1137 = vmax.f32 %v1119, 0.0
        %v1138 = vld [vmem:[%s400] sm:$0xf]
        %v1139 = vld [vmem:[%s400 + $0x4] sm:$0xf]
        %v1140 = vld [vmem:[%s400 + $0x8] sm:$0xf]
        %v1141 = vld [vmem:[%s400 + $0xc] sm:$0xf]
        %v1142 = vld [vmem:[%s400 + $0x10] sm:$0xf]
        %v1143 = vld [vmem:[%s400 + $0x14] sm:$0xf]
        %v1144 = vld [vmem:[%s400 + $0x18] sm:$0xf]
        %v1145 = vld [vmem:[%s400 + $0x1c] sm:$0xf]
        %v1146 = vld [vmem:[%s400 + $0x20] sm:$0xf]
        %v1147 = vld [vmem:[%s400 + $0x24] sm:$0xf]
        %v1148 = vld [vmem:[%s400 + $0x28] sm:$0xf]
        %v1149 = vld [vmem:[%s400 + $0x2c] sm:$0xf]
        %v1150 = vld [vmem:[%s400 + $0x30] sm:$0xf]
        %v1151 = vld [vmem:[%s400 + $0x34] sm:$0xf]
        %v1152 = vld [vmem:[%s400 + $0x38] sm:$0xf]
        %v1153 = vld [vmem:[%s400 + $0x3c] sm:$0xf]
        %v1154 = vunpack.c.l.bf16 %v1138
        %v1155 = vunpack.c.l.bf16 %v1139
        %v1156 = vunpack.c.l.bf16 %v1140
        %v1157 = vunpack.c.l.bf16 %v1141
        %v1158 = vunpack.c.l.bf16 %v1142
        %v1159 = vunpack.c.l.bf16 %v1143
        %v1160 = vunpack.c.l.bf16 %v1144
        %v1161 = vunpack.c.l.bf16 %v1145
        %v1162 = vunpack.c.l.bf16 %v1146
        %v1163 = vunpack.c.l.bf16 %v1147
        %v1164 = vunpack.c.l.bf16 %v1148
        %v1165 = vunpack.c.l.bf16 %v1149
        %v1166 = vunpack.c.l.bf16 %v1150
        %v1167 = vunpack.c.l.bf16 %v1151
        %v1168 = vunpack.c.l.bf16 %v1152
        %v1169 = vunpack.c.l.bf16 %v1153
        %v1170 = vpack.c.bf16 %v1123, %v1122
        %v1171 = vpack.c.bf16 %v1125, %v1124
        %v1172 = vpack.c.bf16 %v1127, %v1126
        %v1173 = vpack.c.bf16 %v1129, %v1128
        %v1174 = vpack.c.bf16 %v1131, %v1130
        %v1175 = vpack.c.bf16 %v1133, %v1132
        %v1176 = vpack.c.bf16 %v1135, %v1134
        %v1177 = vpack.c.bf16 %v1137, %v1136
        %v1178 = vld [vmem:[#allocation10] sm:$0xf]
        %v1179 = vld [vmem:[#allocation10 + $0x4] sm:$0xf]
        %v1180 = vld [vmem:[#allocation10 + $0x8] sm:$0xf]
        %v1181 = vld [vmem:[#allocation10 + $0xc] sm:$0xf]
        %v1182 = vld [vmem:[#allocation10 + $0x10] sm:$0xf]
        %v1183 = vld [vmem:[#allocation10 + $0x14] sm:$0xf]
        %v1184 = vld [vmem:[#allocation10 + $0x18] sm:$0xf]
        %v1185 = vld [vmem:[#allocation10 + $0x1c] sm:$0xf]
        %v1186 = vld [vmem:[#allocation10 + $0x20] sm:$0xf]
        %v1187 = vld [vmem:[#allocation10 + $0x24] sm:$0xf]
        %v1188 = vld [vmem:[#allocation10 + $0x28] sm:$0xf]
        %v1189 = vld [vmem:[#allocation10 + $0x2c] sm:$0xf]
        %v1190 = vld [vmem:[#allocation10 + $0x30] sm:$0xf]
        %v1191 = vld [vmem:[#allocation10 + $0x34] sm:$0xf]
        %v1192 = vld [vmem:[#allocation10 + $0x38] sm:$0xf]
        %v1193 = vld [vmem:[#allocation10 + $0x3c] sm:$0xf]
        %v1210 = vunpack.c.l.b16 %v1178
        %v1211 = vunpack.c.l.b16 %v1179
        %v1212 = vunpack.c.l.b16 %v1180
        %v1213 = vunpack.c.l.b16 %v1181
        %v1214 = vunpack.c.l.b16 %v1182
        %v1215 = vunpack.c.l.b16 %v1183
        %v1216 = vunpack.c.l.b16 %v1184
        %v1217 = vunpack.c.l.b16 %v1185
        %v1218 = vunpack.c.l.b16 %v1186
        %v1219 = vunpack.c.l.b16 %v1187
        %v1220 = vunpack.c.l.b16 %v1188
        %v1221 = vunpack.c.l.b16 %v1189
        %v1222 = vunpack.c.l.b16 %v1190
        %v1223 = vunpack.c.l.b16 %v1191
        %v1224 = vunpack.c.l.b16 %v1192
        %v1225 = vunpack.c.l.b16 %v1193
        %v1226 = vpack.c.b16 %v1211, %v1210
        %v1227 = vpack.c.b16 %v1213, %v1212
        %v1228 = vpack.c.b16 %v1215, %v1214
        %v1229 = vpack.c.b16 %v1217, %v1216
        %v1230 = vpack.c.b16 %v1219, %v1218
        %v1231 = vpack.c.b16 %v1221, %v1220
        %v1232 = vpack.c.b16 %v1223, %v1222
        %v1233 = vpack.c.b16 %v1225, %v1224
        %1242 = vmatprep.subr.bf16.mxu0 0
        %1243 = vmatpush1.bf16.msra.mxu0 %v1226
        %1244 = vmatprep.subr.bf16.mxu0 0
        %1245 = vmatpush1.bf16.msra.mxu0 %v1227
        %1246 = vmatprep.subr.bf16.mxu0 0
        %1247 = vmatpush1.bf16.msra.mxu0 %v1228
        %1248 = vmatprep.subr.bf16.mxu0 0
        %1249 = vmatpush1.bf16.msra.mxu0 %v1229
        %1250 = vmatprep.subr.bf16.mxu0 0
        %1251 = vmatpush1.bf16.msra.mxu0 %v1230
        %1252 = vmatprep.subr.bf16.mxu0 0
        %1253 = vmatpush1.bf16.msra.mxu0 %v1231
        %1254 = vmatprep.subr.bf16.mxu0 0
        %1255 = vmatpush1.bf16.msra.mxu0 %v1232
        %1256 = vmatprep.subr.bf16.mxu0 0
        %1257 = vmatpush1.bf16.msra.mxu0 %v1233
        %1258 = vmatprep.subr.bf16.mxu0 0
        %1259 = vmatpush1.bf16.msra.mxu0 0
        %1260 = vmatprep.subr.bf16.mxu0 0
        %1261 = vmatpush1.bf16.msra.mxu0 0
        %1262 = vmatprep.subr.bf16.mxu0 0
        %1263 = vmatpush1.bf16.msra.mxu0 0
        %1264 = vmatprep.subr.bf16.mxu0 0
        %1265 = vmatpush1.bf16.msra.mxu0 0
        %1266 = vmatprep.subr.bf16.mxu0 0
        %1267 = vmatpush1.bf16.msra.mxu0 0
        %1268 = vmatprep.subr.bf16.mxu0 0
        %1269 = vmatpush1.bf16.msra.mxu0 0
        %1270 = vmatprep.subr.bf16.mxu0 0
        %1271 = vmatpush1.bf16.msra.mxu0 0
        %1272 = vmatprep.subr.bf16.mxu0 0
        %1273 = vmatpush1.bf16.msra.mxu0 0
        %1274 = vmatprep.mubr.bf16.mxu0 0
        %1275 = vmatmul.mubr.bf16.gmra.mrb[0].mxu0 %v1170
        %v1276 = vpop.f32.mrb[0].mxu0
        %v1277 = vadd.f32 0.0, %v1276
        %v1278 = vpop.f32.mrb[0].mxu0
        %v1279 = vpop.f32.mrb[0].mxu0
        %v1280 = vadd.f32 0.0, %v1279
        %v1281 = vpop.f32.mrb[0].mxu0
        %1282 = vmatprep.mubr.bf16.mxu0 0
        %1283 = vmatmul.mubr.bf16.gmra.mrb[0].mxu0 %v1171
        %v1284 = vpop.f32.mrb[0].mxu0
        %v1285 = vadd.f32 0.0, %v1284
        %v1286 = vpop.f32.mrb[0].mxu0
        %v1287 = vpop.f32.mrb[0].mxu0
        %v1288 = vadd.f32 0.0, %v1287
        %v1289 = vpop.f32.mrb[0].mxu0
        %1290 = vmatprep.mubr.bf16.mxu0 0
        %1291 = vmatmul.mubr.bf16.gmra.mrb[0].mxu0 %v1172
        %v1292 = vpop.f32.mrb[0].mxu0
        %v1293 = vadd.f32 0.0, %v1292
        %v1294 = vpop.f32.mrb[0].mxu0
        %v1295 = vpop.f32.mrb[0].mxu0
        %v1296 = vadd.f32 0.0, %v1295
        %v1297 = vpop.f32.mrb[0].mxu0
        %1298 = vmatprep.mubr.bf16.mxu0 0
        %1299 = vmatmul.mubr.bf16.gmra.mrb[0].mxu0 %v1173
        %v1300 = vpop.f32.mrb[0].mxu0
        %v1301 = vadd.f32 0.0, %v1300
        %v1302 = vpop.f32.mrb[0].mxu0
        %v1303 = vpop.f32.mrb[0].mxu0
        %v1304 = vadd.f32 0.0, %v1303
        %v1305 = vpop.f32.mrb[0].mxu0
        %1306 = vmatprep.mubr.bf16.mxu0 0
        %1307 = vmatmul.mubr.bf16.gmra.mrb[0].mxu0 %v1174
        %v1308 = vpop.f32.mrb[0].mxu0
        %v1309 = vadd.f32 0.0, %v1308
        %v1310 = vpop.f32.mrb[0].mxu0
        %v1311 = vpop.f32.mrb[0].mxu0
        %v1312 = vadd.f32 0.0, %v1311
        %v1313 = vpop.f32.mrb[0].mxu0
        %1314 = vmatprep.mubr.bf16.mxu0 0
        %1315 = vmatmul.mubr.bf16.gmra.mrb[0].mxu0 %v1175
        %v1316 = vpop.f32.mrb[0].mxu0
        %v1317 = vadd.f32 0.0, %v1316
        %v1318 = vpop.f32.mrb[0].mxu0
        %v1319 = vpop.f32.mrb[0].mxu0
        %v1320 = vadd.f32 0.0, %v1319
        %v1321 = vpop.f32.mrb[0].mxu0
        %1322 = vmatprep.mubr.bf16.mxu0 0
        %1323 = vmatmul.mubr.bf16.gmra.mrb[0].mxu0 %v1176
        %v1324 = vpop.f32.mrb[0].mxu0
        %v1325 = vadd.f32 0.0, %v1324
        %v1326 = vpop.f32.mrb[0].mxu0
        %v1327 = vpop.f32.mrb[0].mxu0
        %v1328 = vadd.f32 0.0, %v1327
        %v1329 = vpop.f32.mrb[0].mxu0
        %1330 = vmatprep.mubr.bf16.mxu0 0
        %1331 = vmatmul.mubr.bf16.gmra.mrb[0].mxu0 %v1177
        %v1332 = vpop.f32.mrb[0].mxu0
        %v1333 = vadd.f32 0.0, %v1332
        %v1334 = vpop.f32.mrb[0].mxu0
        %v1335 = vpop.f32.mrb[0].mxu0
        %v1336 = vadd.f32 0.0, %v1335
        %v1337 = vpop.f32.mrb[0].mxu0
        %1338 = vdwg.mxu0
        %v1339 = vadd.f32 %v1154, %v1277
        %v1340 = vadd.f32 %v1155, %v1280
        %v1341 = vadd.f32 %v1156, %v1285
        %v1342 = vadd.f32 %v1157, %v1288
        %v1343 = vadd.f32 %v1158, %v1293
        %v1344 = vadd.f32 %v1159, %v1296
        %v1345 = vadd.f32 %v1160, %v1301
        %v1346 = vadd.f32 %v1161, %v1304
        %v1347 = vadd.f32 %v1162, %v1309
        %v1348 = vadd.f32 %v1163, %v1312
        %v1349 = vadd.f32 %v1164, %v1317
        %v1350 = vadd.f32 %v1165, %v1320
        %v1351 = vadd.f32 %v1166, %v1325
        %v1352 = vadd.f32 %v1167, %v1328
        %v1353 = vadd.f32 %v1168, %v1333
        %v1354 = vadd.f32 %v1169, %v1336
        %v1355 = vmax.f32 %v1339, 0.0
        %v1356 = vmax.f32 %v1340, 0.0
        %v1357 = vmax.f32 %v1341, 0.0
        %v1358 = vmax.f32 %v1342, 0.0
        %v1359 = vmax.f32 %v1343, 0.0
        %v1360 = vmax.f32 %v1344, 0.0
        %v1361 = vmax.f32 %v1345, 0.0
        %v1362 = vmax.f32 %v1346, 0.0
        %v1363 = vmax.f32 %v1347, 0.0
        %v1364 = vmax.f32 %v1348, 0.0
        %v1365 = vmax.f32 %v1349, 0.0
        %v1366 = vmax.f32 %v1350, 0.0
        %v1367 = vmax.f32 %v1351, 0.0
        %v1368 = vmax.f32 %v1352, 0.0
        %v1369 = vmax.f32 %v1353, 0.0
        %v1370 = vmax.f32 %v1354, 0.0
        %v1371 = vpack.c.bf16 %v1356, %v1355
        %v1372 = vpack.c.bf16 %v1358, %v1357
        %v1373 = vpack.c.bf16 %v1360, %v1359
        %v1374 = vpack.c.bf16 %v1362, %v1361
        %v1375 = vpack.c.bf16 %v1364, %v1363
        %v1376 = vpack.c.bf16 %v1366, %v1365
        %v1377 = vpack.c.bf16 %v1368, %v1367
        %v1378 = vpack.c.bf16 %v1370, %v1369
        %v1379 = vld [vmem:[#allocation12] sm:$0xf]
        %v1380 = vld [vmem:[#allocation12 + $0x4] sm:$0xf]
        %v1381 = vld [vmem:[#allocation12 + $0x8] sm:$0xf]
        %v1382 = vld [vmem:[#allocation12 + $0xc] sm:$0xf]
        %v1383 = vld [vmem:[#allocation12 + $0x10] sm:$0xf]
        %v1384 = vld [vmem:[#allocation12 + $0x14] sm:$0xf]
        %v1385 = vld [vmem:[#allocation12 + $0x18] sm:$0xf]
        %v1386 = vld [vmem:[#allocation12 + $0x1c] sm:$0xf]
        %v1387 = vld [vmem:[#allocation12 + $0x20] sm:$0xf]
        %v1388 = vld [vmem:[#allocation12 + $0x24] sm:$0xf]
        %v1389 = vld [vmem:[#allocation12 + $0x28] sm:$0xf]
        %v1390 = vld [vmem:[#allocation12 + $0x2c] sm:$0xf]
        %v1391 = vld [vmem:[#allocation12 + $0x30] sm:$0xf]
        %v1392 = vld [vmem:[#allocation12 + $0x34] sm:$0xf]
        %v1393 = vld [vmem:[#allocation12 + $0x38] sm:$0xf]
        %v1394 = vld [vmem:[#allocation12 + $0x3c] sm:$0xf]
        %v1395 = vld [vmem:[#allocation13] sm:$0x1]
        %v1397 = vlaneseq
        %v1398 = vshrl.u32 %v1397, 7
        %v1399 = vsub.s32 0, %v1398
        %v1400 = vrot.slane %v1395, %v1399
        %v1418 = vunpack.c.l.b16 %v1379
        %v1419 = vunpack.c.l.b16 %v1380
        %v1420 = vunpack.c.l.b16 %v1381
        %v1421 = vunpack.c.l.b16 %v1382
        %v1422 = vunpack.c.l.b16 %v1383
        %v1423 = vunpack.c.l.b16 %v1384
        %v1424 = vunpack.c.l.b16 %v1385
        %v1425 = vunpack.c.l.b16 %v1386
        %v1426 = vunpack.c.l.b16 %v1387
        %v1427 = vunpack.c.l.b16 %v1388
        %v1428 = vunpack.c.l.b16 %v1389
        %v1429 = vunpack.c.l.b16 %v1390
        %v1430 = vunpack.c.l.b16 %v1391
        %v1431 = vunpack.c.l.b16 %v1392
        %v1432 = vunpack.c.l.b16 %v1393
        %v1433 = vunpack.c.l.b16 %v1394
        %v1434 = vpack.c.b16 %v1419, %v1418
        %v1435 = vpack.c.b16 %v1421, %v1420
        %v1436 = vpack.c.b16 %v1423, %v1422
        %v1437 = vpack.c.b16 %v1425, %v1424
        %v1438 = vpack.c.b16 %v1427, %v1426
        %v1439 = vpack.c.b16 %v1429, %v1428
        %v1440 = vpack.c.b16 %v1431, %v1430
        %v1441 = vpack.c.b16 %v1433, %v1432
        %1450 = vmatprep.subr.bf16.mxu0 0
        %1451 = vmatpush1.bf16.msra.mxu0 %v1434
        %1452 = vmatprep.subr.bf16.mxu0 0
        %1453 = vmatpush1.bf16.msra.mxu0 %v1435
        %1454 = vmatprep.subr.bf16.mxu0 0
        %1455 = vmatpush1.bf16.msra.mxu0 %v1436
        %1456 = vmatprep.subr.bf16.mxu0 0
        %1457 = vmatpush1.bf16.msra.mxu0 %v1437
        %1458 = vmatprep.subr.bf16.mxu0 0
        %1459 = vmatpush1.bf16.msra.mxu0 %v1438
        %1460 = vmatprep.subr.bf16.mxu0 0
        %1461 = vmatpush1.bf16.msra.mxu0 %v1439
        %1462 = vmatprep.subr.bf16.mxu0 0
        %1463 = vmatpush1.bf16.msra.mxu0 %v1440
        %1464 = vmatprep.subr.bf16.mxu0 0
        %1465 = vmatpush1.bf16.msra.mxu0 %v1441
        %1466 = vmatprep.subr.bf16.mxu0 0
        %1467 = vmatpush1.bf16.msra.mxu0 0
        %1468 = vmatprep.subr.bf16.mxu0 0
        %1469 = vmatpush1.bf16.msra.mxu0 0
        %1470 = vmatprep.subr.bf16.mxu0 0
        %1471 = vmatpush1.bf16.msra.mxu0 0
        %1472 = vmatprep.subr.bf16.mxu0 0
        %1473 = vmatpush1.bf16.msra.mxu0 0
        %1474 = vmatprep.subr.bf16.mxu0 0
        %1475 = vmatpush1.bf16.msra.mxu0 0
        %1476 = vmatprep.subr.bf16.mxu0 0
        %1477 = vmatpush1.bf16.msra.mxu0 0
        %1478 = vmatprep.subr.bf16.mxu0 0
        %1479 = vmatpush1.bf16.msra.mxu0 0
        %1480 = vmatprep.subr.bf16.mxu0 0
        %1481 = vmatpush1.bf16.msra.mxu0 0
        %1482 = vmatprep.mubr.bf16.mxu0 0
        %1483 = vmatmul.mubr.bf16.gmra.mrb[0].mxu0 %v1371
        %v1484 = vpop.f32.mrb[0].mxu0
        %v1485 = vadd.f32 %v1400, %v1484
        %v1486 = vpop.f32.mrb[0].mxu0
        %v1487 = vpop.f32.mrb[0].mxu0
        %v1488 = vadd.f32 %v1400, %v1487
        %v1489 = vpop.f32.mrb[0].mxu0
        %1490 = vmatprep.mubr.bf16.mxu0 0
        %1491 = vmatmul.mubr.bf16.gmra.mrb[0].mxu0 %v1372
        %v1492 = vpop.f32.mrb[0].mxu0
        %v1493 = vadd.f32 %v1400, %v1492
        %v1494 = vpop.f32.mrb[0].mxu0
        %v1495 = vpop.f32.mrb[0].mxu0
        %v1496 = vadd.f32 %v1400, %v1495
        %v1497 = vpop.f32.mrb[0].mxu0
        %1498 = vmatprep.mubr.bf16.mxu0 0
        %1499 = vmatmul.mubr.bf16.gmra.mrb[0].mxu0 %v1373
        %v1500 = vpop.f32.mrb[0].mxu0
        %v1501 = vadd.f32 %v1400, %v1500
        %v1502 = vpop.f32.mrb[0].mxu0
        %v1503 = vpop.f32.mrb[0].mxu0
        %v1504 = vadd.f32 %v1400, %v1503
        %v1505 = vpop.f32.mrb[0].mxu0
        %1506 = vmatprep.mubr.bf16.mxu0 0
        %1507 = vmatmul.mubr.bf16.gmra.mrb[0].mxu0 %v1374
        %v1508 = vpop.f32.mrb[0].mxu0
        %v1509 = vadd.f32 %v1400, %v1508
        %v1510 = vpop.f32.mrb[0].mxu0
        %v1511 = vpop.f32.mrb[0].mxu0
        %v1512 = vadd.f32 %v1400, %v1511
        %v1513 = vpop.f32.mrb[0].mxu0
        %1514 = vmatprep.mubr.bf16.mxu0 0
        %1515 = vmatmul.mubr.bf16.gmra.mrb[0].mxu0 %v1375
        %v1516 = vpop.f32.mrb[0].mxu0
        %v1517 = vadd.f32 %v1400, %v1516
        %v1518 = vpop.f32.mrb[0].mxu0
        %v1519 = vpop.f32.mrb[0].mxu0
        %v1520 = vadd.f32 %v1400, %v1519
        %v1521 = vpop.f32.mrb[0].mxu0
        %1522 = vmatprep.mubr.bf16.mxu0 0
        %1523 = vmatmul.mubr.bf16.gmra.mrb[0].mxu0 %v1376
        %v1524 = vpop.f32.mrb[0].mxu0
        %v1525 = vadd.f32 %v1400, %v1524
        %v1526 = vpop.f32.mrb[0].mxu0
        %v1527 = vpop.f32.mrb[0].mxu0
        %v1528 = vadd.f32 %v1400, %v1527
        %v1529 = vpop.f32.mrb[0].mxu0
        %1530 = vmatprep.mubr.bf16.mxu0 0
        %1531 = vmatmul.mubr.bf16.gmra.mrb[0].mxu0 %v1377
        %v1532 = vpop.f32.mrb[0].mxu0
        %v1533 = vadd.f32 %v1400, %v1532
        %v1534 = vpop.f32.mrb[0].mxu0
        %v1535 = vpop.f32.mrb[0].mxu0
        %v1536 = vadd.f32 %v1400, %v1535
        %v1537 = vpop.f32.mrb[0].mxu0
        %1538 = vmatprep.mubr.bf16.mxu0 0
        %1539 = vmatmul.mubr.bf16.gmra.mrb[0].mxu0 %v1378
        %v1540 = vpop.f32.mrb[0].mxu0
        %v1541 = vadd.f32 %v1400, %v1540
        %v1542 = vpop.f32.mrb[0].mxu0
        %v1543 = vpop.f32.mrb[0].mxu0
        %v1544 = vadd.f32 %v1400, %v1543
        %v1545 = vpop.f32.mrb[0].mxu0
        %1546 = vdwg.mxu0
        %v1547 = vld [vmem:[%s409] sm:$0xff]
        %v1548 = vld [vmem:[%s409 + $0x8] sm:$0xff]
        %v1549 = vld [vmem:[%s409 + $0x10] sm:$0xff]
        %v1550 = vld [vmem:[%s409 + $0x18] sm:$0xff]
        %v1551 = vld [vmem:[%s409 + $0x20] sm:$0xff]
        %v1552 = vld [vmem:[%s409 + $0x28] sm:$0xff]
        %v1553 = vld [vmem:[%s409 + $0x30] sm:$0xff]
        %v1554 = vld [vmem:[%s409 + $0x38] sm:$0xff]
        %v1555 = vld [vmem:[%s409 + $0x40] sm:$0xff]
        %v1556 = vld [vmem:[%s409 + $0x48] sm:$0xff]
        %v1557 = vld [vmem:[%s409 + $0x50] sm:$0xff]
        %v1558 = vld [vmem:[%s409 + $0x58] sm:$0xff]
        %v1559 = vld [vmem:[%s409 + $0x60] sm:$0xff]
        %v1560 = vld [vmem:[%s409 + $0x68] sm:$0xff]
        %v1561 = vld [vmem:[%s409 + $0x70] sm:$0xff]
        %v1562 = vld [vmem:[%s409 + $0x78] sm:$0xff]
        %v1563 = vadd.f32 %v1485, %v1547
        %v1564 = vadd.f32 %v1488, %v1548
        %v1565 = vadd.f32 %v1493, %v1549
        %v1566 = vadd.f32 %v1496, %v1550
        %v1567 = vadd.f32 %v1501, %v1551
        %v1568 = vadd.f32 %v1504, %v1552
        %v1569 = vadd.f32 %v1509, %v1553
        %v1570 = vadd.f32 %v1512, %v1554
        %v1571 = vadd.f32 %v1517, %v1555
        %v1572 = vadd.f32 %v1520, %v1556
        %v1573 = vadd.f32 %v1525, %v1557
        %v1574 = vadd.f32 %v1528, %v1558
        %v1575 = vadd.f32 %v1533, %v1559
        %v1576 = vadd.f32 %v1536, %v1560
        %v1577 = vadd.f32 %v1541, %v1561
        %v1578 = vadd.f32 %v1544, %v1562
        %1579 = vst [vmem:[%s467] sm:$0xff] %v1563
        %1580 = vst [vmem:[%s467 + $0x8] sm:$0xff] %v1564
        %1581 = vst [vmem:[%s467 + $0x10] sm:$0xff] %v1565
        %1582 = vst [vmem:[%s467 + $0x18] sm:$0xff] %v1566
        %1583 = vst [vmem:[%s467 + $0x20] sm:$0xff] %v1567
        %1584 = vst [vmem:[%s467 + $0x28] sm:$0xff] %v1568
        %1585 = vst [vmem:[%s467 + $0x30] sm:$0xff] %v1569
        %1586 = vst [vmem:[%s467 + $0x38] sm:$0xff] %v1570
        %1587 = vst [vmem:[%s467 + $0x40] sm:$0xff] %v1571
        %1588 = vst [vmem:[%s467 + $0x48] sm:$0xff] %v1572
        %1589 = vst [vmem:[%s467 + $0x50] sm:$0xff] %v1573
        %1590 = vst [vmem:[%s467 + $0x58] sm:$0xff] %v1574
        %1591 = vst [vmem:[%s467 + $0x60] sm:$0xff] %v1575
        %1592 = vst [vmem:[%s467 + $0x68] sm:$0xff] %v1576
        %1593 = vst [vmem:[%s467 + $0x70] sm:$0xff] %v1577
        %1594 = vst [vmem:[%s467 + $0x78] sm:$0xff] %v1578
        %s1595 = sand.u32 %s219, 1
        %s1596 = scalar_lea.sflag [#allocation4], %s1595
        %s1597 = sand.u32 %s219, 1
        %s1598 = smul.addr %s1597, 128
        %s1599 = scalar_lea.vmem [#allocation15], %s1598
        // Predicated region
        $region85: #{tide_block_forward.3} parent=51 // pred_check
          %p1600 = pneg %p229
        $region86: #{tide_block_forward.3} parent=51 // pred_check_branch
          %1602 = sbr.rel (%p1600) target = $region88
        $region87: #{tide_block_forward.3} parent=51 // pred_region
          %s1603 = smul.u32 16, %s28
          %s1605 = ssub.s32 2048, 2048
          %1606 = vsyncadd %s1596, %s1605
          %s1607 = smul.addr %s1603, 128
          %s1608 = scalar_lea.hbm %s8, %s1607
          %s1609 = sshll.u32 %s1599, 4
          %s1610 = int_to_ptr.vmem [resolvable:$true] %s1609
          %1615 = dma.vmem_to_hbm [thread:$0]  %s1610, 2048, %s1608, %s1596, 128, 128, 8
        $region88: #{tide_block_forward.3} parent=51 // pred_fallthru
          _
      $region52: #{tide_block_forward.3} parent=5 // pred_fallthru
        _
      %p1616 = scmp.le.s32.totalorder 2, %s23
      // Predicated region
      $region89: #{tide_block_forward.3} parent=5 // pred_check
        %p1617 = pneg %p1616
      $region90: #{tide_block_forward.3} parent=5 // pred_check_branch
        %1619 = sbr.rel (%p1617) target = $region92
      $region91: #{tide_block_forward.3} parent=5 // pred_region
        %s1620 = ssub.s32 %s23, 2
        // Predicated region
        $region93: #{tide_block_forward.3} parent=91 // pred_check
          %p1621 = pneg %p235
        $region94: #{tide_block_forward.3} parent=91 // pred_check_branch
          %1623 = sbr.rel (%p1621) target = $region96
        $region95: #{tide_block_forward.3} parent=91 // pred_region
          %s1624 = sand.u32 %s220, 1
          %s1625 = scalar_lea.sflag [#allocation4], %s1624
          %s1626 = sand.u32 %s220, 1
          %s1627 = smul.addr %s1626, 128
          %s1628 = scalar_lea.vmem [#allocation15], %s1627
          %1629 = dma.done %s1625, 2048
        $region96: #{tide_block_forward.3} parent=91 // pred_fallthru
          _
      $region92: #{tide_block_forward.3} parent=5 // pred_fallthru
        _
    $region6: #{tide_block_forward.3} parent=1 // loop_footer
      %s27 = sadd.s32 1, %s23
    $region7: #{tide_block_forward.3} parent=1 // loop_footer_branch
      %22 = sbr.rel target = $region3
    $region8: #{tide_block_forward.3} parent=1 // loop_exit
      _
    %1630 = vsyncpa [#allocation3], 1
    %s1631 = scalar_lea.sflag [#allocation3], 1
    %1632 = vsyncpa %s1631, 1
    %1633 = vsyncpa [#allocation6], 1
    %1634 = vsyncpa [#allocation11], 1
    %1635 = vsyncpa [#allocation14], 1
    %1636 = vsyncpa [#allocation4], 1
    %s1637 = scalar_lea.sflag [#allocation4], 1
    %1638 = vsyncpa %s1637, 1

// kernel: tide_block_forward.2
$region0: #{tide_block_forward.2}
  #allocation0 [shape = 'u32[]', space=smem, size = 0x4, offset = 0x4, fixed_abs, tag = 'smem constant byte address 0x4 - core index']
  #allocation1 [shape = 'u32[144,128]{1,0:T(1,128)}', space=vmem, size = 0x12000, scoped, tag = 'internal scratch']
  %s0 = inlined_call_operand.hbm [shape: bf16[512,512], index: 0, kind: input, shape index: {}]
  %s1 = inlined_call_operand.hbm [shape: bf16[512,512], index: 1, kind: input, shape index: {}]
  %s2 = inlined_call_operand.hbm [shape: bf16[512,128], index: 2, kind: input, shape index: {}]
  %s3 = inlined_call_operand.hbm [shape: bf16[512,128], index: 3, kind: input, shape index: {}]
  %s4 = inlined_call_operand.hbm [shape: f32[1,128], index: 4, kind: input, shape index: {}]
  %s5 = inlined_call_operand.hbm [shape: bf16[512,128], index: 5, kind: output, shape index: {0}]
  %s6 = inlined_call_operand.hbm [shape: bf16[512,128], index: 6, kind: output, shape index: {1}]
  %7 = xla_tuple %s5, %s6
  %s8 = sld [smem:[#allocation0]]
  $region81: #{tide_block_forward.2} parent=0
    _
  %s10 = ssub.s32 1, %s8
  %s11 = scalar_select 0, %s10, %s8
  $region1: #{tide_block_forward.2} parent=0
    #allocation2 [shape = 'u8[262144]{0}', space=vmem, size = 0x40000, scoped, tag = 'input window, operand 0']
    #allocation3 [shape = 's32[2]{0}', space=sflag, size = 0x8, scoped, tag = 'scoped memory for tide_block_forward.2']
    #allocation4 [shape = 's32[2]{0}', space=sflag, size = 0x8, scoped, tag = 'scoped memory for tide_block_forward.2']
    #allocation5 [shape = 'u8[262144]{0}', space=vmem, size = 0x40000, scoped, tag = 'input window, operand 1']
    #allocation6 [shape = 's32[2]{0}', space=sflag, size = 0x8, scoped, tag = 'scoped memory for tide_block_forward.2']
    #allocation7 [shape = 'u8[131072]{0}', space=vmem, size = 0x20000, scoped, tag = 'input window, operand 2, single buffered']
    #allocation8 [shape = 'u8[131072]{0}', space=vmem, size = 0x20000, scoped, tag = 'input window, operand 3, single buffered']
    #allocation9 [shape = 's32[1]{0}', space=sflag, size = 0x4, scoped, tag = 'scoped memory for tide_block_forward.2']
    #allocation10 [shape = 'u8[512]{0}', space=vmem, size = 0x400, scoped, tag = 'input window, operand 4, single buffered']
    #allocation11 [shape = 'u8[65536]{0}', space=vmem, size = 0x10000, scoped, tag = 'output window, operand 0']
    #allocation12 [shape = 'u8[65536]{0}', space=vmem, size = 0x10000, scoped, tag = 'output window, operand 1']
    #allocation13 [shape = 's32[2]{0}', space=sflag, size = 0x8, scoped, tag = 'scoped memory for tide_block_forward.2']
    %12 = vsyncpa [#allocation3], 0
    %s13 = scalar_lea.sflag [#allocation3], 1
    %14 = vsyncpa %s13, 0
    %15 = vsyncpa [#allocation6], 0
    %s16 = scalar_lea.sflag [#allocation6], 1
    %17 = vsyncpa %s16, 0
    %18 = vsyncpa [#allocation9], 0
    %19 = vsyncpa [#allocation4], 0
    %s20 = scalar_lea.sflag [#allocation4], 1
    %21 = vsyncpa %s20, 0
    %22 = vsyncpa [#allocation13], 0
    %s23 = scalar_lea.sflag [#allocation13], 1
    %24 = vsyncpa %s23, 0
    loop: start=0, step=1, limit=6
    $region2: #{tide_block_forward.2} parent=1 // loop_pre_header
      _
    $region3: #{tide_block_forward.2} parent=1 // loop_header
      %s26 = sphi 0, %s30
      %p27 = scmp.ge.s32.totalorder %s26, 6
      %s36 = sphi 0, %s38
      %s39 = sphi 0, %s36
      %s40 = sphi 0, %s39
      %s56 = sphi 0, %s40
      %s62 = sphi 0, %s64
      %s65 = sphi 0, %s62
      %s66 = sphi 0, %s65
      %s82 = sphi 0, %s66
      %s86 = sphi 0, %s86
      %s88 = sphi 0, %s86
      %s89 = sphi 0, %s88
      %s103 = sphi 0, %s89
      %s107 = sphi 0, %s107
      %s109 = sphi 0, %s107
      %s110 = sphi 0, %s109
      %s124 = sphi 0, %s110
      %s128 = sphi 0, %s128
      %s130 = sphi 0, %s128
      %s131 = sphi 0, %s130
      %s145 = sphi 0, %s131
      %s151 = sphi 0, %s153
      %s154 = sphi 0, %s151
      %s155 = sphi 0, %s154
      %s171 = sphi 0, %s155
      %s177 = sphi 0, %s179
      %s180 = sphi 0, %s177
      %s181 = sphi 0, %s180
      %s197 = sphi 0, %s181
    $region4: #{tide_block_forward.2} parent=1 // loop_header_branch
      %29 = sbr.rel (%p27) target = $region8
    $region5: #{tide_block_forward.2} parent=1 // loop_body
      %s31 = ssub.s32 %s26, 1
      %s32 = ssub.s32 %s26, 2
      %s33 = sadd.s32 %s26, 1
      %s34 = ssub.s32 %s26, %s33
      %p35 = scmp.eq.s32.totalorder %s34, 0
      %s37 = sadd.s32 %s36, 1
      %s38 = scalar_select %p35, %s36, %s37
      %p41 = pneg %p35
      %p42 = scmp.eq.s32.totalorder %s26, 3
      %p43 = por %p41, %p42
      %p44 = scmp.ne.s32.totalorder %s36, %s39
      %p45 = scmp.eq.s32.totalorder %s26, 0
      %p46 = por %p44, %p45
      %p47 = scmp.ne.s32.totalorder %s36, %s39
      %p48 = scmp.eq.s32.totalorder %s31, 3
      %p49 = por %p47, %p48
      %p50 = scmp.ne.s32.totalorder %s39, %s40
      %p51 = scmp.eq.s32.totalorder %s31, 0
      %p52 = por %p50, %p51
      %p53 = scmp.ne.s32.totalorder %s39, %s40
      %p54 = scmp.eq.s32.totalorder %s32, 3
      %p55 = por %p53, %p54
      %p57 = scmp.ne.s32.totalorder %s40, %s56
      %p58 = scmp.eq.s32.totalorder %s32, 0
      %p59 = por %p57, %p58
      %s60 = ssub.s32 %s26, %s33
      %p61 = scmp.eq.s32.totalorder %s60, 0
      %s63 = sadd.s32 %s62, 1
      %s64 = scalar_select %p61, %s62, %s63
      %p67 = pneg %p61
      %p68 = scmp.eq.s32.totalorder %s26, 3
      %p69 = por %p67, %p68
      %p70 = scmp.ne.s32.totalorder %s62, %s65
      %p71 = scmp.eq.s32.totalorder %s26, 0
      %p72 = por %p70, %p71
      %p73 = scmp.ne.s32.totalorder %s62, %s65
      %p74 = scmp.eq.s32.totalorder %s31, 3
      %p75 = por %p73, %p74
      %p76 = scmp.ne.s32.totalorder %s65, %s66
      %p77 = scmp.eq.s32.totalorder %s31, 0
      %p78 = por %p76, %p77
      %p79 = scmp.ne.s32.totalorder %s65, %s66
      %p80 = scmp.eq.s32.totalorder %s32, 3
      %p81 = por %p79, %p80
      %p83 = scmp.ne.s32.totalorder %s66, %s82
      %p84 = scmp.eq.s32.totalorder %s32, 0
      %p85 = por %p83, %p84
      %s87 = sadd.s32 %s86, 1
      %p90 = scmp.eq.s32.totalorder %s26, 3
      %p91 = scmp.ne.s32.totalorder %s86, %s88
      %p92 = scmp.eq.s32.totalorder %s26, 0
      %p93 = por %p91, %p92
      %p94 = scmp.ne.s32.totalorder %s86, %s88
      %p95 = scmp.eq.s32.totalorder %s31, 3
      %p96 = por %p94, %p95
      %p97 = scmp.ne.s32.totalorder %s88, %s89
      %p98 = scmp.eq.s32.totalorder %s31, 0
      %p99 = por %p97, %p98
      %p100 = scmp.ne.s32.totalorder %s88, %s89
      %p101 = scmp.eq.s32.totalorder %s32, 3
      %p102 = por %p100, %p101
      %p104 = scmp.ne.s32.totalorder %s89, %s103
      %p105 = scmp.eq.s32.totalorder %s32, 0
      %p106 = por %p104, %p105
      %s108 = sadd.s32 %s107, 1
      %p111 = scmp.eq.s32.totalorder %s26, 3
      %p112 = scmp.ne.s32.totalorder %s107, %s109
      %p113 = scmp.eq.s32.totalorder %s26, 0
      %p114 = por %p112, %p113
      %p115 = scmp.ne.s32.totalorder %s107, %s109
      %p116 = scmp.eq.s32.totalorder %s31, 3
      %p117 = por %p115, %p116
      %p118 = scmp.ne.s32.totalorder %s109, %s110
      %p119 = scmp.eq.s32.totalorder %s31, 0
      %p120 = por %p118, %p119
      %p121 = scmp.ne.s32.totalorder %s109, %s110
      %p122 = scmp.eq.s32.totalorder %s32, 3
      %p123 = por %p121, %p122
      %p125 = scmp.ne.s32.totalorder %s110, %s124
      %p126 = scmp.eq.s32.totalorder %s32, 0
      %p127 = por %p125, %p126
      %s129 = sadd.s32 %s128, 1
      %p132 = scmp.eq.s32.totalorder %s26, 3
      %p133 = scmp.ne.s32.totalorder %s128, %s130
      %p134 = scmp.eq.s32.totalorder %s26, 0
      %p135 = por %p133, %p134
      %p136 = scmp.ne.s32.totalorder %s128, %s130
      %p137 = scmp.eq.s32.totalorder %s31, 3
      %p138 = por %p136, %p137
      %p139 = scmp.ne.s32.totalorder %s130, %s131
      %p140 = scmp.eq.s32.totalorder %s31, 0
      %p141 = por %p139, %p140
      %p142 = scmp.ne.s32.totalorder %s130, %s131
      %p143 = scmp.eq.s32.totalorder %s32, 3
      %p144 = por %p142, %p143
      %p146 = scmp.ne.s32.totalorder %s131, %s145
      %p147 = scmp.eq.s32.totalorder %s32, 0
      %p148 = por %p146, %p147
      %s149 = ssub.s32 %s26, %s33
      %p150 = scmp.eq.s32.totalorder %s149, 0
      %s152 = sadd.s32 %s151, 1
      %s153 = scalar_select %p150, %s151, %s152
      %p156 = pneg %p150
      %p157 = scmp.eq.s32.totalorder %s26, 3
      %p158 = por %p156, %p157
      %p159 = scmp.ne.s32.totalorder %s151, %s154
      %p160 = scmp.eq.s32.totalorder %s26, 0
      %p161 = por %p159, %p160
      %p162 = scmp.ne.s32.totalorder %s151, %s154
      %p163 = scmp.eq.s32.totalorder %s31, 3
      %p164 = por %p162, %p163
      %p165 = scmp.ne.s32.totalorder %s154, %s155
      %p166 = scmp.eq.s32.totalorder %s31, 0
      %p167 = por %p165, %p166
      %p168 = scmp.ne.s32.totalorder %s154, %s155
      %p169 = scmp.eq.s32.totalorder %s32, 3
      %p170 = por %p168, %p169
      %p172 = scmp.ne.s32.totalorder %s155, %s171
      %p173 = scmp.eq.s32.totalorder %s32, 0
      %p174 = por %p172, %p173
      %s175 = ssub.s32 %s26, %s33
      %p176 = scmp.eq.s32.totalorder %s175, 0
      %s178 = sadd.s32 %s177, 1
      %s179 = scalar_select %p176, %s177, %s178
      %p182 = pneg %p176
      %p183 = scmp.eq.s32.totalorder %s26, 3
      %p184 = por %p182, %p183
      %p185 = scmp.ne.s32.totalorder %s177, %s180
      %p186 = scmp.eq.s32.totalorder %s26, 0
      %p187 = por %p185, %p186
      %p188 = scmp.ne.s32.totalorder %s177, %s180
      %p189 = scmp.eq.s32.totalorder %s31, 3
      %p190 = por %p188, %p189
      %p191 = scmp.ne.s32.totalorder %s180, %s181
      %p192 = scmp.eq.s32.totalorder %s31, 0
      %p193 = por %p191, %p192
      %p194 = scmp.ne.s32.totalorder %s180, %s181
      %p195 = scmp.eq.s32.totalorder %s32, 3
      %p196 = por %p194, %p195
      %p198 = scmp.ne.s32.totalorder %s181, %s197
      %p199 = scmp.eq.s32.totalorder %s32, 0
      %p200 = por %p198, %p199
      %p201 = scmp.le.s32.totalorder 1, %s26
      %p202 = scmp.lt.s32.totalorder %s26, 5
      %p203 = pnand %p201, %p202
      %p204 = pneg %p203
      // Predicated region
      $region9: #{tide_block_forward.2} parent=5 // pred_check
        _
      $region10: #{tide_block_forward.2} parent=5 // pred_check_branch
        %206 = sbr.rel (%p203) target = $region12
      $region11: #{tide_block_forward.2} parent=5 // pred_region
        %s207 = ssub.s32 %s26, 1
        // Predicated region
        $region13: #{tide_block_forward.2} parent=11 // pred_check
          %p208 = pneg %p99
        $region14: #{tide_block_forward.2} parent=11 // pred_check_branch
          %210 = sbr.rel (%p208) target = $region16
        $region15: #{tide_block_forward.2} parent=11 // pred_region
          %s212 = ssub.s32 4096, 4096
          %213 = vsyncadd [#allocation6], %s212
          %s214 = sshll.u32 [#allocation7], 4
          %s215 = int_to_ptr.vmem [resolvable:$true] %s214
          %220 = dma.hbm_to_vmem [thread:$0]  %s2, 4096, %s215, [#allocation6], 64, 64, 4
        $region16: #{tide_block_forward.2} parent=11 // pred_fallthru
          _
        // Predicated region
        $region17: #{tide_block_forward.2} parent=11 // pred_check
          %p221 = pneg %p120
        $region18: #{tide_block_forward.2} parent=11 // pred_check_branch
          %223 = sbr.rel (%p221) target = $region20
        $region19: #{tide_block_forward.2} parent=11 // pred_region
          %s225 = ssub.s32 4096, 4096
          %226 = vsyncadd [#allocation9], %s225
          %s227 = sshll.u32 [#allocation8], 4
          %s228 = int_to_ptr.vmem [resolvable:$true] %s227
          %233 = dma.hbm_to_vmem [thread:$0]  %s3, 4096, %s228, [#allocation9], 64, 64, 4
        $region20: #{tide_block_forward.2} parent=11 // pred_fallthru
          _
        // Predicated region
        $region21: #{tide_block_forward.2} parent=11 // pred_check
          %p234 = pneg %p141
        $region22: #{tide_block_forward.2} parent=11 // pred_check_branch
          %236 = sbr.rel (%p234) target = $region24
        $region23: #{tide_block_forward.2} parent=11 // pred_region
          %s238 = ssub.s32 16, 16
          %239 = vsyncadd [#allocation9], %s238
          %s241 = sshll.u32 [#allocation10], 4
          %s242 = int_to_ptr.vmem [resolvable:$true] %s241
          %244 = dma.hbm_to_vmem [thread:$0]  %s4, 16, %s242, [#allocation9]
        $region24: #{tide_block_forward.2} parent=11 // pred_fallthru
          _
      $region12: #{tide_block_forward.2} parent=5 // pred_fallthru
        _
      %p245 = scmp.lt.s32.totalorder %s26, 4
      // Predicated region
      $region25: #{tide_block_forward.2} parent=5 // pred_check
        %p246 = pneg %p245
      $region26: #{tide_block_forward.2} parent=5 // pred_check_branch
        %248 = sbr.rel (%p246) target = $region28
      $region27: #{tide_block_forward.2} parent=5 // pred_region
        // Predicated region
        $region29: #{tide_block_forward.2} parent=27 // pred_check
          %p249 = pneg %p46
        $region30: #{tide_block_forward.2} parent=27 // pred_check_branch
          %251 = sbr.rel (%p249) target = $region32
        $region31: #{tide_block_forward.2} parent=27 // pred_region
          %s252 = sand.u32 %s36, 1
          %s253 = scalar_lea.sflag [#allocation3], %s252
          %s254 = sand.u32 %s36, 1
          %s255 = smul.addr %s254, 256
          %s256 = scalar_lea.vmem [#allocation2], %s255
          %s257 = smul.u32 16, %s26
          %s259 = ssub.s32 4096, 4096
          %260 = vsyncadd %s253, %s259
          %s261 = smul.addr %s257, 4
          %s262 = smul.addr %s261, 64
          %s263 = scalar_lea.hbm %s0, %s262
          %s264 = sshll.u32 %s256, 4
          %s265 = int_to_ptr.vmem [resolvable:$true] %s264
          %270 = dma.hbm_to_vmem [thread:$0]  %s263, 4096, %s265, %s253, 256, 256, 16
        $region32: #{tide_block_forward.2} parent=27 // pred_fallthru
          _
        // Predicated region
        $region33: #{tide_block_forward.2} parent=27 // pred_check
          %p271 = pneg %p72
        $region34: #{tide_block_forward.2} parent=27 // pred_check_branch
          %273 = sbr.rel (%p271) target = $region36
        $region35: #{tide_block_forward.2} parent=27 // pred_region
          %s274 = sand.u32 %s26, 1
          %s275 = scalar_lea.sflag [#allocation6], %s274
          %s276 = sand.u32 %s62, 1
          %s277 = smul.addr %s276, 256
          %s278 = scalar_lea.vmem [#allocation5], %s277
          %s279 = smul.u32 16, %s26
          %s281 = ssub.s32 4096, 4096
          %282 = vsyncadd %s275, %s281
          %s283 = smul.addr %s279, 4
          %s284 = smul.addr %s283, 64
          %s285 = scalar_lea.hbm %s1, %s284
          %s286 = sshll.u32 %s278, 4
          %s287 = int_to_ptr.vmem [resolvable:$true] %s286
          %292 = dma.hbm_to_vmem [thread:$0]  %s285, 4096, %s287, %s275, 256, 256, 16
        $region36: #{tide_block_forward.2} parent=27 // pred_fallthru
          _
      $region28: #{tide_block_forward.2} parent=5 // pred_fallthru
        _
      %p293 = scmp.le.s32.totalorder 1, %s26
      %p294 = scmp.lt.s32.totalorder %s26, 5
      %p295 = pnand %p293, %p294
      %p296 = pneg %p295
      // Predicated region
      $region37: #{tide_block_forward.2} parent=5 // pred_check
        _
      $region38: #{tide_block_forward.2} parent=5 // pred_check_branch
        %298 = sbr.rel (%p295) target = $region40
      $region39: #{tide_block_forward.2} parent=5 // pred_region
        %s299 = ssub.s32 %s26, 1
        %s300 = sand.u32 %s39, 1
        %s301 = scalar_lea.sflag [#allocation3], %s300
        %s302 = sand.u32 %s39, 1
        %s303 = smul.addr %s302, 256
        %s304 = scalar_lea.vmem [#allocation2], %s303
        // Predicated region
        $region41: #{tide_block_forward.2} parent=39 // pred_check
          %p305 = pneg %p52
        $region42: #{tide_block_forward.2} parent=39 // pred_check_branch
          %307 = sbr.rel (%p305) target = $region44
        $region43: #{tide_block_forward.2} parent=39 // pred_region
          %308 = dma.done %s301, 4096
        $region44: #{tide_block_forward.2} parent=39 // pred_fallthru
          _
        %s309 = sand.u32 %s31, 1
        %s310 = scalar_lea.sflag [#allocation6], %s309
        %s311 = sand.u32 %s65, 1
        %s312 = smul.addr %s311, 256
        %s313 = scalar_lea.vmem [#allocation5], %s312
        // Predicated region
        $region45: #{tide_block_forward.2} parent=39 // pred_check
          %p314 = pneg %p78
        $region46: #{tide_block_forward.2} parent=39 // pred_check_branch
          %316 = sbr.rel (%p314) target = $region48
        $region47: #{tide_block_forward.2} parent=39 // pred_region
          %317 = dma.done %s310, 4096
        $region48: #{tide_block_forward.2} parent=39 // pred_fallthru
          _
        // Predicated region
        $region49: #{tide_block_forward.2} parent=39 // pred_check
          %p318 = pneg %p99
        $region50: #{tide_block_forward.2} parent=39 // pred_check_branch
          %320 = sbr.rel (%p318) target = $region52
        $region51: #{tide_block_forward.2} parent=39 // pred_region
          %321 = dma.done [#allocation6], 4096
        $region52: #{tide_block_forward.2} parent=39 // pred_fallthru
          _
        // Predicated region
        $region53: #{tide_block_forward.2} parent=39 // pred_check
          %p322 = pneg %p120
        $region54: #{tide_block_forward.2} parent=39 // pred_check_branch
          %324 = sbr.rel (%p322) target = $region56
        $region55: #{tide_block_forward.2} parent=39 // pred_region
          %325 = dma.done [#allocation9], 4096
        $region56: #{tide_block_forward.2} parent=39 // pred_fallthru
          _
        // Predicated region
        $region57: #{tide_block_forward.2} parent=39 // pred_check
          %p326 = pneg %p141
        $region58: #{tide_block_forward.2} parent=39 // pred_check_branch
          %328 = sbr.rel (%p326) target = $region60
        $region59: #{tide_block_forward.2} parent=39 // pred_region
          %329 = dma.done [#allocation9], 16
        $region60: #{tide_block_forward.2} parent=39 // pred_fallthru
          _
        %s330 = sand.u32 %s39, 1
        %s331 = scalar_lea.sflag [#allocation3], %s330
        %s332 = sand.u32 %s39, 1
        %s333 = smul.addr %s332, 256
        %s334 = scalar_lea.vmem [#allocation2], %s333
        %p335 = pneg %p52
        %p336 = pneg %p49
        %s337 = sand.u32 %s31, 1
        %s338 = scalar_lea.sflag [#allocation6], %s337
        %s339 = sand.u32 %s65, 1
        %s340 = smul.addr %s339, 256
        %s341 = scalar_lea.vmem [#allocation5], %s340
        %p342 = pneg %p78
        %p343 = pneg %p75
        %p344 = pneg %p99
        %p345 = pneg %p96
        %p346 = pneg %p120
        %p347 = pneg %p117
        %p348 = pneg %p141
        %p349 = pneg %p138
        %p350 = pneg %p167
        %p351 = pneg %p164
        %s352 = sand.u32 %s154, 1
        %s353 = scalar_lea.sflag [#allocation4], %s352
        %s354 = sand.u32 %s154, 1
        %s355 = smul.addr %s354, 64
        %s356 = scalar_lea.vmem [#allocation11], %s355
        %p357 = pneg %p193
        %p358 = pneg %p190
        %s359 = sand.u32 %s180, 1
        %s360 = scalar_lea.sflag [#allocation13], %s359
        %s361 = sand.u32 %s180, 1
        %s362 = smul.addr %s361, 64
        %s363 = scalar_lea.vmem [#allocation12], %s362
        %s364 = smul.u32 16, %s31
        %s365 = smul.u32 16, %s31
        %s366 = smul.u32 8, %s31
        %s367 = smul.u32 16, %s31
        %v369 = vld [vmem:[%s304] sm:$0xff]
        %v370 = vld [vmem:[%s304 + $0x8] sm:$0xff]
        %v371 = vld [vmem:[%s304 + $0x10] sm:$0xff]
        %v372 = vld [vmem:[%s304 + $0x18] sm:$0xff]
        %v373 = vld [vmem:[%s304 + $0x20] sm:$0xff]
        %v374 = vld [vmem:[%s304 + $0x28] sm:$0xff]
        %v375 = vld [vmem:[%s304 + $0x30] sm:$0xff]
        %v376 = vld [vmem:[%s304 + $0x38] sm:$0xff]
        %v377 = vld [vmem:[%s304 + $0x40] sm:$0xff]
        %v378 = vld [vmem:[%s304 + $0x48] sm:$0xff]
        %v379 = vld [vmem:[%s304 + $0x50] sm:$0xff]
        %v380 = vld [vmem:[%s304 + $0x58] sm:$0xff]
        %v381 = vld [vmem:[%s304 + $0x60] sm:$0xff]
        %v382 = vld [vmem:[%s304 + $0x68] sm:$0xff]
        %v383 = vld [vmem:[%s304 + $0x70] sm:$0xff]
        %v384 = vld [vmem:[%s304 + $0x78] sm:$0xff]
        %v385 = vld [vmem:[%s304 + $0x80] sm:$0xff]
        %v386 = vld [vmem:[%s304 + $0x88] sm:$0xff]
        %v387 = vld [vmem:[%s304 + $0x90] sm:$0xff]
        %v388 = vld [vmem:[%s304 + $0x98] sm:$0xff]
        %v389 = vld [vmem:[%s304 + $0xa0] sm:$0xff]
        %v390 = vld [vmem:[%s304 + $0xa8] sm:$0xff]
        %v391 = vld [vmem:[%s304 + $0xb0] sm:$0xff]
        %v392 = vld [vmem:[%s304 + $0xb8] sm:$0xff]
        %v393 = vld [vmem:[%s304 + $0xc0] sm:$0xff]
        %v394 = vld [vmem:[%s304 + $0xc8] sm:$0xff]
        %v395 = vld [vmem:[%s304 + $0xd0] sm:$0xff]
        %v396 = vld [vmem:[%s304 + $0xd8] sm:$0xff]
        %v397 = vld [vmem:[%s304 + $0xe0] sm:$0xff]
        %v398 = vld [vmem:[%s304 + $0xe8] sm:$0xff]
        %v399 = vld [vmem:[%s304 + $0xf0] sm:$0xff]
        %v400 = vld [vmem:[%s304 + $0xf8] sm:$0xff]
        %v401 = vld [vmem:[#allocation7] sm:$0xf]
        %v402 = vld [vmem:[#allocation7 + $0x4] sm:$0xf]
        %v403 = vld [vmem:[#allocation7 + $0x8] sm:$0xf]
        %v404 = vld [vmem:[#allocation7 + $0xc] sm:$0xf]
        %v405 = vld [vmem:[#allocation7 + $0x10] sm:$0xf]
        %v406 = vld [vmem:[#allocation7 + $0x14] sm:$0xf]
        %v407 = vld [vmem:[#allocation7 + $0x18] sm:$0xf]
        %v408 = vld [vmem:[#allocation7 + $0x1c] sm:$0xf]
        %v409 = vld [vmem:[#allocation7 + $0x20] sm:$0xf]
        %v410 = vld [vmem:[#allocation7 + $0x24] sm:$0xf]
        %v411 = vld [vmem:[#allocation7 + $0x28] sm:$0xf]
        %v412 = vld [vmem:[#allocation7 + $0x2c] sm:$0xf]
        %v413 = vld [vmem:[#allocation7 + $0x30] sm:$0xf]
        %v414 = vld [vmem:[#allocation7 + $0x34] sm:$0xf]
        %v415 = vld [vmem:[#allocation7 + $0x38] sm:$0xf]
        %v416 = vld [vmem:[#allocation7 + $0x3c] sm:$0xf]
        %v417 = vld [vmem:[#allocation7 + $0x40] sm:$0xf]
        %v418 = vld [vmem:[#allocation7 + $0x44] sm:$0xf]
        %v419 = vld [vmem:[#allocation7 + $0x48] sm:$0xf]
        %v420 = vld [vmem:[#allocation7 + $0x4c] sm:$0xf]
        %v421 = vld [vmem:[#allocation7 + $0x50] sm:$0xf]
        %v422 = vld [vmem:[#allocation7 + $0x54] sm:$0xf]
        %v423 = vld [vmem:[#allocation7 + $0x58] sm:$0xf]
        %v424 = vld [vmem:[#allocation7 + $0x5c] sm:$0xf]
        %v425 = vld [vmem:[#allocation7 + $0x60] sm:$0xf]
        %v426 = vld [vmem:[#allocation7 + $0x64] sm:$0xf]
        %v427 = vld [vmem:[#allocation7 + $0x68] sm:$0xf]
        %v428 = vld [vmem:[#allocation7 + $0x6c] sm:$0xf]
        %v429 = vld [vmem:[#allocation7 + $0x70] sm:$0xf]
        %v430 = vld [vmem:[#allocation7 + $0x74] sm:$0xf]
        %v431 = vld [vmem:[#allocation7 + $0x78] sm:$0xf]
        %v432 = vld [vmem:[#allocation7 + $0x7c] sm:$0xf]
        %v433 = vld [vmem:[#allocation7 + $0x80] sm:$0xf]
        %v434 = vld [vmem:[#allocation7 + $0x84] sm:$0xf]
        %v435 = vld [vmem:[#allocation7 + $0x88] sm:$0xf]
        %v436 = vld [vmem:[#allocation7 + $0x8c] sm:$0xf]
        %v437 = vld [vmem:[#allocation7 + $0x90] sm:$0xf]
        %v438 = vld [vmem:[#allocation7 + $0x94] sm:$0xf]
        %v439 = vld [vmem:[#allocation7 + $0x98] sm:$0xf]
        %v440 = vld [vmem:[#allocation7 + $0x9c] sm:$0xf]
        %v441 = vld [vmem:[#allocation7 + $0xa0] sm:$0xf]
        %v442 = vld [vmem:[#allocation7 + $0xa4] sm:$0xf]
        %v443 = vld [vmem:[#allocation7 + $0xa8] sm:$0xf]
        %v444 = vld [vmem:[#allocation7 + $0xac] sm:$0xf]
        %v445 = vld [vmem:[#allocation7 + $0xb0] sm:$0xf]
        %v446 = vld [vmem:[#allocation7 + $0xb4] sm:$0xf]
        %v447 = vld [vmem:[#allocation7 + $0xb8] sm:$0xf]
        %v448 = vld [vmem:[#allocation7 + $0xbc] sm:$0xf]
        %v449 = vld [vmem:[#allocation7 + $0xc0] sm:$0xf]
        %v450 = vld [vmem:[#allocation7 + $0xc4] sm:$0xf]
        %v451 = vld [vmem:[#allocation7 + $0xc8] sm:$0xf]
        %v452 = vld [vmem:[#allocation7 + $0xcc] sm:$0xf]
        %v453 = vld [vmem:[#allocation7 + $0xd0] sm:$0xf]
        %v454 = vld [vmem:[#allocation7 + $0xd4] sm:$0xf]
        %v455 = vld [vmem:[#allocation7 + $0xd8] sm:$0xf]
        %v456 = vld [vmem:[#allocation7 + $0xdc] sm:$0xf]
        %v457 = vld [vmem:[#allocation7 + $0xe0] sm:$0xf]
        %v458 = vld [vmem:[#allocation7 + $0xe4] sm:$0xf]
        %v459 = vld [vmem:[#allocation7 + $0xe8] sm:$0xf]
        %v460 = vld [vmem:[#allocation7 + $0xec] sm:$0xf]
        %v461 = vld [vmem:[#allocation7 + $0xf0] sm:$0xf]
        %v462 = vld [vmem:[#allocation7 + $0xf4] sm:$0xf]
        %v463 = vld [vmem:[#allocation7 + $0xf8] sm:$0xf]
        %v464 = vld [vmem:[#allocation7 + $0xfc] sm:$0xf]
        %v465 = vld [vmem:[#allocation10] sm:$0x1]
        %v467 = vlaneseq
        %v468 = vshrl.u32 %v467, 7
        %v469 = vsub.s32 0, %v468
        %v470 = vrot.slane %v465, %v469
        %v504 = vunpack.c.l.b16 %v369
        %v505 = vunpack.c.h.b16 %v369
        %v506 = vunpack.c.l.b16 %v370
        %v507 = vunpack.c.h.b16 %v370
        %v508 = vunpack.c.l.b16 %v371
        %v509 = vunpack.c.h.b16 %v371
        %v510 = vunpack.c.l.b16 %v372
        %v511 = vunpack.c.h.b16 %v372
        %v512 = vunpack.c.l.b16 %v373
        %v513 = vunpack.c.h.b16 %v373
        %v514 = vunpack.c.l.b16 %v374
        %v515 = vunpack.c.h.b16 %v374
        %v516 = vunpack.c.l.b16 %v375
        %v517 = vunpack.c.h.b16 %v375
        %v518 = vunpack.c.l.b16 %v376
        %v519 = vunpack.c.h.b16 %v376
        %v520 = vunpack.c.l.b16 %v377
        %v521 = vunpack.c.h.b16 %v377
        %v522 = vunpack.c.l.b16 %v378
        %v523 = vunpack.c.h.b16 %v378
        %v524 = vunpack.c.l.b16 %v379
        %v525 = vunpack.c.h.b16 %v379
        %v526 = vunpack.c.l.b16 %v380
        %v527 = vunpack.c.h.b16 %v380
        %v528 = vunpack.c.l.b16 %v381
        %v529 = vunpack.c.h.b16 %v381
        %v530 = vunpack.c.l.b16 %v382
        %v531 = vunpack.c.h.b16 %v382
        %v532 = vunpack.c.l.b16 %v383
        %v533 = vunpack.c.h.b16 %v383
        %v534 = vunpack.c.l.b16 %v384
        %v535 = vunpack.c.h.b16 %v384
        %v536 = vunpack.c.l.b16 %v385
        %v537 = vunpack.c.h.b16 %v385
        %v538 = vunpack.c.l.b16 %v386
        %v539 = vunpack.c.h.b16 %v386
        %v540 = vunpack.c.l.b16 %v387
        %v541 = vunpack.c.h.b16 %v387
        %v542 = vunpack.c.l.b16 %v388
        %v543 = vunpack.c.h.b16 %v388
        %v544 = vunpack.c.l.b16 %v389
        %v545 = vunpack.c.h.b16 %v389
        %v546 = vunpack.c.l.b16 %v390
        %v547 = vunpack.c.h.b16 %v390
        %v548 = vunpack.c.l.b16 %v391
        %v549 = vunpack.c.h.b16 %v391
        %v550 = vunpack.c.l.b16 %v392
        %v551 = vunpack.c.h.b16 %v392
        %v552 = vunpack.c.l.b16 %v393
        %v553 = vunpack.c.h.b16 %v393
        %v554 = vunpack.c.l.b16 %v394
        %v555 = vunpack.c.h.b16 %v394
        %v556 = vunpack.c.l.b16 %v395
        %v557 = vunpack.c.h.b16 %v395
        %v558 = vunpack.c.l.b16 %v396
        %v559 = vunpack.c.h.b16 %v396
        %v560 = vunpack.c.l.b16 %v397
        %v561 = vunpack.c.h.b16 %v397
        %v562 = vunpack.c.l.b16 %v398
        %v563 = vunpack.c.h.b16 %v398
        %v564 = vunpack.c.l.b16 %v399
        %v565 = vunpack.c.h.b16 %v399
        %v566 = vunpack.c.l.b16 %v400
        %v567 = vunpack.c.h.b16 %v400
        %v568 = vpack.c.b16 %v508, %v504
        %v569 = vpack.c.b16 %v509, %v505
        %v570 = vpack.c.b16 %v510, %v506
        %v571 = vpack.c.b16 %v511, %v507
        %v572 = vpack.c.b16 %v516, %v512
        %v573 = vpack.c.b16 %v517, %v513
        %v574 = vpack.c.b16 %v518, %v514
        %v575 = vpack.c.b16 %v519, %v515
        %v576 = vpack.c.b16 %v524, %v520
        %v577 = vpack.c.b16 %v525, %v521
        %v578 = vpack.c.b16 %v526, %v522
        %v579 = vpack.c.b16 %v527, %v523
        %v580 = vpack.c.b16 %v532, %v528
        %v581 = vpack.c.b16 %v533, %v529
        %v582 = vpack.c.b16 %v534, %v530
        %v583 = vpack.c.b16 %v535, %v531
        %v584 = vpack.c.b16 %v540, %v536
        %v585 = vpack.c.b16 %v541, %v537
        %v586 = vpack.c.b16 %v542, %v538
        %v587 = vpack.c.b16 %v543, %v539
        %v588 = vpack.c.b16 %v548, %v544
        %v589 = vpack.c.b16 %v549, %v545
        %v590 = vpack.c.b16 %v550, %v546
        %v591 = vpack.c.b16 %v551, %v547
        %v592 = vpack.c.b16 %v556, %v552
        %v593 = vpack.c.b16 %v557, %v553
        %v594 = vpack.c.b16 %v558, %v554
        %v595 = vpack.c.b16 %v559, %v555
        %v596 = vpack.c.b16 %v564, %v560
        %v597 = vpack.c.b16 %v565, %v561
        %v598 = vpack.c.b16 %v566, %v562
        %v599 = vpack.c.b16 %v567, %v563
        %v696 = vunpack.c.l.b16 %v401
        %v697 = vunpack.c.l.b16 %v402
        %v698 = vunpack.c.l.b16 %v403
        %v699 = vunpack.c.l.b16 %v404
        %v700 = vunpack.c.l.b16 %v405
        %v701 = vunpack.c.l.b16 %v406
        %v702 = vunpack.c.l.b16 %v407
        %v703 = vunpack.c.l.b16 %v408
        %v704 = vunpack.c.l.b16 %v409
        %v705 = vunpack.c.l.b16 %v410
        %v706 = vunpack.c.l.b16 %v411
        %v707 = vunpack.c.l.b16 %v412
        %v708 = vunpack.c.l.b16 %v413
        %v709 = vunpack.c.l.b16 %v414
        %v710 = vunpack.c.l.b16 %v415
        %v711 = vunpack.c.l.b16 %v416
        %v712 = vunpack.c.l.b16 %v417
        %v713 = vunpack.c.l.b16 %v418
        %v714 = vunpack.c.l.b16 %v419
        %v715 = vunpack.c.l.b16 %v420
        %v716 = vunpack.c.l.b16 %v421
        %v717 = vunpack.c.l.b16 %v422
        %v718 = vunpack.c.l.b16 %v423
        %v719 = vunpack.c.l.b16 %v424
        %v720 = vunpack.c.l.b16 %v425
        %v721 = vunpack.c.l.b16 %v426
        %v722 = vunpack.c.l.b16 %v427
        %v723 = vunpack.c.l.b16 %v428
        %v724 = vunpack.c.l.b16 %v429
        %v725 = vunpack.c.l.b16 %v430
        %v726 = vunpack.c.l.b16 %v431
        %v727 = vunpack.c.l.b16 %v432
        %v728 = vunpack.c.l.b16 %v433
        %v729 = vunpack.c.l.b16 %v434
        %v730 = vunpack.c.l.b16 %v435
        %v731 = vunpack.c.l.b16 %v436
        %v732 = vunpack.c.l.b16 %v437
        %v733 = vunpack.c.l.b16 %v438
        %v734 = vunpack.c.l.b16 %v439
        %v735 = vunpack.c.l.b16 %v440
        %v736 = vunpack.c.l.b16 %v441
        %v737 = vunpack.c.l.b16 %v442
        %v738 = vunpack.c.l.b16 %v443
        %v739 = vunpack.c.l.b16 %v444
        %v740 = vunpack.c.l.b16 %v445
        %v741 = vunpack.c.l.b16 %v446
        %v742 = vunpack.c.l.b16 %v447
        %v743 = vunpack.c.l.b16 %v448
        %v744 = vunpack.c.l.b16 %v449
        %v745 = vunpack.c.l.b16 %v450
        %v746 = vunpack.c.l.b16 %v451
        %v747 = vunpack.c.l.b16 %v452
        %v748 = vunpack.c.l.b16 %v453
        %v749 = vunpack.c.l.b16 %v454
        %v750 = vunpack.c.l.b16 %v455
        %v751 = vunpack.c.l.b16 %v456
        %v752 = vunpack.c.l.b16 %v457
        %v753 = vunpack.c.l.b16 %v458
        %v754 = vunpack.c.l.b16 %v459
        %v755 = vunpack.c.l.b16 %v460
        %v756 = vunpack.c.l.b16 %v461
        %v757 = vunpack.c.l.b16 %v462
        %v758 = vunpack.c.l.b16 %v463
        %v759 = vunpack.c.l.b16 %v464
        %v760 = vpack.c.b16 %v697, %v696
        %v761 = vpack.c.b16 %v699, %v698
        %v762 = vpack.c.b16 %v701, %v700
        %v763 = vpack.c.b16 %v703, %v702
        %v764 = vpack.c.b16 %v705, %v704
        %v765 = vpack.c.b16 %v707, %v706
        %v766 = vpack.c.b16 %v709, %v708
        %v767 = vpack.c.b16 %v711, %v710
        %v768 = vpack.c.b16 %v713, %v712
        %v769 = vpack.c.b16 %v715, %v714
        %v770 = vpack.c.b16 %v717, %v716
        %v771 = vpack.c.b16 %v719, %v718
        %v772 = vpack.c.b16 %v721, %v720
        %v773 = vpack.c.b16 %v723, %v722
        %v774 = vpack.c.b16 %v725, %v724
        %v775 = vpack.c.b16 %v727, %v726
        %v776 = vpack.c.b16 %v729, %v728
        %v777 = vpack.c.b16 %v731, %v730
        %v778 = vpack.c.b16 %v733, %v732
        %v779 = vpack.c.b16 %v735, %v734
        %v780 = vpack.c.b16 %v737, %v736
        %v781 = vpack.c.b16 %v739, %v738
        %v782 = vpack.c.b16 %v741, %v740
        %v783 = vpack.c.b16 %v743, %v742
        %v784 = vpack.c.b16 %v745, %v744
        %v785 = vpack.c.b16 %v747, %v746
        %v786 = vpack.c.b16 %v749, %v748
        %v787 = vpack.c.b16 %v751, %v750
        %v788 = vpack.c.b16 %v753, %v752
        %v789 = vpack.c.b16 %v755, %v754
        %v790 = vpack.c.b16 %v757, %v756
        %v791 = vpack.c.b16 %v759, %v758
        %824 = vmatprep.subr.bf16.mxu0 0
        %825 = vmatpush1.bf16.msra.mxu0 %v760
        %826 = vmatprep.subr.bf16.mxu0 0
        %827 = vmatpush1.bf16.msra.mxu0 %v761
        %828 = vmatprep.subr.bf16.mxu0 0
        %829 = vmatpush1.bf16.msra.mxu0 %v762
        %830 = vmatprep.subr.bf16.mxu0 0
        %831 = vmatpush1.bf16.msra.mxu0 %v763
        %832 = vmatprep.subr.bf16.mxu0 0
        %833 = vmatpush1.bf16.msra.mxu0 %v764
        %834 = vmatprep.subr.bf16.mxu0 0
        %835 = vmatpush1.bf16.msra.mxu0 %v765
        %836 = vmatprep.subr.bf16.mxu0 0
        %837 = vmatpush1.bf16.msra.mxu0 %v766
        %838 = vmatprep.subr.bf16.mxu0 0
        %839 = vmatpush1.bf16.msra.mxu0 %v767
        %840 = vmatprep.subr.bf16.mxu0 0
        %841 = vmatpush1.bf16.msra.mxu0 %v768
        %842 = vmatprep.subr.bf16.mxu0 0
        %843 = vmatpush1.bf16.msra.mxu0 %v769
        %844 = vmatprep.subr.bf16.mxu0 0
        %845 = vmatpush1.bf16.msra.mxu0 %v770
        %846 = vmatprep.subr.bf16.mxu0 0
        %847 = vmatpush1.bf16.msra.mxu0 %v771
        %848 = vmatprep.subr.bf16.mxu0 0
        %849 = vmatpush1.bf16.msra.mxu0 %v772
        %850 = vmatprep.subr.bf16.mxu0 0
        %851 = vmatpush1.bf16.msra.mxu0 %v773
        %852 = vmatprep.subr.bf16.mxu0 0
        %853 = vmatpush1.bf16.msra.mxu0 %v774
        %854 = vmatprep.subr.bf16.mxu0 0
        %855 = vmatpush1.bf16.msra.mxu0 %v775
        %856 = vmatprep.mubr.bf16.mxu0 %v569
        %857 = vmatmul.mubr.bf16.gmra.mrb[0].mxu0 %v568
        %v858 = vpop.f32.mrb[0].mxu0
        %v859 = vadd.f32 %v470, %v858
        %v860 = vpop.f32.mrb[0].mxu0
        %v861 = vpop.f32.mrb[0].mxu0
        %v862 = vadd.f32 %v470, %v861
        %v863 = vpop.f32.mrb[0].mxu0
        %864 = vmatprep.mubr.bf16.mxu0 %v573
        %865 = vmatmul.mubr.bf16.gmra.mrb[0].mxu0 %v572
        %v866 = vpop.f32.mrb[0].mxu0
        %v867 = vadd.f32 %v470, %v866
        %v868 = vpop.f32.mrb[0].mxu0
        %v869 = vpop.f32.mrb[0].mxu0
        %v870 = vadd.f32 %v470, %v869
        %v871 = vpop.f32.mrb[0].mxu0
        %872 = vmatprep.mubr.bf16.mxu0 %v577
        %873 = vmatmul.mubr.bf16.gmra.mrb[0].mxu0 %v576
        %v874 = vpop.f32.mrb[0].mxu0
        %v875 = vadd.f32 %v470, %v874
        %v876 = vpop.f32.mrb[0].mxu0
        %v877 = vpop.f32.mrb[0].mxu0
        %v878 = vadd.f32 %v470, %v877
        %v879 = vpop.f32.mrb[0].mxu0
        %880 = vmatprep.mubr.bf16.mxu0 %v581
        %881 = vmatmul.mubr.bf16.gmra.mrb[0].mxu0 %v580
        %v882 = vpop.f32.mrb[0].mxu0
        %v883 = vadd.f32 %v470, %v882
        %v884 = vpop.f32.mrb[0].mxu0
        %v885 = vpop.f32.mrb[0].mxu0
        %v886 = vadd.f32 %v470, %v885
        %v887 = vpop.f32.mrb[0].mxu0
        %888 = vmatprep.mubr.bf16.mxu0 %v585
        %889 = vmatmul.mubr.bf16.gmra.mrb[0].mxu0 %v584
        %v890 = vpop.f32.mrb[0].mxu0
        %v891 = vadd.f32 %v470, %v890
        %v892 = vpop.f32.mrb[0].mxu0
        %v893 = vpop.f32.mrb[0].mxu0
        %v894 = vadd.f32 %v470, %v893
        %v895 = vpop.f32.mrb[0].mxu0
        %896 = vmatprep.mubr.bf16.mxu0 %v589
        %897 = vmatmul.mubr.bf16.gmra.mrb[0].mxu0 %v588
        %v898 = vpop.f32.mrb[0].mxu0
        %v899 = vadd.f32 %v470, %v898
        %v900 = vpop.f32.mrb[0].mxu0
        %v901 = vpop.f32.mrb[0].mxu0
        %v902 = vadd.f32 %v470, %v901
        %v903 = vpop.f32.mrb[0].mxu0
        %904 = vmatprep.mubr.bf16.mxu0 %v593
        %905 = vmatmul.mubr.bf16.gmra.mrb[0].mxu0 %v592
        %v906 = vpop.f32.mrb[0].mxu0
        %v907 = vadd.f32 %v470, %v906
        %v908 = vpop.f32.mrb[0].mxu0
        %v909 = vpop.f32.mrb[0].mxu0
        %v910 = vadd.f32 %v470, %v909
        %v911 = vpop.f32.mrb[0].mxu0
        %912 = vmatprep.mubr.bf16.mxu0 %v597
        %913 = vmatmul.mubr.bf16.gmra.mrb[0].mxu0 %v596
        %v914 = vpop.f32.mrb[0].mxu0
        %v915 = vadd.f32 %v470, %v914
        %v916 = vpop.f32.mrb[0].mxu0
        %v917 = vpop.f32.mrb[0].mxu0
        %v918 = vadd.f32 %v470, %v917
        %v919 = vpop.f32.mrb[0].mxu0
        %920 = vdwg.mxu0
        %921 = vmatprep.subr.bf16.mxu0 0
        %922 = vmatpush1.bf16.msra.mxu0 %v776
        %923 = vmatprep.subr.bf16.mxu0 0
        %924 = vmatpush1.bf16.msra.mxu0 %v777
        %925 = vmatprep.subr.bf16.mxu0 0
        %926 = vmatpush1.bf16.msra.mxu0 %v778
        %927 = vmatprep.subr.bf16.mxu0 0
        %928 = vmatpush1.bf16.msra.mxu0 %v779
        %929 = vmatprep.subr.bf16.mxu0 0
        %930 = vmatpush1.bf16.msra.mxu0 %v780
        %931 = vmatprep.subr.bf16.mxu0 0
        %932 = vmatpush1.bf16.msra.mxu0 %v781
        %933 = vmatprep.subr.bf16.mxu0 0
        %934 = vmatpush1.bf16.msra.mxu0 %v782
        %935 = vmatprep.subr.bf16.mxu0 0
        %936 = vmatpush1.bf16.msra.mxu0 %v783
        %937 = vmatprep.subr.bf16.mxu0 0
        %938 = vmatpush1.bf16.msra.mxu0 %v784
        %939 = vmatprep.subr.bf16.mxu0 0
        %940 = vmatpush1.bf16.msra.mxu0 %v785
        %941 = vmatprep.subr.bf16.mxu0 0
        %942 = vmatpush1.bf16.msra.mxu0 %v786
        %943 = vmatprep.subr.bf16.mxu0 0
        %944 = vmatpush1.bf16.msra.mxu0 %v787
        %945 = vmatprep.subr.bf16.mxu0 0
        %946 = vmatpush1.bf16.msra.mxu0 %v788
        %947 = vmatprep.subr.bf16.mxu0 0
        %948 = vmatpush1.bf16.msra.mxu0 %v789
        %949 = vmatprep.subr.bf16.mxu0 0
        %950 = vmatpush1.bf16.msra.mxu0 %v790
        %951 = vmatprep.subr.bf16.mxu0 0
        %952 = vmatpush1.bf16.msra.mxu0 %v791
        %953 = vmatprep.mubr.bf16.mxu0 %v571
        %954 = vmatmul.mubr.bf16.gmra.mrb[0].mxu0 %v570
        %v955 = vpop.f32.mrb[0].mxu0
        %v956 = vadd.f32 %v859, %v955
        %v957 = vpop.f32.mrb[0].mxu0
        %v958 = vpop.f32.mrb[0].mxu0
        %v959 = vadd.f32 %v862, %v958
        %v960 = vpop.f32.mrb[0].mxu0
        %961 = vmatprep.mubr.bf16.mxu0 %v575
        %962 = vmatmul.mubr.bf16.gmra.mrb[0].mxu0 %v574
        %v963 = vpop.f32.mrb[0].mxu0
        %v964 = vadd.f32 %v867, %v963
        %v965 = vpop.f32.mrb[0].mxu0
        %v966 = vpop.f32.mrb[0].mxu0
        %v967 = vadd.f32 %v870, %v966
        %v968 = vpop.f32.mrb[0].mxu0
        %969 = vmatprep.mubr.bf16.mxu0 %v579
        %970 = vmatmul.mubr.bf16.gmra.mrb[0].mxu0 %v578
        %v971 = vpop.f32.mrb[0].mxu0
        %v972 = vadd.f32 %v875, %v971
        %v973 = vpop.f32.mrb[0].mxu0
        %v974 = vpop.f32.mrb[0].mxu0
        %v975 = vadd.f32 %v878, %v974
        %v976 = vpop.f32.mrb[0].mxu0
        %977 = vmatprep.mubr.bf16.mxu0 %v583
        %978 = vmatmul.mubr.bf16.gmra.mrb[0].mxu0 %v582
        %v979 = vpop.f32.mrb[0].mxu0
        %v980 = vadd.f32 %v883, %v979
        %v981 = vpop.f32.mrb[0].mxu0
        %v982 = vpop.f32.mrb[0].mxu0
        %v983 = vadd.f32 %v886, %v982
        %v984 = vpop.f32.mrb[0].mxu0
        %985 = vmatprep.mubr.bf16.mxu0 %v587
        %986 = vmatmul.mubr.bf16.gmra.mrb[0].mxu0 %v586
        %v987 = vpop.f32.mrb[0].mxu0
        %v988 = vadd.f32 %v891, %v987
        %v989 = vpop.f32.mrb[0].mxu0
        %v990 = vpop.f32.mrb[0].mxu0
        %v991 = vadd.f32 %v894, %v990
        %v992 = vpop.f32.mrb[0].mxu0
        %993 = vmatprep.mubr.bf16.mxu0 %v591
        %994 = vmatmul.mubr.bf16.gmra.mrb[0].mxu0 %v590
        %v995 = vpop.f32.mrb[0].mxu0
        %v996 = vadd.f32 %v899, %v995
        %v997 = vpop.f32.mrb[0].mxu0
        %v998 = vpop.f32.mrb[0].mxu0
        %v999 = vadd.f32 %v902, %v998
        %v1000 = vpop.f32.mrb[0].mxu0
        %1001 = vmatprep.mubr.bf16.mxu0 %v595
        %1002 = vmatmul.mubr.bf16.gmra.mrb[0].mxu0 %v594
        %v1003 = vpop.f32.mrb[0].mxu0
        %v1004 = vadd.f32 %v907, %v1003
        %v1005 = vpop.f32.mrb[0].mxu0
        %v1006 = vpop.f32.mrb[0].mxu0
        %v1007 = vadd.f32 %v910, %v1006
        %v1008 = vpop.f32.mrb[0].mxu0
        %1009 = vmatprep.mubr.bf16.mxu0 %v599
        %1010 = vmatmul.mubr.bf16.gmra.mrb[0].mxu0 %v598
        %v1011 = vpop.f32.mrb[0].mxu0
        %v1012 = vadd.f32 %v915, %v1011
        %v1013 = vpop.f32.mrb[0].mxu0
        %v1014 = vpop.f32.mrb[0].mxu0
        %v1015 = vadd.f32 %v918, %v1014
        %v1016 = vpop.f32.mrb[0].mxu0
        %1017 = vdwg.mxu0
        %v1018 = vmax.f32 %v956, 0.0
        %v1019 = vmax.f32 %v959, 0.0
        %v1020 = vmax.f32 %v964, 0.0
        %v1021 = vmax.f32 %v967, 0.0
        %v1022 = vmax.f32 %v972, 0.0
        %v1023 = vmax.f32 %v975, 0.0
        %v1024 = vmax.f32 %v980, 0.0
        %v1025 = vmax.f32 %v983, 0.0
        %v1026 = vmax.f32 %v988, 0.0
        %v1027 = vmax.f32 %v991, 0.0
        %v1028 = vmax.f32 %v996, 0.0
        %v1029 = vmax.f32 %v999, 0.0
        %v1030 = vmax.f32 %v1004, 0.0
        %v1031 = vmax.f32 %v1007, 0.0
        %v1032 = vmax.f32 %v1012, 0.0
        %v1033 = vmax.f32 %v1015, 0.0
        %v1034 = vpack.c.bf16 %v1019, %v1018
        %v1035 = vpack.c.bf16 %v1021, %v1020
        %v1036 = vpack.c.bf16 %v1023, %v1022
        %v1037 = vpack.c.bf16 %v1025, %v1024
        %v1038 = vpack.c.bf16 %v1027, %v1026
        %v1039 = vpack.c.bf16 %v1029, %v1028
        %v1040 = vpack.c.bf16 %v1031, %v1030
        %v1041 = vpack.c.bf16 %v1033, %v1032
        %1042 = vst [vmem:[%s356] sm:$0xff] %v1034
        %1043 = vst [vmem:[%s356 + $0x8] sm:$0xff] %v1035
        %1044 = vst [vmem:[%s356 + $0x10] sm:$0xff] %v1036
        %1045 = vst [vmem:[%s356 + $0x18] sm:$0xff] %v1037
        %1046 = vst [vmem:[%s356 + $0x20] sm:$0xff] %v1038
        %1047 = vst [vmem:[%s356 + $0x28] sm:$0xff] %v1039
        %1048 = vst [vmem:[%s356 + $0x30] sm:$0xff] %v1040
        %1049 = vst [vmem:[%s356 + $0x38] sm:$0xff] %v1041
        %v1050 = vld [vmem:[%s313] sm:$0xff]
        %v1051 = vld [vmem:[%s313 + $0x8] sm:$0xff]
        %v1052 = vld [vmem:[%s313 + $0x10] sm:$0xff]
        %v1053 = vld [vmem:[%s313 + $0x18] sm:$0xff]
        %v1054 = vld [vmem:[%s313 + $0x20] sm:$0xff]
        %v1055 = vld [vmem:[%s313 + $0x28] sm:$0xff]
        %v1056 = vld [vmem:[%s313 + $0x30] sm:$0xff]
        %v1057 = vld [vmem:[%s313 + $0x38] sm:$0xff]
        %v1058 = vld [vmem:[%s313 + $0x40] sm:$0xff]
        %v1059 = vld [vmem:[%s313 + $0x48] sm:$0xff]
        %v1060 = vld [vmem:[%s313 + $0x50] sm:$0xff]
        %v1061 = vld [vmem:[%s313 + $0x58] sm:$0xff]
        %v1062 = vld [vmem:[%s313 + $0x60] sm:$0xff]
        %v1063 = vld [vmem:[%s313 + $0x68] sm:$0xff]
        %v1064 = vld [vmem:[%s313 + $0x70] sm:$0xff]
        %v1065 = vld [vmem:[%s313 + $0x78] sm:$0xff]
        %v1066 = vld [vmem:[%s313 + $0x80] sm:$0xff]
        %v1067 = vld [vmem:[%s313 + $0x88] sm:$0xff]
        %v1068 = vld [vmem:[%s313 + $0x90] sm:$0xff]
        %v1069 = vld [vmem:[%s313 + $0x98] sm:$0xff]
        %v1070 = vld [vmem:[%s313 + $0xa0] sm:$0xff]
        %v1071 = vld [vmem:[%s313 + $0xa8] sm:$0xff]
        %v1072 = vld [vmem:[%s313 + $0xb0] sm:$0xff]
        %v1073 = vld [vmem:[%s313 + $0xb8] sm:$0xff]
        %v1074 = vld [vmem:[%s313 + $0xc0] sm:$0xff]
        %v1075 = vld [vmem:[%s313 + $0xc8] sm:$0xff]
        %v1076 = vld [vmem:[%s313 + $0xd0] sm:$0xff]
        %v1077 = vld [vmem:[%s313 + $0xd8] sm:$0xff]
        %v1078 = vld [vmem:[%s313 + $0xe0] sm:$0xff]
        %v1079 = vld [vmem:[%s313 + $0xe8] sm:$0xff]
        %v1080 = vld [vmem:[%s313 + $0xf0] sm:$0xff]
        %v1081 = vld [vmem:[%s313 + $0xf8] sm:$0xff]
        %v1082 = vld [vmem:[#allocation8] sm:$0xf]
        %v1083 = vld [vmem:[#allocation8 + $0x4] sm:$0xf]
        %v1084 = vld [vmem:[#allocation8 + $0x8] sm:$0xf]
        %v1085 = vld [vmem:[#allocation8 + $0xc] sm:$0xf]
        %v1086 = vld [vmem:[#allocation8 + $0x10] sm:$0xf]
        %v1087 = vld [vmem:[#allocation8 + $0x14] sm:$0xf]
        %v1088 = vld [vmem:[#allocation8 + $0x18] sm:$0xf]
        %v1089 = vld [vmem:[#allocation8 + $0x1c] sm:$0xf]
        %v1090 = vld [vmem:[#allocation8 + $0x20] sm:$0xf]
        %v1091 = vld [vmem:[#allocation8 + $0x24] sm:$0xf]
        %v1092 = vld [vmem:[#allocation8 + $0x28] sm:$0xf]
        %v1093 = vld [vmem:[#allocation8 + $0x2c] sm:$0xf]
        %v1094 = vld [vmem:[#allocation8 + $0x30] sm:$0xf]
        %v1095 = vld [vmem:[#allocation8 + $0x34] sm:$0xf]
        %v1096 = vld [vmem:[#allocation8 + $0x38] sm:$0xf]
        %v1097 = vld [vmem:[#allocation8 + $0x3c] sm:$0xf]
        %v1098 = vld [vmem:[#allocation8 + $0x40] sm:$0xf]
        %v1099 = vld [vmem:[#allocation8 + $0x44] sm:$0xf]
        %v1100 = vld [vmem:[#allocation8 + $0x48] sm:$0xf]
        %v1101 = vld [vmem:[#allocation8 + $0x4c] sm:$0xf]
        %v1102 = vld [vmem:[#allocation8 + $0x50] sm:$0xf]
        %v1103 = vld [vmem:[#allocation8 + $0x54] sm:$0xf]
        %v1104 = vld [vmem:[#allocation8 + $0x58] sm:$0xf]
        %v1105 = vld [vmem:[#allocation8 + $0x5c] sm:$0xf]
        %v1106 = vld [vmem:[#allocation8 + $0x60] sm:$0xf]
        %v1107 = vld [vmem:[#allocation8 + $0x64] sm:$0xf]
        %v1108 = vld [vmem:[#allocation8 + $0x68] sm:$0xf]
        %v1109 = vld [vmem:[#allocation8 + $0x6c] sm:$0xf]
        %v1110 = vld [vmem:[#allocation8 + $0x70] sm:$0xf]
        %v1111 = vld [vmem:[#allocation8 + $0x74] sm:$0xf]
        %v1112 = vld [vmem:[#allocation8 + $0x78] sm:$0xf]
        %v1113 = vld [vmem:[#allocation8 + $0x7c] sm:$0xf]
        %v1114 = vld [vmem:[#allocation8 + $0x80] sm:$0xf]
        %v1115 = vld [vmem:[#allocation8 + $0x84] sm:$0xf]
        %v1116 = vld [vmem:[#allocation8 + $0x88] sm:$0xf]
        %v1117 = vld [vmem:[#allocation8 + $0x8c] sm:$0xf]
        %v1118 = vld [vmem:[#allocation8 + $0x90] sm:$0xf]
        %v1119 = vld [vmem:[#allocation8 + $0x94] sm:$0xf]
        %v1120 = vld [vmem:[#allocation8 + $0x98] sm:$0xf]
        %v1121 = vld [vmem:[#allocation8 + $0x9c] sm:$0xf]
        %v1122 = vld [vmem:[#allocation8 + $0xa0] sm:$0xf]
        %v1123 = vld [vmem:[#allocation8 + $0xa4] sm:$0xf]
        %v1124 = vld [vmem:[#allocation8 + $0xa8] sm:$0xf]
        %v1125 = vld [vmem:[#allocation8 + $0xac] sm:$0xf]
        %v1126 = vld [vmem:[#allocation8 + $0xb0] sm:$0xf]
        %v1127 = vld [vmem:[#allocation8 + $0xb4] sm:$0xf]
        %v1128 = vld [vmem:[#allocation8 + $0xb8] sm:$0xf]
        %v1129 = vld [vmem:[#allocation8 + $0xbc] sm:$0xf]
        %v1130 = vld [vmem:[#allocation8 + $0xc0] sm:$0xf]
        %v1131 = vld [vmem:[#allocation8 + $0xc4] sm:$0xf]
        %v1132 = vld [vmem:[#allocation8 + $0xc8] sm:$0xf]
        %v1133 = vld [vmem:[#allocation8 + $0xcc] sm:$0xf]
        %v1134 = vld [vmem:[#allocation8 + $0xd0] sm:$0xf]
        %v1135 = vld [vmem:[#allocation8 + $0xd4] sm:$0xf]
        %v1136 = vld [vmem:[#allocation8 + $0xd8] sm:$0xf]
        %v1137 = vld [vmem:[#allocation8 + $0xdc] sm:$0xf]
        %v1138 = vld [vmem:[#allocation8 + $0xe0] sm:$0xf]
        %v1139 = vld [vmem:[#allocation8 + $0xe4] sm:$0xf]
        %v1140 = vld [vmem:[#allocation8 + $0xe8] sm:$0xf]
        %v1141 = vld [vmem:[#allocation8 + $0xec] sm:$0xf]
        %v1142 = vld [vmem:[#allocation8 + $0xf0] sm:$0xf]
        %v1143 = vld [vmem:[#allocation8 + $0xf4] sm:$0xf]
        %v1144 = vld [vmem:[#allocation8 + $0xf8] sm:$0xf]
        %v1145 = vld [vmem:[#allocation8 + $0xfc] sm:$0xf]
        %v1178 = vunpack.c.l.b16 %v1050
        %v1179 = vunpack.c.h.b16 %v1050
        %v1180 = vunpack.c.l.b16 %v1051
        %v1181 = vunpack.c.h.b16 %v1051
        %v1182 = vunpack.c.l.b16 %v1052
        %v1183 = vunpack.c.h.b16 %v1052
        %v1184 = vunpack.c.l.b16 %v1053
        %v1185 = vunpack.c.h.b16 %v1053
        %v1186 = vunpack.c.l.b16 %v1054
        %v1187 = vunpack.c.h.b16 %v1054
        %v1188 = vunpack.c.l.b16 %v1055
        %v1189 = vunpack.c.h.b16 %v1055
        %v1190 = vunpack.c.l.b16 %v1056
        %v1191 = vunpack.c.h.b16 %v1056
        %v1192 = vunpack.c.l.b16 %v1057
        %v1193 = vunpack.c.h.b16 %v1057
        %v1194 = vunpack.c.l.b16 %v1058
        %v1195 = vunpack.c.h.b16 %v1058
        %v1196 = vunpack.c.l.b16 %v1059
        %v1197 = vunpack.c.h.b16 %v1059
        %v1198 = vunpack.c.l.b16 %v1060
        %v1199 = vunpack.c.h.b16 %v1060
        %v1200 = vunpack.c.l.b16 %v1061
        %v1201 = vunpack.c.h.b16 %v1061
        %v1202 = vunpack.c.l.b16 %v1062
        %v1203 = vunpack.c.h.b16 %v1062
        %v1204 = vunpack.c.l.b16 %v1063
        %v1205 = vunpack.c.h.b16 %v1063
        %v1206 = vunpack.c.l.b16 %v1064
        %v1207 = vunpack.c.h.b16 %v1064
        %v1208 = vunpack.c.l.b16 %v1065
        %v1209 = vunpack.c.h.b16 %v1065
        %v1210 = vunpack.c.l.b16 %v1066
        %v1211 = vunpack.c.h.b16 %v1066
        %v1212 = vunpack.c.l.b16 %v1067
        %v1213 = vunpack.c.h.b16 %v1067
        %v1214 = vunpack.c.l.b16 %v1068
        %v1215 = vunpack.c.h.b16 %v1068
        %v1216 = vunpack.c.l.b16 %v1069
        %v1217 = vunpack.c.h.b16 %v1069
        %v1218 = vunpack.c.l.b16 %v1070
        %v1219 = vunpack.c.h.b16 %v1070
        %v1220 = vunpack.c.l.b16 %v1071
        %v1221 = vunpack.c.h.b16 %v1071
        %v1222 = vunpack.c.l.b16 %v1072
        %v1223 = vunpack.c.h.b16 %v1072
        %v1224 = vunpack.c.l.b16 %v1073
        %v1225 = vunpack.c.h.b16 %v1073
        %v1226 = vunpack.c.l.b16 %v1074
        %v1227 = vunpack.c.h.b16 %v1074
        %v1228 = vunpack.c.l.b16 %v1075
        %v1229 = vunpack.c.h.b16 %v1075
        %v1230 = vunpack.c.l.b16 %v1076
        %v1231 = vunpack.c.h.b16 %v1076
        %v1232 = vunpack.c.l.b16 %v1077
        %v1233 = vunpack.c.h.b16 %v1077
        %v1234 = vunpack.c.l.b16 %v1078
        %v1235 = vunpack.c.h.b16 %v1078
        %v1236 = vunpack.c.l.b16 %v1079
        %v1237 = vunpack.c.h.b16 %v1079
        %v1238 = vunpack.c.l.b16 %v1080
        %v1239 = vunpack.c.h.b16 %v1080
        %v1240 = vunpack.c.l.b16 %v1081
        %v1241 = vunpack.c.h.b16 %v1081
        %v1242 = vpack.c.b16 %v1182, %v1178
        %v1243 = vpack.c.b16 %v1183, %v1179
        %v1244 = vpack.c.b16 %v1184, %v1180
        %v1245 = vpack.c.b16 %v1185, %v1181
        %v1246 = vpack.c.b16 %v1190, %v1186
        %v1247 = vpack.c.b16 %v1191, %v1187
        %v1248 = vpack.c.b16 %v1192, %v1188
        %v1249 = vpack.c.b16 %v1193, %v1189
        %v1250 = vpack.c.b16 %v1198, %v1194
        %v1251 = vpack.c.b16 %v1199, %v1195
        %v1252 = vpack.c.b16 %v1200, %v1196
        %v1253 = vpack.c.b16 %v1201, %v1197
        %v1254 = vpack.c.b16 %v1206, %v1202
        %v1255 = vpack.c.b16 %v1207, %v1203
        %v1256 = vpack.c.b16 %v1208, %v1204
        %v1257 = vpack.c.b16 %v1209, %v1205
        %v1258 = vpack.c.b16 %v1214, %v1210
        %v1259 = vpack.c.b16 %v1215, %v1211
        %v1260 = vpack.c.b16 %v1216, %v1212
        %v1261 = vpack.c.b16 %v1217, %v1213
        %v1262 = vpack.c.b16 %v1222, %v1218
        %v1263 = vpack.c.b16 %v1223, %v1219
        %v1264 = vpack.c.b16 %v1224, %v1220
        %v1265 = vpack.c.b16 %v1225, %v1221
        %v1266 = vpack.c.b16 %v1230, %v1226
        %v1267 = vpack.c.b16 %v1231, %v1227
        %v1268 = vpack.c.b16 %v1232, %v1228
        %v1269 = vpack.c.b16 %v1233, %v1229
        %v1270 = vpack.c.b16 %v1238, %v1234
        %v1271 = vpack.c.b16 %v1239, %v1235
        %v1272 = vpack.c.b16 %v1240, %v1236
        %v1273 = vpack.c.b16 %v1241, %v1237
        %v1370 = vunpack.c.l.b16 %v1082
        %v1371 = vunpack.c.l.b16 %v1083
        %v1372 = vunpack.c.l.b16 %v1084
        %v1373 = vunpack.c.l.b16 %v1085
        %v1374 = vunpack.c.l.b16 %v1086
        %v1375 = vunpack.c.l.b16 %v1087
        %v1376 = vunpack.c.l.b16 %v1088
        %v1377 = vunpack.c.l.b16 %v1089
        %v1378 = vunpack.c.l.b16 %v1090
        %v1379 = vunpack.c.l.b16 %v1091
        %v1380 = vunpack.c.l.b16 %v1092
        %v1381 = vunpack.c.l.b16 %v1093
        %v1382 = vunpack.c.l.b16 %v1094
        %v1383 = vunpack.c.l.b16 %v1095
        %v1384 = vunpack.c.l.b16 %v1096
        %v1385 = vunpack.c.l.b16 %v1097
        %v1386 = vunpack.c.l.b16 %v1098
        %v1387 = vunpack.c.l.b16 %v1099
        %v1388 = vunpack.c.l.b16 %v1100
        %v1389 = vunpack.c.l.b16 %v1101
        %v1390 = vunpack.c.l.b16 %v1102
        %v1391 = vunpack.c.l.b16 %v1103
        %v1392 = vunpack.c.l.b16 %v1104
        %v1393 = vunpack.c.l.b16 %v1105
        %v1394 = vunpack.c.l.b16 %v1106
        %v1395 = vunpack.c.l.b16 %v1107
        %v1396 = vunpack.c.l.b16 %v1108
        %v1397 = vunpack.c.l.b16 %v1109
        %v1398 = vunpack.c.l.b16 %v1110
        %v1399 = vunpack.c.l.b16 %v1111
        %v1400 = vunpack.c.l.b16 %v1112
        %v1401 = vunpack.c.l.b16 %v1113
        %v1402 = vunpack.c.l.b16 %v1114
        %v1403 = vunpack.c.l.b16 %v1115
        %v1404 = vunpack.c.l.b16 %v1116
        %v1405 = vunpack.c.l.b16 %v1117
        %v1406 = vunpack.c.l.b16 %v1118
        %v1407 = vunpack.c.l.b16 %v1119
        %v1408 = vunpack.c.l.b16 %v1120
        %v1409 = vunpack.c.l.b16 %v1121
        %v1410 = vunpack.c.l.b16 %v1122
        %v1411 = vunpack.c.l.b16 %v1123
        %v1412 = vunpack.c.l.b16 %v1124
        %v1413 = vunpack.c.l.b16 %v1125
        %v1414 = vunpack.c.l.b16 %v1126
        %v1415 = vunpack.c.l.b16 %v1127
        %v1416 = vunpack.c.l.b16 %v1128
        %v1417 = vunpack.c.l.b16 %v1129
        %v1418 = vunpack.c.l.b16 %v1130
        %v1419 = vunpack.c.l.b16 %v1131
        %v1420 = vunpack.c.l.b16 %v1132
        %v1421 = vunpack.c.l.b16 %v1133
        %v1422 = vunpack.c.l.b16 %v1134
        %v1423 = vunpack.c.l.b16 %v1135
        %v1424 = vunpack.c.l.b16 %v1136
        %v1425 = vunpack.c.l.b16 %v1137
        %v1426 = vunpack.c.l.b16 %v1138
        %v1427 = vunpack.c.l.b16 %v1139
        %v1428 = vunpack.c.l.b16 %v1140
        %v1429 = vunpack.c.l.b16 %v1141
        %v1430 = vunpack.c.l.b16 %v1142
        %v1431 = vunpack.c.l.b16 %v1143
        %v1432 = vunpack.c.l.b16 %v1144
        %v1433 = vunpack.c.l.b16 %v1145
        %v1434 = vpack.c.b16 %v1371, %v1370
        %v1435 = vpack.c.b16 %v1373, %v1372
        %v1436 = vpack.c.b16 %v1375, %v1374
        %v1437 = vpack.c.b16 %v1377, %v1376
        %v1438 = vpack.c.b16 %v1379, %v1378
        %v1439 = vpack.c.b16 %v1381, %v1380
        %v1440 = vpack.c.b16 %v1383, %v1382
        %v1441 = vpack.c.b16 %v1385, %v1384
        %v1442 = vpack.c.b16 %v1387, %v1386
        %v1443 = vpack.c.b16 %v1389, %v1388
        %v1444 = vpack.c.b16 %v1391, %v1390
        %v1445 = vpack.c.b16 %v1393, %v1392
        %v1446 = vpack.c.b16 %v1395, %v1394
        %v1447 = vpack.c.b16 %v1397, %v1396
        %v1448 = vpack.c.b16 %v1399, %v1398
        %v1449 = vpack.c.b16 %v1401, %v1400
        %v1450 = vpack.c.b16 %v1403, %v1402
        %v1451 = vpack.c.b16 %v1405, %v1404
        %v1452 = vpack.c.b16 %v1407, %v1406
        %v1453 = vpack.c.b16 %v1409, %v1408
        %v1454 = vpack.c.b16 %v1411, %v1410
        %v1455 = vpack.c.b16 %v1413, %v1412
        %v1456 = vpack.c.b16 %v1415, %v1414
        %v1457 = vpack.c.b16 %v1417, %v1416
        %v1458 = vpack.c.b16 %v1419, %v1418
        %v1459 = vpack.c.b16 %v1421, %v1420
        %v1460 = vpack.c.b16 %v1423, %v1422
        %v1461 = vpack.c.b16 %v1425, %v1424
        %v1462 = vpack.c.b16 %v1427, %v1426
        %v1463 = vpack.c.b16 %v1429, %v1428
        %v1464 = vpack.c.b16 %v1431, %v1430
        %v1465 = vpack.c.b16 %v1433, %v1432
        %1498 = vmatprep.subr.bf16.mxu0 0
        %1499 = vmatpush1.bf16.msra.mxu0 %v1434
        %1500 = vmatprep.subr.bf16.mxu0 0
        %1501 = vmatpush1.bf16.msra.mxu0 %v1435
        %1502 = vmatprep.subr.bf16.mxu0 0
        %1503 = vmatpush1.bf16.msra.mxu0 %v1436
        %1504 = vmatprep.subr.bf16.mxu0 0
        %1505 = vmatpush1.bf16.msra.mxu0 %v1437
        %1506 = vmatprep.subr.bf16.mxu0 0
        %1507 = vmatpush1.bf16.msra.mxu0 %v1438
        %1508 = vmatprep.subr.bf16.mxu0 0
        %1509 = vmatpush1.bf16.msra.mxu0 %v1439
        %1510 = vmatprep.subr.bf16.mxu0 0
        %1511 = vmatpush1.bf16.msra.mxu0 %v1440
        %1512 = vmatprep.subr.bf16.mxu0 0
        %1513 = vmatpush1.bf16.msra.mxu0 %v1441
        %1514 = vmatprep.subr.bf16.mxu0 0
        %1515 = vmatpush1.bf16.msra.mxu0 %v1442
        %1516 = vmatprep.subr.bf16.mxu0 0
        %1517 = vmatpush1.bf16.msra.mxu0 %v1443
        %1518 = vmatprep.subr.bf16.mxu0 0
        %1519 = vmatpush1.bf16.msra.mxu0 %v1444
        %1520 = vmatprep.subr.bf16.mxu0 0
        %1521 = vmatpush1.bf16.msra.mxu0 %v1445
        %1522 = vmatprep.subr.bf16.mxu0 0
        %1523 = vmatpush1.bf16.msra.mxu0 %v1446
        %1524 = vmatprep.subr.bf16.mxu0 0
        %1525 = vmatpush1.bf16.msra.mxu0 %v1447
        %1526 = vmatprep.subr.bf16.mxu0 0
        %1527 = vmatpush1.bf16.msra.mxu0 %v1448
        %1528 = vmatprep.subr.bf16.mxu0 0
        %1529 = vmatpush1.bf16.msra.mxu0 %v1449
        %1530 = vmatprep.mubr.bf16.mxu0 %v1243
        %1531 = vmatmul.mubr.bf16.gmra.mrb[0].mxu0 %v1242
        %v1532 = vpop.f32.mrb[0].mxu0
        %v1533 = vadd.f32 0.0, %v1532
        %v1534 = vpop.f32.mrb[0].mxu0
        %v1535 = vpop.f32.mrb[0].mxu0
        %v1536 = vadd.f32 0.0, %v1535
        %v1537 = vpop.f32.mrb[0].mxu0
        %1538 = vmatprep.mubr.bf16.mxu0 %v1247
        %1539 = vmatmul.mubr.bf16.gmra.mrb[0].mxu0 %v1246
        %v1540 = vpop.f32.mrb[0].mxu0
        %v1541 = vadd.f32 0.0, %v1540
        %v1542 = vpop.f32.mrb[0].mxu0
        %v1543 = vpop.f32.mrb[0].mxu0
        %v1544 = vadd.f32 0.0, %v1543
        %v1545 = vpop.f32.mrb[0].mxu0
        %1546 = vmatprep.mubr.bf16.mxu0 %v1251
        %1547 = vmatmul.mubr.bf16.gmra.mrb[0].mxu0 %v1250
        %v1548 = vpop.f32.mrb[0].mxu0
        %v1549 = vadd.f32 0.0, %v1548
        %v1550 = vpop.f32.mrb[0].mxu0
        %v1551 = vpop.f32.mrb[0].mxu0
        %v1552 = vadd.f32 0.0, %v1551
        %v1553 = vpop.f32.mrb[0].mxu0
        %1554 = vmatprep.mubr.bf16.mxu0 %v1255
        %1555 = vmatmul.mubr.bf16.gmra.mrb[0].mxu0 %v1254
        %v1556 = vpop.f32.mrb[0].mxu0
        %v1557 = vadd.f32 0.0, %v1556
        %v1558 = vpop.f32.mrb[0].mxu0
        %v1559 = vpop.f32.mrb[0].mxu0
        %v1560 = vadd.f32 0.0, %v1559
        %v1561 = vpop.f32.mrb[0].mxu0
        %1562 = vmatprep.mubr.bf16.mxu0 %v1259
        %1563 = vmatmul.mubr.bf16.gmra.mrb[0].mxu0 %v1258
        %v1564 = vpop.f32.mrb[0].mxu0
        %v1565 = vadd.f32 0.0, %v1564
        %v1566 = vpop.f32.mrb[0].mxu0
        %v1567 = vpop.f32.mrb[0].mxu0
        %v1568 = vadd.f32 0.0, %v1567
        %v1569 = vpop.f32.mrb[0].mxu0
        %1570 = vmatprep.mubr.bf16.mxu0 %v1263
        %1571 = vmatmul.mubr.bf16.gmra.mrb[0].mxu0 %v1262
        %v1572 = vpop.f32.mrb[0].mxu0
        %v1573 = vadd.f32 0.0, %v1572
        %v1574 = vpop.f32.mrb[0].mxu0
        %v1575 = vpop.f32.mrb[0].mxu0
        %v1576 = vadd.f32 0.0, %v1575
        %v1577 = vpop.f32.mrb[0].mxu0
        %1578 = vmatprep.mubr.bf16.mxu0 %v1267
        %1579 = vmatmul.mubr.bf16.gmra.mrb[0].mxu0 %v1266
        %v1580 = vpop.f32.mrb[0].mxu0
        %v1581 = vadd.f32 0.0, %v1580
        %v1582 = vpop.f32.mrb[0].mxu0
        %v1583 = vpop.f32.mrb[0].mxu0
        %v1584 = vadd.f32 0.0, %v1583
        %v1585 = vpop.f32.mrb[0].mxu0
        %1586 = vmatprep.mubr.bf16.mxu0 %v1271
        %1587 = vmatmul.mubr.bf16.gmra.mrb[0].mxu0 %v1270
        %v1588 = vpop.f32.mrb[0].mxu0
        %v1589 = vadd.f32 0.0, %v1588
        %v1590 = vpop.f32.mrb[0].mxu0
        %v1591 = vpop.f32.mrb[0].mxu0
        %v1592 = vadd.f32 0.0, %v1591
        %v1593 = vpop.f32.mrb[0].mxu0
        %1594 = vdwg.mxu0
        %1595 = vmatprep.subr.bf16.mxu0 0
        %1596 = vmatpush1.bf16.msra.mxu0 %v1450
        %1597 = vmatprep.subr.bf16.mxu0 0
        %1598 = vmatpush1.bf16.msra.mxu0 %v1451
        %1599 = vmatprep.subr.bf16.mxu0 0
        %1600 = vmatpush1.bf16.msra.mxu0 %v1452
        %1601 = vmatprep.subr.bf16.mxu0 0
        %1602 = vmatpush1.bf16.msra.mxu0 %v1453
        %1603 = vmatprep.subr.bf16.mxu0 0
        %1604 = vmatpush1.bf16.msra.mxu0 %v1454
        %1605 = vmatprep.subr.bf16.mxu0 0
        %1606 = vmatpush1.bf16.msra.mxu0 %v1455
        %1607 = vmatprep.subr.bf16.mxu0 0
        %1608 = vmatpush1.bf16.msra.mxu0 %v1456
        %1609 = vmatprep.subr.bf16.mxu0 0
        %1610 = vmatpush1.bf16.msra.mxu0 %v1457
        %1611 = vmatprep.subr.bf16.mxu0 0
        %1612 = vmatpush1.bf16.msra.mxu0 %v1458
        %1613 = vmatprep.subr.bf16.mxu0 0
        %1614 = vmatpush1.bf16.msra.mxu0 %v1459
        %1615 = vmatprep.subr.bf16.mxu0 0
        %1616 = vmatpush1.bf16.msra.mxu0 %v1460
        %1617 = vmatprep.subr.bf16.mxu0 0
        %1618 = vmatpush1.bf16.msra.mxu0 %v1461
        %1619 = vmatprep.subr.bf16.mxu0 0
        %1620 = vmatpush1.bf16.msra.mxu0 %v1462
        %1621 = vmatprep.subr.bf16.mxu0 0
        %1622 = vmatpush1.bf16.msra.mxu0 %v1463
        %1623 = vmatprep.subr.bf16.mxu0 0
        %1624 = vmatpush1.bf16.msra.mxu0 %v1464
        %1625 = vmatprep.subr.bf16.mxu0 0
        %1626 = vmatpush1.bf16.msra.mxu0 %v1465
        %1627 = vmatprep.mubr.bf16.mxu0 %v1245
        %1628 = vmatmul.mubr.bf16.gmra.mrb[0].mxu0 %v1244
        %v1629 = vpop.f32.mrb[0].mxu0
        %v1630 = vadd.f32 %v1533, %v1629
        %v1631 = vpop.f32.mrb[0].mxu0
        %v1632 = vpop.f32.mrb[0].mxu0
        %v1633 = vadd.f32 %v1536, %v1632
        %v1634 = vpop.f32.mrb[0].mxu0
        %1635 = vmatprep.mubr.bf16.mxu0 %v1249
        %1636 = vmatmul.mubr.bf16.gmra.mrb[0].mxu0 %v1248
        %v1637 = vpop.f32.mrb[0].mxu0
        %v1638 = vadd.f32 %v1541, %v1637
        %v1639 = vpop.f32.mrb[0].mxu0
        %v1640 = vpop.f32.mrb[0].mxu0
        %v1641 = vadd.f32 %v1544, %v1640
        %v1642 = vpop.f32.mrb[0].mxu0
        %1643 = vmatprep.mubr.bf16.mxu0 %v1253
        %1644 = vmatmul.mubr.bf16.gmra.mrb[0].mxu0 %v1252
        %v1645 = vpop.f32.mrb[0].mxu0
        %v1646 = vadd.f32 %v1549, %v1645
        %v1647 = vpop.f32.mrb[0].mxu0
        %v1648 = vpop.f32.mrb[0].mxu0
        %v1649 = vadd.f32 %v1552, %v1648
        %v1650 = vpop.f32.mrb[0].mxu0
        %1651 = vmatprep.mubr.bf16.mxu0 %v1257
        %1652 = vmatmul.mubr.bf16.gmra.mrb[0].mxu0 %v1256
        %v1653 = vpop.f32.mrb[0].mxu0
        %v1654 = vadd.f32 %v1557, %v1653
        %v1655 = vpop.f32.mrb[0].mxu0
        %v1656 = vpop.f32.mrb[0].mxu0
        %v1657 = vadd.f32 %v1560, %v1656
        %v1658 = vpop.f32.mrb[0].mxu0
        %1659 = vmatprep.mubr.bf16.mxu0 %v1261
        %1660 = vmatmul.mubr.bf16.gmra.mrb[0].mxu0 %v1260
        %v1661 = vpop.f32.mrb[0].mxu0
        %v1662 = vadd.f32 %v1565, %v1661
        %v1663 = vpop.f32.mrb[0].mxu0
        %v1664 = vpop.f32.mrb[0].mxu0
        %v1665 = vadd.f32 %v1568, %v1664
        %v1666 = vpop.f32.mrb[0].mxu0
        %1667 = vmatprep.mubr.bf16.mxu0 %v1265
        %1668 = vmatmul.mubr.bf16.gmra.mrb[0].mxu0 %v1264
        %v1669 = vpop.f32.mrb[0].mxu0
        %v1670 = vadd.f32 %v1573, %v1669
        %v1671 = vpop.f32.mrb[0].mxu0
        %v1672 = vpop.f32.mrb[0].mxu0
        %v1673 = vadd.f32 %v1576, %v1672
        %v1674 = vpop.f32.mrb[0].mxu0
        %1675 = vmatprep.mubr.bf16.mxu0 %v1269
        %1676 = vmatmul.mubr.bf16.gmra.mrb[0].mxu0 %v1268
        %v1677 = vpop.f32.mrb[0].mxu0
        %v1678 = vadd.f32 %v1581, %v1677
        %v1679 = vpop.f32.mrb[0].mxu0
        %v1680 = vpop.f32.mrb[0].mxu0
        %v1681 = vadd.f32 %v1584, %v1680
        %v1682 = vpop.f32.mrb[0].mxu0
        %1683 = vmatprep.mubr.bf16.mxu0 %v1273
        %1684 = vmatmul.mubr.bf16.gmra.mrb[0].mxu0 %v1272
        %v1685 = vpop.f32.mrb[0].mxu0
        %v1686 = vadd.f32 %v1589, %v1685
        %v1687 = vpop.f32.mrb[0].mxu0
        %v1688 = vpop.f32.mrb[0].mxu0
        %v1689 = vadd.f32 %v1592, %v1688
        %v1690 = vpop.f32.mrb[0].mxu0
        %1691 = vdwg.mxu0
        %v1692 = vpack.c.bf16 %v1633, %v1630
        %v1693 = vpack.c.bf16 %v1641, %v1638
        %v1694 = vpack.c.bf16 %v1649, %v1646
        %v1695 = vpack.c.bf16 %v1657, %v1654
        %v1696 = vpack.c.bf16 %v1665, %v1662
        %v1697 = vpack.c.bf16 %v1673, %v1670
        %v1698 = vpack.c.bf16 %v1681, %v1678
        %v1699 = vpack.c.bf16 %v1689, %v1686
        %v1708 = vunpack.c.l.b16 %v1692
        %v1709 = vunpack.c.h.b16 %v1692
        %v1710 = vunpack.c.l.b16 %v1693
        %v1711 = vunpack.c.h.b16 %v1693
        %v1712 = vunpack.c.l.b16 %v1694
        %v1713 = vunpack.c.h.b16 %v1694
        %v1714 = vunpack.c.l.b16 %v1695
        %v1715 = vunpack.c.h.b16 %v1695
        %v1716 = vunpack.c.l.b16 %v1696
        %v1717 = vunpack.c.h.b16 %v1696
        %v1718 = vunpack.c.l.b16 %v1697
        %v1719 = vunpack.c.h.b16 %v1697
        %v1720 = vunpack.c.l.b16 %v1698
        %v1721 = vunpack.c.h.b16 %v1698
        %v1722 = vunpack.c.l.b16 %v1699
        %v1723 = vunpack.c.h.b16 %v1699
        %v1724 = vpack.c.b16 %v1708, %v1708
        %v1725 = vpack.c.b16 %v1709, %v1709
        %v1726 = vpack.c.b16 %v1710, %v1710
        %v1727 = vpack.c.b16 %v1711, %v1711
        %v1728 = vpack.c.b16 %v1712, %v1712
        %v1729 = vpack.c.b16 %v1713, %v1713
        %v1730 = vpack.c.b16 %v1714, %v1714
        %v1731 = vpack.c.b16 %v1715, %v1715
        %v1732 = vpack.c.b16 %v1716, %v1716
        %v1733 = vpack.c.b16 %v1717, %v1717
        %v1734 = vpack.c.b16 %v1718, %v1718
        %v1735 = vpack.c.b16 %v1719, %v1719
        %v1736 = vpack.c.b16 %v1720, %v1720
        %v1737 = vpack.c.b16 %v1721, %v1721
        %v1738 = vpack.c.b16 %v1722, %v1722
        %v1739 = vpack.c.b16 %v1723, %v1723
        %1756 = vst [vmem:[%s363] sm:$0xf] %v1724
        %1757 = vst [vmem:[%s363 + $0x4] sm:$0xf] %v1725
        %1758 = vst [vmem:[%s363 + $0x8] sm:$0xf] %v1726
        %1759 = vst [vmem:[%s363 + $0xc] sm:$0xf] %v1727
        %1760 = vst [vmem:[%s363 + $0x10] sm:$0xf] %v1728
        %1761 = vst [vmem:[%s363 + $0x14] sm:$0xf] %v1729
        %1762 = vst [vmem:[%s363 + $0x18] sm:$0xf] %v1730
        %1763 = vst [vmem:[%s363 + $0x1c] sm:$0xf] %v1731
        %1764 = vst [vmem:[%s363 + $0x20] sm:$0xf] %v1732
        %1765 = vst [vmem:[%s363 + $0x24] sm:$0xf] %v1733
        %1766 = vst [vmem:[%s363 + $0x28] sm:$0xf] %v1734
        %1767 = vst [vmem:[%s363 + $0x2c] sm:$0xf] %v1735
        %1768 = vst [vmem:[%s363 + $0x30] sm:$0xf] %v1736
        %1769 = vst [vmem:[%s363 + $0x34] sm:$0xf] %v1737
        %1770 = vst [vmem:[%s363 + $0x38] sm:$0xf] %v1738
        %1771 = vst [vmem:[%s363 + $0x3c] sm:$0xf] %v1739
        %s1772 = sand.u32 %s154, 1
        %s1773 = scalar_lea.sflag [#allocation4], %s1772
        %s1774 = sand.u32 %s154, 1
        %s1775 = smul.addr %s1774, 64
        %s1776 = scalar_lea.vmem [#allocation11], %s1775
        %s1777 = sand.u32 %s180, 1
        %s1778 = scalar_lea.sflag [#allocation13], %s1777
        %s1779 = sand.u32 %s180, 1
        %s1780 = smul.addr %s1779, 64
        %s1781 = scalar_lea.vmem [#allocation12], %s1780
        // Predicated region
        $region61: #{tide_block_forward.2} parent=39 // pred_check
          %p1782 = pneg %p164
        $region62: #{tide_block_forward.2} parent=39 // pred_check_branch
          %1784 = sbr.rel (%p1782) target = $region64
        $region63: #{tide_block_forward.2} parent=39 // pred_region
          %s1785 = smul.u32 8, %s31
          %s1787 = ssub.s32 1024, 1024
          %1788 = vsyncadd %s1773, %s1787
          %s1789 = smul.addr %s1785, 128
          %s1790 = scalar_lea.hbm %s5, %s1789
          %s1791 = sshll.u32 %s1776, 4
          %s1792 = int_to_ptr.vmem [resolvable:$true] %s1791
          %1797 = dma.vmem_to_hbm [thread:$0]  %s1792, 1024, %s1790, %s1773, 128, 128, 8
        $region64: #{tide_block_forward.2} parent=39 // pred_fallthru
          _
        // Predicated region
        $region65: #{tide_block_forward.2} parent=39 // pred_check
          %p1798 = pneg %p190
        $region66: #{tide_block_forward.2} parent=39 // pred_check_branch
          %1800 = sbr.rel (%p1798) target = $region68
        $region67: #{tide_block_forward.2} parent=39 // pred_region
          %s1801 = smul.u32 16, %s31
          %s1803 = ssub.s32 1024, 1024
          %1804 = vsyncadd %s1778, %s1803
          %s1805 = smul.addr %s1801, 64
          %s1806 = scalar_lea.hbm %s6, %s1805
          %s1807 = sshll.u32 %s1781, 4
          %s1808 = int_to_ptr.vmem [resolvable:$true] %s1807
          %1813 = dma.vmem_to_hbm [thread:$0]  %s1808, 1024, %s1806, %s1778, 64, 64, 4
        $region68: #{tide_block_forward.2} parent=39 // pred_fallthru
          _
      $region40: #{tide_block_forward.2} parent=5 // pred_fallthru
        _
      %p1814 = scmp.le.s32.totalorder 2, %s26
      // Predicated region
      $region69: #{tide_block_forward.2} parent=5 // pred_check
        %p1815 = pneg %p1814
      $region70: #{tide_block_forward.2} parent=5 // pred_check_branch
        %1817 = sbr.rel (%p1815) target = $region72
      $region71: #{tide_block_forward.2} parent=5 // pred_region
        %s1818 = ssub.s32 %s26, 2
        // Predicated region
        $region73: #{tide_block_forward.2} parent=71 // pred_check
          %p1819 = pneg %p170
        $region74: #{tide_block_forward.2} parent=71 // pred_check_branch
          %1821 = sbr.rel (%p1819) target = $region76
        $region75: #{tide_block_forward.2} parent=71 // pred_region
          %s1822 = sand.u32 %s155, 1
          %s1823 = scalar_lea.sflag [#allocation4], %s1822
          %s1824 = sand.u32 %s155, 1
          %s1825 = smul.addr %s1824, 64
          %s1826 = scalar_lea.vmem [#allocation11], %s1825
          %1827 = dma.done %s1823, 1024
        $region76: #{tide_block_forward.2} parent=71 // pred_fallthru
          _
        // Predicated region
        $region77: #{tide_block_forward.2} parent=71 // pred_check
          %p1828 = pneg %p196
        $region78: #{tide_block_forward.2} parent=71 // pred_check_branch
          %1830 = sbr.rel (%p1828) target = $region80
        $region79: #{tide_block_forward.2} parent=71 // pred_region
          %s1831 = sand.u32 %s181, 1
          %s1832 = scalar_lea.sflag [#allocation13], %s1831
          %s1833 = sand.u32 %s181, 1
          %s1834 = smul.addr %s1833, 64
          %s1835 = scalar_lea.vmem [#allocation12], %s1834
          %1836 = dma.done %s1832, 1024
        $region80: #{tide_block_forward.2} parent=71 // pred_fallthru
          _
      $region72: #{tide_block_forward.2} parent=5 // pred_fallthru
        _
    $region6: #{tide_block_forward.2} parent=1 // loop_footer
      %s30 = sadd.s32 1, %s26
    $region7: #{tide_block_forward.2} parent=1 // loop_footer_branch
      %25 = sbr.rel target = $region3
    $region8: #{tide_block_forward.2} parent=1 // loop_exit
      _
    %1837 = vsyncpa [#allocation3], 1
    %s1838 = scalar_lea.sflag [#allocation3], 1
    %1839 = vsyncpa %s1838, 1
    %1840 = vsyncpa [#allocation6], 1
    %s1841 = scalar_lea.sflag [#allocation6], 1
    %1842 = vsyncpa %s1841, 1
    %1843 = vsyncpa [#allocation9], 1
    %1844 = vsyncpa [#allocation4], 1
    %s1845 = scalar_lea.sflag [#allocation4], 1
    %1846 = vsyncpa %s1845, 1
    %1847 = vsyncpa [#allocation13], 1
    %s1848 = scalar_lea.sflag [#allocation13], 1
    %1849 = vsyncpa %s1848, 1

// kernel: neg.0
$region0: #{neg.0}
  #allocation0 [shape = 's32[1]{0}', space=sflag, size = 0x4, scoped, tag = 'scoped memory for neg.0']
  %s0 = inlined_call_operand.vmem [shape: f32[64], index: 0, kind: input, shape index: {}]
  %s1 = inlined_call_operand.vmem [shape: f32[64], index: 1, kind: output, shape index: {}]
  %v2 = vld [vmem:[%s0] sm:$0x1]
  %3 = xla_tuple %v2
  %4 = xla_tuple %3
  %v5 = vxor.u32 %v2, 2147483648
  %6 = xla_tuple %v5
  %7 = vst [vmem:[%s1] sm:$0x1] %v5

// kernel: tide_block_forward.2
$region0: #{tide_block_forward.2}
  #allocation0 [shape = 'u32[]', space=smem, size = 0x4, offset = 0x4, fixed_abs, tag = 'smem constant byte address 0x4 - core index']
  #allocation1 [shape = 'u32[144,128]{1,0:T(1,128)}', space=vmem, size = 0x12000, scoped, tag = 'internal scratch']
  %s0 = inlined_call_operand.hbm [shape: bf16[512,512], index: 0, kind: input, shape index: {}]
  %s1 = inlined_call_operand.hbm [shape: bf16[512,512], index: 1, kind: input, shape index: {}]
  %s2 = inlined_call_operand.hbm [shape: bf16[512,128], index: 2, kind: input, shape index: {}]
  %s3 = inlined_call_operand.hbm [shape: bf16[512,128], index: 3, kind: input, shape index: {}]
  %s4 = inlined_call_operand.hbm [shape: f32[1,128], index: 4, kind: input, shape index: {}]
  %s5 = inlined_call_operand.hbm [shape: bf16[512,128], index: 5, kind: output, shape index: {0}]
  %s6 = inlined_call_operand.hbm [shape: bf16[512,128], index: 6, kind: output, shape index: {1}]
  %7 = xla_tuple %s5, %s6
  %s8 = sld [smem:[#allocation0]]
  $region81: #{tide_block_forward.2} parent=0
    _
  %s10 = ssub.s32 1, %s8
  %s11 = scalar_select 0, %s10, %s8
  $region1: #{tide_block_forward.2} parent=0
    #allocation2 [shape = 'u8[262144]{0}', space=vmem, size = 0x40000, scoped, tag = 'input window, operand 0']
    #allocation3 [shape = 's32[2]{0}', space=sflag, size = 0x8, scoped, tag = 'scoped memory for tide_block_forward.2']
    #allocation4 [shape = 's32[2]{0}', space=sflag, size = 0x8, scoped, tag = 'scoped memory for tide_block_forward.2']
    #allocation5 [shape = 'u8[262144]{0}', space=vmem, size = 0x40000, scoped, tag = 'input window, operand 1']
    #allocation6 [shape = 's32[2]{0}', space=sflag, size = 0x8, scoped, tag = 'scoped memory for tide_block_forward.2']
    #allocation7 [shape = 'u8[131072]{0}', space=vmem, size = 0x20000, scoped, tag = 'input window, operand 2, single buffered']
    #allocation8 [shape = 'u8[131072]{0}', space=vmem, size = 0x20000, scoped, tag = 'input window, operand 3, single buffered']
    #allocation9 [shape = 's32[1]{0}', space=sflag, size = 0x4, scoped, tag = 'scoped memory for tide_block_forward.2']
    #allocation10 [shape = 'u8[512]{0}', space=vmem, size = 0x400, scoped, tag = 'input window, operand 4, single buffered']
    #allocation11 [shape = 'u8[65536]{0}', space=vmem, size = 0x10000, scoped, tag = 'output window, operand 0']
    #allocation12 [shape = 'u8[65536]{0}', space=vmem, size = 0x10000, scoped, tag = 'output window, operand 1']
    #allocation13 [shape = 's32[2]{0}', space=sflag, size = 0x8, scoped, tag = 'scoped memory for tide_block_forward.2']
    %12 = vsyncpa [#allocation3], 0
    %s13 = scalar_lea.sflag [#allocation3], 1
    %14 = vsyncpa %s13, 0
    %15 = vsyncpa [#allocation6], 0
    %s16 = scalar_lea.sflag [#allocation6], 1
    %17 = vsyncpa %s16, 0
    %18 = vsyncpa [#allocation9], 0
    %19 = vsyncpa [#allocation4], 0
    %s20 = scalar_lea.sflag [#allocation4], 1
    %21 = vsyncpa %s20, 0
    %22 = vsyncpa [#allocation13], 0
    %s23 = scalar_lea.sflag [#allocation13], 1
    %24 = vsyncpa %s23, 0
    loop: start=0, step=1, limit=6
    $region2: #{tide_block_forward.2} parent=1 // loop_pre_header
      _
    $region3: #{tide_block_forward.2} parent=1 // loop_header
      %s26 = sphi 0, %s30
      %p27 = scmp.ge.s32.totalorder %s26, 6
      %s36 = sphi 0, %s38
      %s39 = sphi 0, %s36
      %s40 = sphi 0, %s39
      %s56 = sphi 0, %s40
      %s62 = sphi 0, %s64
      %s65 = sphi 0, %s62
      %s66 = sphi 0, %s65
      %s82 = sphi 0, %s66
      %s86 = sphi 0, %s86
      %s88 = sphi 0, %s86
      %s89 = sphi 0, %s88
      %s103 = sphi 0, %s89
      %s107 = sphi 0, %s107
      %s109 = sphi 0, %s107
      %s110 = sphi 0, %s109
      %s124 = sphi 0, %s110
      %s128 = sphi 0, %s128
      %s130 = sphi 0, %s128
      %s131 = sphi 0, %s130
      %s145 = sphi 0, %s131
      %s151 = sphi 0, %s153
      %s154 = sphi 0, %s151
      %s155 = sphi 0, %s154
      %s171 = sphi 0, %s155
      %s177 = sphi 0, %s179
      %s180 = sphi 0, %s177
      %s181 = sphi 0, %s180
      %s197 = sphi 0, %s181
    $region4: #{tide_block_forward.2} parent=1 // loop_header_branch
      %29 = sbr.rel (%p27) target = $region8
    $region5: #{tide_block_forward.2} parent=1 // loop_body
      %s31 = ssub.s32 %s26, 1
      %s32 = ssub.s32 %s26, 2
      %s33 = sadd.s32 %s26, 1
      %s34 = ssub.s32 %s26, %s33
      %p35 = scmp.eq.s32.totalorder %s34, 0
      %s37 = sadd.s32 %s36, 1
      %s38 = scalar_select %p35, %s36, %s37
      %p41 = pneg %p35
      %p42 = scmp.eq.s32.totalorder %s26, 3
      %p43 = por %p41, %p42
      %p44 = scmp.ne.s32.totalorder %s36, %s39
      %p45 = scmp.eq.s32.totalorder %s26, 0
      %p46 = por %p44, %p45
      %p47 = scmp.ne.s32.totalorder %s36, %s39
      %p48 = scmp.eq.s32.totalorder %s31, 3
      %p49 = por %p47, %p48
      %p50 = scmp.ne.s32.totalorder %s39, %s40
      %p51 = scmp.eq.s32.totalorder %s31, 0
      %p52 = por %p50, %p51
      %p53 = scmp.ne.s32.totalorder %s39, %s40
      %p54 = scmp.eq.s32.totalorder %s32, 3
      %p55 = por %p53, %p54
      %p57 = scmp.ne.s32.totalorder %s40, %s56
      %p58 = scmp.eq.s32.totalorder %s32, 0
      %p59 = por %p57, %p58
      %s60 = ssub.s32 %s26, %s33
      %p61 = scmp.eq.s32.totalorder %s60, 0
      %s63 = sadd.s32 %s62, 1
      %s64 = scalar_select %p61, %s62, %s63
      %p67 = pneg %p61
      %p68 = scmp.eq.s32.totalorder %s26, 3
      %p69 = por %p67, %p68
      %p70 = scmp.ne.s32.totalorder %s62, %s65
      %p71 = scmp.eq.s32.totalorder %s26, 0
      %p72 = por %p70, %p71
      %p73 = scmp.ne.s32.totalorder %s62, %s65
      %p74 = scmp.eq.s32.totalorder %s31, 3
      %p75 = por %p73, %p74
      %p76 = scmp.ne.s32.totalorder %s65, %s66
      %p77 = scmp.eq.s32.totalorder %s31, 0
      %p78 = por %p76, %p77
      %p79 = scmp.ne.s32.totalorder %s65, %s66
      %p80 = scmp.eq.s32.totalorder %s32, 3
      %p81 = por %p79, %p80
      %p83 = scmp.ne.s32.totalorder %s66, %s82
      %p84 = scmp.eq.s32.totalorder %s32, 0
      %p85 = por %p83, %p84
      %s87 = sadd.s32 %s86, 1
      %p90 = scmp.eq.s32.totalorder %s26, 3
      %p91 = scmp.ne.s32.totalorder %s86, %s88
      %p92 = scmp.eq.s32.totalorder %s26, 0
      %p93 = por %p91, %p92
      %p94 = scmp.ne.s32.totalorder %s86, %s88
      %p95 = scmp.eq.s32.totalorder %s31, 3
      %p96 = por %p94, %p95
      %p97 = scmp.ne.s32.totalorder %s88, %s89
      %p98 = scmp.eq.s32.totalorder %s31, 0
      %p99 = por %p97, %p98
      %p100 = scmp.ne.s32.totalorder %s88, %s89
      %p101 = scmp.eq.s32.totalorder %s32, 3
      %p102 = por %p100, %p101
      %p104 = scmp.ne.s32.totalorder %s89, %s103
      %p105 = scmp.eq.s32.totalorder %s32, 0
      %p106 = por %p104, %p105
      %s108 = sadd.s32 %s107, 1
      %p111 = scmp.eq.s32.totalorder %s26, 3
      %p112 = scmp.ne.s32.totalorder %s107, %s109
      %p113 = scmp.eq.s32.totalorder %s26, 0
      %p114 = por %p112, %p113
      %p115 = scmp.ne.s32.totalorder %s107, %s109
      %p116 = scmp.eq.s32.totalorder %s31, 3
      %p117 = por %p115, %p116
      %p118 = scmp.ne.s32.totalorder %s109, %s110
      %p119 = scmp.eq.s32.totalorder %s31, 0
      %p120 = por %p118, %p119
      %p121 = scmp.ne.s32.totalorder %s109, %s110
      %p122 = scmp.eq.s32.totalorder %s32, 3
      %p123 = por %p121, %p122
      %p125 = scmp.ne.s32.totalorder %s110, %s124
      %p126 = scmp.eq.s32.totalorder %s32, 0
      %p127 = por %p125, %p126
      %s129 = sadd.s32 %s128, 1
      %p132 = scmp.eq.s32.totalorder %s26, 3
      %p133 = scmp.ne.s32.totalorder %s128, %s130
      %p134 = scmp.eq.s32.totalorder %s26, 0
      %p135 = por %p133, %p134
      %p136 = scmp.ne.s32.totalorder %s128, %s130
      %p137 = scmp.eq.s32.totalorder %s31, 3
      %p138 = por %p136, %p137
      %p139 = scmp.ne.s32.totalorder %s130, %s131
      %p140 = scmp.eq.s32.totalorder %s31, 0
      %p141 = por %p139, %p140
      %p142 = scmp.ne.s32.totalorder %s130, %s131
      %p143 = scmp.eq.s32.totalorder %s32, 3
      %p144 = por %p142, %p143
      %p146 = scmp.ne.s32.totalorder %s131, %s145
      %p147 = scmp.eq.s32.totalorder %s32, 0
      %p148 = por %p146, %p147
      %s149 = ssub.s32 %s26, %s33
      %p150 = scmp.eq.s32.totalorder %s149, 0
      %s152 = sadd.s32 %s151, 1
      %s153 = scalar_select %p150, %s151, %s152
      %p156 = pneg %p150
      %p157 = scmp.eq.s32.totalorder %s26, 3
      %p158 = por %p156, %p157
      %p159 = scmp.ne.s32.totalorder %s151, %s154
      %p160 = scmp.eq.s32.totalorder %s26, 0
      %p161 = por %p159, %p160
      %p162 = scmp.ne.s32.totalorder %s151, %s154
      %p163 = scmp.eq.s32.totalorder %s31, 3
      %p164 = por %p162, %p163
      %p165 = scmp.ne.s32.totalorder %s154, %s155
      %p166 = scmp.eq.s32.totalorder %s31, 0
      %p167 = por %p165, %p166
      %p168 = scmp.ne.s32.totalorder %s154, %s155
      %p169 = scmp.eq.s32.totalorder %s32, 3
      %p170 = por %p168, %p169
      %p172 = scmp.ne.s32.totalorder %s155, %s171
      %p173 = scmp.eq.s32.totalorder %s32, 0
      %p174 = por %p172, %p173
      %s175 = ssub.s32 %s26, %s33
      %p176 = scmp.eq.s32.totalorder %s175, 0
      %s178 = sadd.s32 %s177, 1
      %s179 = scalar_select %p176, %s177, %s178
      %p182 = pneg %p176
      %p183 = scmp.eq.s32.totalorder %s26, 3
      %p184 = por %p182, %p183
      %p185 = scmp.ne.s32.totalorder %s177, %s180
      %p186 = scmp.eq.s32.totalorder %s26, 0
      %p187 = por %p185, %p186
      %p188 = scmp.ne.s32.totalorder %s177, %s180
      %p189 = scmp.eq.s32.totalorder %s31, 3
      %p190 = por %p188, %p189
      %p191 = scmp.ne.s32.totalorder %s180, %s181
      %p192 = scmp.eq.s32.totalorder %s31, 0
      %p193 = por %p191, %p192
      %p194 = scmp.ne.s32.totalorder %s180, %s181
      %p195 = scmp.eq.s32.totalorder %s32, 3
      %p196 = por %p194, %p195
      %p198 = scmp.ne.s32.totalorder %s181, %s197
      %p199 = scmp.eq.s32.totalorder %s32, 0
      %p200 = por %p198, %p199
      %p201 = scmp.le.s32.totalorder 1, %s26
      %p202 = scmp.lt.s32.totalorder %s26, 5
      %p203 = pnand %p201, %p202
      %p204 = pneg %p203
      // Predicated region
      $region9: #{tide_block_forward.2} parent=5 // pred_check
        _
      $region10: #{tide_block_forward.2} parent=5 // pred_check_branch
        %206 = sbr.rel (%p203) target = $region12
      $region11: #{tide_block_forward.2} parent=5 // pred_region
        %s207 = ssub.s32 %s26, 1
        // Predicated region
        $region13: #{tide_block_forward.2} parent=11 // pred_check
          %p208 = pneg %p99
        $region14: #{tide_block_forward.2} parent=11 // pred_check_branch
          %210 = sbr.rel (%p208) target = $region16
        $region15: #{tide_block_forward.2} parent=11 // pred_region
          %s212 = ssub.s32 4096, 4096
          %213 = vsyncadd [#allocation6], %s212
          %s214 = sshll.u32 [#allocation7], 4
          %s215 = int_to_ptr.vmem [resolvable:$true] %s214
          %220 = dma.hbm_to_vmem [thread:$0]  %s2, 4096, %s215, [#allocation6], 64, 64, 4
        $region16: #{tide_block_forward.2} parent=11 // pred_fallthru
          _
        // Predicated region
        $region17: #{tide_block_forward.2} parent=11 // pred_check
          %p221 = pneg %p120
        $region18: #{tide_block_forward.2} parent=11 // pred_check_branch
          %223 = sbr.rel (%p221) target = $region20
        $region19: #{tide_block_forward.2} parent=11 // pred_region
          %s225 = ssub.s32 4096, 4096
          %226 = vsyncadd [#allocation9], %s225
          %s227 = sshll.u32 [#allocation8], 4
          %s228 = int_to_ptr.vmem [resolvable:$true] %s227
          %233 = dma.hbm_to_vmem [thread:$0]  %s3, 4096, %s228, [#allocation9], 64, 64, 4
        $region20: #{tide_block_forward.2} parent=11 // pred_fallthru
          _
        // Predicated region
        $region21: #{tide_block_forward.2} parent=11 // pred_check
          %p234 = pneg %p141
        $region22: #{tide_block_forward.2} parent=11 // pred_check_branch
          %236 = sbr.rel (%p234) target = $region24
        $region23: #{tide_block_forward.2} parent=11 // pred_region
          %s238 = ssub.s32 16, 16
          %239 = vsyncadd [#allocation9], %s238
          %s241 = sshll.u32 [#allocation10], 4
          %s242 = int_to_ptr.vmem [resolvable:$true] %s241
          %244 = dma.hbm_to_vmem [thread:$0]  %s4, 16, %s242, [#allocation9]
        $region24: #{tide_block_forward.2} parent=11 // pred_fallthru
          _
      $region12: #{tide_block_forward.2} parent=5 // pred_fallthru
        _
      %p245 = scmp.lt.s32.totalorder %s26, 4
      // Predicated region
      $region25: #{tide_block_forward.2} parent=5 // pred_check
        %p246 = pneg %p245
      $region26: #{tide_block_forward.2} parent=5 // pred_check_branch
        %248 = sbr.rel (%p246) target = $region28
      $region27: #{tide_block_forward.2} parent=5 // pred_region
        // Predicated region
        $region29: #{tide_block_forward.2} parent=27 // pred_check
          %p249 = pneg %p46
        $region30: #{tide_block_forward.2} parent=27 // pred_check_branch
          %251 = sbr.rel (%p249) target = $region32
        $region31: #{tide_block_forward.2} parent=27 // pred_region
          %s252 = sand.u32 %s36, 1
          %s253 = scalar_lea.sflag [#allocation3], %s252
          %s254 = sand.u32 %s36, 1
          %s255 = smul.addr %s254, 256
          %s256 = scalar_lea.vmem [#allocation2], %s255
          %s257 = smul.u32 16, %s26
          %s259 = ssub.s32 4096, 4096
          %260 = vsyncadd %s253, %s259
          %s261 = smul.addr %s257, 4
          %s262 = smul.addr %s261, 64
          %s263 = scalar_lea.hbm %s0, %s262
          %s264 = sshll.u32 %s256, 4
          %s265 = int_to_ptr.vmem [resolvable:$true] %s264
          %270 = dma.hbm_to_vmem [thread:$0]  %s263, 4096, %s265, %s253, 256, 256, 16
        $region32: #{tide_block_forward.2} parent=27 // pred_fallthru
          _
        // Predicated region
        $region33: #{tide_block_forward.2} parent=27 // pred_check
          %p271 = pneg %p72
        $region34: #{tide_block_forward.2} parent=27 // pred_check_branch
          %273 = sbr.rel (%p271) target = $region36
        $region35: #{tide_block_forward.2} parent=27 // pred_region
          %s274 = sand.u32 %s26, 1
          %s275 = scalar_lea.sflag [#allocation6], %s274
          %s276 = sand.u32 %s62, 1
          %s277 = smul.addr %s276, 256
          %s278 = scalar_lea.vmem [#allocation5], %s277
          %s279 = smul.u32 16, %s26
          %s281 = ssub.s32 4096, 4096
          %282 = vsyncadd %s275, %s281
          %s283 = smul.addr %s279, 4
          %s284 = smul.addr %s283, 64
          %s285 = scalar_lea.hbm %s1, %s284
          %s286 = sshll.u32 %s278, 4
          %s287 = int_to_ptr.vmem [resolvable:$true] %s286
          %292 = dma.hbm_to_vmem [thread:$0]  %s285, 4096, %s287, %s275, 256, 256, 16
        $region36: #{tide_block_forward.2} parent=27 // pred_fallthru
          _
      $region28: #{tide_block_forward.2} parent=5 // pred_fallthru
        _
      %p293 = scmp.le.s32.totalorder 1, %s26
      %p294 = scmp.lt.s32.totalorder %s26, 5
      %p295 = pnand %p293, %p294
      %p296 = pneg %p295
      // Predicated region
      $region37: #{tide_block_forward.2} parent=5 // pred_check
        _
      $region38: #{tide_block_forward.2} parent=5 // pred_check_branch
        %298 = sbr.rel (%p295) target = $region40
      $region39: #{tide_block_forward.2} parent=5 // pred_region
        %s299 = ssub.s32 %s26, 1
        %s300 = sand.u32 %s39, 1
        %s301 = scalar_lea.sflag [#allocation3], %s300
        %s302 = sand.u32 %s39, 1
        %s303 = smul.addr %s302, 256
        %s304 = scalar_lea.vmem [#allocation2], %s303
        // Predicated region
        $region41: #{tide_block_forward.2} parent=39 // pred_check
          %p305 = pneg %p52
        $region42: #{tide_block_forward.2} parent=39 // pred_check_branch
          %307 = sbr.rel (%p305) target = $region44
        $region43: #{tide_block_forward.2} parent=39 // pred_region
          %308 = dma.done %s301, 4096
        $region44: #{tide_block_forward.2} parent=39 // pred_fallthru
          _
        %s309 = sand.u32 %s31, 1
        %s310 = scalar_lea.sflag [#allocation6], %s309
        %s311 = sand.u32 %s65, 1
        %s312 = smul.addr %s311, 256
        %s313 = scalar_lea.vmem [#allocation5], %s312
        // Predicated region
        $region45: #{tide_block_forward.2} parent=39 // pred_check
          %p314 = pneg %p78
        $region46: #{tide_block_forward.2} parent=39 // pred_check_branch
          %316 = sbr.rel (%p314) target = $region48
        $region47: #{tide_block_forward.2} parent=39 // pred_region
          %317 = dma.done %s310, 4096
        $region48: #{tide_block_forward.2} parent=39 // pred_fallthru
          _
        // Predicated region
        $region49: #{tide_block_forward.2} parent=39 // pred_check
          %p318 = pneg %p99
        $region50: #{tide_block_forward.2} parent=39 // pred_check_branch
          %320 = sbr.rel (%p318) target = $region52
        $region51: #{tide_block_forward.2} parent=39 // pred_region
          %321 = dma.done [#allocation6], 4096
        $region52: #{tide_block_forward.2} parent=39 // pred_fallthru
          _
        // Predicated region
        $region53: #{tide_block_forward.2} parent=39 // pred_check
          %p322 = pneg %p120
        $region54: #{tide_block_forward.2} parent=39 // pred_check_branch
          %324 = sbr.rel (%p322) target = $region56
        $region55: #{tide_block_forward.2} parent=39 // pred_region
          %325 = dma.done [#allocation9], 4096
        $region56: #{tide_block_forward.2} parent=39 // pred_fallthru
          _
        // Predicated region
        $region57: #{tide_block_forward.2} parent=39 // pred_check
          %p326 = pneg %p141
        $region58: #{tide_block_forward.2} parent=39 // pred_check_branch
          %328 = sbr.rel (%p326) target = $region60
        $region59: #{tide_block_forward.2} parent=39 // pred_region
          %329 = dma.done [#allocation9], 16
        $region60: #{tide_block_forward.2} parent=39 // pred_fallthru
          _
        %s330 = sand.u32 %s39, 1
        %s331 = scalar_lea.sflag [#allocation3], %s330
        %s332 = sand.u32 %s39, 1
        %s333 = smul.addr %s332, 256
        %s334 = scalar_lea.vmem [#allocation2], %s333
        %p335 = pneg %p52
        %p336 = pneg %p49
        %s337 = sand.u32 %s31, 1
        %s338 = scalar_lea.sflag [#allocation6], %s337
        %s339 = sand.u32 %s65, 1
        %s340 = smul.addr %s339, 256
        %s341 = scalar_lea.vmem [#allocation5], %s340
        %p342 = pneg %p78
        %p343 = pneg %p75
        %p344 = pneg %p99
        %p345 = pneg %p96
        %p346 = pneg %p120
        %p347 = pneg %p117
        %p348 = pneg %p141
        %p349 = pneg %p138
        %p350 = pneg %p167
        %p351 = pneg %p164
        %s352 = sand.u32 %s154, 1
        %s353 = scalar_lea.sflag [#allocation4], %s352
        %s354 = sand.u32 %s154, 1
        %s355 = smul.addr %s354, 64
        %s356 = scalar_lea.vmem [#allocation11], %s355
        %p357 = pneg %p193
        %p358 = pneg %p190
        %s359 = sand.u32 %s180, 1
        %s360 = scalar_lea.sflag [#allocation13], %s359
        %s361 = sand.u32 %s180, 1
        %s362 = smul.addr %s361, 64
        %s363 = scalar_lea.vmem [#allocation12], %s362
        %s364 = smul.u32 16, %s31
        %s365 = smul.u32 16, %s31
        %s366 = smul.u32 8, %s31
        %s367 = smul.u32 16, %s31
        %v369 = vld [vmem:[%s304] sm:$0xff]
        %v370 = vld [vmem:[%s304 + $0x8] sm:$0xff]
        %v371 = vld [vmem:[%s304 + $0x10] sm:$0xff]
        %v372 = vld [vmem:[%s304 + $0x18] sm:$0xff]
        %v373 = vld [vmem:[%s304 + $0x20] sm:$0xff]
        %v374 = vld [vmem:[%s304 + $0x28] sm:$0xff]
        %v375 = vld [vmem:[%s304 + $0x30] sm:$0xff]
        %v376 = vld [vmem:[%s304 + $0x38] sm:$0xff]
        %v377 = vld [vmem:[%s304 + $0x40] sm:$0xff]
        %v378 = vld [vmem:[%s304 + $0x48] sm:$0xff]
        %v379 = vld [vmem:[%s304 + $0x50] sm:$0xff]
        %v380 = vld [vmem:[%s304 + $0x58] sm:$0xff]
        %v381 = vld [vmem:[%s304 + $0x60] sm:$0xff]
        %v382 = vld [vmem:[%s304 + $0x68] sm:$0xff]
        %v383 = vld [vmem:[%s304 + $0x70] sm:$0xff]
        %v384 = vld [vmem:[%s304 + $0x78] sm:$0xff]
        %v385 = vld [vmem:[%s304 + $0x80] sm:$0xff]
        %v386 = vld [vmem:[%s304 + $0x88] sm:$0xff]
        %v387 = vld [vmem:[%s304 + $0x90] sm:$0xff]
        %v388 = vld [vmem:[%s304 + $0x98] sm:$0xff]
        %v389 = vld [vmem:[%s304 + $0xa0] sm:$0xff]
        %v390 = vld [vmem:[%s304 + $0xa8] sm:$0xff]
        %v391 = vld [vmem:[%s304 + $0xb0] sm:$0xff]
        %v392 = vld [vmem:[%s304 + $0xb8] sm:$0xff]
        %v393 = vld [vmem:[%s304 + $0xc0] sm:$0xff]
        %v394 = vld [vmem:[%s304 + $0xc8] sm:$0xff]
        %v395 = vld [vmem:[%s304 + $0xd0] sm:$0xff]
        %v396 = vld [vmem:[%s304 + $0xd8] sm:$0xff]
        %v397 = vld [vmem:[%s304 + $0xe0] sm:$0xff]
        %v398 = vld [vmem:[%s304 + $0xe8] sm:$0xff]
        %v399 = vld [vmem:[%s304 + $0xf0] sm:$0xff]
        %v400 = vld [vmem:[%s304 + $0xf8] sm:$0xff]
        %v401 = vld [vmem:[#allocation7] sm:$0xf]
        %v402 = vld [vmem:[#allocation7 + $0x4] sm:$0xf]
        %v403 = vld [vmem:[#allocation7 + $0x8] sm:$0xf]
        %v404 = vld [vmem:[#allocation7 + $0xc] sm:$0xf]
        %v405 = vld [vmem:[#allocation7 + $0x10] sm:$0xf]
        %v406 = vld [vmem:[#allocation7 + $0x14] sm:$0xf]
        %v407 = vld [vmem:[#allocation7 + $0x18] sm:$0xf]
        %v408 = vld [vmem:[#allocation7 + $0x1c] sm:$0xf]
        %v409 = vld [vmem:[#allocation7 + $0x20] sm:$0xf]
        %v410 = vld [vmem:[#allocation7 + $0x24] sm:$0xf]
        %v411 = vld [vmem:[#allocation7 + $0x28] sm:$0xf]
        %v412 = vld [vmem:[#allocation7 + $0x2c] sm:$0xf]
        %v413 = vld [vmem:[#allocation7 + $0x30] sm:$0xf]
        %v414 = vld [vmem:[#allocation7 + $0x34] sm:$0xf]
        %v415 = vld [vmem:[#allocation7 + $0x38] sm:$0xf]
        %v416 = vld [vmem:[#allocation7 + $0x3c] sm:$0xf]
        %v417 = vld [vmem:[#allocation7 + $0x40] sm:$0xf]
        %v418 = vld [vmem:[#allocation7 + $0x44] sm:$0xf]
        %v419 = vld [vmem:[#allocation7 + $0x48] sm:$0xf]
        %v420 = vld [vmem:[#allocation7 + $0x4c] sm:$0xf]
        %v421 = vld [vmem:[#allocation7 + $0x50] sm:$0xf]
        %v422 = vld [vmem:[#allocation7 + $0x54] sm:$0xf]
        %v423 = vld [vmem:[#allocation7 + $0x58] sm:$0xf]
        %v424 = vld [vmem:[#allocation7 + $0x5c] sm:$0xf]
        %v425 = vld [vmem:[#allocation7 + $0x60] sm:$0xf]
        %v426 = vld [vmem:[#allocation7 + $0x64] sm:$0xf]
        %v427 = vld [vmem:[#allocation7 + $0x68] sm:$0xf]
        %v428 = vld [vmem:[#allocation7 + $0x6c] sm:$0xf]
        %v429 = vld [vmem:[#allocation7 + $0x70] sm:$0xf]
        %v430 = vld [vmem:[#allocation7 + $0x74] sm:$0xf]
        %v431 = vld [vmem:[#allocation7 + $0x78] sm:$0xf]
        %v432 = vld [vmem:[#allocation7 + $0x7c] sm:$0xf]
        %v433 = vld [vmem:[#allocation7 + $0x80] sm:$0xf]
        %v434 = vld [vmem:[#allocation7 + $0x84] sm:$0xf]
        %v435 = vld [vmem:[#allocation7 + $0x88] sm:$0xf]
        %v436 = vld [vmem:[#allocation7 + $0x8c] sm:$0xf]
        %v437 = vld [vmem:[#allocation7 + $0x90] sm:$0xf]
        %v438 = vld [vmem:[#allocation7 + $0x94] sm:$0xf]
        %v439 = vld [vmem:[#allocation7 + $0x98] sm:$0xf]
        %v440 = vld [vmem:[#allocation7 + $0x9c] sm:$0xf]
        %v441 = vld [vmem:[#allocation7 + $0xa0] sm:$0xf]
        %v442 = vld [vmem:[#allocation7 + $0xa4] sm:$0xf]
        %v443 = vld [vmem:[#allocation7 + $0xa8] sm:$0xf]
        %v444 = vld [vmem:[#allocation7 + $0xac] sm:$0xf]
        %v445 = vld [vmem:[#allocation7 + $0xb0] sm:$0xf]
        %v446 = vld [vmem:[#allocation7 + $0xb4] sm:$0xf]
        %v447 = vld [vmem:[#allocation7 + $0xb8] sm:$0xf]
        %v448 = vld [vmem:[#allocation7 + $0xbc] sm:$0xf]
        %v449 = vld [vmem:[#allocation7 + $0xc0] sm:$0xf]
        %v450 = vld [vmem:[#allocation7 + $0xc4] sm:$0xf]
        %v451 = vld [vmem:[#allocation7 + $0xc8] sm:$0xf]
        %v452 = vld [vmem:[#allocation7 + $0xcc] sm:$0xf]
        %v453 = vld [vmem:[#allocation7 + $0xd0] sm:$0xf]
        %v454 = vld [vmem:[#allocation7 + $0xd4] sm:$0xf]
        %v455 = vld [vmem:[#allocation7 + $0xd8] sm:$0xf]
        %v456 = vld [vmem:[#allocation7 + $0xdc] sm:$0xf]
        %v457 = vld [vmem:[#allocation7 + $0xe0] sm:$0xf]
        %v458 = vld [vmem:[#allocation7 + $0xe4] sm:$0xf]
        %v459 = vld [vmem:[#allocation7 + $0xe8] sm:$0xf]
        %v460 = vld [vmem:[#allocation7 + $0xec] sm:$0xf]
        %v461 = vld [vmem:[#allocation7 + $0xf0] sm:$0xf]
        %v462 = vld [vmem:[#allocation7 + $0xf4] sm:$0xf]
        %v463 = vld [vmem:[#allocation7 + $0xf8] sm:$0xf]
        %v464 = vld [vmem:[#allocation7 + $0xfc] sm:$0xf]
        %v465 = vld [vmem:[#allocation10] sm:$0x1]
        %v467 = vlaneseq
        %v468 = vshrl.u32 %v467, 7
        %v469 = vsub.s32 0, %v468
        %v470 = vrot.slane %v465, %v469
        %v504 = vunpack.c.l.b16 %v369
        %v505 = vunpack.c.h.b16 %v369
        %v506 = vunpack.c.l.b16 %v370
        %v507 = vunpack.c.h.b16 %v370
        %v508 = vunpack.c.l.b16 %v371
        %v509 = vunpack.c.h.b16 %v371
        %v510 = vunpack.c.l.b16 %v372
        %v511 = vunpack.c.h.b16 %v372
        %v512 = vunpack.c.l.b16 %v373
        %v513 = vunpack.c.h.b16 %v373
        %v514 = vunpack.c.l.b16 %v374
        %v515 = vunpack.c.h.b16 %v374
        %v516 = vunpack.c.l.b16 %v375
        %v517 = vunpack.c.h.b16 %v375
        %v518 = vunpack.c.l.b16 %v376
        %v519 = vunpack.c.h.b16 %v376
        %v520 = vunpack.c.l.b16 %v377
        %v521 = vunpack.c.h.b16 %v377
        %v522 = vunpack.c.l.b16 %v378
        %v523 = vunpack.c.h.b16 %v378
        %v524 = vunpack.c.l.b16 %v379
        %v525 = vunpack.c.h.b16 %v379
        %v526 = vunpack.c.l.b16 %v380
        %v527 = vunpack.c.h.b16 %v380
        %v528 = vunpack.c.l.b16 %v381
        %v529 = vunpack.c.h.b16 %v381
        %v530 = vunpack.c.l.b16 %v382
        %v531 = vunpack.c.h.b16 %v382
        %v532 = vunpack.c.l.b16 %v383
        %v533 = vunpack.c.h.b16 %v383
        %v534 = vunpack.c.l.b16 %v384
        %v535 = vunpack.c.h.b16 %v384
        %v536 = vunpack.c.l.b16 %v385
        %v537 = vunpack.c.h.b16 %v385
        %v538 = vunpack.c.l.b16 %v386
        %v539 = vunpack.c.h.b16 %v386
        %v540 = vunpack.c.l.b16 %v387
        %v541 = vunpack.c.h.b16 %v387
        %v542 = vunpack.c.l.b16 %v388
        %v543 = vunpack.c.h.b16 %v388
        %v544 = vunpack.c.l.b16 %v389
        %v545 = vunpack.c.h.b16 %v389
        %v546 = vunpack.c.l.b16 %v390
        %v547 = vunpack.c.h.b16 %v390
        %v548 = vunpack.c.l.b16 %v391
        %v549 = vunpack.c.h.b16 %v391
        %v550 = vunpack.c.l.b16 %v392
        %v551 = vunpack.c.h.b16 %v392
        %v552 = vunpack.c.l.b16 %v393
        %v553 = vunpack.c.h.b16 %v393
        %v554 = vunpack.c.l.b16 %v394
        %v555 = vunpack.c.h.b16 %v394
        %v556 = vunpack.c.l.b16 %v395
        %v557 = vunpack.c.h.b16 %v395
        %v558 = vunpack.c.l.b16 %v396
        %v559 = vunpack.c.h.b16 %v396
        %v560 = vunpack.c.l.b16 %v397
        %v561 = vunpack.c.h.b16 %v397
        %v562 = vunpack.c.l.b16 %v398
        %v563 = vunpack.c.h.b16 %v398
        %v564 = vunpack.c.l.b16 %v399
        %v565 = vunpack.c.h.b16 %v399
        %v566 = vunpack.c.l.b16 %v400
        %v567 = vunpack.c.h.b16 %v400
        %v568 = vpack.c.b16 %v508, %v504
        %v569 = vpack.c.b16 %v509, %v505
        %v570 = vpack.c.b16 %v510, %v506
        %v571 = vpack.c.b16 %v511, %v507
        %v572 = vpack.c.b16 %v516, %v512
        %v573 = vpack.c.b16 %v517, %v513
        %v574 = vpack.c.b16 %v518, %v514
        %v575 = vpack.c.b16 %v519, %v515
        %v576 = vpack.c.b16 %v524, %v520
        %v577 = vpack.c.b16 %v525, %v521
        %v578 = vpack.c.b16 %v526, %v522
        %v579 = vpack.c.b16 %v527, %v523
        %v580 = vpack.c.b16 %v532, %v528
        %v581 = vpack.c.b16 %v533, %v529
        %v582 = vpack.c.b16 %v534, %v530
        %v583 = vpack.c.b16 %v535, %v531
        %v584 = vpack.c.b16 %v540, %v536
        %v585 = vpack.c.b16 %v541, %v537
        %v586 = vpack.c.b16 %v542, %v538
        %v587 = vpack.c.b16 %v543, %v539
        %v588 = vpack.c.b16 %v548, %v544
        %v589 = vpack.c.b16 %v549, %v545
        %v590 = vpack.c.b16 %v550, %v546
        %v591 = vpack.c.b16 %v551, %v547
        %v592 = vpack.c.b16 %v556, %v552
        %v593 = vpack.c.b16 %v557, %v553
        %v594 = vpack.c.b16 %v558, %v554
        %v595 = vpack.c.b16 %v559, %v555
        %v596 = vpack.c.b16 %v564, %v560
        %v597 = vpack.c.b16 %v565, %v561
        %v598 = vpack.c.b16 %v566, %v562
        %v599 = vpack.c.b16 %v567, %v563
        %v696 = vunpack.c.l.b16 %v401
        %v697 = vunpack.c.l.b16 %v402
        %v698 = vunpack.c.l.b16 %v403
        %v699 = vunpack.c.l.b16 %v404
        %v700 = vunpack.c.l.b16 %v405
        %v701 = vunpack.c.l.b16 %v406
        %v702 = vunpack.c.l.b16 %v407
        %v703 = vunpack.c.l.b16 %v408
        %v704 = vunpack.c.l.b16 %v409
        %v705 = vunpack.c.l.b16 %v410
        %v706 = vunpack.c.l.b16 %v411
        %v707 = vunpack.c.l.b16 %v412
        %v708 = vunpack.c.l.b16 %v413
        %v709 = vunpack.c.l.b16 %v414
        %v710 = vunpack.c.l.b16 %v415
        %v711 = vunpack.c.l.b16 %v416
        %v712 = vunpack.c.l.b16 %v417
        %v713 = vunpack.c.l.b16 %v418
        %v714 = vunpack.c.l.b16 %v419
        %v715 = vunpack.c.l.b16 %v420
        %v716 = vunpack.c.l.b16 %v421
        %v717 = vunpack.c.l.b16 %v422
        %v718 = vunpack.c.l.b16 %v423
        %v719 = vunpack.c.l.b16 %v424
        %v720 = vunpack.c.l.b16 %v425
        %v721 = vunpack.c.l.b16 %v426
        %v722 = vunpack.c.l.b16 %v427
        %v723 = vunpack.c.l.b16 %v428
        %v724 = vunpack.c.l.b16 %v429
        %v725 = vunpack.c.l.b16 %v430
        %v726 = vunpack.c.l.b16 %v431
        %v727 = vunpack.c.l.b16 %v432
        %v728 = vunpack.c.l.b16 %v433
        %v729 = vunpack.c.l.b16 %v434
        %v730 = vunpack.c.l.b16 %v435
        %v731 = vunpack.c.l.b16 %v436
        %v732 = vunpack.c.l.b16 %v437
        %v733 = vunpack.c.l.b16 %v438
        %v734 = vunpack.c.l.b16 %v439
        %v735 = vunpack.c.l.b16 %v440
        %v736 = vunpack.c.l.b16 %v441
        %v737 = vunpack.c.l.b16 %v442
        %v738 = vunpack.c.l.b16 %v443
        %v739 = vunpack.c.l.b16 %v444
        %v740 = vunpack.c.l.b16 %v445
        %v741 = vunpack.c.l.b16 %v446
        %v742 = vunpack.c.l.b16 %v447
        %v743 = vunpack.c.l.b16 %v448
        %v744 = vunpack.c.l.b16 %v449
        %v745 = vunpack.c.l.b16 %v450
        %v746 = vunpack.c.l.b16 %v451
        %v747 = vunpack.c.l.b16 %v452
        %v748 = vunpack.c.l.b16 %v453
        %v749 = vunpack.c.l.b16 %v454
        %v750 = vunpack.c.l.b16 %v455
        %v751 = vunpack.c.l.b16 %v456
        %v752 = vunpack.c.l.b16 %v457
        %v753 = vunpack.c.l.b16 %v458
        %v754 = vunpack.c.l.b16 %v459
        %v755 = vunpack.c.l.b16 %v460
        %v756 = vunpack.c.l.b16 %v461
        %v757 = vunpack.c.l.b16 %v462
        %v758 = vunpack.c.l.b16 %v463
        %v759 = vunpack.c.l.b16 %v464
        %v760 = vpack.c.b16 %v697, %v696
        %v761 = vpack.c.b16 %v699, %v698
        %v762 = vpack.c.b16 %v701, %v700
        %v763 = vpack.c.b16 %v703, %v702
        %v764 = vpack.c.b16 %v705, %v704
        %v765 = vpack.c.b16 %v707, %v706
        %v766 = vpack.c.b16 %v709, %v708
        %v767 = vpack.c.b16 %v711, %v710
        %v768 = vpack.c.b16 %v713, %v712
        %v769 = vpack.c.b16 %v715, %v714
        %v770 = vpack.c.b16 %v717, %v716
        %v771 = vpack.c.b16 %v719, %v718
        %v772 = vpack.c.b16 %v721, %v720
        %v773 = vpack.c.b16 %v723, %v722
        %v774 = vpack.c.b16 %v725, %v724
        %v775 = vpack.c.b16 %v727, %v726
        %v776 = vpack.c.b16 %v729, %v728
        %v777 = vpack.c.b16 %v731, %v730
        %v778 = vpack.c.b16 %v733, %v732
        %v779 = vpack.c.b16 %v735, %v734
        %v780 = vpack.c.b16 %v737, %v736
        %v781 = vpack.c.b16 %v739, %v738
        %v782 = vpack.c.b16 %v741, %v740
        %v783 = vpack.c.b16 %v743, %v742
        %v784 = vpack.c.b16 %v745, %v744
        %v785 = vpack.c.b16 %v747, %v746
        %v786 = vpack.c.b16 %v749, %v748
        %v787 = vpack.c.b16 %v751, %v750
        %v788 = vpack.c.b16 %v753, %v752
        %v789 = vpack.c.b16 %v755, %v754
        %v790 = vpack.c.b16 %v757, %v756
        %v791 = vpack.c.b16 %v759, %v758
        %824 = vmatprep.subr.bf16.mxu0 0
        %825 = vmatpush1.bf16.msra.mxu0 %v760
        %826 = vmatprep.subr.bf16.mxu0 0
        %827 = vmatpush1.bf16.msra.mxu0 %v761
        %828 = vmatprep.subr.bf16.mxu0 0
        %829 = vmatpush1.bf16.msra.mxu0 %v762
        %830 = vmatprep.subr.bf16.mxu0 0
        %831 = vmatpush1.bf16.msra.mxu0 %v763
        %832 = vmatprep.subr.bf16.mxu0 0
        %833 = vmatpush1.bf16.msra.mxu0 %v764
        %834 = vmatprep.subr.bf16.mxu0 0
        %835 = vmatpush1.bf16.msra.mxu0 %v765
        %836 = vmatprep.subr.bf16.mxu0 0
        %837 = vmatpush1.bf16.msra.mxu0 %v766
        %838 = vmatprep.subr.bf16.mxu0 0
        %839 = vmatpush1.bf16.msra.mxu0 %v767
        %840 = vmatprep.subr.bf16.mxu0 0
        %841 = vmatpush1.bf16.msra.mxu0 %v768
        %842 = vmatprep.subr.bf16.mxu0 0
        %843 = vmatpush1.bf16.msra.mxu0 %v769
        %844 = vmatprep.subr.bf16.mxu0 0
        %845 = vmatpush1.bf16.msra.mxu0 %v770
        %846 = vmatprep.subr.bf16.mxu0 0
        %847 = vmatpush1.bf16.msra.mxu0 %v771
        %848 = vmatprep.subr.bf16.mxu0 0
        %849 = vmatpush1.bf16.msra.mxu0 %v772
        %850 = vmatprep.subr.bf16.mxu0 0
        %851 = vmatpush1.bf16.msra.mxu0 %v773
        %852 = vmatprep.subr.bf16.mxu0 0
        %853 = vmatpush1.bf16.msra.mxu0 %v774
        %854 = vmatprep.subr.bf16.mxu0 0
        %855 = vmatpush1.bf16.msra.mxu0 %v775
        %856 = vmatprep.mubr.bf16.mxu0 %v569
        %857 = vmatmul.mubr.bf16.gmra.mrb[0].mxu0 %v568
        %v858 = vpop.f32.mrb[0].mxu0
        %v859 = vadd.f32 %v470, %v858
        %v860 = vpop.f32.mrb[0].mxu0
        %v861 = vpop.f32.mrb[0].mxu0
        %v862 = vadd.f32 %v470, %v861
        %v863 = vpop.f32.mrb[0].mxu0
        %864 = vmatprep.mubr.bf16.mxu0 %v573
        %865 = vmatmul.mubr.bf16.gmra.mrb[0].mxu0 %v572
        %v866 = vpop.f32.mrb[0].mxu0
        %v867 = vadd.f32 %v470, %v866
        %v868 = vpop.f32.mrb[0].mxu0
        %v869 = vpop.f32.mrb[0].mxu0
        %v870 = vadd.f32 %v470, %v869
        %v871 = vpop.f32.mrb[0].mxu0
        %872 = vmatprep.mubr.bf16.mxu0 %v577
        %873 = vmatmul.mubr.bf16.gmra.mrb[0].mxu0 %v576
        %v874 = vpop.f32.mrb[0].mxu0
        %v875 = vadd.f32 %v470, %v874
        %v876 = vpop.f32.mrb[0].mxu0
        %v877 = vpop.f32.mrb[0].mxu0
        %v878 = vadd.f32 %v470, %v877
        %v879 = vpop.f32.mrb[0].mxu0
        %880 = vmatprep.mubr.bf16.mxu0 %v581
        %881 = vmatmul.mubr.bf16.gmra.mrb[0].mxu0 %v580
        %v882 = vpop.f32.mrb[0].mxu0
        %v883 = vadd.f32 %v470, %v882
        %v884 = vpop.f32.mrb[0].mxu0
        %v885 = vpop.f32.mrb[0].mxu0
        %v886 = vadd.f32 %v470, %v885
        %v887 = vpop.f32.mrb[0].mxu0
        %888 = vmatprep.mubr.bf16.mxu0 %v585
        %889 = vmatmul.mubr.bf16.gmra.mrb[0].mxu0 %v584
        %v890 = vpop.f32.mrb[0].mxu0
        %v891 = vadd.f32 %v470, %v890
        %v892 = vpop.f32.mrb[0].mxu0
        %v893 = vpop.f32.mrb[0].mxu0
        %v894 = vadd.f32 %v470, %v893
        %v895 = vpop.f32.mrb[0].mxu0
        %896 = vmatprep.mubr.bf16.mxu0 %v589
        %897 = vmatmul.mubr.bf16.gmra.mrb[0].mxu0 %v588
        %v898 = vpop.f32.mrb[0].mxu0
        %v899 = vadd.f32 %v470, %v898
        %v900 = vpop.f32.mrb[0].mxu0
        %v901 = vpop.f32.mrb[0].mxu0
        %v902 = vadd.f32 %v470, %v901
        %v903 = vpop.f32.mrb[0].mxu0
        %904 = vmatprep.mubr.bf16.mxu0 %v593
        %905 = vmatmul.mubr.bf16.gmra.mrb[0].mxu0 %v592
        %v906 = vpop.f32.mrb[0].mxu0
        %v907 = vadd.f32 %v470, %v906
        %v908 = vpop.f32.mrb[0].mxu0
        %v909 = vpop.f32.mrb[0].mxu0
        %v910 = vadd.f32 %v470, %v909
        %v911 = vpop.f32.mrb[0].mxu0
        %912 = vmatprep.mubr.bf16.mxu0 %v597
        %913 = vmatmul.mubr.bf16.gmra.mrb[0].mxu0 %v596
        %v914 = vpop.f32.mrb[0].mxu0
        %v915 = vadd.f32 %v470, %v914
        %v916 = vpop.f32.mrb[0].mxu0
        %v917 = vpop.f32.mrb[0].mxu0
        %v918 = vadd.f32 %v470, %v917
        %v919 = vpop.f32.mrb[0].mxu0
        %920 = vdwg.mxu0
        %921 = vmatprep.subr.bf16.mxu0 0
        %922 = vmatpush1.bf16.msra.mxu0 %v776
        %923 = vmatprep.subr.bf16.mxu0 0
        %924 = vmatpush1.bf16.msra.mxu0 %v777
        %925 = vmatprep.subr.bf16.mxu0 0
        %926 = vmatpush1.bf16.msra.mxu0 %v778
        %927 = vmatprep.subr.bf16.mxu0 0
        %928 = vmatpush1.bf16.msra.mxu0 %v779
        %929 = vmatprep.subr.bf16.mxu0 0
        %930 = vmatpush1.bf16.msra.mxu0 %v780
        %931 = vmatprep.subr.bf16.mxu0 0
        %932 = vmatpush1.bf16.msra.mxu0 %v781
        %933 = vmatprep.subr.bf16.mxu0 0
        %934 = vmatpush1.bf16.msra.mxu0 %v782
        %935 = vmatprep.subr.bf16.mxu0 0
        %936 = vmatpush1.bf16.msra.mxu0 %v783
        %937 = vmatprep.subr.bf16.mxu0 0
        %938 = vmatpush1.bf16.msra.mxu0 %v784
        %939 = vmatprep.subr.bf16.mxu0 0
        %940 = vmatpush1.bf16.msra.mxu0 %v785
        %941 = vmatprep.subr.bf16.mxu0 0
        %942 = vmatpush1.bf16.msra.mxu0 %v786
        %943 = vmatprep.subr.bf16.mxu0 0
        %944 = vmatpush1.bf16.msra.mxu0 %v787
        %945 = vmatprep.subr.bf16.mxu0 0
        %946 = vmatpush1.bf16.msra.mxu0 %v788
        %947 = vmatprep.subr.bf16.mxu0 0
        %948 = vmatpush1.bf16.msra.mxu0 %v789
        %949 = vmatprep.subr.bf16.mxu0 0
        %950 = vmatpush1.bf16.msra.mxu0 %v790
        %951 = vmatprep.subr.bf16.mxu0 0
        %952 = vmatpush1.bf16.msra.mxu0 %v791
        %953 = vmatprep.mubr.bf16.mxu0 %v571
        %954 = vmatmul.mubr.bf16.gmra.mrb[0].mxu0 %v570
        %v955 = vpop.f32.mrb[0].mxu0
        %v956 = vadd.f32 %v859, %v955
        %v957 = vpop.f32.mrb[0].mxu0
        %v958 = vpop.f32.mrb[0].mxu0
        %v959 = vadd.f32 %v862, %v958
        %v960 = vpop.f32.mrb[0].mxu0
        %961 = vmatprep.mubr.bf16.mxu0 %v575
        %962 = vmatmul.mubr.bf16.gmra.mrb[0].mxu0 %v574
        %v963 = vpop.f32.mrb[0].mxu0
        %v964 = vadd.f32 %v867, %v963
        %v965 = vpop.f32.mrb[0].mxu0
        %v966 = vpop.f32.mrb[0].mxu0
        %v967 = vadd.f32 %v870, %v966
        %v968 = vpop.f32.mrb[0].mxu0
        %969 = vmatprep.mubr.bf16.mxu0 %v579
        %970 = vmatmul.mubr.bf16.gmra.mrb[0].mxu0 %v578
        %v971 = vpop.f32.mrb[0].mxu0
        %v972 = vadd.f32 %v875, %v971
        %v973 = vpop.f32.mrb[0].mxu0
        %v974 = vpop.f32.mrb[0].mxu0
        %v975 = vadd.f32 %v878, %v974
        %v976 = vpop.f32.mrb[0].mxu0
        %977 = vmatprep.mubr.bf16.mxu0 %v583
        %978 = vmatmul.mubr.bf16.gmra.mrb[0].mxu0 %v582
        %v979 = vpop.f32.mrb[0].mxu0
        %v980 = vadd.f32 %v883, %v979
        %v981 = vpop.f32.mrb[0].mxu0
        %v982 = vpop.f32.mrb[0].mxu0
        %v983 = vadd.f32 %v886, %v982
        %v984 = vpop.f32.mrb[0].mxu0
        %985 = vmatprep.mubr.bf16.mxu0 %v587
        %986 = vmatmul.mubr.bf16.gmra.mrb[0].mxu0 %v586
        %v987 = vpop.f32.mrb[0].mxu0
        %v988 = vadd.f32 %v891, %v987
        %v989 = vpop.f32.mrb[0].mxu0
        %v990 = vpop.f32.mrb[0].mxu0
        %v991 = vadd.f32 %v894, %v990
        %v992 = vpop.f32.mrb[0].mxu0
        %993 = vmatprep.mubr.bf16.mxu0 %v591
        %994 = vmatmul.mubr.bf16.gmra.mrb[0].mxu0 %v590
        %v995 = vpop.f32.mrb[0].mxu0
        %v996 = vadd.f32 %v899, %v995
        %v997 = vpop.f32.mrb[0].mxu0
        %v998 = vpop.f32.mrb[0].mxu0
        %v999 = vadd.f32 %v902, %v998
        %v1000 = vpop.f32.mrb[0].mxu0
        %1001 = vmatprep.mubr.bf16.mxu0 %v595
        %1002 = vmatmul.mubr.bf16.gmra.mrb[0].mxu0 %v594
        %v1003 = vpop.f32.mrb[0].mxu0
        %v1004 = vadd.f32 %v907, %v1003
        %v1005 = vpop.f32.mrb[0].mxu0
        %v1006 = vpop.f32.mrb[0].mxu0
        %v1007 = vadd.f32 %v910, %v1006
        %v1008 = vpop.f32.mrb[0].mxu0
        %1009 = vmatprep.mubr.bf16.mxu0 %v599
        %1010 = vmatmul.mubr.bf16.gmra.mrb[0].mxu0 %v598
        %v1011 = vpop.f32.mrb[0].mxu0
        %v1012 = vadd.f32 %v915, %v1011
        %v1013 = vpop.f32.mrb[0].mxu0
        %v1014 = vpop.f32.mrb[0].mxu0
        %v1015 = vadd.f32 %v918, %v1014
        %v1016 = vpop.f32.mrb[0].mxu0
        %1017 = vdwg.mxu0
        %v1018 = vmax.f32 %v956, 0.0
        %v1019 = vmax.f32 %v959, 0.0
        %v1020 = vmax.f32 %v964, 0.0
        %v1021 = vmax.f32 %v967, 0.0
        %v1022 = vmax.f32 %v972, 0.0
        %v1023 = vmax.f32 %v975, 0.0
        %v1024 = vmax.f32 %v980, 0.0
        %v1025 = vmax.f32 %v983, 0.0
        %v1026 = vmax.f32 %v988, 0.0
        %v1027 = vmax.f32 %v991, 0.0
        %v1028 = vmax.f32 %v996, 0.0
        %v1029 = vmax.f32 %v999, 0.0
        %v1030 = vmax.f32 %v1004, 0.0
        %v1031 = vmax.f32 %v1007, 0.0
        %v1032 = vmax.f32 %v1012, 0.0
        %v1033 = vmax.f32 %v1015, 0.0
        %v1034 = vpack.c.bf16 %v1019, %v1018
        %v1035 = vpack.c.bf16 %v1021, %v1020
        %v1036 = vpack.c.bf16 %v1023, %v1022
        %v1037 = vpack.c.bf16 %v1025, %v1024
        %v1038 = vpack.c.bf16 %v1027, %v1026
        %v1039 = vpack.c.bf16 %v1029, %v1028
        %v1040 = vpack.c.bf16 %v1031, %v1030
        %v1041 = vpack.c.bf16 %v1033, %v1032
        %1042 = vst [vmem:[%s356] sm:$0xff] %v1034
        %1043 = vst [vmem:[%s356 + $0x8] sm:$0xff] %v1035
        %1044 = vst [vmem:[%s356 + $0x10] sm:$0xff] %v1036
        %1045 = vst [vmem:[%s356 + $0x18] sm:$0xff] %v1037
        %1046 = vst [vmem:[%s356 + $0x20] sm:$0xff] %v1038
        %1047 = vst [vmem:[%s356 + $0x28] sm:$0xff] %v1039
        %1048 = vst [vmem:[%s356 + $0x30] sm:$0xff] %v1040
        %1049 = vst [vmem:[%s356 + $0x38] sm:$0xff] %v1041
        %v1050 = vld [vmem:[%s313] sm:$0xff]
        %v1051 = vld [vmem:[%s313 + $0x8] sm:$0xff]
        %v1052 = vld [vmem:[%s313 + $0x10] sm:$0xff]
        %v1053 = vld [vmem:[%s313 + $0x18] sm:$0xff]
        %v1054 = vld [vmem:[%s313 + $0x20] sm:$0xff]
        %v1055 = vld [vmem:[%s313 + $0x28] sm:$0xff]
        %v1056 = vld [vmem:[%s313 + $0x30] sm:$0xff]
        %v1057 = vld [vmem:[%s313 + $0x38] sm:$0xff]
        %v1058 = vld [vmem:[%s313 + $0x40] sm:$0xff]
        %v1059 = vld [vmem:[%s313 + $0x48] sm:$0xff]
        %v1060 = vld [vmem:[%s313 + $0x50] sm:$0xff]
        %v1061 = vld [vmem:[%s313 + $0x58] sm:$0xff]
        %v1062 = vld [vmem:[%s313 + $0x60] sm:$0xff]
        %v1063 = vld [vmem:[%s313 + $0x68] sm:$0xff]
        %v1064 = vld [vmem:[%s313 + $0x70] sm:$0xff]
        %v1065 = vld [vmem:[%s313 + $0x78] sm:$0xff]
        %v1066 = vld [vmem:[%s313 + $0x80] sm:$0xff]
        %v1067 = vld [vmem:[%s313 + $0x88] sm:$0xff]
        %v1068 = vld [vmem:[%s313 + $0x90] sm:$0xff]
        %v1069 = vld [vmem:[%s313 + $0x98] sm:$0xff]
        %v1070 = vld [vmem:[%s313 + $0xa0] sm:$0xff]
        %v1071 = vld [vmem:[%s313 + $0xa8] sm:$0xff]
        %v1072 = vld [vmem:[%s313 + $0xb0] sm:$0xff]
        %v1073 = vld [vmem:[%s313 + $0xb8] sm:$0xff]
        %v1074 = vld [vmem:[%s313 + $0xc0] sm:$0xff]
        %v1075 = vld [vmem:[%s313 + $0xc8] sm:$0xff]
        %v1076 = vld [vmem:[%s313 + $0xd0] sm:$0xff]
        %v1077 = vld [vmem:[%s313 + $0xd8] sm:$0xff]
        %v1078 = vld [vmem:[%s313 + $0xe0] sm:$0xff]
        %v1079 = vld [vmem:[%s313 + $0xe8] sm:$0xff]
        %v1080 = vld [vmem:[%s313 + $0xf0] sm:$0xff]
        %v1081 = vld [vmem:[%s313 + $0xf8] sm:$0xff]
        %v1082 = vld [vmem:[#allocation8] sm:$0xf]
        %v1083 = vld [vmem:[#allocation8 + $0x4] sm:$0xf]
        %v1084 = vld [vmem:[#allocation8 + $0x8] sm:$0xf]
        %v1085 = vld [vmem:[#allocation8 + $0xc] sm:$0xf]
        %v1086 = vld [vmem:[#allocation8 + $0x10] sm:$0xf]
        %v1087 = vld [vmem:[#allocation8 + $0x14] sm:$0xf]
        %v1088 = vld [vmem:[#allocation8 + $0x18] sm:$0xf]
        %v1089 = vld [vmem:[#allocation8 + $0x1c] sm:$0xf]
        %v1090 = vld [vmem:[#allocation8 + $0x20] sm:$0xf]
        %v1091 = vld [vmem:[#allocation8 + $0x24] sm:$0xf]
        %v1092 = vld [vmem:[#allocation8 + $0x28] sm:$0xf]
        %v1093 = vld [vmem:[#allocation8 + $0x2c] sm:$0xf]
        %v1094 = vld [vmem:[#allocation8 + $0x30] sm:$0xf]
        %v1095 = vld [vmem:[#allocation8 + $0x34] sm:$0xf]
        %v1096 = vld [vmem:[#allocation8 + $0x38] sm:$0xf]
        %v1097 = vld [vmem:[#allocation8 + $0x3c] sm:$0xf]
        %v1098 = vld [vmem:[#allocation8 + $0x40] sm:$0xf]
        %v1099 = vld [vmem:[#allocation8 + $0x44] sm:$0xf]
        %v1100 = vld [vmem:[#allocation8 + $0x48] sm:$0xf]
        %v1101 = vld [vmem:[#allocation8 + $0x4c] sm:$0xf]
        %v1102 = vld [vmem:[#allocation8 + $0x50] sm:$0xf]
        %v1103 = vld [vmem:[#allocation8 + $0x54] sm:$0xf]
        %v1104 = vld [vmem:[#allocation8 + $0x58] sm:$0xf]
        %v1105 = vld [vmem:[#allocation8 + $0x5c] sm:$0xf]
        %v1106 = vld [vmem:[#allocation8 + $0x60] sm:$0xf]
        %v1107 = vld [vmem:[#allocation8 + $0x64] sm:$0xf]
        %v1108 = vld [vmem:[#allocation8 + $0x68] sm:$0xf]
        %v1109 = vld [vmem:[#allocation8 + $0x6c] sm:$0xf]
        %v1110 = vld [vmem:[#allocation8 + $0x70] sm:$0xf]
        %v1111 = vld [vmem:[#allocation8 + $0x74] sm:$0xf]
        %v1112 = vld [vmem:[#allocation8 + $0x78] sm:$0xf]
        %v1113 = vld [vmem:[#allocation8 + $0x7c] sm:$0xf]
        %v1114 = vld [vmem:[#allocation8 + $0x80] sm:$0xf]
        %v1115 = vld [vmem:[#allocation8 + $0x84] sm:$0xf]
        %v1116 = vld [vmem:[#allocation8 + $0x88] sm:$0xf]
        %v1117 = vld [vmem:[#allocation8 + $0x8c] sm:$0xf]
        %v1118 = vld [vmem:[#allocation8 + $0x90] sm:$0xf]
        %v1119 = vld [vmem:[#allocation8 + $0x94] sm:$0xf]
        %v1120 = vld [vmem:[#allocation8 + $0x98] sm:$0xf]
        %v1121 = vld [vmem:[#allocation8 + $0x9c] sm:$0xf]
        %v1122 = vld [vmem:[#allocation8 + $0xa0] sm:$0xf]
        %v1123 = vld [vmem:[#allocation8 + $0xa4] sm:$0xf]
        %v1124 = vld [vmem:[#allocation8 + $0xa8] sm:$0xf]
        %v1125 = vld [vmem:[#allocation8 + $0xac] sm:$0xf]
        %v1126 = vld [vmem:[#allocation8 + $0xb0] sm:$0xf]
        %v1127 = vld [vmem:[#allocation8 + $0xb4] sm:$0xf]
        %v1128 = vld [vmem:[#allocation8 + $0xb8] sm:$0xf]
        %v1129 = vld [vmem:[#allocation8 + $0xbc] sm:$0xf]
        %v1130 = vld [vmem:[#allocation8 + $0xc0] sm:$0xf]
        %v1131 = vld [vmem:[#allocation8 + $0xc4] sm:$0xf]
        %v1132 = vld [vmem:[#allocation8 + $0xc8] sm:$0xf]
        %v1133 = vld [vmem:[#allocation8 + $0xcc] sm:$0xf]
        %v1134 = vld [vmem:[#allocation8 + $0xd0] sm:$0xf]
        %v1135 = vld [vmem:[#allocation8 + $0xd4] sm:$0xf]
        %v1136 = vld [vmem:[#allocation8 + $0xd8] sm:$0xf]
        %v1137 = vld [vmem:[#allocation8 + $0xdc] sm:$0xf]
        %v1138 = vld [vmem:[#allocation8 + $0xe0] sm:$0xf]
        %v1139 = vld [vmem:[#allocation8 + $0xe4] sm:$0xf]
        %v1140 = vld [vmem:[#allocation8 + $0xe8] sm:$0xf]
        %v1141 = vld [vmem:[#allocation8 + $0xec] sm:$0xf]
        %v1142 = vld [vmem:[#allocation8 + $0xf0] sm:$0xf]
        %v1143 = vld [vmem:[#allocation8 + $0xf4] sm:$0xf]
        %v1144 = vld [vmem:[#allocation8 + $0xf8] sm:$0xf]
        %v1145 = vld [vmem:[#allocation8 + $0xfc] sm:$0xf]
        %v1178 = vunpack.c.l.b16 %v1050
        %v1179 = vunpack.c.h.b16 %v1050
        %v1180 = vunpack.c.l.b16 %v1051
        %v1181 = vunpack.c.h.b16 %v1051
        %v1182 = vunpack.c.l.b16 %v1052
        %v1183 = vunpack.c.h.b16 %v1052
        %v1184 = vunpack.c.l.b16 %v1053
        %v1185 = vunpack.c.h.b16 %v1053
        %v1186 = vunpack.c.l.b16 %v1054
        %v1187 = vunpack.c.h.b16 %v1054
        %v1188 = vunpack.c.l.b16 %v1055
        %v1189 = vunpack.c.h.b16 %v1055
        %v1190 = vunpack.c.l.b16 %v1056
        %v1191 = vunpack.c.h.b16 %v1056
        %v1192 = vunpack.c.l.b16 %v1057
        %v1193 = vunpack.c.h.b16 %v1057
        %v1194 = vunpack.c.l.b16 %v1058
        %v1195 = vunpack.c.h.b16 %v1058
        %v1196 = vunpack.c.l.b16 %v1059
        %v1197 = vunpack.c.h.b16 %v1059
        %v1198 = vunpack.c.l.b16 %v1060
        %v1199 = vunpack.c.h.b16 %v1060
        %v1200 = vunpack.c.l.b16 %v1061
        %v1201 = vunpack.c.h.b16 %v1061
        %v1202 = vunpack.c.l.b16 %v1062
        %v1203 = vunpack.c.h.b16 %v1062
        %v1204 = vunpack.c.l.b16 %v1063
        %v1205 = vunpack.c.h.b16 %v1063
        %v1206 = vunpack.c.l.b16 %v1064
        %v1207 = vunpack.c.h.b16 %v1064
        %v1208 = vunpack.c.l.b16 %v1065
        %v1209 = vunpack.c.h.b16 %v1065
        %v1210 = vunpack.c.l.b16 %v1066
        %v1211 = vunpack.c.h.b16 %v1066
        %v1212 = vunpack.c.l.b16 %v1067
        %v1213 = vunpack.c.h.b16 %v1067
        %v1214 = vunpack.c.l.b16 %v1068
        %v1215 = vunpack.c.h.b16 %v1068
        %v1216 = vunpack.c.l.b16 %v1069
        %v1217 = vunpack.c.h.b16 %v1069
        %v1218 = vunpack.c.l.b16 %v1070
        %v1219 = vunpack.c.h.b16 %v1070
        %v1220 = vunpack.c.l.b16 %v1071
        %v1221 = vunpack.c.h.b16 %v1071
        %v1222 = vunpack.c.l.b16 %v1072
        %v1223 = vunpack.c.h.b16 %v1072
        %v1224 = vunpack.c.l.b16 %v1073
        %v1225 = vunpack.c.h.b16 %v1073
        %v1226 = vunpack.c.l.b16 %v1074
        %v1227 = vunpack.c.h.b16 %v1074
        %v1228 = vunpack.c.l.b16 %v1075
        %v1229 = vunpack.c.h.b16 %v1075
        %v1230 = vunpack.c.l.b16 %v1076
        %v1231 = vunpack.c.h.b16 %v1076
        %v1232 = vunpack.c.l.b16 %v1077
        %v1233 = vunpack.c.h.b16 %v1077
        %v1234 = vunpack.c.l.b16 %v1078
        %v1235 = vunpack.c.h.b16 %v1078
        %v1236 = vunpack.c.l.b16 %v1079
        %v1237 = vunpack.c.h.b16 %v1079
        %v1238 = vunpack.c.l.b16 %v1080
        %v1239 = vunpack.c.h.b16 %v1080
        %v1240 = vunpack.c.l.b16 %v1081
        %v1241 = vunpack.c.h.b16 %v1081
        %v1242 = vpack.c.b16 %v1182, %v1178
        %v1243 = vpack.c.b16 %v1183, %v1179
        %v1244 = vpack.c.b16 %v1184, %v1180
        %v1245 = vpack.c.b16 %v1185, %v1181
        %v1246 = vpack.c.b16 %v1190, %v1186
        %v1247 = vpack.c.b16 %v1191, %v1187
        %v1248 = vpack.c.b16 %v1192, %v1188
        %v1249 = vpack.c.b16 %v1193, %v1189
        %v1250 = vpack.c.b16 %v1198, %v1194
        %v1251 = vpack.c.b16 %v1199, %v1195
        %v1252 = vpack.c.b16 %v1200, %v1196
        %v1253 = vpack.c.b16 %v1201, %v1197
        %v1254 = vpack.c.b16 %v1206, %v1202
        %v1255 = vpack.c.b16 %v1207, %v1203
        %v1256 = vpack.c.b16 %v1208, %v1204
        %v1257 = vpack.c.b16 %v1209, %v1205
        %v1258 = vpack.c.b16 %v1214, %v1210
        %v1259 = vpack.c.b16 %v1215, %v1211
        %v1260 = vpack.c.b16 %v1216, %v1212
        %v1261 = vpack.c.b16 %v1217, %v1213
        %v1262 = vpack.c.b16 %v1222, %v1218
        %v1263 = vpack.c.b16 %v1223, %v1219
        %v1264 = vpack.c.b16 %v1224, %v1220
        %v1265 = vpack.c.b16 %v1225, %v1221
        %v1266 = vpack.c.b16 %v1230, %v1226
        %v1267 = vpack.c.b16 %v1231, %v1227
        %v1268 = vpack.c.b16 %v1232, %v1228
        %v1269 = vpack.c.b16 %v1233, %v1229
        %v1270 = vpack.c.b16 %v1238, %v1234
        %v1271 = vpack.c.b16 %v1239, %v1235
        %v1272 = vpack.c.b16 %v1240, %v1236
        %v1273 = vpack.c.b16 %v1241, %v1237
        %v1370 = vunpack.c.l.b16 %v1082
        %v1371 = vunpack.c.l.b16 %v1083
        %v1372 = vunpack.c.l.b16 %v1084
        %v1373 = vunpack.c.l.b16 %v1085
        %v1374 = vunpack.c.l.b16 %v1086
        %v1375 = vunpack.c.l.b16 %v1087
        %v1376 = vunpack.c.l.b16 %v1088
        %v1377 = vunpack.c.l.b16 %v1089
        %v1378 = vunpack.c.l.b16 %v1090
        %v1379 = vunpack.c.l.b16 %v1091
        %v1380 = vunpack.c.l.b16 %v1092
        %v1381 = vunpack.c.l.b16 %v1093
        %v1382 = vunpack.c.l.b16 %v1094
        %v1383 = vunpack.c.l.b16 %v1095
        %v1384 = vunpack.c.l.b16 %v1096
        %v1385 = vunpack.c.l.b16 %v1097
        %v1386 = vunpack.c.l.b16 %v1098
        %v1387 = vunpack.c.l.b16 %v1099
        %v1388 = vunpack.c.l.b16 %v1100
        %v1389 = vunpack.c.l.b16 %v1101
        %v1390 = vunpack.c.l.b16 %v1102
        %v1391 = vunpack.c.l.b16 %v1103
        %v1392 = vunpack.c.l.b16 %v1104
        %v1393 = vunpack.c.l.b16 %v1105
        %v1394 = vunpack.c.l.b16 %v1106
        %v1395 = vunpack.c.l.b16 %v1107
        %v1396 = vunpack.c.l.b16 %v1108
        %v1397 = vunpack.c.l.b16 %v1109
        %v1398 = vunpack.c.l.b16 %v1110
        %v1399 = vunpack.c.l.b16 %v1111
        %v1400 = vunpack.c.l.b16 %v1112
        %v1401 = vunpack.c.l.b16 %v1113
        %v1402 = vunpack.c.l.b16 %v1114
        %v1403 = vunpack.c.l.b16 %v1115
        %v1404 = vunpack.c.l.b16 %v1116
        %v1405 = vunpack.c.l.b16 %v1117
        %v1406 = vunpack.c.l.b16 %v1118
        %v1407 = vunpack.c.l.b16 %v1119
        %v1408 = vunpack.c.l.b16 %v1120
        %v1409 = vunpack.c.l.b16 %v1121
        %v1410 = vunpack.c.l.b16 %v1122
        %v1411 = vunpack.c.l.b16 %v1123
        %v1412 = vunpack.c.l.b16 %v1124
        %v1413 = vunpack.c.l.b16 %v1125
        %v1414 = vunpack.c.l.b16 %v1126
        %v1415 = vunpack.c.l.b16 %v1127
        %v1416 = vunpack.c.l.b16 %v1128
        %v1417 = vunpack.c.l.b16 %v1129
        %v1418 = vunpack.c.l.b16 %v1130
        %v1419 = vunpack.c.l.b16 %v1131
        %v1420 = vunpack.c.l.b16 %v1132
        %v1421 = vunpack.c.l.b16 %v1133
        %v1422 = vunpack.c.l.b16 %v1134
        %v1423 = vunpack.c.l.b16 %v1135
        %v1424 = vunpack.c.l.b16 %v1136
        %v1425 = vunpack.c.l.b16 %v1137
        %v1426 = vunpack.c.l.b16 %v1138
        %v1427 = vunpack.c.l.b16 %v1139
        %v1428 = vunpack.c.l.b16 %v1140
        %v1429 = vunpack.c.l.b16 %v1141
        %v1430 = vunpack.c.l.b16 %v1142
        %v1431 = vunpack.c.l.b16 %v1143
        %v1432 = vunpack.c.l.b16 %v1144
        %v1433 = vunpack.c.l.b16 %v1145
        %v1434 = vpack.c.b16 %v1371, %v1370
        %v1435 = vpack.c.b16 %v1373, %v1372
        %v1436 = vpack.c.b16 %v1375, %v1374
        %v1437 = vpack.c.b16 %v1377, %v1376
        %v1438 = vpack.c.b16 %v1379, %v1378
        %v1439 = vpack.c.b16 %v1381, %v1380
        %v1440 = vpack.c.b16 %v1383, %v1382
        %v1441 = vpack.c.b16 %v1385, %v1384
        %v1442 = vpack.c.b16 %v1387, %v1386
        %v1443 = vpack.c.b16 %v1389, %v1388
        %v1444 = vpack.c.b16 %v1391, %v1390
        %v1445 = vpack.c.b16 %v1393, %v1392
        %v1446 = vpack.c.b16 %v1395, %v1394
        %v1447 = vpack.c.b16 %v1397, %v1396
        %v1448 = vpack.c.b16 %v1399, %v1398
        %v1449 = vpack.c.b16 %v1401, %v1400
        %v1450 = vpack.c.b16 %v1403, %v1402
        %v1451 = vpack.c.b16 %v1405, %v1404
        %v1452 = vpack.c.b16 %v1407, %v1406
        %v1453 = vpack.c.b16 %v1409, %v1408
        %v1454 = vpack.c.b16 %v1411, %v1410
        %v1455 = vpack.c.b16 %v1413, %v1412
        %v1456 = vpack.c.b16 %v1415, %v1414
        %v1457 = vpack.c.b16 %v1417, %v1416
        %v1458 = vpack.c.b16 %v1419, %v1418
        %v1459 = vpack.c.b16 %v1421, %v1420
        %v1460 = vpack.c.b16 %v1423, %v1422
        %v1461 = vpack.c.b16 %v1425, %v1424
        %v1462 = vpack.c.b16 %v1427, %v1426
        %v1463 = vpack.c.b16 %v1429, %v1428
        %v1464 = vpack.c.b16 %v1431, %v1430
        %v1465 = vpack.c.b16 %v1433, %v1432
        %1498 = vmatprep.subr.bf16.mxu0 0
        %1499 = vmatpush1.bf16.msra.mxu0 %v1434
        %1500 = vmatprep.subr.bf16.mxu0 0
        %1501 = vmatpush1.bf16.msra.mxu0 %v1435
        %1502 = vmatprep.subr.bf16.mxu0 0
        %1503 = vmatpush1.bf16.msra.mxu0 %v1436
        %1504 = vmatprep.subr.bf16.mxu0 0
        %1505 = vmatpush1.bf16.msra.mxu0 %v1437
        %1506 = vmatprep.subr.bf16.mxu0 0
        %1507 = vmatpush1.bf16.msra.mxu0 %v1438
        %1508 = vmatprep.subr.bf16.mxu0 0
        %1509 = vmatpush1.bf16.msra.mxu0 %v1439
        %1510 = vmatprep.subr.bf16.mxu0 0
        %1511 = vmatpush1.bf16.msra.mxu0 %v1440
        %1512 = vmatprep.subr.bf16.mxu0 0
        %1513 = vmatpush1.bf16.msra.mxu0 %v1441
        %1514 = vmatprep.subr.bf16.mxu0 0
        %1515 = vmatpush1.bf16.msra.mxu0 %v1442
        %1516 = vmatprep.subr.bf16.mxu0 0
        %1517 = vmatpush1.bf16.msra.mxu0 %v1443
        %1518 = vmatprep.subr.bf16.mxu0 0
        %1519 = vmatpush1.bf16.msra.mxu0 %v1444
        %1520 = vmatprep.subr.bf16.mxu0 0
        %1521 = vmatpush1.bf16.msra.mxu0 %v1445
        %1522 = vmatprep.subr.bf16.mxu0 0
        %1523 = vmatpush1.bf16.msra.mxu0 %v1446
        %1524 = vmatprep.subr.bf16.mxu0 0
        %1525 = vmatpush1.bf16.msra.mxu0 %v1447
        %1526 = vmatprep.subr.bf16.mxu0 0
        %1527 = vmatpush1.bf16.msra.mxu0 %v1448
        %1528 = vmatprep.subr.bf16.mxu0 0
        %1529 = vmatpush1.bf16.msra.mxu0 %v1449
        %1530 = vmatprep.mubr.bf16.mxu0 %v1243
        %1531 = vmatmul.mubr.bf16.gmra.mrb[0].mxu0 %v1242
        %v1532 = vpop.f32.mrb[0].mxu0
        %v1533 = vadd.f32 0.0, %v1532
        %v1534 = vpop.f32.mrb[0].mxu0
        %v1535 = vpop.f32.mrb[0].mxu0
        %v1536 = vadd.f32 0.0, %v1535
        %v1537 = vpop.f32.mrb[0].mxu0
        %1538 = vmatprep.mubr.bf16.mxu0 %v1247
        %1539 = vmatmul.mubr.bf16.gmra.mrb[0].mxu0 %v1246
        %v1540 = vpop.f32.mrb[0].mxu0
        %v1541 = vadd.f32 0.0, %v1540
        %v1542 = vpop.f32.mrb[0].mxu0
        %v1543 = vpop.f32.mrb[0].mxu0
        %v1544 = vadd.f32 0.0, %v1543
        %v1545 = vpop.f32.mrb[0].mxu0
        %1546 = vmatprep.mubr.bf16.mxu0 %v1251
        %1547 = vmatmul.mubr.bf16.gmra.mrb[0].mxu0 %v1250
        %v1548 = vpop.f32.mrb[0].mxu0
        %v1549 = vadd.f32 0.0, %v1548
        %v1550 = vpop.f32.mrb[0].mxu0
        %v1551 = vpop.f32.mrb[0].mxu0
        %v1552 = vadd.f32 0.0, %v1551
        %v1553 = vpop.f32.mrb[0].mxu0
        %1554 = vmatprep.mubr.bf16.mxu0 %v1255
        %1555 = vmatmul.mubr.bf16.gmra.mrb[0].mxu0 %v1254
        %v1556 = vpop.f32.mrb[0].mxu0
        %v1557 = vadd.f32 0.0, %v1556
        %v1558 = vpop.f32.mrb[0].mxu0
        %v1559 = vpop.f32.mrb[0].mxu0
        %v1560 = vadd.f32 0.0, %v1559
        %v1561 = vpop.f32.mrb[0].mxu0
        %1562 = vmatprep.mubr.bf16.mxu0 %v1259
        %1563 = vmatmul.mubr.bf16.gmra.mrb[0].mxu0 %v1258
        %v1564 = vpop.f32.mrb[0].mxu0
        %v1565 = vadd.f32 0.0, %v1564
        %v1566 = vpop.f32.mrb[0].mxu0
        %v1567 = vpop.f32.mrb[0].mxu0
        %v1568 = vadd.f32 0.0, %v1567
        %v1569 = vpop.f32.mrb[0].mxu0
        %1570 = vmatprep.mubr.bf16.mxu0 %v1263
        %1571 = vmatmul.mubr.bf16.gmra.mrb[0].mxu0 %v1262
        %v1572 = vpop.f32.mrb[0].mxu0
        %v1573 = vadd.f32 0.0, %v1572
        %v1574 = vpop.f32.mrb[0].mxu0
        %v1575 = vpop.f32.mrb[0].mxu0
        %v1576 = vadd.f32 0.0, %v1575
        %v1577 = vpop.f32.mrb[0].mxu0
        %1578 = vmatprep.mubr.bf16.mxu0 %v1267
        %1579 = vmatmul.mubr.bf16.gmra.mrb[0].mxu0 %v1266
        %v1580 = vpop.f32.mrb[0].mxu0
        %v1581 = vadd.f32 0.0, %v1580
        %v1582 = vpop.f32.mrb[0].mxu0
        %v1583 = vpop.f32.mrb[0].mxu0
        %v1584 = vadd.f32 0.0, %v1583
        %v1585 = vpop.f32.mrb[0].mxu0
        %1586 = vmatprep.mubr.bf16.mxu0 %v1271
        %1587 = vmatmul.mubr.bf16.gmra.mrb[0].mxu0 %v1270
        %v1588 = vpop.f32.mrb[0].mxu0
        %v1589 = vadd.f32 0.0, %v1588
        %v1590 = vpop.f32.mrb[0].mxu0
        %v1591 = vpop.f32.mrb[0].mxu0
        %v1592 = vadd.f32 0.0, %v1591
        %v1593 = vpop.f32.mrb[0].mxu0
        %1594 = vdwg.mxu0
        %1595 = vmatprep.subr.bf16.mxu0 0
        %1596 = vmatpush1.bf16.msra.mxu0 %v1450
        %1597 = vmatprep.subr.bf16.mxu0 0
        %1598 = vmatpush1.bf16.msra.mxu0 %v1451
        %1599 = vmatprep.subr.bf16.mxu0 0
        %1600 = vmatpush1.bf16.msra.mxu0 %v1452
        %1601 = vmatprep.subr.bf16.mxu0 0
        %1602 = vmatpush1.bf16.msra.mxu0 %v1453
        %1603 = vmatprep.subr.bf16.mxu0 0
        %1604 = vmatpush1.bf16.msra.mxu0 %v1454
        %1605 = vmatprep.subr.bf16.mxu0 0
        %1606 = vmatpush1.bf16.msra.mxu0 %v1455
        %1607 = vmatprep.subr.bf16.mxu0 0
        %1608 = vmatpush1.bf16.msra.mxu0 %v1456
        %1609 = vmatprep.subr.bf16.mxu0 0
        %1610 = vmatpush1.bf16.msra.mxu0 %v1457
        %1611 = vmatprep.subr.bf16.mxu0 0
        %1612 = vmatpush1.bf16.msra.mxu0 %v1458
        %1613 = vmatprep.subr.bf16.mxu0 0
        %1614 = vmatpush1.bf16.msra.mxu0 %v1459
        %1615 = vmatprep.subr.bf16.mxu0 0
        %1616 = vmatpush1.bf16.msra.mxu0 %v1460
        %1617 = vmatprep.subr.bf16.mxu0 0
        %1618 = vmatpush1.bf16.msra.mxu0 %v1461
        %1619 = vmatprep.subr.bf16.mxu0 0
        %1620 = vmatpush1.bf16.msra.mxu0 %v1462
        %1621 = vmatprep.subr.bf16.mxu0 0
        %1622 = vmatpush1.bf16.msra.mxu0 %v1463
        %1623 = vmatprep.subr.bf16.mxu0 0
        %1624 = vmatpush1.bf16.msra.mxu0 %v1464
        %1625 = vmatprep.subr.bf16.mxu0 0
        %1626 = vmatpush1.bf16.msra.mxu0 %v1465
        %1627 = vmatprep.mubr.bf16.mxu0 %v1245
        %1628 = vmatmul.mubr.bf16.gmra.mrb[0].mxu0 %v1244
        %v1629 = vpop.f32.mrb[0].mxu0
        %v1630 = vadd.f32 %v1533, %v1629
        %v1631 = vpop.f32.mrb[0].mxu0
        %v1632 = vpop.f32.mrb[0].mxu0
        %v1633 = vadd.f32 %v1536, %v1632
        %v1634 = vpop.f32.mrb[0].mxu0
        %1635 = vmatprep.mubr.bf16.mxu0 %v1249
        %1636 = vmatmul.mubr.bf16.gmra.mrb[0].mxu0 %v1248
        %v1637 = vpop.f32.mrb[0].mxu0
        %v1638 = vadd.f32 %v1541, %v1637
        %v1639 = vpop.f32.mrb[0].mxu0
        %v1640 = vpop.f32.mrb[0].mxu0
        %v1641 = vadd.f32 %v1544, %v1640
        %v1642 = vpop.f32.mrb[0].mxu0
        %1643 = vmatprep.mubr.bf16.mxu0 %v1253
        %1644 = vmatmul.mubr.bf16.gmra.mrb[0].mxu0 %v1252
        %v1645 = vpop.f32.mrb[0].mxu0
        %v1646 = vadd.f32 %v1549, %v1645
        %v1647 = vpop.f32.mrb[0].mxu0
        %v1648 = vpop.f32.mrb[0].mxu0
        %v1649 = vadd.f32 %v1552, %v1648
        %v1650 = vpop.f32.mrb[0].mxu0
        %1651 = vmatprep.mubr.bf16.mxu0 %v1257
        %1652 = vmatmul.mubr.bf16.gmra.mrb[0].mxu0 %v1256
        %v1653 = vpop.f32.mrb[0].mxu0
        %v1654 = vadd.f32 %v1557, %v1653
        %v1655 = vpop.f32.mrb[0].mxu0
        %v1656 = vpop.f32.mrb[0].mxu0
        %v1657 = vadd.f32 %v1560, %v1656
        %v1658 = vpop.f32.mrb[0].mxu0
        %1659 = vmatprep.mubr.bf16.mxu0 %v1261
        %1660 = vmatmul.mubr.bf16.gmra.mrb[0].mxu0 %v1260
        %v1661 = vpop.f32.mrb[0].mxu0
        %v1662 = vadd.f32 %v1565, %v1661
        %v1663 = vpop.f32.mrb[0].mxu0
        %v1664 = vpop.f32.mrb[0].mxu0
        %v1665 = vadd.f32 %v1568, %v1664
        %v1666 = vpop.f32.mrb[0].mxu0
        %1667 = vmatprep.mubr.bf16.mxu0 %v1265
        %1668 = vmatmul.mubr.bf16.gmra.mrb[0].mxu0 %v1264
        %v1669 = vpop.f32.mrb[0].mxu0
        %v1670 = vadd.f32 %v1573, %v1669
        %v1671 = vpop.f32.mrb[0].mxu0
        %v1672 = vpop.f32.mrb[0].mxu0
        %v1673 = vadd.f32 %v1576, %v1672
        %v1674 = vpop.f32.mrb[0].mxu0
        %1675 = vmatprep.mubr.bf16.mxu0 %v1269
        %1676 = vmatmul.mubr.bf16.gmra.mrb[0].mxu0 %v1268
        %v1677 = vpop.f32.mrb[0].mxu0
        %v1678 = vadd.f32 %v1581, %v1677
        %v1679 = vpop.f32.mrb[0].mxu0
        %v1680 = vpop.f32.mrb[0].mxu0
        %v1681 = vadd.f32 %v1584, %v1680
        %v1682 = vpop.f32.mrb[0].mxu0
        %1683 = vmatprep.mubr.bf16.mxu0 %v1273
        %1684 = vmatmul.mubr.bf16.gmra.mrb[0].mxu0 %v1272
        %v1685 = vpop.f32.mrb[0].mxu0
        %v1686 = vadd.f32 %v1589, %v1685
        %v1687 = vpop.f32.mrb[0].mxu0
        %v1688 = vpop.f32.mrb[0].mxu0
        %v1689 = vadd.f32 %v1592, %v1688
        %v1690 = vpop.f32.mrb[0].mxu0
        %1691 = vdwg.mxu0
        %v1692 = vpack.c.bf16 %v1633, %v1630
        %v1693 = vpack.c.bf16 %v1641, %v1638
        %v1694 = vpack.c.bf16 %v1649, %v1646
        %v1695 = vpack.c.bf16 %v1657, %v1654
        %v1696 = vpack.c.bf16 %v1665, %v1662
        %v1697 = vpack.c.bf16 %v1673, %v1670
        %v1698 = vpack.c.bf16 %v1681, %v1678
        %v1699 = vpack.c.bf16 %v1689, %v1686
        %v1708 = vunpack.c.l.b16 %v1692
        %v1709 = vunpack.c.h.b16 %v1692
        %v1710 = vunpack.c.l.b16 %v1693
        %v1711 = vunpack.c.h.b16 %v1693
        %v1712 = vunpack.c.l.b16 %v1694
        %v1713 = vunpack.c.h.b16 %v1694
        %v1714 = vunpack.c.l.b16 %v1695
        %v1715 = vunpack.c.h.b16 %v1695
        %v1716 = vunpack.c.l.b16 %v1696
        %v1717 = vunpack.c.h.b16 %v1696
        %v1718 = vunpack.c.l.b16 %v1697
        %v1719 = vunpack.c.h.b16 %v1697
        %v1720 = vunpack.c.l.b16 %v1698
        %v1721 = vunpack.c.h.b16 %v1698
        %v1722 = vunpack.c.l.b16 %v1699
        %v1723 = vunpack.c.h.b16 %v1699
        %v1724 = vpack.c.b16 %v1708, %v1708
        %v1725 = vpack.c.b16 %v1709, %v1709
        %v1726 = vpack.c.b16 %v1710, %v1710
        %v1727 = vpack.c.b16 %v1711, %v1711
        %v1728 = vpack.c.b16 %v1712, %v1712
        %v1729 = vpack.c.b16 %v1713, %v1713
        %v1730 = vpack.c.b16 %v1714, %v1714
        %v1731 = vpack.c.b16 %v1715, %v1715
        %v1732 = vpack.c.b16 %v1716, %v1716
        %v1733 = vpack.c.b16 %v1717, %v1717
        %v1734 = vpack.c.b16 %v1718, %v1718
        %v1735 = vpack.c.b16 %v1719, %v1719
        %v1736 = vpack.c.b16 %v1720, %v1720
        %v1737 = vpack.c.b16 %v1721, %v1721
        %v1738 = vpack.c.b16 %v1722, %v1722
        %v1739 = vpack.c.b16 %v1723, %v1723
        %1756 = vst [vmem:[%s363] sm:$0xf] %v1724
        %1757 = vst [vmem:[%s363 + $0x4] sm:$0xf] %v1725
        %1758 = vst [vmem:[%s363 + $0x8] sm:$0xf] %v1726
        %1759 = vst [vmem:[%s363 + $0xc] sm:$0xf] %v1727
        %1760 = vst [vmem:[%s363 + $0x10] sm:$0xf] %v1728
        %1761 = vst [vmem:[%s363 + $0x14] sm:$0xf] %v1729
        %1762 = vst [vmem:[%s363 + $0x18] sm:$0xf] %v1730
        %1763 = vst [vmem:[%s363 + $0x1c] sm:$0xf] %v1731
        %1764 = vst [vmem:[%s363 + $0x20] sm:$0xf] %v1732
        %1765 = vst [vmem:[%s363 + $0x24] sm:$0xf] %v1733
        %1766 = vst [vmem:[%s363 + $0x28] sm:$0xf] %v1734
        %1767 = vst [vmem:[%s363 + $0x2c] sm:$0xf] %v1735
        %1768 = vst [vmem:[%s363 + $0x30] sm:$0xf] %v1736
        %1769 = vst [vmem:[%s363 + $0x34] sm:$0xf] %v1737
        %1770 = vst [vmem:[%s363 + $0x38] sm:$0xf] %v1738
        %1771 = vst [vmem:[%s363 + $0x3c] sm:$0xf] %v1739
        %s1772 = sand.u32 %s154, 1
        %s1773 = scalar_lea.sflag [#allocation4], %s1772
        %s1774 = sand.u32 %s154, 1
        %s1775 = smul.addr %s1774, 64
        %s1776 = scalar_lea.vmem [#allocation11], %s1775
        %s1777 = sand.u32 %s180, 1
        %s1778 = scalar_lea.sflag [#allocation13], %s1777
        %s1779 = sand.u32 %s180, 1
        %s1780 = smul.addr %s1779, 64
        %s1781 = scalar_lea.vmem [#allocation12], %s1780
        // Predicated region
        $region61: #{tide_block_forward.2} parent=39 // pred_check
          %p1782 = pneg %p164
        $region62: #{tide_block_forward.2} parent=39 // pred_check_branch
          %1784 = sbr.rel (%p1782) target = $region64
        $region63: #{tide_block_forward.2} parent=39 // pred_region
          %s1785 = smul.u32 8, %s31
          %s1787 = ssub.s32 1024, 1024
          %1788 = vsyncadd %s1773, %s1787
          %s1789 = smul.addr %s1785, 128
          %s1790 = scalar_lea.hbm %s5, %s1789
          %s1791 = sshll.u32 %s1776, 4
          %s1792 = int_to_ptr.vmem [resolvable:$true] %s1791
          %1797 = dma.vmem_to_hbm [thread:$0]  %s1792, 1024, %s1790, %s1773, 128, 128, 8
        $region64: #{tide_block_forward.2} parent=39 // pred_fallthru
          _
        // Predicated region
        $region65: #{tide_block_forward.2} parent=39 // pred_check
          %p1798 = pneg %p190
        $region66: #{tide_block_forward.2} parent=39 // pred_check_branch
          %1800 = sbr.rel (%p1798) target = $region68
        $region67: #{tide_block_forward.2} parent=39 // pred_region
          %s1801 = smul.u32 16, %s31
          %s1803 = ssub.s32 1024, 1024
          %1804 = vsyncadd %s1778, %s1803
          %s1805 = smul.addr %s1801, 64
          %s1806 = scalar_lea.hbm %s6, %s1805
          %s1807 = sshll.u32 %s1781, 4
          %s1808 = int_to_ptr.vmem [resolvable:$true] %s1807
          %1813 = dma.vmem_to_hbm [thread:$0]  %s1808, 1024, %s1806, %s1778, 64, 64, 4
        $region68: #{tide_block_forward.2} parent=39 // pred_fallthru
          _
      $region40: #{tide_block_forward.2} parent=5 // pred_fallthru
        _
      %p1814 = scmp.le.s32.totalorder 2, %s26
      // Predicated region
      $region69: #{tide_block_forward.2} parent=5 // pred_check
        %p1815 = pneg %p1814
      $region70: #{tide_block_forward.2} parent=5 // pred_check_branch
        %1817 = sbr.rel (%p1815) target = $region72
      $region71: #{tide_block_forward.2} parent=5 // pred_region
        %s1818 = ssub.s32 %s26, 2
        // Predicated region
        $region73: #{tide_block_forward.2} parent=71 // pred_check
          %p1819 = pneg %p170
        $region74: #{tide_block_forward.2} parent=71 // pred_check_branch
          %1821 = sbr.rel (%p1819) target = $region76
        $region75: #{tide_block_forward.2} parent=71 // pred_region
          %s1822 = sand.u32 %s155, 1
          %s1823 = scalar_lea.sflag [#allocation4], %s1822
          %s1824 = sand.u32 %s155, 1
          %s1825 = smul.addr %s1824, 64
          %s1826 = scalar_lea.vmem [#allocation11], %s1825
          %1827 = dma.done %s1823, 1024
        $region76: #{tide_block_forward.2} parent=71 // pred_fallthru
          _
        // Predicated region
        $region77: #{tide_block_forward.2} parent=71 // pred_check
          %p1828 = pneg %p196
        $region78: #{tide_block_forward.2} parent=71 // pred_check_branch
          %1830 = sbr.rel (%p1828) target = $region80
        $region79: #{tide_block_forward.2} parent=71 // pred_region
          %s1831 = sand.u32 %s181, 1
          %s1832 = scalar_lea.sflag [#allocation13], %s1831
          %s1833 = sand.u32 %s181, 1
          %s1834 = smul.addr %s1833, 64
          %s1835 = scalar_lea.vmem [#allocation12], %s1834
          %1836 = dma.done %s1832, 1024
        $region80: #{tide_block_forward.2} parent=71 // pred_fallthru
          _
      $region72: #{tide_block_forward.2} parent=5 // pred_fallthru
        _
    $region6: #{tide_block_forward.2} parent=1 // loop_footer
      %s30 = sadd.s32 1, %s26
    $region7: #{tide_block_forward.2} parent=1 // loop_footer_branch
      %25 = sbr.rel target = $region3
    $region8: #{tide_block_forward.2} parent=1 // loop_exit
      _
    %1837 = vsyncpa [#allocation3], 1
    %s1838 = scalar_lea.sflag [#allocation3], 1
    %1839 = vsyncpa %s1838, 1
    %1840 = vsyncpa [#allocation6], 1
    %s1841 = scalar_lea.sflag [#allocation6], 1
    %1842 = vsyncpa %s1841, 1
    %1843 = vsyncpa [#allocation9], 1
    %1844 = vsyncpa [#allocation4], 1
    %s1845 = scalar_lea.sflag [#allocation4], 1
    %1846 = vsyncpa %s1845, 1
    %1847 = vsyncpa [#allocation13], 1
    %s1848 = scalar_lea.sflag [#allocation13], 1
    %1849 = vsyncpa %s1848, 1

// kernel: tide_block_forward.3
$region0: #{tide_block_forward.3}
  #allocation0 [shape = 'u32[]', space=smem, size = 0x4, offset = 0x4, fixed_abs, tag = 'smem constant byte address 0x4 - core index']
  #allocation1 [shape = 'u32[144,128]{1,0:T(1,128)}', space=vmem, size = 0x12000, scoped, tag = 'internal scratch']
  %s0 = inlined_call_operand.hbm [shape: bf16[512,512], index: 0, kind: input, shape index: {}]
  %s1 = inlined_call_operand.hbm [shape: bf16[512,128], index: 1, kind: input, shape index: {}]
  %s2 = inlined_call_operand.hbm [shape: bf16[512,128], index: 2, kind: input, shape index: {}]
  %s3 = inlined_call_operand.hbm [shape: f32[512,128], index: 3, kind: input, shape index: {}]
  %s4 = inlined_call_operand.hbm [shape: f32[1,128], index: 4, kind: input, shape index: {}]
  %s5 = inlined_call_operand.hbm [shape: bf16[128,128], index: 5, kind: input, shape index: {}]
  %s6 = inlined_call_operand.hbm [shape: bf16[128,128], index: 6, kind: input, shape index: {}]
  %s7 = inlined_call_operand.hbm [shape: f32[1,128], index: 7, kind: input, shape index: {}]
  %s8 = inlined_call_operand.hbm [shape: f32[512,128], index: 8, kind: output, shape index: {}]
  %s9 = sld [smem:[#allocation0]]
  $region97: #{tide_block_forward.3} parent=0
    _
  %s11 = ssub.s32 1, %s9
  %s12 = scalar_select 0, %s11, %s9
  $region1: #{tide_block_forward.3} parent=0
    #allocation2 [shape = 'u8[262144]{0}', space=vmem, size = 0x40000, scoped, tag = 'input window, operand 0']
    #allocation3 [shape = 's32[2]{0}', space=sflag, size = 0x8, scoped, tag = 'scoped memory for tide_block_forward.3']
    #allocation4 [shape = 's32[2]{0}', space=sflag, size = 0x8, scoped, tag = 'scoped memory for tide_block_forward.3']
    #allocation5 [shape = 'u8[131072]{0}', space=vmem, size = 0x20000, scoped, tag = 'input window, operand 1, single buffered']
    #allocation6 [shape = 's32[1]{0}', space=sflag, size = 0x4, scoped, tag = 'scoped memory for tide_block_forward.3']
    #allocation7 [shape = 'u8[65536]{0}', space=vmem, size = 0x10000, scoped, tag = 'input window, operand 2']
    #allocation8 [shape = 'u8[131072]{0}', space=vmem, size = 0x20000, scoped, tag = 'input window, operand 3']
    #allocation9 [shape = 'u8[512]{0}', space=vmem, size = 0x400, scoped, tag = 'input window, operand 4, single buffered']
    #allocation10 [shape = 'u8[32768]{0}', space=vmem, size = 0x8000, scoped, tag = 'input window, operand 5, single buffered']
    #allocation11 [shape = 's32[1]{0}', space=sflag, size = 0x4, scoped, tag = 'scoped memory for tide_block_forward.3']
    #allocation12 [shape = 'u8[32768]{0}', space=vmem, size = 0x8000, scoped, tag = 'input window, operand 6, single buffered']
    #allocation13 [shape = 'u8[512]{0}', space=vmem, size = 0x400, scoped, tag = 'input window, operand 7, single buffered']
    #allocation14 [shape = 's32[1]{0}', space=sflag, size = 0x4, scoped, tag = 'scoped memory for tide_block_forward.3']
    #allocation15 [shape = 'u8[131072]{0}', space=vmem, size = 0x20000, scoped, tag = 'output window, operand 0']
    %13 = vsyncpa [#allocation3], 0
    %s14 = scalar_lea.sflag [#allocation3], 1
    %15 = vsyncpa %s14, 0
    %16 = vsyncpa [#allocation6], 0
    %17 = vsyncpa [#allocation11], 0
    %18 = vsyncpa [#allocation14], 0
    %19 = vsyncpa [#allocation4], 0
    %s20 = scalar_lea.sflag [#allocation4], 1
    %21 = vsyncpa %s20, 0
    loop: start=0, step=1, limit=6
    $region2: #{tide_block_forward.3} parent=1 // loop_pre_header
      _
    $region3: #{tide_block_forward.3} parent=1 // loop_header
      %s23 = sphi 0, %s27
      %p24 = scmp.ge.s32.totalorder %s23, 6
      %s33 = sphi 0, %s35
      %s36 = sphi 0, %s33
      %s37 = sphi 0, %s36
      %s53 = sphi 0, %s37
      %s57 = sphi 0, %s57
      %s59 = sphi 0, %s57
      %s60 = sphi 0, %s59
      %s74 = sphi 0, %s60
      %s80 = sphi 0, %s82
      %s83 = sphi 0, %s80
      %s84 = sphi 0, %s83
      %s100 = sphi 0, %s84
      %s106 = sphi 0, %s108
      %s109 = sphi 0, %s106
      %s110 = sphi 0, %s109
      %s126 = sphi 0, %s110
      %s130 = sphi 0, %s130
      %s132 = sphi 0, %s130
      %s133 = sphi 0, %s132
      %s147 = sphi 0, %s133
      %s151 = sphi 0, %s151
      %s153 = sphi 0, %s151
      %s154 = sphi 0, %s153
      %s168 = sphi 0, %s154
      %s172 = sphi 0, %s172
      %s174 = sphi 0, %s172
      %s175 = sphi 0, %s174
      %s189 = sphi 0, %s175
      %s193 = sphi 0, %s193
      %s195 = sphi 0, %s193
      %s196 = sphi 0, %s195
      %s210 = sphi 0, %s196
      %s216 = sphi 0, %s218
      %s219 = sphi 0, %s216
      %s220 = sphi 0, %s219
      %s236 = sphi 0, %s220
    $region4: #{tide_block_forward.3} parent=1 // loop_header_branch
      %26 = sbr.rel (%p24) target = $region8
    $region5: #{tide_block_forward.3} parent=1 // loop_body
      %s28 = ssub.s32 %s23, 1
      %s29 = ssub.s32 %s23, 2
      %s30 = sadd.s32 %s23, 1
      %s31 = ssub.s32 %s23, %s30
      %p32 = scmp.eq.s32.totalorder %s31, 0
      %s34 = sadd.s32 %s33, 1
      %s35 = scalar_select %p32, %s33, %s34
      %p38 = pneg %p32
      %p39 = scmp.eq.s32.totalorder %s23, 3
      %p40 = por %p38, %p39
      %p41 = scmp.ne.s32.totalorder %s33, %s36
      %p42 = scmp.eq.s32.totalorder %s23, 0
      %p43 = por %p41, %p42
      %p44 = scmp.ne.s32.totalorder %s33, %s36
      %p45 = scmp.eq.s32.totalorder %s28, 3
      %p46 = por %p44, %p45
      %p47 = scmp.ne.s32.totalorder %s36, %s37
      %p48 = scmp.eq.s32.totalorder %s28, 0
      %p49 = por %p47, %p48
      %p50 = scmp.ne.s32.totalorder %s36, %s37
      %p51 = scmp.eq.s32.totalorder %s29, 3
      %p52 = por %p50, %p51
      %p54 = scmp.ne.s32.totalorder %s37, %s53
      %p55 = scmp.eq.s32.totalorder %s29, 0
      %p56 = por %p54, %p55
      %s58 = sadd.s32 %s57, 1
      %p61 = scmp.eq.s32.totalorder %s23, 3
      %p62 = scmp.ne.s32.totalorder %s57, %s59
      %p63 = scmp.eq.s32.totalorder %s23, 0
      %p64 = por %p62, %p63
      %p65 = scmp.ne.s32.totalorder %s57, %s59
      %p66 = scmp.eq.s32.totalorder %s28, 3
      %p67 = por %p65, %p66
      %p68 = scmp.ne.s32.totalorder %s59, %s60
      %p69 = scmp.eq.s32.totalorder %s28, 0
      %p70 = por %p68, %p69
      %p71 = scmp.ne.s32.totalorder %s59, %s60
      %p72 = scmp.eq.s32.totalorder %s29, 3
      %p73 = por %p71, %p72
      %p75 = scmp.ne.s32.totalorder %s60, %s74
      %p76 = scmp.eq.s32.totalorder %s29, 0
      %p77 = por %p75, %p76
      %s78 = ssub.s32 %s23, %s30
      %p79 = scmp.eq.s32.totalorder %s78, 0
      %s81 = sadd.s32 %s80, 1
      %s82 = scalar_select %p79, %s80, %s81
      %p85 = pneg %p79
      %p86 = scmp.eq.s32.totalorder %s23, 3
      %p87 = por %p85, %p86
      %p88 = scmp.ne.s32.totalorder %s80, %s83
      %p89 = scmp.eq.s32.totalorder %s23, 0
      %p90 = por %p88, %p89
      %p91 = scmp.ne.s32.totalorder %s80, %s83
      %p92 = scmp.eq.s32.totalorder %s28, 3
      %p93 = por %p91, %p92
      %p94 = scmp.ne.s32.totalorder %s83, %s84
      %p95 = scmp.eq.s32.totalorder %s28, 0
      %p96 = por %p94, %p95
      %p97 = scmp.ne.s32.totalorder %s83, %s84
      %p98 = scmp.eq.s32.totalorder %s29, 3
      %p99 = por %p97, %p98
      %p101 = scmp.ne.s32.totalorder %s84, %s100
      %p102 = scmp.eq.s32.totalorder %s29, 0
      %p103 = por %p101, %p102
      %s104 = ssub.s32 %s23, %s30
      %p105 = scmp.eq.s32.totalorder %s104, 0
      %s107 = sadd.s32 %s106, 1
      %s108 = scalar_select %p105, %s106, %s107
      %p111 = pneg %p105
      %p112 = scmp.eq.s32.totalorder %s23, 3
      %p113 = por %p111, %p112
      %p114 = scmp.ne.s32.totalorder %s106, %s109
      %p115 = scmp.eq.s32.totalorder %s23, 0
      %p116 = por %p114, %p115
      %p117 = scmp.ne.s32.totalorder %s106, %s109
      %p118 = scmp.eq.s32.totalorder %s28, 3
      %p119 = por %p117, %p118
      %p120 = scmp.ne.s32.totalorder %s109, %s110
      %p121 = scmp.eq.s32.totalorder %s28, 0
      %p122 = por %p120, %p121
      %p123 = scmp.ne.s32.totalorder %s109, %s110
      %p124 = scmp.eq.s32.totalorder %s29, 3
      %p125 = por %p123, %p124
      %p127 = scmp.ne.s32.totalorder %s110, %s126
      %p128 = scmp.eq.s32.totalorder %s29, 0
      %p129 = por %p127, %p128
      %s131 = sadd.s32 %s130, 1
      %p134 = scmp.eq.s32.totalorder %s23, 3
      %p135 = scmp.ne.s32.totalorder %s130, %s132
      %p136 = scmp.eq.s32.totalorder %s23, 0
      %p137 = por %p135, %p136
      %p138 = scmp.ne.s32.totalorder %s130, %s132
      %p139 = scmp.eq.s32.totalorder %s28, 3
      %p140 = por %p138, %p139
      %p141 = scmp.ne.s32.totalorder %s132, %s133
      %p142 = scmp.eq.s32.totalorder %s28, 0
      %p143 = por %p141, %p142
      %p144 = scmp.ne.s32.totalorder %s132, %s133
      %p145 = scmp.eq.s32.totalorder %s29, 3
      %p146 = por %p144, %p145
      %p148 = scmp.ne.s32.totalorder %s133, %s147
      %p149 = scmp.eq.s32.totalorder %s29, 0
      %p150 = por %p148, %p149
      %s152 = sadd.s32 %s151, 1
      %p155 = scmp.eq.s32.totalorder %s23, 3
      %p156 = scmp.ne.s32.totalorder %s151, %s153
      %p157 = scmp.eq.s32.totalorder %s23, 0
      %p158 = por %p156, %p157
      %p159 = scmp.ne.s32.totalorder %s151, %s153
      %p160 = scmp.eq.s32.totalorder %s28, 3
      %p161 = por %p159, %p160
      %p162 = scmp.ne.s32.totalorder %s153, %s154
      %p163 = scmp.eq.s32.totalorder %s28, 0
      %p164 = por %p162, %p163
      %p165 = scmp.ne.s32.totalorder %s153, %s154
      %p166 = scmp.eq.s32.totalorder %s29, 3
      %p167 = por %p165, %p166
      %p169 = scmp.ne.s32.totalorder %s154, %s168
      %p170 = scmp.eq.s32.totalorder %s29, 0
      %p171 = por %p169, %p170
      %s173 = sadd.s32 %s172, 1
      %p176 = scmp.eq.s32.totalorder %s23, 3
      %p177 = scmp.ne.s32.totalorder %s172, %s174
      %p178 = scmp.eq.s32.totalorder %s23, 0
      %p179 = por %p177, %p178
      %p180 = scmp.ne.s32.totalorder %s172, %s174
      %p181 = scmp.eq.s32.totalorder %s28, 3
      %p182 = por %p180, %p181
      %p183 = scmp.ne.s32.totalorder %s174, %s175
      %p184 = scmp.eq.s32.totalorder %s28, 0
      %p185 = por %p183, %p184
      %p186 = scmp.ne.s32.totalorder %s174, %s175
      %p187 = scmp.eq.s32.totalorder %s29, 3
      %p188 = por %p186, %p187
      %p190 = scmp.ne.s32.totalorder %s175, %s189
      %p191 = scmp.eq.s32.totalorder %s29, 0
      %p192 = por %p190, %p191
      %s194 = sadd.s32 %s193, 1
      %p197 = scmp.eq.s32.totalorder %s23, 3
      %p198 = scmp.ne.s32.totalorder %s193, %s195
      %p199 = scmp.eq.s32.totalorder %s23, 0
      %p200 = por %p198, %p199
      %p201 = scmp.ne.s32.totalorder %s193, %s195
      %p202 = scmp.eq.s32.totalorder %s28, 3
      %p203 = por %p201, %p202
      %p204 = scmp.ne.s32.totalorder %s195, %s196
      %p205 = scmp.eq.s32.totalorder %s28, 0
      %p206 = por %p204, %p205
      %p207 = scmp.ne.s32.totalorder %s195, %s196
      %p208 = scmp.eq.s32.totalorder %s29, 3
      %p209 = por %p207, %p208
      %p211 = scmp.ne.s32.totalorder %s196, %s210
      %p212 = scmp.eq.s32.totalorder %s29, 0
      %p213 = por %p211, %p212
      %s214 = ssub.s32 %s23, %s30
      %p215 = scmp.eq.s32.totalorder %s214, 0
      %s217 = sadd.s32 %s216, 1
      %s218 = scalar_select %p215, %s216, %s217
      %p221 = pneg %p215
      %p222 = scmp.eq.s32.totalorder %s23, 3
      %p223 = por %p221, %p222
      %p224 = scmp.ne.s32.totalorder %s216, %s219
      %p225 = scmp.eq.s32.totalorder %s23, 0
      %p226 = por %p224, %p225
      %p227 = scmp.ne.s32.totalorder %s216, %s219
      %p228 = scmp.eq.s32.totalorder %s28, 3
      %p229 = por %p227, %p228
      %p230 = scmp.ne.s32.totalorder %s219, %s220
      %p231 = scmp.eq.s32.totalorder %s28, 0
      %p232 = por %p230, %p231
      %p233 = scmp.ne.s32.totalorder %s219, %s220
      %p234 = scmp.eq.s32.totalorder %s29, 3
      %p235 = por %p233, %p234
      %p237 = scmp.ne.s32.totalorder %s220, %s236
      %p238 = scmp.eq.s32.totalorder %s29, 0
      %p239 = por %p237, %p238
      %p240 = scmp.le.s32.totalorder 1, %s23
      %p241 = scmp.lt.s32.totalorder %s23, 5
      %p242 = pnand %p240, %p241
      %p243 = pneg %p242
      // Predicated region
      $region9: #{tide_block_forward.3} parent=5 // pred_check
        _
      $region10: #{tide_block_forward.3} parent=5 // pred_check_branch
        %245 = sbr.rel (%p242) target = $region12
      $region11: #{tide_block_forward.3} parent=5 // pred_region
        %s246 = ssub.s32 %s23, 1
        // Predicated region
        $region13: #{tide_block_forward.3} parent=11 // pred_check
          %p247 = pneg %p70
        $region14: #{tide_block_forward.3} parent=11 // pred_check_branch
          %249 = sbr.rel (%p247) target = $region16
        $region15: #{tide_block_forward.3} parent=11 // pred_region
          %s251 = ssub.s32 4096, 4096
          %252 = vsyncadd [#allocation6], %s251
          %s253 = sshll.u32 [#allocation5], 4
          %s254 = int_to_ptr.vmem [resolvable:$true] %s253
          %259 = dma.hbm_to_vmem [thread:$0]  %s1, 4096, %s254, [#allocation6], 64, 64, 4
        $region16: #{tide_block_forward.3} parent=11 // pred_fallthru
          _
        // Predicated region
        $region17: #{tide_block_forward.3} parent=11 // pred_check
          %p260 = pneg %p143
        $region18: #{tide_block_forward.3} parent=11 // pred_check_branch
          %262 = sbr.rel (%p260) target = $region20
        $region19: #{tide_block_forward.3} parent=11 // pred_region
          %s264 = ssub.s32 16, 16
          %265 = vsyncadd [#allocation6], %s264
          %s267 = sshll.u32 [#allocation9], 4
          %s268 = int_to_ptr.vmem [resolvable:$true] %s267
          %270 = dma.hbm_to_vmem [thread:$0]  %s4, 16, %s268, [#allocation6]
        $region20: #{tide_block_forward.3} parent=11 // pred_fallthru
          _
        // Predicated region
        $region21: #{tide_block_forward.3} parent=11 // pred_check
          %p271 = pneg %p164
        $region22: #{tide_block_forward.3} parent=11 // pred_check_branch
          %273 = sbr.rel (%p271) target = $region24
        $region23: #{tide_block_forward.3} parent=11 // pred_region
          %s275 = ssub.s32 1024, 1024
          %276 = vsyncadd [#allocation11], %s275
          %s277 = sshll.u32 [#allocation10], 4
          %s278 = int_to_ptr.vmem [resolvable:$true] %s277
          %283 = dma.hbm_to_vmem [thread:$0]  %s5, 1024, %s278, [#allocation11], 64, 64, 4
        $region24: #{tide_block_forward.3} parent=11 // pred_fallthru
          _
        // Predicated region
        $region25: #{tide_block_forward.3} parent=11 // pred_check
          %p284 = pneg %p185
        $region26: #{tide_block_forward.3} parent=11 // pred_check_branch
          %286 = sbr.rel (%p284) target = $region28
        $region27: #{tide_block_forward.3} parent=11 // pred_region
          %s288 = ssub.s32 1024, 1024
          %289 = vsyncadd [#allocation11], %s288
          %s290 = sshll.u32 [#allocation12], 4
          %s291 = int_to_ptr.vmem [resolvable:$true] %s290
          %296 = dma.hbm_to_vmem [thread:$0]  %s6, 1024, %s291, [#allocation11], 64, 64, 4
        $region28: #{tide_block_forward.3} parent=11 // pred_fallthru
          _
        // Predicated region
        $region29: #{tide_block_forward.3} parent=11 // pred_check
          %p297 = pneg %p206
        $region30: #{tide_block_forward.3} parent=11 // pred_check_branch
          %299 = sbr.rel (%p297) target = $region32
        $region31: #{tide_block_forward.3} parent=11 // pred_region
          %s301 = ssub.s32 16, 16
          %302 = vsyncadd [#allocation14], %s301
          %s304 = sshll.u32 [#allocation13], 4
          %s305 = int_to_ptr.vmem [resolvable:$true] %s304
          %307 = dma.hbm_to_vmem [thread:$0]  %s7, 16, %s305, [#allocation14]
        $region32: #{tide_block_forward.3} parent=11 // pred_fallthru
          _
      $region12: #{tide_block_forward.3} parent=5 // pred_fallthru
        _
      %p308 = scmp.lt.s32.totalorder %s23, 4
      // Predicated region
      $region33: #{tide_block_forward.3} parent=5 // pred_check
        %p309 = pneg %p308
      $region34: #{tide_block_forward.3} parent=5 // pred_check_branch
        %311 = sbr.rel (%p309) target = $region36
      $region35: #{tide_block_forward.3} parent=5 // pred_region
        // Predicated region
        $region37: #{tide_block_forward.3} parent=35 // pred_check
          %p312 = pneg %p43
        $region38: #{tide_block_forward.3} parent=35 // pred_check_branch
          %314 = sbr.rel (%p312) target = $region40
        $region39: #{tide_block_forward.3} parent=35 // pred_region
          %s315 = sand.u32 %s23, 1
          %s316 = scalar_lea.sflag [#allocation3], %s315
          %s317 = sand.u32 %s33, 1
          %s318 = smul.addr %s317, 256
          %s319 = scalar_lea.vmem [#allocation2], %s318
          %s320 = smul.u32 16, %s23
          %s322 = ssub.s32 4096, 4096
          %323 = vsyncadd %s316, %s322
          %s324 = smul.addr %s320, 4
          %s325 = smul.addr %s324, 64
          %s326 = scalar_lea.hbm %s0, %s325
          %s327 = sshll.u32 %s319, 4
          %s328 = int_to_ptr.vmem [resolvable:$true] %s327
          %333 = dma.hbm_to_vmem [thread:$0]  %s326, 4096, %s328, %s316, 256, 256, 16
        $region40: #{tide_block_forward.3} parent=35 // pred_fallthru
          _
        // Predicated region
        $region41: #{tide_block_forward.3} parent=35 // pred_check
          %p334 = pneg %p90
        $region42: #{tide_block_forward.3} parent=35 // pred_check_branch
          %336 = sbr.rel (%p334) target = $region44
        $region43: #{tide_block_forward.3} parent=35 // pred_region
          %s337 = sand.u32 %s23, 1
          %s338 = scalar_lea.sflag [#allocation3], %s337
          %s339 = sand.u32 %s80, 1
          %s340 = smul.addr %s339, 64
          %s341 = scalar_lea.vmem [#allocation7], %s340
          %s342 = smul.u32 16, %s23
          %s344 = ssub.s32 1024, 1024
          %345 = vsyncadd %s338, %s344
          %s346 = smul.addr %s342, 64
          %s347 = scalar_lea.hbm %s2, %s346
          %s348 = sshll.u32 %s341, 4
          %s349 = int_to_ptr.vmem [resolvable:$true] %s348
          %354 = dma.hbm_to_vmem [thread:$0]  %s347, 1024, %s349, %s338, 64, 64, 4
        $region44: #{tide_block_forward.3} parent=35 // pred_fallthru
          _
        // Predicated region
        $region45: #{tide_block_forward.3} parent=35 // pred_check
          %p355 = pneg %p116
        $region46: #{tide_block_forward.3} parent=35 // pred_check_branch
          %357 = sbr.rel (%p355) target = $region48
        $region47: #{tide_block_forward.3} parent=35 // pred_region
          %s358 = sand.u32 %s23, 1
          %s359 = scalar_lea.sflag [#allocation3], %s358
          %s360 = sand.u32 %s106, 1
          %s361 = smul.addr %s360, 128
          %s362 = scalar_lea.vmem [#allocation8], %s361
          %s363 = smul.u32 16, %s23
          %s365 = ssub.s32 2048, 2048
          %366 = vsyncadd %s359, %s365
          %s367 = smul.addr %s363, 128
          %s368 = scalar_lea.hbm %s3, %s367
          %s369 = sshll.u32 %s362, 4
          %s370 = int_to_ptr.vmem [resolvable:$true] %s369
          %375 = dma.hbm_to_vmem [thread:$0]  %s368, 2048, %s370, %s359, 128, 128, 8
        $region48: #{tide_block_forward.3} parent=35 // pred_fallthru
          _
      $region36: #{tide_block_forward.3} parent=5 // pred_fallthru
        _
      %p376 = scmp.le.s32.totalorder 1, %s23
      %p377 = scmp.lt.s32.totalorder %s23, 5
      %p378 = pnand %p376, %p377
      %p379 = pneg %p378
      // Predicated region
      $region49: #{tide_block_forward.3} parent=5 // pred_check
        _
      $region50: #{tide_block_forward.3} parent=5 // pred_check_branch
        %381 = sbr.rel (%p378) target = $region52
      $region51: #{tide_block_forward.3} parent=5 // pred_region
        %s382 = ssub.s32 %s23, 1
        %s383 = sand.u32 %s28, 1
        %s384 = scalar_lea.sflag [#allocation3], %s383
        %s385 = sand.u32 %s36, 1
        %s386 = smul.addr %s385, 256
        %s387 = scalar_lea.vmem [#allocation2], %s386
        // Predicated region
        $region53: #{tide_block_forward.3} parent=51 // pred_check
          %p388 = pneg %p49
        $region54: #{tide_block_forward.3} parent=51 // pred_check_branch
          %390 = sbr.rel (%p388) target = $region56
        $region55: #{tide_block_forward.3} parent=51 // pred_region
          %391 = dma.done %s384, 4096
        $region56: #{tide_block_forward.3} parent=51 // pred_fallthru
          _
        // Predicated region
        $region57: #{tide_block_forward.3} parent=51 // pred_check
          %p392 = pneg %p70
        $region58: #{tide_block_forward.3} parent=51 // pred_check_branch
          %394 = sbr.rel (%p392) target = $region60
        $region59: #{tide_block_forward.3} parent=51 // pred_region
          %395 = dma.done [#allocation6], 4096
        $region60: #{tide_block_forward.3} parent=51 // pred_fallthru
          _
        %s396 = sand.u32 %s28, 1
        %s397 = scalar_lea.sflag [#allocation3], %s396
        %s398 = sand.u32 %s83, 1
        %s399 = smul.addr %s398, 64
        %s400 = scalar_lea.vmem [#allocation7], %s399
        // Predicated region
        $region61: #{tide_block_forward.3} parent=51 // pred_check
          %p401 = pneg %p96
        $region62: #{tide_block_forward.3} parent=51 // pred_check_branch
          %403 = sbr.rel (%p401) target = $region64
        $region63: #{tide_block_forward.3} parent=51 // pred_region
          %404 = dma.done %s397, 1024
        $region64: #{tide_block_forward.3} parent=51 // pred_fallthru
          _
        %s405 = sand.u32 %s28, 1
        %s406 = scalar_lea.sflag [#allocation3], %s405
        %s407 = sand.u32 %s109, 1
        %s408 = smul.addr %s407, 128
        %s409 = scalar_lea.vmem [#allocation8], %s408
        // Predicated region
        $region65: #{tide_block_forward.3} parent=51 // pred_check
          %p410 = pneg %p122
        $region66: #{tide_block_forward.3} parent=51 // pred_check_branch
          %412 = sbr.rel (%p410) target = $region68
        $region67: #{tide_block_forward.3} parent=51 // pred_region
          %413 = dma.done %s406, 2048
        $region68: #{tide_block_forward.3} parent=51 // pred_fallthru
          _
        // Predicated region
        $region69: #{tide_block_forward.3} parent=51 // pred_check
          %p414 = pneg %p143
        $region70: #{tide_block_forward.3} parent=51 // pred_check_branch
          %416 = sbr.rel (%p414) target = $region72
        $region71: #{tide_block_forward.3} parent=51 // pred_region
          %417 = dma.done [#allocation6], 16
        $region72: #{tide_block_forward.3} parent=51 // pred_fallthru
          _
        // Predicated region
        $region73: #{tide_block_forward.3} parent=51 // pred_check
          %p418 = pneg %p164
        $region74: #{tide_block_forward.3} parent=51 // pred_check_branch
          %420 = sbr.rel (%p418) target = $region76
        $region75: #{tide_block_forward.3} parent=51 // pred_region
          %421 = dma.done [#allocation11], 1024
        $region76: #{tide_block_forward.3} parent=51 // pred_fallthru
          _
        // Predicated region
        $region77: #{tide_block_forward.3} parent=51 // pred_check
          %p422 = pneg %p185
        $region78: #{tide_block_forward.3} parent=51 // pred_check_branch
          %424 = sbr.rel (%p422) target = $region80
        $region79: #{tide_block_forward.3} parent=51 // pred_region
          %425 = dma.done [#allocation11], 1024
        $region80: #{tide_block_forward.3} parent=51 // pred_fallthru
          _
        // Predicated region
        $region81: #{tide_block_forward.3} parent=51 // pred_check
          %p426 = pneg %p206
        $region82: #{tide_block_forward.3} parent=51 // pred_check_branch
          %428 = sbr.rel (%p426) target = $region84
        $region83: #{tide_block_forward.3} parent=51 // pred_region
          %429 = dma.done [#allocation14], 16
        $region84: #{tide_block_forward.3} parent=51 // pred_fallthru
          _
        %s430 = sand.u32 %s28, 1
        %s431 = scalar_lea.sflag [#allocation3], %s430
        %s432 = sand.u32 %s36, 1
        %s433 = smul.addr %s432, 256
        %s434 = scalar_lea.vmem [#allocation2], %s433
        %p435 = pneg %p49
        %p436 = pneg %p46
        %p437 = pneg %p70
        %p438 = pneg %p67
        %s439 = sand.u32 %s28, 1
        %s440 = scalar_lea.sflag [#allocation3], %s439
        %s441 = sand.u32 %s83, 1
        %s442 = smul.addr %s441, 64
        %s443 = scalar_lea.vmem [#allocation7], %s442
        %p444 = pneg %p96
        %p445 = pneg %p93
        %s446 = sand.u32 %s28, 1
        %s447 = scalar_lea.sflag [#allocation3], %s446
        %s448 = sand.u32 %s109, 1
        %s449 = smul.addr %s448, 128
        %s450 = scalar_lea.vmem [#allocation8], %s449
        %p451 = pneg %p122
        %p452 = pneg %p119
        %p453 = pneg %p143
        %p454 = pneg %p140
        %p455 = pneg %p164
        %p456 = pneg %p161
        %p457 = pneg %p185
        %p458 = pneg %p182
        %p459 = pneg %p206
        %p460 = pneg %p203
        %p461 = pneg %p232
        %p462 = pneg %p229
        %s463 = sand.u32 %s219, 1
        %s464 = scalar_lea.sflag [#allocation4], %s463
        %s465 = sand.u32 %s219, 1
        %s466 = smul.addr %s465, 128
        %s467 = scalar_lea.vmem [#allocation15], %s466
        %s468 = smul.u32 16, %s28
        %s469 = smul.u32 16, %s28
        %s470 = smul.u32 16, %s28
        %s471 = smul.u32 16, %s28
        %v473 = vld [vmem:[%s387] sm:$0xff]
        %v474 = vld [vmem:[%s387 + $0x8] sm:$0xff]
        %v475 = vld [vmem:[%s387 + $0x10] sm:$0xff]
        %v476 = vld [vmem:[%s387 + $0x18] sm:$0xff]
        %v477 = vld [vmem:[%s387 + $0x20] sm:$0xff]
        %v478 = vld [vmem:[%s387 + $0x28] sm:$0xff]
        %v479 = vld [vmem:[%s387 + $0x30] sm:$0xff]
        %v480 = vld [vmem:[%s387 + $0x38] sm:$0xff]
        %v481 = vld [vmem:[%s387 + $0x40] sm:$0xff]
        %v482 = vld [vmem:[%s387 + $0x48] sm:$0xff]
        %v483 = vld [vmem:[%s387 + $0x50] sm:$0xff]
        %v484 = vld [vmem:[%s387 + $0x58] sm:$0xff]
        %v485 = vld [vmem:[%s387 + $0x60] sm:$0xff]
        %v486 = vld [vmem:[%s387 + $0x68] sm:$0xff]
        %v487 = vld [vmem:[%s387 + $0x70] sm:$0xff]
        %v488 = vld [vmem:[%s387 + $0x78] sm:$0xff]
        %v489 = vld [vmem:[%s387 + $0x80] sm:$0xff]
        %v490 = vld [vmem:[%s387 + $0x88] sm:$0xff]
        %v491 = vld [vmem:[%s387 + $0x90] sm:$0xff]
        %v492 = vld [vmem:[%s387 + $0x98] sm:$0xff]
        %v493 = vld [vmem:[%s387 + $0xa0] sm:$0xff]
        %v494 = vld [vmem:[%s387 + $0xa8] sm:$0xff]
        %v495 = vld [vmem:[%s387 + $0xb0] sm:$0xff]
        %v496 = vld [vmem:[%s387 + $0xb8] sm:$0xff]
        %v497 = vld [vmem:[%s387 + $0xc0] sm:$0xff]
        %v498 = vld [vmem:[%s387 + $0xc8] sm:$0xff]
        %v499 = vld [vmem:[%s387 + $0xd0] sm:$0xff]
        %v500 = vld [vmem:[%s387 + $0xd8] sm:$0xff]
        %v501 = vld [vmem:[%s387 + $0xe0] sm:$0xff]
        %v502 = vld [vmem:[%s387 + $0xe8] sm:$0xff]
        %v503 = vld [vmem:[%s387 + $0xf0] sm:$0xff]
        %v504 = vld [vmem:[%s387 + $0xf8] sm:$0xff]
        %v505 = vld [vmem:[#allocation5] sm:$0xf]
        %v506 = vld [vmem:[#allocation5 + $0x4] sm:$0xf]
        %v507 = vld [vmem:[#allocation5 + $0x8] sm:$0xf]
        %v508 = vld [vmem:[#allocation5 + $0xc] sm:$0xf]
        %v509 = vld [vmem:[#allocation5 + $0x10] sm:$0xf]
        %v510 = vld [vmem:[#allocation5 + $0x14] sm:$0xf]
        %v511 = vld [vmem:[#allocation5 + $0x18] sm:$0xf]
        %v512 = vld [vmem:[#allocation5 + $0x1c] sm:$0xf]
        %v513 = vld [vmem:[#allocation5 + $0x20] sm:$0xf]
        %v514 = vld [vmem:[#allocation5 + $0x24] sm:$0xf]
        %v515 = vld [vmem:[#allocation5 + $0x28] sm:$0xf]
        %v516 = vld [vmem:[#allocation5 + $0x2c] sm:$0xf]
        %v517 = vld [vmem:[#allocation5 + $0x30] sm:$0xf]
        %v518 = vld [vmem:[#allocation5 + $0x34] sm:$0xf]
        %v519 = vld [vmem:[#allocation5 + $0x38] sm:$0xf]
        %v520 = vld [vmem:[#allocation5 + $0x3c] sm:$0xf]
        %v521 = vld [vmem:[#allocation5 + $0x40] sm:$0xf]
        %v522 = vld [vmem:[#allocation5 + $0x44] sm:$0xf]
        %v523 = vld [vmem:[#allocation5 + $0x48] sm:$0xf]
        %v524 = vld [vmem:[#allocation5 + $0x4c] sm:$0xf]
        %v525 = vld [vmem:[#allocation5 + $0x50] sm:$0xf]
        %v526 = vld [vmem:[#allocation5 + $0x54] sm:$0xf]
        %v527 = vld [vmem:[#allocation5 + $0x58] sm:$0xf]
        %v528 = vld [vmem:[#allocation5 + $0x5c] sm:$0xf]
        %v529 = vld [vmem:[#allocation5 + $0x60] sm:$0xf]
        %v530 = vld [vmem:[#allocation5 + $0x64] sm:$0xf]
        %v531 = vld [vmem:[#allocation5 + $0x68] sm:$0xf]
        %v532 = vld [vmem:[#allocation5 + $0x6c] sm:$0xf]
        %v533 = vld [vmem:[#allocation5 + $0x70] sm:$0xf]
        %v534 = vld [vmem:[#allocation5 + $0x74] sm:$0xf]
        %v535 = vld [vmem:[#allocation5 + $0x78] sm:$0xf]
        %v536 = vld [vmem:[#allocation5 + $0x7c] sm:$0xf]
        %v537 = vld [vmem:[#allocation5 + $0x80] sm:$0xf]
        %v538 = vld [vmem:[#allocation5 + $0x84] sm:$0xf]
        %v539 = vld [vmem:[#allocation5 + $0x88] sm:$0xf]
        %v540 = vld [vmem:[#allocation5 + $0x8c] sm:$0xf]
        %v541 = vld [vmem:[#allocation5 + $0x90] sm:$0xf]
        %v542 = vld [vmem:[#allocation5 + $0x94] sm:$0xf]
        %v543 = vld [vmem:[#allocation5 + $0x98] sm:$0xf]
        %v544 = vld [vmem:[#allocation5 + $0x9c] sm:$0xf]
        %v545 = vld [vmem:[#allocation5 + $0xa0] sm:$0xf]
        %v546 = vld [vmem:[#allocation5 + $0xa4] sm:$0xf]
        %v547 = vld [vmem:[#allocation5 + $0xa8] sm:$0xf]
        %v548 = vld [vmem:[#allocation5 + $0xac] sm:$0xf]
        %v549 = vld [vmem:[#allocation5 + $0xb0] sm:$0xf]
        %v550 = vld [vmem:[#allocation5 + $0xb4] sm:$0xf]
        %v551 = vld [vmem:[#allocation5 + $0xb8] sm:$0xf]
        %v552 = vld [vmem:[#allocation5 + $0xbc] sm:$0xf]
        %v553 = vld [vmem:[#allocation5 + $0xc0] sm:$0xf]
        %v554 = vld [vmem:[#allocation5 + $0xc4] sm:$0xf]
        %v555 = vld [vmem:[#allocation5 + $0xc8] sm:$0xf]
        %v556 = vld [vmem:[#allocation5 + $0xcc] sm:$0xf]
        %v557 = vld [vmem:[#allocation5 + $0xd0] sm:$0xf]
        %v558 = vld [vmem:[#allocation5 + $0xd4] sm:$0xf]
        %v559 = vld [vmem:[#allocation5 + $0xd8] sm:$0xf]
        %v560 = vld [vmem:[#allocation5 + $0xdc] sm:$0xf]
        %v561 = vld [vmem:[#allocation5 + $0xe0] sm:$0xf]
        %v562 = vld [vmem:[#allocation5 + $0xe4] sm:$0xf]
        %v563 = vld [vmem:[#allocation5 + $0xe8] sm:$0xf]
        %v564 = vld [vmem:[#allocation5 + $0xec] sm:$0xf]
        %v565 = vld [vmem:[#allocation5 + $0xf0] sm:$0xf]
        %v566 = vld [vmem:[#allocation5 + $0xf4] sm:$0xf]
        %v567 = vld [vmem:[#allocation5 + $0xf8] sm:$0xf]
        %v568 = vld [vmem:[#allocation5 + $0xfc] sm:$0xf]
        %v569 = vld [vmem:[#allocation9] sm:$0x1]
        %v571 = vlaneseq
        %v572 = vshrl.u32 %v571, 7
        %v573 = vsub.s32 0, %v572
        %v574 = vrot.slane %v569, %v573
        %v608 = vunpack.c.l.b16 %v473
        %v609 = vunpack.c.h.b16 %v473
        %v610 = vunpack.c.l.b16 %v474
        %v611 = vunpack.c.h.b16 %v474
        %v612 = vunpack.c.l.b16 %v475
        %v613 = vunpack.c.h.b16 %v475
        %v614 = vunpack.c.l.b16 %v476
        %v615 = vunpack.c.h.b16 %v476
        %v616 = vunpack.c.l.b16 %v477
        %v617 = vunpack.c.h.b16 %v477
        %v618 = vunpack.c.l.b16 %v478
        %v619 = vunpack.c.h.b16 %v478
        %v620 = vunpack.c.l.b16 %v479
        %v621 = vunpack.c.h.b16 %v479
        %v622 = vunpack.c.l.b16 %v480
        %v623 = vunpack.c.h.b16 %v480
        %v624 = vunpack.c.l.b16 %v481
        %v625 = vunpack.c.h.b16 %v481
        %v626 = vunpack.c.l.b16 %v482
        %v627 = vunpack.c.h.b16 %v482
        %v628 = vunpack.c.l.b16 %v483
        %v629 = vunpack.c.h.b16 %v483
        %v630 = vunpack.c.l.b16 %v484
        %v631 = vunpack.c.h.b16 %v484
        %v632 = vunpack.c.l.b16 %v485
        %v633 = vunpack.c.h.b16 %v485
        %v634 = vunpack.c.l.b16 %v486
        %v635 = vunpack.c.h.b16 %v486
        %v636 = vunpack.c.l.b16 %v487
        %v637 = vunpack.c.h.b16 %v487
        %v638 = vunpack.c.l.b16 %v488
        %v639 = vunpack.c.h.b16 %v488
        %v640 = vunpack.c.l.b16 %v489
        %v641 = vunpack.c.h.b16 %v489
        %v642 = vunpack.c.l.b16 %v490
        %v643 = vunpack.c.h.b16 %v490
        %v644 = vunpack.c.l.b16 %v491
        %v645 = vunpack.c.h.b16 %v491
        %v646 = vunpack.c.l.b16 %v492
        %v647 = vunpack.c.h.b16 %v492
        %v648 = vunpack.c.l.b16 %v493
        %v649 = vunpack.c.h.b16 %v493
        %v650 = vunpack.c.l.b16 %v494
        %v651 = vunpack.c.h.b16 %v494
        %v652 = vunpack.c.l.b16 %v495
        %v653 = vunpack.c.h.b16 %v495
        %v654 = vunpack.c.l.b16 %v496
        %v655 = vunpack.c.h.b16 %v496
        %v656 = vunpack.c.l.b16 %v497
        %v657 = vunpack.c.h.b16 %v497
        %v658 = vunpack.c.l.b16 %v498
        %v659 = vunpack.c.h.b16 %v498
        %v660 = vunpack.c.l.b16 %v499
        %v661 = vunpack.c.h.b16 %v499
        %v662 = vunpack.c.l.b16 %v500
        %v663 = vunpack.c.h.b16 %v500
        %v664 = vunpack.c.l.b16 %v501
        %v665 = vunpack.c.h.b16 %v501
        %v666 = vunpack.c.l.b16 %v502
        %v667 = vunpack.c.h.b16 %v502
        %v668 = vunpack.c.l.b16 %v503
        %v669 = vunpack.c.h.b16 %v503
        %v670 = vunpack.c.l.b16 %v504
        %v671 = vunpack.c.h.b16 %v504
        %v672 = vpack.c.b16 %v612, %v608
        %v673 = vpack.c.b16 %v613, %v609
        %v674 = vpack.c.b16 %v614, %v610
        %v675 = vpack.c.b16 %v615, %v611
        %v676 = vpack.c.b16 %v620, %v616
        %v677 = vpack.c.b16 %v621, %v617
        %v678 = vpack.c.b16 %v622, %v618
        %v679 = vpack.c.b16 %v623, %v619
        %v680 = vpack.c.b16 %v628, %v624
        %v681 = vpack.c.b16 %v629, %v625
        %v682 = vpack.c.b16 %v630, %v626
        %v683 = vpack.c.b16 %v631, %v627
        %v684 = vpack.c.b16 %v636, %v632
        %v685 = vpack.c.b16 %v637, %v633
        %v686 = vpack.c.b16 %v638, %v634
        %v687 = vpack.c.b16 %v639, %v635
        %v688 = vpack.c.b16 %v644, %v640
        %v689 = vpack.c.b16 %v645, %v641
        %v690 = vpack.c.b16 %v646, %v642
        %v691 = vpack.c.b16 %v647, %v643
        %v692 = vpack.c.b16 %v652, %v648
        %v693 = vpack.c.b16 %v653, %v649
        %v694 = vpack.c.b16 %v654, %v650
        %v695 = vpack.c.b16 %v655, %v651
        %v696 = vpack.c.b16 %v660, %v656
        %v697 = vpack.c.b16 %v661, %v657
        %v698 = vpack.c.b16 %v662, %v658
        %v699 = vpack.c.b16 %v663, %v659
        %v700 = vpack.c.b16 %v668, %v664
        %v701 = vpack.c.b16 %v669, %v665
        %v702 = vpack.c.b16 %v670, %v666
        %v703 = vpack.c.b16 %v671, %v667
        %v800 = vunpack.c.l.b16 %v505
        %v801 = vunpack.c.l.b16 %v506
        %v802 = vunpack.c.l.b16 %v507
        %v803 = vunpack.c.l.b16 %v508
        %v804 = vunpack.c.l.b16 %v509
        %v805 = vunpack.c.l.b16 %v510
        %v806 = vunpack.c.l.b16 %v511
        %v807 = vunpack.c.l.b16 %v512
        %v808 = vunpack.c.l.b16 %v513
        %v809 = vunpack.c.l.b16 %v514
        %v810 = vunpack.c.l.b16 %v515
        %v811 = vunpack.c.l.b16 %v516
        %v812 = vunpack.c.l.b16 %v517
        %v813 = vunpack.c.l.b16 %v518
        %v814 = vunpack.c.l.b16 %v519
        %v815 = vunpack.c.l.b16 %v520
        %v816 = vunpack.c.l.b16 %v521
        %v817 = vunpack.c.l.b16 %v522
        %v818 = vunpack.c.l.b16 %v523
        %v819 = vunpack.c.l.b16 %v524
        %v820 = vunpack.c.l.b16 %v525
        %v821 = vunpack.c.l.b16 %v526
        %v822 = vunpack.c.l.b16 %v527
        %v823 = vunpack.c.l.b16 %v528
        %v824 = vunpack.c.l.b16 %v529
        %v825 = vunpack.c.l.b16 %v530
        %v826 = vunpack.c.l.b16 %v531
        %v827 = vunpack.c.l.b16 %v532
        %v828 = vunpack.c.l.b16 %v533
        %v829 = vunpack.c.l.b16 %v534
        %v830 = vunpack.c.l.b16 %v535
        %v831 = vunpack.c.l.b16 %v536
        %v832 = vunpack.c.l.b16 %v537
        %v833 = vunpack.c.l.b16 %v538
        %v834 = vunpack.c.l.b16 %v539
        %v835 = vunpack.c.l.b16 %v540
        %v836 = vunpack.c.l.b16 %v541
        %v837 = vunpack.c.l.b16 %v542
        %v838 = vunpack.c.l.b16 %v543
        %v839 = vunpack.c.l.b16 %v544
        %v840 = vunpack.c.l.b16 %v545
        %v841 = vunpack.c.l.b16 %v546
        %v842 = vunpack.c.l.b16 %v547
        %v843 = vunpack.c.l.b16 %v548
        %v844 = vunpack.c.l.b16 %v549
        %v845 = vunpack.c.l.b16 %v550
        %v846 = vunpack.c.l.b16 %v551
        %v847 = vunpack.c.l.b16 %v552
        %v848 = vunpack.c.l.b16 %v553
        %v849 = vunpack.c.l.b16 %v554
        %v850 = vunpack.c.l.b16 %v555
        %v851 = vunpack.c.l.b16 %v556
        %v852 = vunpack.c.l.b16 %v557
        %v853 = vunpack.c.l.b16 %v558
        %v854 = vunpack.c.l.b16 %v559
        %v855 = vunpack.c.l.b16 %v560
        %v856 = vunpack.c.l.b16 %v561
        %v857 = vunpack.c.l.b16 %v562
        %v858 = vunpack.c.l.b16 %v563
        %v859 = vunpack.c.l.b16 %v564
        %v860 = vunpack.c.l.b16 %v565
        %v861 = vunpack.c.l.b16 %v566
        %v862 = vunpack.c.l.b16 %v567
        %v863 = vunpack.c.l.b16 %v568
        %v864 = vpack.c.b16 %v801, %v800
        %v865 = vpack.c.b16 %v803, %v802
        %v866 = vpack.c.b16 %v805, %v804
        %v867 = vpack.c.b16 %v807, %v806
        %v868 = vpack.c.b16 %v809, %v808
        %v869 = vpack.c.b16 %v811, %v810
        %v870 = vpack.c.b16 %v813, %v812
        %v871 = vpack.c.b16 %v815, %v814
        %v872 = vpack.c.b16 %v817, %v816
        %v873 = vpack.c.b16 %v819, %v818
        %v874 = vpack.c.b16 %v821, %v820
        %v875 = vpack.c.b16 %v823, %v822
        %v876 = vpack.c.b16 %v825, %v824
        %v877 = vpack.c.b16 %v827, %v826
        %v878 = vpack.c.b16 %v829, %v828
        %v879 = vpack.c.b16 %v831, %v830
        %v880 = vpack.c.b16 %v833, %v832
        %v881 = vpack.c.b16 %v835, %v834
        %v882 = vpack.c.b16 %v837, %v836
        %v883 = vpack.c.b16 %v839, %v838
        %v884 = vpack.c.b16 %v841, %v840
        %v885 = vpack.c.b16 %v843, %v842
        %v886 = vpack.c.b16 %v845, %v844
        %v887 = vpack.c.b16 %v847, %v846
        %v888 = vpack.c.b16 %v849, %v848
        %v889 = vpack.c.b16 %v851, %v850
        %v890 = vpack.c.b16 %v853, %v852
        %v891 = vpack.c.b16 %v855, %v854
        %v892 = vpack.c.b16 %v857, %v856
        %v893 = vpack.c.b16 %v859, %v858
        %v894 = vpack.c.b16 %v861, %v860
        %v895 = vpack.c.b16 %v863, %v862
        %928 = vmatprep.subr.bf16.mxu0 0
        %929 = vmatpush1.bf16.msra.mxu0 %v864
        %930 = vmatprep.subr.bf16.mxu0 0
        %931 = vmatpush1.bf16.msra.mxu0 %v865
        %932 = vmatprep.subr.bf16.mxu0 0
        %933 = vmatpush1.bf16.msra.mxu0 %v866
        %934 = vmatprep.subr.bf16.mxu0 0
        %935 = vmatpush1.bf16.msra.mxu0 %v867
        %936 = vmatprep.subr.bf16.mxu0 0
        %937 = vmatpush1.bf16.msra.mxu0 %v868
        %938 = vmatprep.subr.bf16.mxu0 0
        %939 = vmatpush1.bf16.msra.mxu0 %v869
        %940 = vmatprep.subr.bf16.mxu0 0
        %941 = vmatpush1.bf16.msra.mxu0 %v870
        %942 = vmatprep.subr.bf16.mxu0 0
        %943 = vmatpush1.bf16.msra.mxu0 %v871
        %944 = vmatprep.subr.bf16.mxu0 0
        %945 = vmatpush1.bf16.msra.mxu0 %v872
        %946 = vmatprep.subr.bf16.mxu0 0
        %947 = vmatpush1.bf16.msra.mxu0 %v873
        %948 = vmatprep.subr.bf16.mxu0 0
        %949 = vmatpush1.bf16.msra.mxu0 %v874
        %950 = vmatprep.subr.bf16.mxu0 0
        %951 = vmatpush1.bf16.msra.mxu0 %v875
        %952 = vmatprep.subr.bf16.mxu0 0
        %953 = vmatpush1.bf16.msra.mxu0 %v876
        %954 = vmatprep.subr.bf16.mxu0 0
        %955 = vmatpush1.bf16.msra.mxu0 %v877
        %956 = vmatprep.subr.bf16.mxu0 0
        %957 = vmatpush1.bf16.msra.mxu0 %v878
        %958 = vmatprep.subr.bf16.mxu0 0
        %959 = vmatpush1.bf16.msra.mxu0 %v879
        %960 = vmatprep.mubr.bf16.mxu0 %v673
        %961 = vmatmul.mubr.bf16.gmra.mrb[0].mxu0 %v672
        %v962 = vpop.f32.mrb[0].mxu0
        %v963 = vadd.f32 %v574, %v962
        %v964 = vpop.f32.mrb[0].mxu0
        %v965 = vpop.f32.mrb[0].mxu0
        %v966 = vadd.f32 %v574, %v965
        %v967 = vpop.f32.mrb[0].mxu0
        %968 = vmatprep.mubr.bf16.mxu0 %v677
        %969 = vmatmul.mubr.bf16.gmra.mrb[0].mxu0 %v676
        %v970 = vpop.f32.mrb[0].mxu0
        %v971 = vadd.f32 %v574, %v970
        %v972 = vpop.f32.mrb[0].mxu0
        %v973 = vpop.f32.mrb[0].mxu0
        %v974 = vadd.f32 %v574, %v973
        %v975 = vpop.f32.mrb[0].mxu0
        %976 = vmatprep.mubr.bf16.mxu0 %v681
        %977 = vmatmul.mubr.bf16.gmra.mrb[0].mxu0 %v680
        %v978 = vpop.f32.mrb[0].mxu0
        %v979 = vadd.f32 %v574, %v978
        %v980 = vpop.f32.mrb[0].mxu0
        %v981 = vpop.f32.mrb[0].mxu0
        %v982 = vadd.f32 %v574, %v981
        %v983 = vpop.f32.mrb[0].mxu0
        %984 = vmatprep.mubr.bf16.mxu0 %v685
        %985 = vmatmul.mubr.bf16.gmra.mrb[0].mxu0 %v684
        %v986 = vpop.f32.mrb[0].mxu0
        %v987 = vadd.f32 %v574, %v986
        %v988 = vpop.f32.mrb[0].mxu0
        %v989 = vpop.f32.mrb[0].mxu0
        %v990 = vadd.f32 %v574, %v989
        %v991 = vpop.f32.mrb[0].mxu0
        %992 = vmatprep.mubr.bf16.mxu0 %v689
        %993 = vmatmul.mubr.bf16.gmra.mrb[0].mxu0 %v688
        %v994 = vpop.f32.mrb[0].mxu0
        %v995 = vadd.f32 %v574, %v994
        %v996 = vpop.f32.mrb[0].mxu0
        %v997 = vpop.f32.mrb[0].mxu0
        %v998 = vadd.f32 %v574, %v997
        %v999 = vpop.f32.mrb[0].mxu0
        %1000 = vmatprep.mubr.bf16.mxu0 %v693
        %1001 = vmatmul.mubr.bf16.gmra.mrb[0].mxu0 %v692
        %v1002 = vpop.f32.mrb[0].mxu0
        %v1003 = vadd.f32 %v574, %v1002
        %v1004 = vpop.f32.mrb[0].mxu0
        %v1005 = vpop.f32.mrb[0].mxu0
        %v1006 = vadd.f32 %v574, %v1005
        %v1007 = vpop.f32.mrb[0].mxu0
        %1008 = vmatprep.mubr.bf16.mxu0 %v697
        %1009 = vmatmul.mubr.bf16.gmra.mrb[0].mxu0 %v696
        %v1010 = vpop.f32.mrb[0].mxu0
        %v1011 = vadd.f32 %v574, %v1010
        %v1012 = vpop.f32.mrb[0].mxu0
        %v1013 = vpop.f32.mrb[0].mxu0
        %v1014 = vadd.f32 %v574, %v1013
        %v1015 = vpop.f32.mrb[0].mxu0
        %1016 = vmatprep.mubr.bf16.mxu0 %v701
        %1017 = vmatmul.mubr.bf16.gmra.mrb[0].mxu0 %v700
        %v1018 = vpop.f32.mrb[0].mxu0
        %v1019 = vadd.f32 %v574, %v1018
        %v1020 = vpop.f32.mrb[0].mxu0
        %v1021 = vpop.f32.mrb[0].mxu0
        %v1022 = vadd.f32 %v574, %v1021
        %v1023 = vpop.f32.mrb[0].mxu0
        %1024 = vdwg.mxu0
        %1025 = vmatprep.subr.bf16.mxu0 0
        %1026 = vmatpush1.bf16.msra.mxu0 %v880
        %1027 = vmatprep.subr.bf16.mxu0 0
        %1028 = vmatpush1.bf16.msra.mxu0 %v881
        %1029 = vmatprep.subr.bf16.mxu0 0
        %1030 = vmatpush1.bf16.msra.mxu0 %v882
        %1031 = vmatprep.subr.bf16.mxu0 0
        %1032 = vmatpush1.bf16.msra.mxu0 %v883
        %1033 = vmatprep.subr.bf16.mxu0 0
        %1034 = vmatpush1.bf16.msra.mxu0 %v884
        %1035 = vmatprep.subr.bf16.mxu0 0
        %1036 = vmatpush1.bf16.msra.mxu0 %v885
        %1037 = vmatprep.subr.bf16.mxu0 0
        %1038 = vmatpush1.bf16.msra.mxu0 %v886
        %1039 = vmatprep.subr.bf16.mxu0 0
        %1040 = vmatpush1.bf16.msra.mxu0 %v887
        %1041 = vmatprep.subr.bf16.mxu0 0
        %1042 = vmatpush1.bf16.msra.mxu0 %v888
        %1043 = vmatprep.subr.bf16.mxu0 0
        %1044 = vmatpush1.bf16.msra.mxu0 %v889
        %1045 = vmatprep.subr.bf16.mxu0 0
        %1046 = vmatpush1.bf16.msra.mxu0 %v890
        %1047 = vmatprep.subr.bf16.mxu0 0
        %1048 = vmatpush1.bf16.msra.mxu0 %v891
        %1049 = vmatprep.subr.bf16.mxu0 0
        %1050 = vmatpush1.bf16.msra.mxu0 %v892
        %1051 = vmatprep.subr.bf16.mxu0 0
        %1052 = vmatpush1.bf16.msra.mxu0 %v893
        %1053 = vmatprep.subr.bf16.mxu0 0
        %1054 = vmatpush1.bf16.msra.mxu0 %v894
        %1055 = vmatprep.subr.bf16.mxu0 0
        %1056 = vmatpush1.bf16.msra.mxu0 %v895
        %1057 = vmatprep.mubr.bf16.mxu0 %v675
        %1058 = vmatmul.mubr.bf16.gmra.mrb[0].mxu0 %v674
        %v1059 = vpop.f32.mrb[0].mxu0
        %v1060 = vadd.f32 %v963, %v1059
        %v1061 = vpop.f32.mrb[0].mxu0
        %v1062 = vpop.f32.mrb[0].mxu0
        %v1063 = vadd.f32 %v966, %v1062
        %v1064 = vpop.f32.mrb[0].mxu0
        %1065 = vmatprep.mubr.bf16.mxu0 %v679
        %1066 = vmatmul.mubr.bf16.gmra.mrb[0].mxu0 %v678
        %v1067 = vpop.f32.mrb[0].mxu0
        %v1068 = vadd.f32 %v971, %v1067
        %v1069 = vpop.f32.mrb[0].mxu0
        %v1070 = vpop.f32.mrb[0].mxu0
        %v1071 = vadd.f32 %v974, %v1070
        %v1072 = vpop.f32.mrb[0].mxu0
        %1073 = vmatprep.mubr.bf16.mxu0 %v683
        %1074 = vmatmul.mubr.bf16.gmra.mrb[0].mxu0 %v682
        %v1075 = vpop.f32.mrb[0].mxu0
        %v1076 = vadd.f32 %v979, %v1075
        %v1077 = vpop.f32.mrb[0].mxu0
        %v1078 = vpop.f32.mrb[0].mxu0
        %v1079 = vadd.f32 %v982, %v1078
        %v1080 = vpop.f32.mrb[0].mxu0
        %1081 = vmatprep.mubr.bf16.mxu0 %v687
        %1082 = vmatmul.mubr.bf16.gmra.mrb[0].mxu0 %v686
        %v1083 = vpop.f32.mrb[0].mxu0
        %v1084 = vadd.f32 %v987, %v1083
        %v1085 = vpop.f32.mrb[0].mxu0
        %v1086 = vpop.f32.mrb[0].mxu0
        %v1087 = vadd.f32 %v990, %v1086
        %v1088 = vpop.f32.mrb[0].mxu0
        %1089 = vmatprep.mubr.bf16.mxu0 %v691
        %1090 = vmatmul.mubr.bf16.gmra.mrb[0].mxu0 %v690
        %v1091 = vpop.f32.mrb[0].mxu0
        %v1092 = vadd.f32 %v995, %v1091
        %v1093 = vpop.f32.mrb[0].mxu0
        %v1094 = vpop.f32.mrb[0].mxu0
        %v1095 = vadd.f32 %v998, %v1094
        %v1096 = vpop.f32.mrb[0].mxu0
        %1097 = vmatprep.mubr.bf16.mxu0 %v695
        %1098 = vmatmul.mubr.bf16.gmra.mrb[0].mxu0 %v694
        %v1099 = vpop.f32.mrb[0].mxu0
        %v1100 = vadd.f32 %v1003, %v1099
        %v1101 = vpop.f32.mrb[0].mxu0
        %v1102 = vpop.f32.mrb[0].mxu0
        %v1103 = vadd.f32 %v1006, %v1102
        %v1104 = vpop.f32.mrb[0].mxu0
        %1105 = vmatprep.mubr.bf16.mxu0 %v699
        %1106 = vmatmul.mubr.bf16.gmra.mrb[0].mxu0 %v698
        %v1107 = vpop.f32.mrb[0].mxu0
        %v1108 = vadd.f32 %v1011, %v1107
        %v1109 = vpop.f32.mrb[0].mxu0
        %v1110 = vpop.f32.mrb[0].mxu0
        %v1111 = vadd.f32 %v1014, %v1110
        %v1112 = vpop.f32.mrb[0].mxu0
        %1113 = vmatprep.mubr.bf16.mxu0 %v703
        %1114 = vmatmul.mubr.bf16.gmra.mrb[0].mxu0 %v702
        %v1115 = vpop.f32.mrb[0].mxu0
        %v1116 = vadd.f32 %v1019, %v1115
        %v1117 = vpop.f32.mrb[0].mxu0
        %v1118 = vpop.f32.mrb[0].mxu0
        %v1119 = vadd.f32 %v1022, %v1118
        %v1120 = vpop.f32.mrb[0].mxu0
        %1121 = vdwg.mxu0
        %v1122 = vmax.f32 %v1060, 0.0
        %v1123 = vmax.f32 %v1063, 0.0
        %v1124 = vmax.f32 %v1068, 0.0
        %v1125 = vmax.f32 %v1071, 0.0
        %v1126 = vmax.f32 %v1076, 0.0
        %v1127 = vmax.f32 %v1079, 0.0
        %v1128 = vmax.f32 %v1084, 0.0
        %v1129 = vmax.f32 %v1087, 0.0
        %v1130 = vmax.f32 %v1092, 0.0
        %v1131 = vmax.f32 %v1095, 0.0
        %v1132 = vmax.f32 %v1100, 0.0
        %v1133 = vmax.f32 %v1103, 0.0
        %v1134 = vmax.f32 %v1108, 0.0
        %v1135 = vmax.f32 %v1111, 0.0
        %v1136 = vmax.f32 %v1116, 0.0
        %v1137 = vmax.f32 %v1119, 0.0
        %v1138 = vld [vmem:[%s400] sm:$0xf]
        %v1139 = vld [vmem:[%s400 + $0x4] sm:$0xf]
        %v1140 = vld [vmem:[%s400 + $0x8] sm:$0xf]
        %v1141 = vld [vmem:[%s400 + $0xc] sm:$0xf]
        %v1142 = vld [vmem:[%s400 + $0x10] sm:$0xf]
        %v1143 = vld [vmem:[%s400 + $0x14] sm:$0xf]
        %v1144 = vld [vmem:[%s400 + $0x18] sm:$0xf]
        %v1145 = vld [vmem:[%s400 + $0x1c] sm:$0xf]
        %v1146 = vld [vmem:[%s400 + $0x20] sm:$0xf]
        %v1147 = vld [vmem:[%s400 + $0x24] sm:$0xf]
        %v1148 = vld [vmem:[%s400 + $0x28] sm:$0xf]
        %v1149 = vld [vmem:[%s400 + $0x2c] sm:$0xf]
        %v1150 = vld [vmem:[%s400 + $0x30] sm:$0xf]
        %v1151 = vld [vmem:[%s400 + $0x34] sm:$0xf]
        %v1152 = vld [vmem:[%s400 + $0x38] sm:$0xf]
        %v1153 = vld [vmem:[%s400 + $0x3c] sm:$0xf]
        %v1154 = vunpack.c.l.bf16 %v1138
        %v1155 = vunpack.c.l.bf16 %v1139
        %v1156 = vunpack.c.l.bf16 %v1140
        %v1157 = vunpack.c.l.bf16 %v1141
        %v1158 = vunpack.c.l.bf16 %v1142
        %v1159 = vunpack.c.l.bf16 %v1143
        %v1160 = vunpack.c.l.bf16 %v1144
        %v1161 = vunpack.c.l.bf16 %v1145
        %v1162 = vunpack.c.l.bf16 %v1146
        %v1163 = vunpack.c.l.bf16 %v1147
        %v1164 = vunpack.c.l.bf16 %v1148
        %v1165 = vunpack.c.l.bf16 %v1149
        %v1166 = vunpack.c.l.bf16 %v1150
        %v1167 = vunpack.c.l.bf16 %v1151
        %v1168 = vunpack.c.l.bf16 %v1152
        %v1169 = vunpack.c.l.bf16 %v1153
        %v1170 = vpack.c.bf16 %v1123, %v1122
        %v1171 = vpack.c.bf16 %v1125, %v1124
        %v1172 = vpack.c.bf16 %v1127, %v1126
        %v1173 = vpack.c.bf16 %v1129, %v1128
        %v1174 = vpack.c.bf16 %v1131, %v1130
        %v1175 = vpack.c.bf16 %v1133, %v1132
        %v1176 = vpack.c.bf16 %v1135, %v1134
        %v1177 = vpack.c.bf16 %v1137, %v1136
        %v1178 = vld [vmem:[#allocation10] sm:$0xf]
        %v1179 = vld [vmem:[#allocation10 + $0x4] sm:$0xf]
        %v1180 = vld [vmem:[#allocation10 + $0x8] sm:$0xf]
        %v1181 = vld [vmem:[#allocation10 + $0xc] sm:$0xf]
        %v1182 = vld [vmem:[#allocation10 + $0x10] sm:$0xf]
        %v1183 = vld [vmem:[#allocation10 + $0x14] sm:$0xf]
        %v1184 = vld [vmem:[#allocation10 + $0x18] sm:$0xf]
        %v1185 = vld [vmem:[#allocation10 + $0x1c] sm:$0xf]
        %v1186 = vld [vmem:[#allocation10 + $0x20] sm:$0xf]
        %v1187 = vld [vmem:[#allocation10 + $0x24] sm:$0xf]
        %v1188 = vld [vmem:[#allocation10 + $0x28] sm:$0xf]
        %v1189 = vld [vmem:[#allocation10 + $0x2c] sm:$0xf]
        %v1190 = vld [vmem:[#allocation10 + $0x30] sm:$0xf]
        %v1191 = vld [vmem:[#allocation10 + $0x34] sm:$0xf]
        %v1192 = vld [vmem:[#allocation10 + $0x38] sm:$0xf]
        %v1193 = vld [vmem:[#allocation10 + $0x3c] sm:$0xf]
        %v1210 = vunpack.c.l.b16 %v1178
        %v1211 = vunpack.c.l.b16 %v1179
        %v1212 = vunpack.c.l.b16 %v1180
        %v1213 = vunpack.c.l.b16 %v1181
        %v1214 = vunpack.c.l.b16 %v1182
        %v1215 = vunpack.c.l.b16 %v1183
        %v1216 = vunpack.c.l.b16 %v1184
        %v1217 = vunpack.c.l.b16 %v1185
        %v1218 = vunpack.c.l.b16 %v1186
        %v1219 = vunpack.c.l.b16 %v1187
        %v1220 = vunpack.c.l.b16 %v1188
        %v1221 = vunpack.c.l.b16 %v1189
        %v1222 = vunpack.c.l.b16 %v1190
        %v1223 = vunpack.c.l.b16 %v1191
        %v1224 = vunpack.c.l.b16 %v1192
        %v1225 = vunpack.c.l.b16 %v1193
        %v1226 = vpack.c.b16 %v1211, %v1210
        %v1227 = vpack.c.b16 %v1213, %v1212
        %v1228 = vpack.c.b16 %v1215, %v1214
        %v1229 = vpack.c.b16 %v1217, %v1216
        %v1230 = vpack.c.b16 %v1219, %v1218
        %v1231 = vpack.c.b16 %v1221, %v1220
        %v1232 = vpack.c.b16 %v1223, %v1222
        %v1233 = vpack.c.b16 %v1225, %v1224
        %1242 = vmatprep.subr.bf16.mxu0 0
        %1243 = vmatpush1.bf16.msra.mxu0 %v1226
        %1244 = vmatprep.subr.bf16.mxu0 0
        %1245 = vmatpush1.bf16.msra.mxu0 %v1227
        %1246 = vmatprep.subr.bf16.mxu0 0
        %1247 = vmatpush1.bf16.msra.mxu0 %v1228
        %1248 = vmatprep.subr.bf16.mxu0 0
        %1249 = vmatpush1.bf16.msra.mxu0 %v1229
        %1250 = vmatprep.subr.bf16.mxu0 0
        %1251 = vmatpush1.bf16.msra.mxu0 %v1230
        %1252 = vmatprep.subr.bf16.mxu0 0
        %1253 = vmatpush1.bf16.msra.mxu0 %v1231
        %1254 = vmatprep.subr.bf16.mxu0 0
        %1255 = vmatpush1.bf16.msra.mxu0 %v1232
        %1256 = vmatprep.subr.bf16.mxu0 0
        %1257 = vmatpush1.bf16.msra.mxu0 %v1233
        %1258 = vmatprep.subr.bf16.mxu0 0
        %1259 = vmatpush1.bf16.msra.mxu0 0
        %1260 = vmatprep.subr.bf16.mxu0 0
        %1261 = vmatpush1.bf16.msra.mxu0 0
        %1262 = vmatprep.subr.bf16.mxu0 0
        %1263 = vmatpush1.bf16.msra.mxu0 0
        %1264 = vmatprep.subr.bf16.mxu0 0
        %1265 = vmatpush1.bf16.msra.mxu0 0
        %1266 = vmatprep.subr.bf16.mxu0 0
        %1267 = vmatpush1.bf16.msra.mxu0 0
        %1268 = vmatprep.subr.bf16.mxu0 0
        %1269 = vmatpush1.bf16.msra.mxu0 0
        %1270 = vmatprep.subr.bf16.mxu0 0
        %1271 = vmatpush1.bf16.msra.mxu0 0
        %1272 = vmatprep.subr.bf16.mxu0 0
        %1273 = vmatpush1.bf16.msra.mxu0 0
        %1274 = vmatprep.mubr.bf16.mxu0 0
        %1275 = vmatmul.mubr.bf16.gmra.mrb[0].mxu0 %v1170
        %v1276 = vpop.f32.mrb[0].mxu0
        %v1277 = vadd.f32 0.0, %v1276
        %v1278 = vpop.f32.mrb[0].mxu0
        %v1279 = vpop.f32.mrb[0].mxu0
        %v1280 = vadd.f32 0.0, %v1279
        %v1281 = vpop.f32.mrb[0].mxu0
        %1282 = vmatprep.mubr.bf16.mxu0 0
        %1283 = vmatmul.mubr.bf16.gmra.mrb[0].mxu0 %v1171
        %v1284 = vpop.f32.mrb[0].mxu0
        %v1285 = vadd.f32 0.0, %v1284
        %v1286 = vpop.f32.mrb[0].mxu0
        %v1287 = vpop.f32.mrb[0].mxu0
        %v1288 = vadd.f32 0.0, %v1287
        %v1289 = vpop.f32.mrb[0].mxu0
        %1290 = vmatprep.mubr.bf16.mxu0 0
        %1291 = vmatmul.mubr.bf16.gmra.mrb[0].mxu0 %v1172
        %v1292 = vpop.f32.mrb[0].mxu0
        %v1293 = vadd.f32 0.0, %v1292
        %v1294 = vpop.f32.mrb[0].mxu0
        %v1295 = vpop.f32.mrb[0].mxu0
        %v1296 = vadd.f32 0.0, %v1295
        %v1297 = vpop.f32.mrb[0].mxu0
        %1298 = vmatprep.mubr.bf16.mxu0 0
        %1299 = vmatmul.mubr.bf16.gmra.mrb[0].mxu0 %v1173
        %v1300 = vpop.f32.mrb[0].mxu0
        %v1301 = vadd.f32 0.0, %v1300
        %v1302 = vpop.f32.mrb[0].mxu0
        %v1303 = vpop.f32.mrb[0].mxu0
        %v1304 = vadd.f32 0.0, %v1303
        %v1305 = vpop.f32.mrb[0].mxu0
        %1306 = vmatprep.mubr.bf16.mxu0 0
        %1307 = vmatmul.mubr.bf16.gmra.mrb[0].mxu0 %v1174
        %v1308 = vpop.f32.mrb[0].mxu0
        %v1309 = vadd.f32 0.0, %v1308
        %v1310 = vpop.f32.mrb[0].mxu0
        %v1311 = vpop.f32.mrb[0].mxu0
        %v1312 = vadd.f32 0.0, %v1311
        %v1313 = vpop.f32.mrb[0].mxu0
        %1314 = vmatprep.mubr.bf16.mxu0 0
        %1315 = vmatmul.mubr.bf16.gmra.mrb[0].mxu0 %v1175
        %v1316 = vpop.f32.mrb[0].mxu0
        %v1317 = vadd.f32 0.0, %v1316
        %v1318 = vpop.f32.mrb[0].mxu0
        %v1319 = vpop.f32.mrb[0].mxu0
        %v1320 = vadd.f32 0.0, %v1319
        %v1321 = vpop.f32.mrb[0].mxu0
        %1322 = vmatprep.mubr.bf16.mxu0 0
        %1323 = vmatmul.mubr.bf16.gmra.mrb[0].mxu0 %v1176
        %v1324 = vpop.f32.mrb[0].mxu0
        %v1325 = vadd.f32 0.0, %v1324
        %v1326 = vpop.f32.mrb[0].mxu0
        %v1327 = vpop.f32.mrb[0].mxu0
        %v1328 = vadd.f32 0.0, %v1327
        %v1329 = vpop.f32.mrb[0].mxu0
        %1330 = vmatprep.mubr.bf16.mxu0 0
        %1331 = vmatmul.mubr.bf16.gmra.mrb[0].mxu0 %v1177
        %v1332 = vpop.f32.mrb[0].mxu0
        %v1333 = vadd.f32 0.0, %v1332
        %v1334 = vpop.f32.mrb[0].mxu0
        %v1335 = vpop.f32.mrb[0].mxu0
        %v1336 = vadd.f32 0.0, %v1335
        %v1337 = vpop.f32.mrb[0].mxu0
        %1338 = vdwg.mxu0
        %v1339 = vadd.f32 %v1154, %v1277
        %v1340 = vadd.f32 %v1155, %v1280
        %v1341 = vadd.f32 %v1156, %v1285
        %v1342 = vadd.f32 %v1157, %v1288
        %v1343 = vadd.f32 %v1158, %v1293
        %v1344 = vadd.f32 %v1159, %v1296
        %v1345 = vadd.f32 %v1160, %v1301
        %v1346 = vadd.f32 %v1161, %v1304
        %v1347 = vadd.f32 %v1162, %v1309
        %v1348 = vadd.f32 %v1163, %v1312
        %v1349 = vadd.f32 %v1164, %v1317
        %v1350 = vadd.f32 %v1165, %v1320
        %v1351 = vadd.f32 %v1166, %v1325
        %v1352 = vadd.f32 %v1167, %v1328
        %v1353 = vadd.f32 %v1168, %v1333
        %v1354 = vadd.f32 %v1169, %v1336
        %v1355 = vmax.f32 %v1339, 0.0
        %v1356 = vmax.f32 %v1340, 0.0
        %v1357 = vmax.f32 %v1341, 0.0
        %v1358 = vmax.f32 %v1342, 0.0
        %v1359 = vmax.f32 %v1343, 0.0
        %v1360 = vmax.f32 %v1344, 0.0
        %v1361 = vmax.f32 %v1345, 0.0
        %v1362 = vmax.f32 %v1346, 0.0
        %v1363 = vmax.f32 %v1347, 0.0
        %v1364 = vmax.f32 %v1348, 0.0
        %v1365 = vmax.f32 %v1349, 0.0
        %v1366 = vmax.f32 %v1350, 0.0
        %v1367 = vmax.f32 %v1351, 0.0
        %v1368 = vmax.f32 %v1352, 0.0
        %v1369 = vmax.f32 %v1353, 0.0
        %v1370 = vmax.f32 %v1354, 0.0
        %v1371 = vpack.c.bf16 %v1356, %v1355
        %v1372 = vpack.c.bf16 %v1358, %v1357
        %v1373 = vpack.c.bf16 %v1360, %v1359
        %v1374 = vpack.c.bf16 %v1362, %v1361
        %v1375 = vpack.c.bf16 %v1364, %v1363
        %v1376 = vpack.c.bf16 %v1366, %v1365
        %v1377 = vpack.c.bf16 %v1368, %v1367
        %v1378 = vpack.c.bf16 %v1370, %v1369
        %v1379 = vld [vmem:[#allocation12] sm:$0xf]
        %v1380 = vld [vmem:[#allocation12 + $0x4] sm:$0xf]
        %v1381 = vld [vmem:[#allocation12 + $0x8] sm:$0xf]
        %v1382 = vld [vmem:[#allocation12 + $0xc] sm:$0xf]
        %v1383 = vld [vmem:[#allocation12 + $0x10] sm:$0xf]
        %v1384 = vld [vmem:[#allocation12 + $0x14] sm:$0xf]
        %v1385 = vld [vmem:[#allocation12 + $0x18] sm:$0xf]
        %v1386 = vld [vmem:[#allocation12 + $0x1c] sm:$0xf]
        %v1387 = vld [vmem:[#allocation12 + $0x20] sm:$0xf]
        %v1388 = vld [vmem:[#allocation12 + $0x24] sm:$0xf]
        %v1389 = vld [vmem:[#allocation12 + $0x28] sm:$0xf]
        %v1390 = vld [vmem:[#allocation12 + $0x2c] sm:$0xf]
        %v1391 = vld [vmem:[#allocation12 + $0x30] sm:$0xf]
        %v1392 = vld [vmem:[#allocation12 + $0x34] sm:$0xf]
        %v1393 = vld [vmem:[#allocation12 + $0x38] sm:$0xf]
        %v1394 = vld [vmem:[#allocation12 + $0x3c] sm:$0xf]
        %v1395 = vld [vmem:[#allocation13] sm:$0x1]
        %v1397 = vlaneseq
        %v1398 = vshrl.u32 %v1397, 7
        %v1399 = vsub.s32 0, %v1398
        %v1400 = vrot.slane %v1395, %v1399
        %v1418 = vunpack.c.l.b16 %v1379
        %v1419 = vunpack.c.l.b16 %v1380
        %v1420 = vunpack.c.l.b16 %v1381
        %v1421 = vunpack.c.l.b16 %v1382
        %v1422 = vunpack.c.l.b16 %v1383
        %v1423 = vunpack.c.l.b16 %v1384
        %v1424 = vunpack.c.l.b16 %v1385
        %v1425 = vunpack.c.l.b16 %v1386
        %v1426 = vunpack.c.l.b16 %v1387
        %v1427 = vunpack.c.l.b16 %v1388
        %v1428 = vunpack.c.l.b16 %v1389
        %v1429 = vunpack.c.l.b16 %v1390
        %v1430 = vunpack.c.l.b16 %v1391
        %v1431 = vunpack.c.l.b16 %v1392
        %v1432 = vunpack.c.l.b16 %v1393
        %v1433 = vunpack.c.l.b16 %v1394
        %v1434 = vpack.c.b16 %v1419, %v1418
        %v1435 = vpack.c.b16 %v1421, %v1420
        %v1436 = vpack.c.b16 %v1423, %v1422
        %v1437 = vpack.c.b16 %v1425, %v1424
        %v1438 = vpack.c.b16 %v1427, %v1426
        %v1439 = vpack.c.b16 %v1429, %v1428
        %v1440 = vpack.c.b16 %v1431, %v1430
        %v1441 = vpack.c.b16 %v1433, %v1432
        %1450 = vmatprep.subr.bf16.mxu0 0
        %1451 = vmatpush1.bf16.msra.mxu0 %v1434
        %1452 = vmatprep.subr.bf16.mxu0 0
        %1453 = vmatpush1.bf16.msra.mxu0 %v1435
        %1454 = vmatprep.subr.bf16.mxu0 0
        %1455 = vmatpush1.bf16.msra.mxu0 %v1436
        %1456 = vmatprep.subr.bf16.mxu0 0
        %1457 = vmatpush1.bf16.msra.mxu0 %v1437
        %1458 = vmatprep.subr.bf16.mxu0 0
        %1459 = vmatpush1.bf16.msra.mxu0 %v1438
        %1460 = vmatprep.subr.bf16.mxu0 0
        %1461 = vmatpush1.bf16.msra.mxu0 %v1439
        %1462 = vmatprep.subr.bf16.mxu0 0
        %1463 = vmatpush1.bf16.msra.mxu0 %v1440
        %1464 = vmatprep.subr.bf16.mxu0 0
        %1465 = vmatpush1.bf16.msra.mxu0 %v1441
        %1466 = vmatprep.subr.bf16.mxu0 0
        %1467 = vmatpush1.bf16.msra.mxu0 0
        %1468 = vmatprep.subr.bf16.mxu0 0
        %1469 = vmatpush1.bf16.msra.mxu0 0
        %1470 = vmatprep.subr.bf16.mxu0 0
        %1471 = vmatpush1.bf16.msra.mxu0 0
        %1472 = vmatprep.subr.bf16.mxu0 0
        %1473 = vmatpush1.bf16.msra.mxu0 0
        %1474 = vmatprep.subr.bf16.mxu0 0
        %1475 = vmatpush1.bf16.msra.mxu0 0
        %1476 = vmatprep.subr.bf16.mxu0 0
        %1477 = vmatpush1.bf16.msra.mxu0 0
        %1478 = vmatprep.subr.bf16.mxu0 0
        %1479 = vmatpush1.bf16.msra.mxu0 0
        %1480 = vmatprep.subr.bf16.mxu0 0
        %1481 = vmatpush1.bf16.msra.mxu0 0
        %1482 = vmatprep.mubr.bf16.mxu0 0
        %1483 = vmatmul.mubr.bf16.gmra.mrb[0].mxu0 %v1371
        %v1484 = vpop.f32.mrb[0].mxu0
        %v1485 = vadd.f32 %v1400, %v1484
        %v1486 = vpop.f32.mrb[0].mxu0
        %v1487 = vpop.f32.mrb[0].mxu0
        %v1488 = vadd.f32 %v1400, %v1487
        %v1489 = vpop.f32.mrb[0].mxu0
        %1490 = vmatprep.mubr.bf16.mxu0 0
        %1491 = vmatmul.mubr.bf16.gmra.mrb[0].mxu0 %v1372
        %v1492 = vpop.f32.mrb[0].mxu0
        %v1493 = vadd.f32 %v1400, %v1492
        %v1494 = vpop.f32.mrb[0].mxu0
        %v1495 = vpop.f32.mrb[0].mxu0
        %v1496 = vadd.f32 %v1400, %v1495
        %v1497 = vpop.f32.mrb[0].mxu0
        %1498 = vmatprep.mubr.bf16.mxu0 0
        %1499 = vmatmul.mubr.bf16.gmra.mrb[0].mxu0 %v1373
        %v1500 = vpop.f32.mrb[0].mxu0
        %v1501 = vadd.f32 %v1400, %v1500
        %v1502 = vpop.f32.mrb[0].mxu0
        %v1503 = vpop.f32.mrb[0].mxu0
        %v1504 = vadd.f32 %v1400, %v1503
        %v1505 = vpop.f32.mrb[0].mxu0
        %1506 = vmatprep.mubr.bf16.mxu0 0
        %1507 = vmatmul.mubr.bf16.gmra.mrb[0].mxu0 %v1374
        %v1508 = vpop.f32.mrb[0].mxu0
        %v1509 = vadd.f32 %v1400, %v1508
        %v1510 = vpop.f32.mrb[0].mxu0
        %v1511 = vpop.f32.mrb[0].mxu0
        %v1512 = vadd.f32 %v1400, %v1511
        %v1513 = vpop.f32.mrb[0].mxu0
        %1514 = vmatprep.mubr.bf16.mxu0 0
        %1515 = vmatmul.mubr.bf16.gmra.mrb[0].mxu0 %v1375
        %v1516 = vpop.f32.mrb[0].mxu0
        %v1517 = vadd.f32 %v1400, %v1516
        %v1518 = vpop.f32.mrb[0].mxu0
        %v1519 = vpop.f32.mrb[0].mxu0
        %v1520 = vadd.f32 %v1400, %v1519
        %v1521 = vpop.f32.mrb[0].mxu0
        %1522 = vmatprep.mubr.bf16.mxu0 0
        %1523 = vmatmul.mubr.bf16.gmra.mrb[0].mxu0 %v1376
        %v1524 = vpop.f32.mrb[0].mxu0
        %v1525 = vadd.f32 %v1400, %v1524
        %v1526 = vpop.f32.mrb[0].mxu0
        %v1527 = vpop.f32.mrb[0].mxu0
        %v1528 = vadd.f32 %v1400, %v1527
        %v1529 = vpop.f32.mrb[0].mxu0
        %1530 = vmatprep.mubr.bf16.mxu0 0
        %1531 = vmatmul.mubr.bf16.gmra.mrb[0].mxu0 %v1377
        %v1532 = vpop.f32.mrb[0].mxu0
        %v1533 = vadd.f32 %v1400, %v1532
        %v1534 = vpop.f32.mrb[0].mxu0
        %v1535 = vpop.f32.mrb[0].mxu0
        %v1536 = vadd.f32 %v1400, %v1535
        %v1537 = vpop.f32.mrb[0].mxu0
        %1538 = vmatprep.mubr.bf16.mxu0 0
        %1539 = vmatmul.mubr.bf16.gmra.mrb[0].mxu0 %v1378
        %v1540 = vpop.f32.mrb[0].mxu0
        %v1541 = vadd.f32 %v1400, %v1540
        %v1542 = vpop.f32.mrb[0].mxu0
        %v1543 = vpop.f32.mrb[0].mxu0
        %v1544 = vadd.f32 %v1400, %v1543
        %v1545 = vpop.f32.mrb[0].mxu0
        %1546 = vdwg.mxu0
        %v1547 = vld [vmem:[%s409] sm:$0xff]
        %v1548 = vld [vmem:[%s409 + $0x8] sm:$0xff]
        %v1549 = vld [vmem:[%s409 + $0x10] sm:$0xff]
        %v1550 = vld [vmem:[%s409 + $0x18] sm:$0xff]
        %v1551 = vld [vmem:[%s409 + $0x20] sm:$0xff]
        %v1552 = vld [vmem:[%s409 + $0x28] sm:$0xff]
        %v1553 = vld [vmem:[%s409 + $0x30] sm:$0xff]
        %v1554 = vld [vmem:[%s409 + $0x38] sm:$0xff]
        %v1555 = vld [vmem:[%s409 + $0x40] sm:$0xff]
        %v1556 = vld [vmem:[%s409 + $0x48] sm:$0xff]
        %v1557 = vld [vmem:[%s409 + $0x50] sm:$0xff]
        %v1558 = vld [vmem:[%s409 + $0x58] sm:$0xff]
        %v1559 = vld [vmem:[%s409 + $0x60] sm:$0xff]
        %v1560 = vld [vmem:[%s409 + $0x68] sm:$0xff]
        %v1561 = vld [vmem:[%s409 + $0x70] sm:$0xff]
        %v1562 = vld [vmem:[%s409 + $0x78] sm:$0xff]
        %v1563 = vadd.f32 %v1485, %v1547
        %v1564 = vadd.f32 %v1488, %v1548
        %v1565 = vadd.f32 %v1493, %v1549
        %v1566 = vadd.f32 %v1496, %v1550
        %v1567 = vadd.f32 %v1501, %v1551
        %v1568 = vadd.f32 %v1504, %v1552
        %v1569 = vadd.f32 %v1509, %v1553
        %v1570 = vadd.f32 %v1512, %v1554
        %v1571 = vadd.f32 %v1517, %v1555
        %v1572 = vadd.f32 %v1520, %v1556
        %v1573 = vadd.f32 %v1525, %v1557
        %v1574 = vadd.f32 %v1528, %v1558
        %v1575 = vadd.f32 %v1533, %v1559
        %v1576 = vadd.f32 %v1536, %v1560
        %v1577 = vadd.f32 %v1541, %v1561
        %v1578 = vadd.f32 %v1544, %v1562
        %1579 = vst [vmem:[%s467] sm:$0xff] %v1563
        %1580 = vst [vmem:[%s467 + $0x8] sm:$0xff] %v1564
        %1581 = vst [vmem:[%s467 + $0x10] sm:$0xff] %v1565
        %1582 = vst [vmem:[%s467 + $0x18] sm:$0xff] %v1566
        %1583 = vst [vmem:[%s467 + $0x20] sm:$0xff] %v1567
        %1584 = vst [vmem:[%s467 + $0x28] sm:$0xff] %v1568
        %1585 = vst [vmem:[%s467 + $0x30] sm:$0xff] %v1569
        %1586 = vst [vmem:[%s467 + $0x38] sm:$0xff] %v1570
        %1587 = vst [vmem:[%s467 + $0x40] sm:$0xff] %v1571
        %1588 = vst [vmem:[%s467 + $0x48] sm:$0xff] %v1572
        %1589 = vst [vmem:[%s467 + $0x50] sm:$0xff] %v1573
        %1590 = vst [vmem:[%s467 + $0x58] sm:$0xff] %v1574
        %1591 = vst [vmem:[%s467 + $0x60] sm:$0xff] %v1575
        %1592 = vst [vmem:[%s467 + $0x68] sm:$0xff] %v1576
        %1593 = vst [vmem:[%s467 + $0x70] sm:$0xff] %v1577
        %1594 = vst [vmem:[%s467 + $0x78] sm:$0xff] %v1578
        %s1595 = sand.u32 %s219, 1
        %s1596 = scalar_lea.sflag [#allocation4], %s1595
        %s1597 = sand.u32 %s219, 1
        %s1598 = smul.addr %s1597, 128
        %s1599 = scalar_lea.vmem [#allocation15], %s1598
        // Predicated region
        $region85: #{tide_block_forward.3} parent=51 // pred_check
          %p1600 = pneg %p229
        $region86: #{tide_block_forward.3} parent=51 // pred_check_branch
          %1602 = sbr.rel (%p1600) target = $region88
        $region87: #{tide_block_forward.3} parent=51 // pred_region
          %s1603 = smul.u32 16, %s28
          %s1605 = ssub.s32 2048, 2048
          %1606 = vsyncadd %s1596, %s1605
          %s1607 = smul.addr %s1603, 128
          %s1608 = scalar_lea.hbm %s8, %s1607
          %s1609 = sshll.u32 %s1599, 4
          %s1610 = int_to_ptr.vmem [resolvable:$true] %s1609
          %1615 = dma.vmem_to_hbm [thread:$0]  %s1610, 2048, %s1608, %s1596, 128, 128, 8
        $region88: #{tide_block_forward.3} parent=51 // pred_fallthru
          _
      $region52: #{tide_block_forward.3} parent=5 // pred_fallthru
        _
      %p1616 = scmp.le.s32.totalorder 2, %s23
      // Predicated region
      $region89: #{tide_block_forward.3} parent=5 // pred_check
        %p1617 = pneg %p1616
      $region90: #{tide_block_forward.3} parent=5 // pred_check_branch
        %1619 = sbr.rel (%p1617) target = $region92
      $region91: #{tide_block_forward.3} parent=5 // pred_region
        %s1620 = ssub.s32 %s23, 2
        // Predicated region
        $region93: #{tide_block_forward.3} parent=91 // pred_check
          %p1621 = pneg %p235
        $region94: #{tide_block_forward.3} parent=91 // pred_check_branch
          %1623 = sbr.rel (%p1621) target = $region96
        $region95: #{tide_block_forward.3} parent=91 // pred_region
          %s1624 = sand.u32 %s220, 1
          %s1625 = scalar_lea.sflag [#allocation4], %s1624
          %s1626 = sand.u32 %s220, 1
          %s1627 = smul.addr %s1626, 128
          %s1628 = scalar_lea.vmem [#allocation15], %s1627
          %1629 = dma.done %s1625, 2048
        $region96: #{tide_block_forward.3} parent=91 // pred_fallthru
          _
      $region92: #{tide_block_forward.3} parent=5 // pred_fallthru
        _
    $region6: #{tide_block_forward.3} parent=1 // loop_footer
      %s27 = sadd.s32 1, %s23
    $region7: #{tide_block_forward.3} parent=1 // loop_footer_branch
      %22 = sbr.rel target = $region3
    $region8: #{tide_block_forward.3} parent=1 // loop_exit
      _
    %1630 = vsyncpa [#allocation3], 1
    %s1631 = scalar_lea.sflag [#allocation3], 1
    %1632 = vsyncpa %s1631, 1
    %1633 = vsyncpa [#allocation6], 1
    %1634 = vsyncpa [#allocation11], 1
    %1635 = vsyncpa [#allocation14], 1
    %1636 = vsyncpa [#allocation4], 1
    %s1637 = scalar_lea.sflag [#allocation4], 1
    %1638 = vsyncpa %s1637, 1

</llo_original>
